<compile_context>
chip_gen: v5e
topology: v5e:2x2
jax: 0.10.0
libtpu: 0.0.40
codegen_flags: <defaults>
</compile_context>

<pallas_src>
import functools

import jax
import jax.numpy as jnp
from jax.experimental import pallas as pl
from jax.experimental.pallas import tpu as pltpu


# --------------------------------------------------------------------------
# In-kernel 9-tap conv3x3 (padding=1, stride=1) on the padded-flat layout
# --------------------------------------------------------------------------
def _conv9(src_ref, w_ref, L, Wp2):
    """Accumulate nine shifted (L, Cin) @ (Cin, Cout) tap matmuls in f32."""
    acc = None
    for di in range(3):
        for dj in range(3):
            start = (di + 1) * Wp2 + dj            # static per tap
            tap = src_ref[pl.ds(start, L), :]      # (L, Cin), VMEM slice only
            p = jnp.dot(tap, w_ref[di, dj], preferred_element_type=jnp.float32)
            acc = p if acc is None else acc + p
    return acc


def _make_level2_kernel(H, W):
    """Fused conv3x3+bias+ReLU -> conv3x3+bias+ReLU, intermediate in VMEM."""
    Wp2 = W + 2
    L = H * Wp2
    OFF = 2 * Wp2 + 1          # flat row of activation pixel (0, 0)

    def kernel(x_ref, mask_ref, wa_ref, ba_ref, wb_ref, bb_ref, o_ref, mid_ref):
        mask = mask_ref[...]                                     # (L, 1) {0,1}
        # conv A: 9 taps from the padded-flat input, f32 accumulate.
        acc_a = _conv9(x_ref, wa_ref, L, Wp2)
        val_a = jnp.maximum(acc_a + ba_ref[...], 0.0) * mask     # zero junk cols
        # Intermediate stays in VMEM, rebuilt in padded-flat layout.
        mid_ref[...] = jnp.zeros_like(mid_ref)                   # zero halo
        mid_ref[pl.ds(OFF, L), :] = val_a.astype(mid_ref.dtype)
        # conv B from the VMEM-resident intermediate.
        acc_b = _conv9(mid_ref, wb_ref, L, Wp2)
        o_ref[...] = (jnp.maximum(acc_b + bb_ref[...], 0.0) * mask).astype(
            o_ref.dtype)

    return kernel


def _make_level1_kernel(H, W):
    """Single conv3x3+bias+ReLU (last level)."""
    Wp2 = W + 2
    L = H * Wp2

    def kernel(x_ref, mask_ref, wa_ref, ba_ref, o_ref):
        mask = mask_ref[...]
        acc = _conv9(x_ref, wa_ref, L, Wp2)
        o_ref[...] = (jnp.maximum(acc + ba_ref[...], 0.0) * mask).astype(
            o_ref.dtype)

    return kernel


# --------------------------------------------------------------------------
# One FE level (one or two fused convs); returns the "extended" activation
#   (B, H, W+2, Cout) f32 with the two extra columns per row zeroed.
# --------------------------------------------------------------------------
def conv_level(x_nhwc, conv_a, conv_b=None, compute_dtype=jnp.bfloat16):
    B, H, W, Cin = x_nhwc.shape
    Wp2 = W + 2
    Rin = (H + 4) * Wp2
    L = H * Wp2
    wa, ba = conv_a
    Cmid = wa.shape[-1]

    # Layout plumbing (plain JAX): pad once (~15% extra bytes, vs 9x im2col)
    # and flatten rows; the reshape is a free bitcast.
    xpad = jnp.pad(x_nhwc, ((0, 0), (2, 2), (1, 1), (0, 0)))
    xflat = xpad.reshape(B, Rin, Cin).astype(compute_dtype)
    col = jnp.arange(L, dtype=jnp.int32) % Wp2
    mask = (col < W).astype(jnp.float32).reshape(L, 1)

    def resident(shape):
        # Constant block index -> fetched once, stays VMEM-resident.
        return pl.BlockSpec(shape, lambda b: (0,) * len(shape))

    in_specs = [
        pl.BlockSpec((None, Rin, Cin), lambda b: (b, 0, 0)),
        resident((L, 1)),
        resident((3, 3, Cin, Cmid)),
        resident((1, Cmid)),
    ]
    args = [xflat, mask, wa.astype(compute_dtype),
            ba.reshape(1, Cmid).astype(jnp.float32)]

    if conv_b is None:
        Cout = Cmid
        kernel = _make_level1_kernel(H, W)
        scratch = []
    else:
        wb, bb = conv_b
        Cout = wb.shape[-1]
        kernel = _make_level2_kernel(H, W)
        in_specs += [resident((3, 3, Cmid, Cout)), resident((1, Cout))]
        args += [wb.astype(compute_dtype),
                 bb.reshape(1, Cout).astype(jnp.float32)]
        scratch = [pltpu.VMEM((Rin, Cmid), compute_dtype)]

    y = pl.pallas_call(
        kernel,
        out_shape=jax.ShapeDtypeStruct((B, L, Cout), jnp.float32),
        grid=(B,),
        in_specs=in_specs,
        out_specs=pl.BlockSpec((None, L, Cout), lambda b: (b, 0, 0)),
        scratch_shapes=scratch,
        compiler_params=pltpu.CompilerParams(dimension_semantics=("parallel",)),
    )(*args)
    return y.reshape(B, H, Wp2, Cout)


# --------------------------------------------------------------------------
# 2x2 / stride-2 max-pool on the extended layout; single input read,
# in-kernel 4-way max, tiled over (batch, row-pairs).
# --------------------------------------------------------------------------
def maxpool2x2_ext(y_ext):
    B, H, Wp2, C = y_ext.shape
    W = Wp2 - 2
    # TODO(synk): PyTorch MaxPool2d floor semantics for odd H/W not handled.
    assert H % 2 == 0 and W % 2 == 0, "maxpool2x2 requires even spatial dims"
    Hh, Wh = H // 2, W // 2
    Wg = Wp2 // 2                           # column-pair groups (last one junk)
    x = y_ext.reshape(B, H, Wg, 2 * C)      # free reshape: lane-pack col pairs

    def kernel(x_ref, o_ref):
        r = jnp.maximum(x_ref[0], x_ref[1])        # (Wg, 2C): max over row pair
        cmax = jnp.maximum(r[:, :C], r[:, C:])     # (Wg, C):  max over col pair
        o_ref[...] = cmax[:Wh, :]                  # drop junk column group

    return pl.pallas_call(
        kernel,
        out_shape=jax.ShapeDtypeStruct((B, Hh, Wh, C), jnp.float32),
        grid=(B, Hh),
        in_specs=[pl.BlockSpec((None, 2, Wg, 2 * C), lambda b, i: (b, i, 0, 0))],
        out_specs=pl.BlockSpec((None, None, Wh, C), lambda b, i: (b, i, 0, 0)),
        compiler_params=pltpu.CompilerParams(
            dimension_semantics=("parallel", "parallel")),
    )(x)


# --------------------------------------------------------------------------
# FE forward pass (matches the PyTorch module's semantics)
# --------------------------------------------------------------------------
def fe_forward(params, x_nchw, compute_dtype=jnp.bfloat16):
    x = jnp.transpose(x_nchw, (0, 2, 3, 1)).astype(jnp.float32)   # NCHW -> NHWC
    feats = []

    y = conv_level(x, params["conv11"], params["conv12"], compute_dtype)
    feats.append(y[:, :, : y.shape[2] - 2, :])        # x_lv1 (drop junk cols)
    x = maxpool2x2_ext(y)

    y = conv_level(x, params["conv21"], params["conv22"], compute_dtype)
    feats.append(y[:, :, : y.shape[2] - 2, :])        # x_lv2
    x = maxpool2x2_ext(y)

    y = conv_level(x, params["conv31"], params["conv32"], compute_dtype)
    feats.append(y[:, :, : y.shape[2] - 2, :])        # x_lv3
    x = maxpool2x2_ext(y)

    y = conv_level(x, params["conv41"], None, compute_dtype)
    feats.append(y[:, :, : y.shape[2] - 2, :])        # x_lv4

    to_nchw = lambda t: jnp.transpose(t, (0, 3, 1, 2))
    return tuple(to_nchw(t) for t in feats)


# --------------------------------------------------------------------------
# Parameter init (PyTorch Conv2d default: U(-1/sqrt(fan_in), 1/sqrt(fan_in)))
# --------------------------------------------------------------------------
def init_fe_params(key, n_feats):
    specs = [
        ("conv11", 6, n_feats),
        ("conv12", n_feats, n_feats),
        ("conv21", n_feats, 2 * n_feats),
        ("conv22", 2 * n_feats, 2 * n_feats),
        ("conv31", 2 * n_feats, 4 * n_feats),
        ("conv32", 4 * n_feats, 4 * n_feats),
        ("conv41", 4 * n_feats, 8 * n_feats),
    ]
    params = {}
    keys = jax.random.split(key, 2 * len(specs))
    for i, (name, cin, cout) in enumerate(specs):
        bound = float(cin * 9) ** -0.5
        w = jax.random.uniform(keys[2 * i], (3, 3, cin, cout), jnp.float32,
                               minval=-bound, maxval=bound)
        b = jax.random.uniform(keys[2 * i + 1], (cout,), jnp.float32,
                               minval=-bound, maxval=bound)
        params[name] = (w, b)
    return params


# --------------------------------------------------------------------------
# Plain-XLA reference (full f32 precision) for in-script numerical validation
# --------------------------------------------------------------------------
def _conv_ref(x_nhwc, w, b):
    y = jax.lax.conv_general_dilated(
        x_nhwc, w, window_strides=(1, 1), padding=((1, 1), (1, 1)),
        dimension_numbers=("NHWC", "HWIO", "NHWC"),
        precision=jax.lax.Precision.HIGHEST)
    return jnp.maximum(y + b, 0.0)


def _maxpool_ref(x_nhwc):
    return jax.lax.reduce_window(x_nhwc, -jnp.inf, jax.lax.max,
                                 (1, 2, 2, 1), (1, 2, 2, 1), "VALID")


def fe_forward_ref(params, x_nchw):
    x = jnp.transpose(x_nchw, (0, 2, 3, 1)).astype(jnp.float32)
    x = _conv_ref(x, *params["conv11"])
    x = _conv_ref(x, *params["conv12"])
    x_lv1 = x
    x = _maxpool_ref(x)
    x = _conv_ref(x, *params["conv21"])
    x = _conv_ref(x, *params["conv22"])
    x_lv2 = x
    x = _maxpool_ref(x)
    x = _conv_ref(x, *params["conv31"])
    x = _conv_ref(x, *params["conv32"])
    x_lv3 = x
    x = _maxpool_ref(x)
    x = _conv_ref(x, *params["conv41"])
    x_lv4 = x
    to_nchw = lambda t: jnp.transpose(t, (0, 3, 1, 2))
    return tuple(to_nchw(t) for t in (x_lv1, x_lv2, x_lv3, x_lv4))


# --------------------------------------------------------------------------
if __name__ == "__main__":
    import numpy as np

    n_feats = 8
    B, H, W = 2, 16, 16

    root = jax.random.PRNGKey(0)
    kp, kx = jax.random.split(root)
    params = init_fe_params(kp, n_feats)
    x = jax.random.normal(kx, (B, 6, H, W), jnp.float32)

    refs = fe_forward_ref(params, x)

    # --- f32-operand path first, tighter tolerance (review correctness note).
    fwd_f32 = jax.jit(functools.partial(fe_forward, compute_dtype=jnp.float32))
    outs_f32 = jax.block_until_ready(fwd_f32(params, x))
    for got, want in zip(outs_f32, refs):
        np.testing.assert_allclose(np.asarray(got), np.asarray(want),
                                   atol=1e-2, rtol=1e-2)

    # --- bf16-operand / f32-accumulate path (the performance configuration).
    fwd_bf16 = jax.jit(functools.partial(fe_forward, compute_dtype=jnp.bfloat16))
    x_lv1, x_lv2, x_lv3, x_lv4 = jax.block_until_ready(fwd_bf16(params, x))

    assert x_lv1.shape == (B, n_feats, H, W)
    assert x_lv2.shape == (B, 2 * n_feats, H // 2, W // 2)
    assert x_lv3.shape == (B, 4 * n_feats, H // 4, W // 4)
    assert x_lv4.shape == (B, 8 * n_feats, H // 8, W // 8)

    for got, want in zip((x_lv1, x_lv2, x_lv3, x_lv4), refs):
        np.testing.assert_allclose(np.asarray(got), np.asarray(want),
                                   atol=4e-2, rtol=4e-2)

    print("KERNEL_OK")
</pallas_src>

<mosaic_0001>
module attributes {stable_mosaic.version = 11 : i64} {
  func.func @kernel(%arg0: i32, %arg1: i32, %arg2: memref<1x2x5x32xf32, #tpu.memory_space<vmem>>, %arg3: memref<1x1x4x16xf32, #tpu.memory_space<vmem>>) attributes {dimension_semantics = [#tpu.dimension_semantics<parallel>, #tpu.dimension_semantics<parallel>], iteration_bounds = array<i64: 2, 4>, scalar_prefetch = 0 : i64, scratch_operands = 0 : i64, tpu.core_type = #tpu.core_type<tc>, window_params = [{transform_indices = @transform_0, window_bounds = array<i64: 1, 2, 5, 32>}, {transform_indices = @transform_1, window_bounds = array<i64: 1, 1, 4, 16>}]} {
    %c0 = arith.constant 0 : index
    %c0_0 = arith.constant 0 : index
    %c0_1 = arith.constant 0 : index
    %c0_2 = arith.constant 0 : index
    %0 = vector.load %arg2[%c0, %c0_0, %c0_1, %c0_2] : memref<1x2x5x32xf32, #tpu.memory_space<vmem>>, vector<1x1x5x32xf32>
    %1 = vector.shape_cast %0 : vector<1x1x5x32xf32> to vector<5x32xf32>
    %c0_3 = arith.constant 0 : index
    %c1 = arith.constant 1 : index
    %c0_4 = arith.constant 0 : index
    %c0_5 = arith.constant 0 : index
    %2 = vector.load %arg2[%c0_3, %c1, %c0_4, %c0_5] : memref<1x2x5x32xf32, #tpu.memory_space<vmem>>, vector<1x1x5x32xf32>
    %3 = vector.shape_cast %2 : vector<1x1x5x32xf32> to vector<5x32xf32>
    %4 = arith.maximumf %1, %3 : vector<5x32xf32>
    %5 = vector.extract_strided_slice %4 {offsets = [0, 0], sizes = [5, 16], strides = [1, 1]} : vector<5x32xf32> to vector<5x16xf32>
    %6 = vector.extract_strided_slice %4 {offsets = [0, 16], sizes = [5, 16], strides = [1, 1]} : vector<5x32xf32> to vector<5x16xf32>
    %7 = arith.maximumf %5, %6 : vector<5x16xf32>
    %8 = vector.extract_strided_slice %7 {offsets = [0, 0], sizes = [4, 16], strides = [1, 1]} : vector<5x16xf32> to vector<4x16xf32>
    %c0_6 = arith.constant 0 : index
    %c0_7 = arith.constant 0 : index
    %c0_8 = arith.constant 0 : index
    %c0_9 = arith.constant 0 : index
    %9 = vector.load %arg3[%c0_6, %c0_7, %c0_8, %c0_9] : memref<1x1x4x16xf32, #tpu.memory_space<vmem>>, vector<1x1x4x16xf32>
    %10 = vector.shape_cast %9 : vector<1x1x4x16xf32> to vector<4x16xf32>
    %11 = vector.shape_cast %8 : vector<4x16xf32> to vector<1x1x4x16xf32>
    tpu.vector_store %arg3[%c0_6, %c0_7, %c0_8, %c0_9], %11 {strides = array<i32>} : memref<1x1x4x16xf32, #tpu.memory_space<vmem>>, vector<1x1x4x16xf32>,
    return
  }
  func.func @transform_0(%arg0: i32, %arg1: i32) -> (i32, i32, i32, i32) {
    %c0_i32 = arith.constant 0 : i32
    %c0_i32_0 = arith.constant 0 : i32
    %c0_i32_1 = arith.constant 0 : i32
    return %arg0, %arg1, %c0_i32, %c0_i32_0 : i32, i32, i32, i32
  }
  func.func @transform_1(%arg0: i32, %arg1: i32) -> (i32, i32, i32, i32) {
    %c0_i32 = arith.constant 0 : i32
    %c0_i32_0 = arith.constant 0 : i32
    %c0_i32_1 = arith.constant 0 : i32
    return %arg0, %arg1, %c0_i32, %c0_i32_0 : i32, i32, i32, i32
  }
}

module attributes {stable_mosaic.version = 11 : i64} {
  func.func @kernel(%arg0: i32, %arg1: memref<1x360x6xf32, #tpu.memory_space<vmem>>, %arg2: memref<288x1xf32, #tpu.memory_space<vmem>>, %arg3: memref<3x3x6x8xf32, #tpu.memory_space<vmem>>, %arg4: memref<1x8xf32, #tpu.memory_space<vmem>>, %arg5: memref<3x3x8x8xf32, #tpu.memory_space<vmem>>, %arg6: memref<1x8xf32, #tpu.memory_space<vmem>>, %arg7: memref<1x288x8xf32, #tpu.memory_space<vmem>>, %arg8: memref<360x8xf32, #tpu.memory_space<vmem>>) attributes {dimension_semantics = [#tpu.dimension_semantics<parallel>], iteration_bounds = array<i64: 2>, scalar_prefetch = 0 : i64, scratch_operands = 1 : i64, tpu.core_type = #tpu.core_type<tc>, window_params = [{transform_indices = @transform_0, window_bounds = array<i64: 1, 360, 6>}, {pipeline_mode = #tpu.pipeline_mode<synchronous>, transform_indices = @transform_1, window_bounds = array<i64: 288, 1>}, {pipeline_mode = #tpu.pipeline_mode<synchronous>, transform_indices = @transform_2, window_bounds = array<i64: 3, 3, 6, 8>}, {pipeline_mode = #tpu.pipeline_mode<synchronous>, transform_indices = @transform_3, window_bounds = array<i64: 1, 8>}, {pipeline_mode = #tpu.pipeline_mode<synchronous>, transform_indices = @transform_4, window_bounds = array<i64: 3, 3, 8, 8>}, {pipeline_mode = #tpu.pipeline_mode<synchronous>, transform_indices = @transform_5, window_bounds = array<i64: 1, 8>}, {transform_indices = @transform_6, window_bounds = array<i64: 1, 288, 8>}]} {
    %c0 = arith.constant 0 : index
    %c0_0 = arith.constant 0 : index
    %0 = vector.load %arg2[%c0, %c0_0] : memref<288x1xf32, #tpu.memory_space<vmem>>, vector<288x1xf32>
    %c0_1 = arith.constant 0 : index
    %c18 = arith.constant 18 : index
    %c0_2 = arith.constant 0 : index
    %1 = vector.load %arg1[%c0_1, %c18, %c0_2] : memref<1x360x6xf32, #tpu.memory_space<vmem>>, vector<1x288x6xf32>
    %2 = vector.shape_cast %1 : vector<1x288x6xf32> to vector<288x6xf32>
    %c0_3 = arith.constant 0 : index
    %c0_4 = arith.constant 0 : index
    %c0_5 = arith.constant 0 : index
    %c0_6 = arith.constant 0 : index
    %3 = vector.load %arg3[%c0_3, %c0_4, %c0_5, %c0_6] : memref<3x3x6x8xf32, #tpu.memory_space<vmem>>, vector<1x1x6x8xf32>
    %4 = vector.shape_cast %3 : vector<1x1x6x8xf32> to vector<6x8xf32>
    %cst = arith.constant dense<0.000000e+00> : vector<288x8xf32>
    %5 = tpu.matmul %2, %4, %cst {dimension_numbers = #tpu.dot_dimension_numbers<[1], [0], [0], [1], [0, 0, 1, 1], [], []>} : vector<288x6xf32>, vector<6x8xf32>, vector<288x8xf32> -> vector<288x8xf32>
    %c0_7 = arith.constant 0 : index
    %c19 = arith.constant 19 : index
    %c0_8 = arith.constant 0 : index
    %6 = vector.load %arg1[%c0_7, %c19, %c0_8] : memref<1x360x6xf32, #tpu.memory_space<vmem>>, vector<1x288x6xf32>
    %7 = vector.shape_cast %6 : vector<1x288x6xf32> to vector<288x6xf32>
    %c0_9 = arith.constant 0 : index
    %c1 = arith.constant 1 : index
    %c0_10 = arith.constant 0 : index
    %c0_11 = arith.constant 0 : index
    %8 = vector.load %arg3[%c0_9, %c1, %c0_10, %c0_11] : memref<3x3x6x8xf32, #tpu.memory_space<vmem>>, vector<1x1x6x8xf32>
    %9 = vector.shape_cast %8 : vector<1x1x6x8xf32> to vector<6x8xf32>
    %cst_12 = arith.constant dense<0.000000e+00> : vector<288x8xf32>
    %10 = tpu.matmul %7, %9, %cst_12 {dimension_numbers = #tpu.dot_dimension_numbers<[1], [0], [0], [1], [0, 0, 1, 1], [], []>} : vector<288x6xf32>, vector<6x8xf32>, vector<288x8xf32> -> vector<288x8xf32>
    %11 = arith.addf %5, %10 : vector<288x8xf32>
    %c0_13 = arith.constant 0 : index
    %c20 = arith.constant 20 : index
    %c0_14 = arith.constant 0 : index
    %12 = vector.load %arg1[%c0_13, %c20, %c0_14] : memref<1x360x6xf32, #tpu.memory_space<vmem>>, vector<1x288x6xf32>
    %13 = vector.shape_cast %12 : vector<1x288x6xf32> to vector<288x6xf32>
    %c0_15 = arith.constant 0 : index
    %c2 = arith.constant 2 : index
    %c0_16 = arith.constant 0 : index
    %c0_17 = arith.constant 0 : index
    %14 = vector.load %arg3[%c0_15, %c2, %c0_16, %c0_17] : memref<3x3x6x8xf32, #tpu.memory_space<vmem>>, vector<1x1x6x8xf32>
    %15 = vector.shape_cast %14 : vector<1x1x6x8xf32> to vector<6x8xf32>
    %cst_18 = arith.constant dense<0.000000e+00> : vector<288x8xf32>
    %16 = tpu.matmul %13, %15, %cst_18 {dimension_numbers = #tpu.dot_dimension_numbers<[1], [0], [0], [1], [0, 0, 1, 1], [], []>} : vector<288x6xf32>, vector<6x8xf32>, vector<288x8xf32> -> vector<288x8xf32>
    %17 = arith.addf %11, %16 : vector<288x8xf32>
    %c0_19 = arith.constant 0 : index
    %c36 = arith.constant 36 : index
    %c0_20 = arith.constant 0 : index
    %18 = vector.load %arg1[%c0_19, %c36, %c0_20] : memref<1x360x6xf32, #tpu.memory_space<vmem>>, vector<1x288x6xf32>
    %19 = vector.shape_cast %18 : vector<1x288x6xf32> to vector<288x6xf32>
    %c1_21 = arith.constant 1 : index
    %c0_22 = arith.constant 0 : index
    %c0_23 = arith.constant 0 : index
    %c0_24 = arith.constant 0 : index
    %20 = vector.load %arg3[%c1_21, %c0_22, %c0_23, %c0_24] : memref<3x3x6x8xf32, #tpu.memory_space<vmem>>, vector<1x1x6x8xf32>
    %21 = vector.shape_cast %20 : vector<1x1x6x8xf32> to vector<6x8xf32>
    %cst_25 = arith.constant dense<0.000000e+00> : vector<288x8xf32>
    %22 = tpu.matmul %19, %21, %cst_25 {dimension_numbers = #tpu.dot_dimension_numbers<[1], [0], [0], [1], [0, 0, 1, 1], [], []>} : vector<288x6xf32>, vector<6x8xf32>, vector<288x8xf32> -> vector<288x8xf32>
    %23 = arith.addf %17, %22 : vector<288x8xf32>
    %c0_26 = arith.constant 0 : index
    %c37 = arith.constant 37 : index
    %c0_27 = arith.constant 0 : index
    %24 = vector.load %arg1[%c0_26, %c37, %c0_27] : memref<1x360x6xf32, #tpu.memory_space<vmem>>, vector<1x288x6xf32>
    %25 = vector.shape_cast %24 : vector<1x288x6xf32> to vector<288x6xf32>
    %c1_28 = arith.constant 1 : index
    %c1_29 = arith.constant 1 : index
    %c0_30 = arith.constant 0 : index
    %c0_31 = arith.constant 0 : index
    %26 = vector.load %arg3[%c1_28, %c1_29, %c0_30, %c0_31] : memref<3x3x6x8xf32, #tpu.memory_space<vmem>>, vector<1x1x6x8xf32>
    %27 = vector.shape_cast %26 : vector<1x1x6x8xf32> to vector<6x8xf32>
    %cst_32 = arith.constant dense<0.000000e+00> : vector<288x8xf32>
    %28 = tpu.matmul %25, %27, %cst_32 {dimension_numbers = #tpu.dot_dimension_numbers<[1], [0], [0], [1], [0, 0, 1, 1], [], []>} : vector<288x6xf32>, vector<6x8xf32>, vector<288x8xf32> -> vector<288x8xf32>
    %29 = arith.addf %23, %28 : vector<288x8xf32>
    %c0_33 = arith.constant 0 : index
    %c38 = arith.constant 38 : index
    %c0_34 = arith.constant 0 : index
    %30 = vector.load %arg1[%c0_33, %c38, %c0_34] : memref<1x360x6xf32, #tpu.memory_space<vmem>>, vector<1x288x6xf32>
    %31 = vector.shape_cast %30 : vector<1x288x6xf32> to vector<288x6xf32>
    %c1_35 = arith.constant 1 : index
    %c2_36 = arith.constant 2 : index
    %c0_37 = arith.constant 0 : index
    %c0_38 = arith.constant 0 : index
    %32 = vector.load %arg3[%c1_35, %c2_36, %c0_37, %c0_38] : memref<3x3x6x8xf32, #tpu.memory_space<vmem>>, vector<1x1x6x8xf32>
    %33 = vector.shape_cast %32 : vector<1x1x6x8xf32> to vector<6x8xf32>
    %cst_39 = arith.constant dense<0.000000e+00> : vector<288x8xf32>
    %34 = tpu.matmul %31, %33, %cst_39 {dimension_numbers = #tpu.dot_dimension_numbers<[1], [0], [0], [1], [0, 0, 1, 1], [], []>} : vector<288x6xf32>, vector<6x8xf32>, vector<288x8xf32> -> vector<288x8xf32>
    %35 = arith.addf %29, %34 : vector<288x8xf32>
    %c0_40 = arith.constant 0 : index
    %c54 = arith.constant 54 : index
    %c0_41 = arith.constant 0 : index
    %36 = vector.load %arg1[%c0_40, %c54, %c0_41] : memref<1x360x6xf32, #tpu.memory_space<vmem>>, vector<1x288x6xf32>
    %37 = vector.shape_cast %36 : vector<1x288x6xf32> to vector<288x6xf32>
    %c2_42 = arith.constant 2 : index
    %c0_43 = arith.constant 0 : index
    %c0_44 = arith.constant 0 : index
    %c0_45 = arith.constant 0 : index
    %38 = vector.load %arg3[%c2_42, %c0_43, %c0_44, %c0_45] : memref<3x3x6x8xf32, #tpu.memory_space<vmem>>, vector<1x1x6x8xf32>
    %39 = vector.shape_cast %38 : vector<1x1x6x8xf32> to vector<6x8xf32>
    %cst_46 = arith.constant dense<0.000000e+00> : vector<288x8xf32>
    %40 = tpu.matmul %37, %39, %cst_46 {dimension_numbers = #tpu.dot_dimension_numbers<[1], [0], [0], [1], [0, 0, 1, 1], [], []>} : vector<288x6xf32>, vector<6x8xf32>, vector<288x8xf32> -> vector<288x8xf32>
    %41 = arith.addf %35, %40 : vector<288x8xf32>
    %c0_47 = arith.constant 0 : index
    %c55 = arith.constant 55 : index
    %c0_48 = arith.constant 0 : index
    %42 = vector.load %arg1[%c0_47, %c55, %c0_48] : memref<1x360x6xf32, #tpu.memory_space<vmem>>, vector<1x288x6xf32>
    %43 = vector.shape_cast %42 : vector<1x288x6xf32> to vector<288x6xf32>
    %c2_49 = arith.constant 2 : index
    %c1_50 = arith.constant 1 : index
    %c0_51 = arith.constant 0 : index
    %c0_52 = arith.constant 0 : index
    %44 = vector.load %arg3[%c2_49, %c1_50, %c0_51, %c0_52] : memref<3x3x6x8xf32, #tpu.memory_space<vmem>>, vector<1x1x6x8xf32>
    %45 = vector.shape_cast %44 : vector<1x1x6x8xf32> to vector<6x8xf32>
    %cst_53 = arith.constant dense<0.000000e+00> : vector<288x8xf32>
    %46 = tpu.matmul %43, %45, %cst_53 {dimension_numbers = #tpu.dot_dimension_numbers<[1], [0], [0], [1], [0, 0, 1, 1], [], []>} : vector<288x6xf32>, vector<6x8xf32>, vector<288x8xf32> -> vector<288x8xf32>
    %47 = arith.addf %41, %46 : vector<288x8xf32>
    %c0_54 = arith.constant 0 : index
    %c56 = arith.constant 56 : index
    %c0_55 = arith.constant 0 : index
    %48 = vector.load %arg1[%c0_54, %c56, %c0_55] : memref<1x360x6xf32, #tpu.memory_space<vmem>>, vector<1x288x6xf32>
    %49 = vector.shape_cast %48 : vector<1x288x6xf32> to vector<288x6xf32>
    %c2_56 = arith.constant 2 : index
    %c2_57 = arith.constant 2 : index
    %c0_58 = arith.constant 0 : index
    %c0_59 = arith.constant 0 : index
    %50 = vector.load %arg3[%c2_56, %c2_57, %c0_58, %c0_59] : memref<3x3x6x8xf32, #tpu.memory_space<vmem>>, vector<1x1x6x8xf32>
    %51 = vector.shape_cast %50 : vector<1x1x6x8xf32> to vector<6x8xf32>
    %cst_60 = arith.constant dense<0.000000e+00> : vector<288x8xf32>
    %52 = tpu.matmul %49, %51, %cst_60 {dimension_numbers = #tpu.dot_dimension_numbers<[1], [0], [0], [1], [0, 0, 1, 1], [], []>} : vector<288x6xf32>, vector<6x8xf32>, vector<288x8xf32> -> vector<288x8xf32>
    %53 = arith.addf %47, %52 : vector<288x8xf32>
    %c0_61 = arith.constant 0 : index
    %c0_62 = arith.constant 0 : index
    %54 = vector.load %arg4[%c0_61, %c0_62] : memref<1x8xf32, #tpu.memory_space<vmem>>, vector<1x8xf32>
    %55 = vector.broadcast %54 : vector<1x8xf32> to vector<288x8xf32>
    %56 = arith.addf %53, %55 : vector<288x8xf32>
    %cst_63 = arith.constant 0.000000e+00 : f32
    %57 = vector.broadcast %cst_63 : f32 to vector<288x8xf32>
    %58 = arith.maximumf %56, %57 : vector<288x8xf32>
    %59 = vector.broadcast %0 : vector<288x1xf32> to vector<288x8xf32>
    %60 = arith.mulf %58, %59 : vector<288x8xf32>
    %cst_64 = arith.constant 0.000000e+00 : f32
    %61 = vector.broadcast %cst_64 : f32 to vector<360x8xf32>
    %c0_65 = arith.constant 0 : index
    %c0_66 = arith.constant 0 : index
    %62 = vector.load %arg8[%c0_65, %c0_66] : memref<360x8xf32, #tpu.memory_space<vmem>>, vector<360x8xf32>
    tpu.vector_store %arg8[%c0_65, %c0_66], %61 {strides = array<i32>} : memref<360x8xf32, #tpu.memory_space<vmem>>, vector<360x8xf32>,
    %c37_67 = arith.constant 37 : index
    %c0_68 = arith.constant 0 : index
    %63 = vector.load %arg8[%c37_67, %c0_68] : memref<360x8xf32, #tpu.memory_space<vmem>>, vector<288x8xf32>
    tpu.vector_store %arg8[%c37_67, %c0_68], %60 {strides = array<i32>} : memref<360x8xf32, #tpu.memory_space<vmem>>, vector<288x8xf32>,
    %c18_69 = arith.constant 18 : index
    %c0_70 = arith.constant 0 : index
    %64 = vector.load %arg8[%c18_69, %c0_70] : memref<360x8xf32, #tpu.memory_space<vmem>>, vector<288x8xf32>
    %c0_71 = arith.constant 0 : index
    %c0_72 = arith.constant 0 : index
    %c0_73 = arith.constant 0 : index
    %c0_74 = arith.constant 0 : index
    %65 = vector.load %arg5[%c0_71, %c0_72, %c0_73, %c0_74] : memref<3x3x8x8xf32, #tpu.memory_space<vmem>>, vector<1x1x8x8xf32>
    %66 = vector.shape_cast %65 : vector<1x1x8x8xf32> to vector<8x8xf32>
    %cst_75 = arith.constant dense<0.000000e+00> : vector<288x8xf32>
    %67 = tpu.matmul %64, %66, %cst_75 {dimension_numbers = #tpu.dot_dimension_numbers<[1], [0], [0], [1], [0, 0, 1, 1], [], []>} : vector<288x8xf32>, vector<8x8xf32>, vector<288x8xf32> -> vector<288x8xf32>
    %c19_76 = arith.constant 19 : index
    %c0_77 = arith.constant 0 : index
    %68 = vector.load %arg8[%c19_76, %c0_77] : memref<360x8xf32, #tpu.memory_space<vmem>>, vector<288x8xf32>
    %c0_78 = arith.constant 0 : index
    %c1_79 = arith.constant 1 : index
    %c0_80 = arith.constant 0 : index
    %c0_81 = arith.constant 0 : index
    %69 = vector.load %arg5[%c0_78, %c1_79, %c0_80, %c0_81] : memref<3x3x8x8xf32, #tpu.memory_space<vmem>>, vector<1x1x8x8xf32>
    %70 = vector.shape_cast %69 : vector<1x1x8x8xf32> to vector<8x8xf32>
    %cst_82 = arith.constant dense<0.000000e+00> : vector<288x8xf32>
    %71 = tpu.matmul %68, %70, %cst_82 {dimension_numbers = #tpu.dot_dimension_numbers<[1], [0], [0], [1], [0, 0, 1, 1], [], []>} : vector<288x8xf32>, vector<8x8xf32>, vector<288x8xf32> -> vector<288x8xf32>
    %72 = arith.addf %67, %71 : vector<288x8xf32>
    %c20_83 = arith.constant 20 : index
    %c0_84 = arith.constant 0 : index
    %73 = vector.load %arg8[%c20_83, %c0_84] : memref<360x8xf32, #tpu.memory_space<vmem>>, vector<288x8xf32>
    %c0_85 = arith.constant 0 : index
    %c2_86 = arith.constant 2 : index
    %c0_87 = arith.constant 0 : index
    %c0_88 = arith.constant 0 : index
    %74 = vector.load %arg5[%c0_85, %c2_86, %c0_87, %c0_88] : memref<3x3x8x8xf32, #tpu.memory_space<vmem>>, vector<1x1x8x8xf32>
    %75 = vector.shape_cast %74 : vector<1x1x8x8xf32> to vector<8x8xf32>
    %cst_89 = arith.constant dense<0.000000e+00> : vector<288x8xf32>
    %76 = tpu.matmul %73, %75, %cst_89 {dimension_numbers = #tpu.dot_dimension_numbers<[1], [0], [0], [1], [0, 0, 1, 1], [], []>} : vector<288x8xf32>, vector<8x8xf32>, vector<288x8xf32> -> vector<288x8xf32>
    %77 = arith.addf %72, %76 : vector<288x8xf32>
    %c36_90 = arith.constant 36 : index
    %c0_91 = arith.constant 0 : index
    %78 = vector.load %arg8[%c36_90, %c0_91] : memref<360x8xf32, #tpu.memory_space<vmem>>, vector<288x8xf32>
    %c1_92 = arith.constant 1 : index
    %c0_93 = arith.constant 0 : index
    %c0_94 = arith.constant 0 : index
    %c0_95 = arith.constant 0 : index
    %79 = vector.load %arg5[%c1_92, %c0_93, %c0_94, %c0_95] : memref<3x3x8x8xf32, #tpu.memory_space<vmem>>, vector<1x1x8x8xf32>
    %80 = vector.shape_cast %79 : vector<1x1x8x8xf32> to vector<8x8xf32>
    %cst_96 = arith.constant dense<0.000000e+00> : vector<288x8xf32>
    %81 = tpu.matmul %78, %80, %cst_96 {dimension_numbers = #tpu.dot_dimension_numbers<[1], [0], [0], [1], [0, 0, 1, 1], [], []>} : vector<288x8xf32>, vector<8x8xf32>, vector<288x8xf32> -> vector<288x8xf32>
    %82 = arith.addf %77, %81 : vector<288x8xf32>
    %c37_97 = arith.constant 37 : index
    %c0_98 = arith.constant 0 : index
    %83 = vector.load %arg8[%c37_97, %c0_98] : memref<360x8xf32, #tpu.memory_space<vmem>>, vector<288x8xf32>
    %c1_99 = arith.constant 1 : index
    %c1_100 = arith.constant 1 : index
    %c0_101 = arith.constant 0 : index
    %c0_102 = arith.constant 0 : index
    %84 = vector.load %arg5[%c1_99, %c1_100, %c0_101, %c0_102] : memref<3x3x8x8xf32, #tpu.memory_space<vmem>>, vector<1x1x8x8xf32>
    %85 = vector.shape_cast %84 : vector<1x1x8x8xf32> to vector<8x8xf32>
    %cst_103 = arith.constant dense<0.000000e+00> : vector<288x8xf32>
    %86 = tpu.matmul %83, %85, %cst_103 {dimension_numbers = #tpu.dot_dimension_numbers<[1], [0], [0], [1], [0, 0, 1, 1], [], []>} : vector<288x8xf32>, vector<8x8xf32>, vector<288x8xf32> -> vector<288x8xf32>
    %87 = arith.addf %82, %86 : vector<288x8xf32>
    %c38_104 = arith.constant 38 : index
    %c0_105 = arith.constant 0 : index
    %88 = vector.load %arg8[%c38_104, %c0_105] : memref<360x8xf32, #tpu.memory_space<vmem>>, vector<288x8xf32>
    %c1_106 = arith.constant 1 : index
    %c2_107 = arith.constant 2 : index
    %c0_108 = arith.constant 0 : index
    %c0_109 = arith.constant 0 : index
    %89 = vector.load %arg5[%c1_106, %c2_107, %c0_108, %c0_109] : memref<3x3x8x8xf32, #tpu.memory_space<vmem>>, vector<1x1x8x8xf32>
    %90 = vector.shape_cast %89 : vector<1x1x8x8xf32> to vector<8x8xf32>
    %cst_110 = arith.constant dense<0.000000e+00> : vector<288x8xf32>
    %91 = tpu.matmul %88, %90, %cst_110 {dimension_numbers = #tpu.dot_dimension_numbers<[1], [0], [0], [1], [0, 0, 1, 1], [], []>} : vector<288x8xf32>, vector<8x8xf32>, vector<288x8xf32> -> vector<288x8xf32>
    %92 = arith.addf %87, %91 : vector<288x8xf32>
    %c54_111 = arith.constant 54 : index
    %c0_112 = arith.constant 0 : index
    %93 = vector.load %arg8[%c54_111, %c0_112] : memref<360x8xf32, #tpu.memory_space<vmem>>, vector<288x8xf32>
    %c2_113 = arith.constant 2 : index
    %c0_114 = arith.constant 0 : index
    %c0_115 = arith.constant 0 : index
    %c0_116 = arith.constant 0 : index
    %94 = vector.load %arg5[%c2_113, %c0_114, %c0_115, %c0_116] : memref<3x3x8x8xf32, #tpu.memory_space<vmem>>, vector<1x1x8x8xf32>
    %95 = vector.shape_cast %94 : vector<1x1x8x8xf32> to vector<8x8xf32>
    %cst_117 = arith.constant dense<0.000000e+00> : vector<288x8xf32>
    %96 = tpu.matmul %93, %95, %cst_117 {dimension_numbers = #tpu.dot_dimension_numbers<[1], [0], [0], [1], [0, 0, 1, 1], [], []>} : vector<288x8xf32>, vector<8x8xf32>, vector<288x8xf32> -> vector<288x8xf32>
    %97 = arith.addf %92, %96 : vector<288x8xf32>
    %c55_118 = arith.constant 55 : index
    %c0_119 = arith.constant 0 : index
    %98 = vector.load %arg8[%c55_118, %c0_119] : memref<360x8xf32, #tpu.memory_space<vmem>>, vector<288x8xf32>
    %c2_120 = arith.constant 2 : index
    %c1_121 = arith.constant 1 : index
    %c0_122 = arith.constant 0 : index
    %c0_123 = arith.constant 0 : index
    %99 = vector.load %arg5[%c2_120, %c1_121, %c0_122, %c0_123] : memref<3x3x8x8xf32, #tpu.memory_space<vmem>>, vector<1x1x8x8xf32>
    %100 = vector.shape_cast %99 : vector<1x1x8x8xf32> to vector<8x8xf32>
    %cst_124 = arith.constant dense<0.000000e+00> : vector<288x8xf32>
    %101 = tpu.matmul %98, %100, %cst_124 {dimension_numbers = #tpu.dot_dimension_numbers<[1], [0], [0], [1], [0, 0, 1, 1], [], []>} : vector<288x8xf32>, vector<8x8xf32>, vector<288x8xf32> -> vector<288x8xf32>
    %102 = arith.addf %97, %101 : vector<288x8xf32>
    %c56_125 = arith.constant 56 : index
    %c0_126 = arith.constant 0 : index
    %103 = vector.load %arg8[%c56_125, %c0_126] : memref<360x8xf32, #tpu.memory_space<vmem>>, vector<288x8xf32>
    %c2_127 = arith.constant 2 : index
    %c2_128 = arith.constant 2 : index
    %c0_129 = arith.constant 0 : index
    %c0_130 = arith.constant 0 : index
    %104 = vector.load %arg5[%c2_127, %c2_128, %c0_129, %c0_130] : memref<3x3x8x8xf32, #tpu.memory_space<vmem>>, vector<1x1x8x8xf32>
    %105 = vector.shape_cast %104 : vector<1x1x8x8xf32> to vector<8x8xf32>
    %cst_131 = arith.constant dense<0.000000e+00> : vector<288x8xf32>
    %106 = tpu.matmul %103, %105, %cst_131 {dimension_numbers = #tpu.dot_dimension_numbers<[1], [0], [0], [1], [0, 0, 1, 1], [], []>} : vector<288x8xf32>, vector<8x8xf32>, vector<288x8xf32> -> vector<288x8xf32>
    %107 = arith.addf %102, %106 : vector<288x8xf32>
    %c0_132 = arith.constant 0 : index
    %c0_133 = arith.constant 0 : index
    %108 = vector.load %arg6[%c0_132, %c0_133] : memref<1x8xf32, #tpu.memory_space<vmem>>, vector<1x8xf32>
    %109 = vector.broadcast %108 : vector<1x8xf32> to vector<288x8xf32>
    %110 = arith.addf %107, %109 : vector<288x8xf32>
    %cst_134 = arith.constant 0.000000e+00 : f32
    %111 = vector.broadcast %cst_134 : f32 to vector<288x8xf32>
    %112 = arith.maximumf %110, %111 : vector<288x8xf32>
    %113 = vector.broadcast %0 : vector<288x1xf32> to vector<288x8xf32>
    %114 = arith.mulf %112, %113 : vector<288x8xf32>
    %c0_135 = arith.constant 0 : index
    %c0_136 = arith.constant 0 : index
    %c0_137 = arith.constant 0 : index
    %115 = vector.load %arg7[%c0_135, %c0_136, %c0_137] : memref<1x288x8xf32, #tpu.memory_space<vmem>>, vector<1x288x8xf32>
    %116 = vector.shape_cast %115 : vector<1x288x8xf32> to vector<288x8xf32>
    %117 = vector.shape_cast %114 : vector<288x8xf32> to vector<1x288x8xf32>
    tpu.vector_store %arg7[%c0_135, %c0_136, %c0_137], %117 {strides = array<i32>} : memref<1x288x8xf32, #tpu.memory_space<vmem>>, vector<1x288x8xf32>,
    return
  }
  func.func @transform_0(%arg0: i32) -> (i32, i32, i32) {
    %c0_i32 = arith.constant 0 : i32
    %c0_i32_0 = arith.constant 0 : i32
    %c0_i32_1 = arith.constant 0 : i32
    return %arg0, %c0_i32, %c0_i32_0 : i32, i32, i32
  }
  func.func @transform_1(%arg0: i32) -> (i32, i32) {
    %c0_i32 = arith.constant 0 : i32
    %c0_i32_0 = arith.constant 0 : i32
    %c0_i32_1 = arith.constant 0 : i32
    return %c0_i32, %c0_i32_0 : i32, i32
  }
  func.func @transform_2(%arg0: i32) -> (i32, i32, i32, i32) {
    %c0_i32 = arith.constant 0 : i32
    %c0_i32_0 = arith.constant 0 : i32
    %c0_i32_1 = arith.constant 0 : i32
    %c0_i32_2 = arith.constant 0 : i32
    %c0_i32_3 = arith.constant 0 : i32
    return %c0_i32, %c0_i32_0, %c0_i32_1, %c0_i32_2 : i32, i32, i32, i32
  }
  func.func @transform_3(%arg0: i32) -> (i32, i32) {
    %c0_i32 = arith.constant 0 : i32
    %c0_i32_0 = arith.constant 0 : i32
    %c0_i32_1 = arith.constant 0 : i32
    return %c0_i32, %c0_i32_0 : i32, i32
  }
  func.func @transform_4(%arg0: i32) -> (i32, i32, i32, i32) {
    %c0_i32 = arith.constant 0 : i32
    %c0_i32_0 = arith.constant 0 : i32
    %c0_i32_1 = arith.constant 0 : i32
    %c0_i32_2 = arith.constant 0 : i32
    %c0_i32_3 = arith.constant 0 : i32
    return %c0_i32, %c0_i32_0, %c0_i32_1, %c0_i32_2 : i32, i32, i32, i32
  }
  func.func @transform_5(%arg0: i32) -> (i32, i32) {
    %c0_i32 = arith.constant 0 : i32
    %c0_i32_0 = arith.constant 0 : i32
    %c0_i32_1 = arith.constant 0 : i32
    return %c0_i32, %c0_i32_0 : i32, i32
  }
  func.func @transform_6(%arg0: i32) -> (i32, i32, i32) {
    %c0_i32 = arith.constant 0 : i32
    %c0_i32_0 = arith.constant 0 : i32
    %c0_i32_1 = arith.constant 0 : i32
    return %arg0, %c0_i32, %c0_i32_0 : i32, i32, i32
  }
}

module attributes {stable_mosaic.version = 11 : i64} {
  func.func @kernel(%arg0: i32, %arg1: i32, %arg2: memref<1x2x9x16xf32, #tpu.memory_space<vmem>>, %arg3: memref<1x1x8x8xf32, #tpu.memory_space<vmem>>) attributes {dimension_semantics = [#tpu.dimension_semantics<parallel>, #tpu.dimension_semantics<parallel>], iteration_bounds = array<i64: 2, 8>, scalar_prefetch = 0 : i64, scratch_operands = 0 : i64, tpu.core_type = #tpu.core_type<tc>, window_params = [{transform_indices = @transform_0, window_bounds = array<i64: 1, 2, 9, 16>}, {transform_indices = @transform_1, window_bounds = array<i64: 1, 1, 8, 8>}]} {
    %c0 = arith.constant 0 : index
    %c0_0 = arith.constant 0 : index
    %c0_1 = arith.constant 0 : index
    %c0_2 = arith.constant 0 : index
    %0 = vector.load %arg2[%c0, %c0_0, %c0_1, %c0_2] : memref<1x2x9x16xf32, #tpu.memory_space<vmem>>, vector<1x1x9x16xf32>
    %1 = vector.shape_cast %0 : vector<1x1x9x16xf32> to vector<9x16xf32>
    %c0_3 = arith.constant 0 : index
    %c1 = arith.constant 1 : index
    %c0_4 = arith.constant 0 : index
    %c0_5 = arith.constant 0 : index
    %2 = vector.load %arg2[%c0_3, %c1, %c0_4, %c0_5] : memref<1x2x9x16xf32, #tpu.memory_space<vmem>>, vector<1x1x9x16xf32>
    %3 = vector.shape_cast %2 : vector<1x1x9x16xf32> to vector<9x16xf32>
    %4 = arith.maximumf %1, %3 : vector<9x16xf32>
    %5 = vector.extract_strided_slice %4 {offsets = [0, 0], sizes = [9, 8], strides = [1, 1]} : vector<9x16xf32> to vector<9x8xf32>
    %6 = vector.extract_strided_slice %4 {offsets = [0, 8], sizes = [9, 8], strides = [1, 1]} : vector<9x16xf32> to vector<9x8xf32>
    %7 = arith.maximumf %5, %6 : vector<9x8xf32>
    %8 = vector.extract_strided_slice %7 {offsets = [0, 0], sizes = [8, 8], strides = [1, 1]} : vector<9x8xf32> to vector<8x8xf32>
    %c0_6 = arith.constant 0 : index
    %c0_7 = arith.constant 0 : index
    %c0_8 = arith.constant 0 : index
    %c0_9 = arith.constant 0 : index
    %9 = vector.load %arg3[%c0_6, %c0_7, %c0_8, %c0_9] : memref<1x1x8x8xf32, #tpu.memory_space<vmem>>, vector<1x1x8x8xf32>
    %10 = vector.shape_cast %9 : vector<1x1x8x8xf32> to vector<8x8xf32>
    %11 = vector.shape_cast %8 : vector<8x8xf32> to vector<1x1x8x8xf32>
    tpu.vector_store %arg3[%c0_6, %c0_7, %c0_8, %c0_9], %11 {strides = array<i32>} : memref<1x1x8x8xf32, #tpu.memory_space<vmem>>, vector<1x1x8x8xf32>,
    return
  }
  func.func @transform_0(%arg0: i32, %arg1: i32) -> (i32, i32, i32, i32) {
    %c0_i32 = arith.constant 0 : i32
    %c0_i32_0 = arith.constant 0 : i32
    %c0_i32_1 = arith.constant 0 : i32
    return %arg0, %arg1, %c0_i32, %c0_i32_0 : i32, i32, i32, i32
  }
  func.func @transform_1(%arg0: i32, %arg1: i32) -> (i32, i32, i32, i32) {
    %c0_i32 = arith.constant 0 : i32
    %c0_i32_0 = arith.constant 0 : i32
    %c0_i32_1 = arith.constant 0 : i32
    return %arg0, %arg1, %c0_i32, %c0_i32_0 : i32, i32, i32, i32
  }
}

module attributes {stable_mosaic.version = 11 : i64} {
  func.func @kernel(%arg0: i32, %arg1: memref<1x120x8xf32, #tpu.memory_space<vmem>>, %arg2: memref<80x1xf32, #tpu.memory_space<vmem>>, %arg3: memref<3x3x8x16xf32, #tpu.memory_space<vmem>>, %arg4: memref<1x16xf32, #tpu.memory_space<vmem>>, %arg5: memref<3x3x16x16xf32, #tpu.memory_space<vmem>>, %arg6: memref<1x16xf32, #tpu.memory_space<vmem>>, %arg7: memref<1x80x16xf32, #tpu.memory_space<vmem>>, %arg8: memref<120x16xf32, #tpu.memory_space<vmem>>) attributes {dimension_semantics = [#tpu.dimension_semantics<parallel>], iteration_bounds = array<i64: 2>, scalar_prefetch = 0 : i64, scratch_operands = 1 : i64, tpu.core_type = #tpu.core_type<tc>, window_params = [{transform_indices = @transform_0, window_bounds = array<i64: 1, 120, 8>}, {pipeline_mode = #tpu.pipeline_mode<synchronous>, transform_indices = @transform_1, window_bounds = array<i64: 80, 1>}, {pipeline_mode = #tpu.pipeline_mode<synchronous>, transform_indices = @transform_2, window_bounds = array<i64: 3, 3, 8, 16>}, {pipeline_mode = #tpu.pipeline_mode<synchronous>, transform_indices = @transform_3, window_bounds = array<i64: 1, 16>}, {pipeline_mode = #tpu.pipeline_mode<synchronous>, transform_indices = @transform_4, window_bounds = array<i64: 3, 3, 16, 16>}, {pipeline_mode = #tpu.pipeline_mode<synchronous>, transform_indices = @transform_5, window_bounds = array<i64: 1, 16>}, {transform_indices = @transform_6, window_bounds = array<i64: 1, 80, 16>}]} {
    %c0 = arith.constant 0 : index
    %c0_0 = arith.constant 0 : index
    %0 = vector.load %arg2[%c0, %c0_0] : memref<80x1xf32, #tpu.memory_space<vmem>>, vector<80x1xf32>
    %c0_1 = arith.constant 0 : index
    %c10 = arith.constant 10 : index
    %c0_2 = arith.constant 0 : index
    %1 = vector.load %arg1[%c0_1, %c10, %c0_2] : memref<1x120x8xf32, #tpu.memory_space<vmem>>, vector<1x80x8xf32>
    %2 = vector.shape_cast %1 : vector<1x80x8xf32> to vector<80x8xf32>
    %c0_3 = arith.constant 0 : index
    %c0_4 = arith.constant 0 : index
    %c0_5 = arith.constant 0 : index
    %c0_6 = arith.constant 0 : index
    %3 = vector.load %arg3[%c0_3, %c0_4, %c0_5, %c0_6] : memref<3x3x8x16xf32, #tpu.memory_space<vmem>>, vector<1x1x8x16xf32>
    %4 = vector.shape_cast %3 : vector<1x1x8x16xf32> to vector<8x16xf32>
    %cst = arith.constant dense<0.000000e+00> : vector<80x16xf32>
    %5 = tpu.matmul %2, %4, %cst {dimension_numbers = #tpu.dot_dimension_numbers<[1], [0], [0], [1], [0, 0, 1, 1], [], []>} : vector<80x8xf32>, vector<8x16xf32>, vector<80x16xf32> -> vector<80x16xf32>
    %c0_7 = arith.constant 0 : index
    %c11 = arith.constant 11 : index
    %c0_8 = arith.constant 0 : index
    %6 = vector.load %arg1[%c0_7, %c11, %c0_8] : memref<1x120x8xf32, #tpu.memory_space<vmem>>, vector<1x80x8xf32>
    %7 = vector.shape_cast %6 : vector<1x80x8xf32> to vector<80x8xf32>
    %c0_9 = arith.constant 0 : index
    %c1 = arith.constant 1 : index
    %c0_10 = arith.constant 0 : index
    %c0_11 = arith.constant 0 : index
    %8 = vector.load %arg3[%c0_9, %c1, %c0_10, %c0_11] : memref<3x3x8x16xf32, #tpu.memory_space<vmem>>, vector<1x1x8x16xf32>
    %9 = vector.shape_cast %8 : vector<1x1x8x16xf32> to vector<8x16xf32>
    %cst_12 = arith.constant dense<0.000000e+00> : vector<80x16xf32>
    %10 = tpu.matmul %7, %9, %cst_12 {dimension_numbers = #tpu.dot_dimension_numbers<[1], [0], [0], [1], [0, 0, 1, 1], [], []>} : vector<80x8xf32>, vector<8x16xf32>, vector<80x16xf32> -> vector<80x16xf32>
    %11 = arith.addf %5, %10 : vector<80x16xf32>
    %c0_13 = arith.constant 0 : index
    %c12 = arith.constant 12 : index
    %c0_14 = arith.constant 0 : index
    %12 = vector.load %arg1[%c0_13, %c12, %c0_14] : memref<1x120x8xf32, #tpu.memory_space<vmem>>, vector<1x80x8xf32>
    %13 = vector.shape_cast %12 : vector<1x80x8xf32> to vector<80x8xf32>
    %c0_15 = arith.constant 0 : index
    %c2 = arith.constant 2 : index
    %c0_16 = arith.constant 0 : index
    %c0_17 = arith.constant 0 : index
    %14 = vector.load %arg3[%c0_15, %c2, %c0_16, %c0_17] : memref<3x3x8x16xf32, #tpu.memory_space<vmem>>, vector<1x1x8x16xf32>
    %15 = vector.shape_cast %14 : vector<1x1x8x16xf32> to vector<8x16xf32>
    %cst_18 = arith.constant dense<0.000000e+00> : vector<80x16xf32>
    %16 = tpu.matmul %13, %15, %cst_18 {dimension_numbers = #tpu.dot_dimension_numbers<[1], [0], [0], [1], [0, 0, 1, 1], [], []>} : vector<80x8xf32>, vector<8x16xf32>, vector<80x16xf32> -> vector<80x16xf32>
    %17 = arith.addf %11, %16 : vector<80x16xf32>
    %c0_19 = arith.constant 0 : index
    %c20 = arith.constant 20 : index
    %c0_20 = arith.constant 0 : index
    %18 = vector.load %arg1[%c0_19, %c20, %c0_20] : memref<1x120x8xf32, #tpu.memory_space<vmem>>, vector<1x80x8xf32>
    %19 = vector.shape_cast %18 : vector<1x80x8xf32> to vector<80x8xf32>
    %c1_21 = arith.constant 1 : index
    %c0_22 = arith.constant 0 : index
    %c0_23 = arith.constant 0 : index
    %c0_24 = arith.constant 0 : index
    %20 = vector.load %arg3[%c1_21, %c0_22, %c0_23, %c0_24] : memref<3x3x8x16xf32, #tpu.memory_space<vmem>>, vector<1x1x8x16xf32>
    %21 = vector.shape_cast %20 : vector<1x1x8x16xf32> to vector<8x16xf32>
    %cst_25 = arith.constant dense<0.000000e+00> : vector<80x16xf32>
    %22 = tpu.matmul %19, %21, %cst_25 {dimension_numbers = #tpu.dot_dimension_numbers<[1], [0], [0], [1], [0, 0, 1, 1], [], []>} : vector<80x8xf32>, vector<8x16xf32>, vector<80x16xf32> -> vector<80x16xf32>
    %23 = arith.addf %17, %22 : vector<80x16xf32>
    %c0_26 = arith.constant 0 : index
    %c21 = arith.constant 21 : index
    %c0_27 = arith.constant 0 : index
    %24 = vector.load %arg1[%c0_26, %c21, %c0_27] : memref<1x120x8xf32, #tpu.memory_space<vmem>>, vector<1x80x8xf32>
    %25 = vector.shape_cast %24 : vector<1x80x8xf32> to vector<80x8xf32>
    %c1_28 = arith.constant 1 : index
    %c1_29 = arith.constant 1 : index
    %c0_30 = arith.constant 0 : index
    %c0_31 = arith.constant 0 : index
    %26 = vector.load %arg3[%c1_28, %c1_29, %c0_30, %c0_31] : memref<3x3x8x16xf32, #tpu.memory_space<vmem>>, vector<1x1x8x16xf32>
    %27 = vector.shape_cast %26 : vector<1x1x8x16xf32> to vector<8x16xf32>
    %cst_32 = arith.constant dense<0.000000e+00> : vector<80x16xf32>
    %28 = tpu.matmul %25, %27, %cst_32 {dimension_numbers = #tpu.dot_dimension_numbers<[1], [0], [0], [1], [0, 0, 1, 1], [], []>} : vector<80x8xf32>, vector<8x16xf32>, vector<80x16xf32> -> vector<80x16xf32>
    %29 = arith.addf %23, %28 : vector<80x16xf32>
    %c0_33 = arith.constant 0 : index
    %c22 = arith.constant 22 : index
    %c0_34 = arith.constant 0 : index
    %30 = vector.load %arg1[%c0_33, %c22, %c0_34] : memref<1x120x8xf32, #tpu.memory_space<vmem>>, vector<1x80x8xf32>
    %31 = vector.shape_cast %30 : vector<1x80x8xf32> to vector<80x8xf32>
    %c1_35 = arith.constant 1 : index
    %c2_36 = arith.constant 2 : index
    %c0_37 = arith.constant 0 : index
    %c0_38 = arith.constant 0 : index
    %32 = vector.load %arg3[%c1_35, %c2_36, %c0_37, %c0_38] : memref<3x3x8x16xf32, #tpu.memory_space<vmem>>, vector<1x1x8x16xf32>
    %33 = vector.shape_cast %32 : vector<1x1x8x16xf32> to vector<8x16xf32>
    %cst_39 = arith.constant dense<0.000000e+00> : vector<80x16xf32>
    %34 = tpu.matmul %31, %33, %cst_39 {dimension_numbers = #tpu.dot_dimension_numbers<[1], [0], [0], [1], [0, 0, 1, 1], [], []>} : vector<80x8xf32>, vector<8x16xf32>, vector<80x16xf32> -> vector<80x16xf32>
    %35 = arith.addf %29, %34 : vector<80x16xf32>
    %c0_40 = arith.constant 0 : index
    %c30 = arith.constant 30 : index
    %c0_41 = arith.constant 0 : index
    %36 = vector.load %arg1[%c0_40, %c30, %c0_41] : memref<1x120x8xf32, #tpu.memory_space<vmem>>, vector<1x80x8xf32>
    %37 = vector.shape_cast %36 : vector<1x80x8xf32> to vector<80x8xf32>
    %c2_42 = arith.constant 2 : index
    %c0_43 = arith.constant 0 : index
    %c0_44 = arith.constant 0 : index
    %c0_45 = arith.constant 0 : index
    %38 = vector.load %arg3[%c2_42, %c0_43, %c0_44, %c0_45] : memref<3x3x8x16xf32, #tpu.memory_space<vmem>>, vector<1x1x8x16xf32>
    %39 = vector.shape_cast %38 : vector<1x1x8x16xf32> to vector<8x16xf32>
    %cst_46 = arith.constant dense<0.000000e+00> : vector<80x16xf32>
    %40 = tpu.matmul %37, %39, %cst_46 {dimension_numbers = #tpu.dot_dimension_numbers<[1], [0], [0], [1], [0, 0, 1, 1], [], []>} : vector<80x8xf32>, vector<8x16xf32>, vector<80x16xf32> -> vector<80x16xf32>
    %41 = arith.addf %35, %40 : vector<80x16xf32>
    %c0_47 = arith.constant 0 : index
    %c31 = arith.constant 31 : index
    %c0_48 = arith.constant 0 : index
    %42 = vector.load %arg1[%c0_47, %c31, %c0_48] : memref<1x120x8xf32, #tpu.memory_space<vmem>>, vector<1x80x8xf32>
    %43 = vector.shape_cast %42 : vector<1x80x8xf32> to vector<80x8xf32>
    %c2_49 = arith.constant 2 : index
    %c1_50 = arith.constant 1 : index
    %c0_51 = arith.constant 0 : index
    %c0_52 = arith.constant 0 : index
    %44 = vector.load %arg3[%c2_49, %c1_50, %c0_51, %c0_52] : memref<3x3x8x16xf32, #tpu.memory_space<vmem>>, vector<1x1x8x16xf32>
    %45 = vector.shape_cast %44 : vector<1x1x8x16xf32> to vector<8x16xf32>
    %cst_53 = arith.constant dense<0.000000e+00> : vector<80x16xf32>
    %46 = tpu.matmul %43, %45, %cst_53 {dimension_numbers = #tpu.dot_dimension_numbers<[1], [0], [0], [1], [0, 0, 1, 1], [], []>} : vector<80x8xf32>, vector<8x16xf32>, vector<80x16xf32> -> vector<80x16xf32>
    %47 = arith.addf %41, %46 : vector<80x16xf32>
    %c0_54 = arith.constant 0 : index
    %c32 = arith.constant 32 : index
    %c0_55 = arith.constant 0 : index
    %48 = vector.load %arg1[%c0_54, %c32, %c0_55] : memref<1x120x8xf32, #tpu.memory_space<vmem>>, vector<1x80x8xf32>
    %49 = vector.shape_cast %48 : vector<1x80x8xf32> to vector<80x8xf32>
    %c2_56 = arith.constant 2 : index
    %c2_57 = arith.constant 2 : index
    %c0_58 = arith.constant 0 : index
    %c0_59 = arith.constant 0 : index
    %50 = vector.load %arg3[%c2_56, %c2_57, %c0_58, %c0_59] : memref<3x3x8x16xf32, #tpu.memory_space<vmem>>, vector<1x1x8x16xf32>
    %51 = vector.shape_cast %50 : vector<1x1x8x16xf32> to vector<8x16xf32>
    %cst_60 = arith.constant dense<0.000000e+00> : vector<80x16xf32>
    %52 = tpu.matmul %49, %51, %cst_60 {dimension_numbers = #tpu.dot_dimension_numbers<[1], [0], [0], [1], [0, 0, 1, 1], [], []>} : vector<80x8xf32>, vector<8x16xf32>, vector<80x16xf32> -> vector<80x16xf32>
    %53 = arith.addf %47, %52 : vector<80x16xf32>
    %c0_61 = arith.constant 0 : index
    %c0_62 = arith.constant 0 : index
    %54 = vector.load %arg4[%c0_61, %c0_62] : memref<1x16xf32, #tpu.memory_space<vmem>>, vector<1x16xf32>
    %55 = vector.broadcast %54 : vector<1x16xf32> to vector<80x16xf32>
    %56 = arith.addf %53, %55 : vector<80x16xf32>
    %cst_63 = arith.constant 0.000000e+00 : f32
    %57 = vector.broadcast %cst_63 : f32 to vector<80x16xf32>
    %58 = arith.maximumf %56, %57 : vector<80x16xf32>
    %59 = vector.broadcast %0 : vector<80x1xf32> to vector<80x16xf32>
    %60 = arith.mulf %58, %59 : vector<80x16xf32>
    %cst_64 = arith.constant 0.000000e+00 : f32
    %61 = vector.broadcast %cst_64 : f32 to vector<120x16xf32>
    %c0_65 = arith.constant 0 : index
    %c0_66 = arith.constant 0 : index
    %62 = vector.load %arg8[%c0_65, %c0_66] : memref<120x16xf32, #tpu.memory_space<vmem>>, vector<120x16xf32>
    tpu.vector_store %arg8[%c0_65, %c0_66], %61 {strides = array<i32>} : memref<120x16xf32, #tpu.memory_space<vmem>>, vector<120x16xf32>,
    %c21_67 = arith.constant 21 : index
    %c0_68 = arith.constant 0 : index
    %63 = vector.load %arg8[%c21_67, %c0_68] : memref<120x16xf32, #tpu.memory_space<vmem>>, vector<80x16xf32>
    tpu.vector_store %arg8[%c21_67, %c0_68], %60 {strides = array<i32>} : memref<120x16xf32, #tpu.memory_space<vmem>>, vector<80x16xf32>,
    %c10_69 = arith.constant 10 : index
    %c0_70 = arith.constant 0 : index
    %64 = vector.load %arg8[%c10_69, %c0_70] : memref<120x16xf32, #tpu.memory_space<vmem>>, vector<80x16xf32>
    %c0_71 = arith.constant 0 : index
    %c0_72 = arith.constant 0 : index
    %c0_73 = arith.constant 0 : index
    %c0_74 = arith.constant 0 : index
    %65 = vector.load %arg5[%c0_71, %c0_72, %c0_73, %c0_74] : memref<3x3x16x16xf32, #tpu.memory_space<vmem>>, vector<1x1x16x16xf32>
    %66 = vector.shape_cast %65 : vector<1x1x16x16xf32> to vector<16x16xf32>
    %cst_75 = arith.constant dense<0.000000e+00> : vector<80x16xf32>
    %67 = tpu.matmul %64, %66, %cst_75 {dimension_numbers = #tpu.dot_dimension_numbers<[1], [0], [0], [1], [0, 0, 1, 1], [], []>} : vector<80x16xf32>, vector<16x16xf32>, vector<80x16xf32> -> vector<80x16xf32>
    %c11_76 = arith.constant 11 : index
    %c0_77 = arith.constant 0 : index
    %68 = vector.load %arg8[%c11_76, %c0_77] : memref<120x16xf32, #tpu.memory_space<vmem>>, vector<80x16xf32>
    %c0_78 = arith.constant 0 : index
    %c1_79 = arith.constant 1 : index
    %c0_80 = arith.constant 0 : index
    %c0_81 = arith.constant 0 : index
    %69 = vector.load %arg5[%c0_78, %c1_79, %c0_80, %c0_81] : memref<3x3x16x16xf32, #tpu.memory_space<vmem>>, vector<1x1x16x16xf32>
    %70 = vector.shape_cast %69 : vector<1x1x16x16xf32> to vector<16x16xf32>
    %cst_82 = arith.constant dense<0.000000e+00> : vector<80x16xf32>
    %71 = tpu.matmul %68, %70, %cst_82 {dimension_numbers = #tpu.dot_dimension_numbers<[1], [0], [0], [1], [0, 0, 1, 1], [], []>} : vector<80x16xf32>, vector<16x16xf32>, vector<80x16xf32> -> vector<80x16xf32>
    %72 = arith.addf %67, %71 : vector<80x16xf32>
    %c12_83 = arith.constant 12 : index
    %c0_84 = arith.constant 0 : index
    %73 = vector.load %arg8[%c12_83, %c0_84] : memref<120x16xf32, #tpu.memory_space<vmem>>, vector<80x16xf32>
    %c0_85 = arith.constant 0 : index
    %c2_86 = arith.constant 2 : index
    %c0_87 = arith.constant 0 : index
    %c0_88 = arith.constant 0 : index
    %74 = vector.load %arg5[%c0_85, %c2_86, %c0_87, %c0_88] : memref<3x3x16x16xf32, #tpu.memory_space<vmem>>, vector<1x1x16x16xf32>
    %75 = vector.shape_cast %74 : vector<1x1x16x16xf32> to vector<16x16xf32>
    %cst_89 = arith.constant dense<0.000000e+00> : vector<80x16xf32>
    %76 = tpu.matmul %73, %75, %cst_89 {dimension_numbers = #tpu.dot_dimension_numbers<[1], [0], [0], [1], [0, 0, 1, 1], [], []>} : vector<80x16xf32>, vector<16x16xf32>, vector<80x16xf32> -> vector<80x16xf32>
    %77 = arith.addf %72, %76 : vector<80x16xf32>
    %c20_90 = arith.constant 20 : index
    %c0_91 = arith.constant 0 : index
    %78 = vector.load %arg8[%c20_90, %c0_91] : memref<120x16xf32, #tpu.memory_space<vmem>>, vector<80x16xf32>
    %c1_92 = arith.constant 1 : index
    %c0_93 = arith.constant 0 : index
    %c0_94 = arith.constant 0 : index
    %c0_95 = arith.constant 0 : index
    %79 = vector.load %arg5[%c1_92, %c0_93, %c0_94, %c0_95] : memref<3x3x16x16xf32, #tpu.memory_space<vmem>>, vector<1x1x16x16xf32>
    %80 = vector.shape_cast %79 : vector<1x1x16x16xf32> to vector<16x16xf32>
    %cst_96 = arith.constant dense<0.000000e+00> : vector<80x16xf32>
    %81 = tpu.matmul %78, %80, %cst_96 {dimension_numbers = #tpu.dot_dimension_numbers<[1], [0], [0], [1], [0, 0, 1, 1], [], []>} : vector<80x16xf32>, vector<16x16xf32>, vector<80x16xf32> -> vector<80x16xf32>
    %82 = arith.addf %77, %81 : vector<80x16xf32>
    %c21_97 = arith.constant 21 : index
    %c0_98 = arith.constant 0 : index
    %83 = vector.load %arg8[%c21_97, %c0_98] : memref<120x16xf32, #tpu.memory_space<vmem>>, vector<80x16xf32>
    %c1_99 = arith.constant 1 : index
    %c1_100 = arith.constant 1 : index
    %c0_101 = arith.constant 0 : index
    %c0_102 = arith.constant 0 : index
    %84 = vector.load %arg5[%c1_99, %c1_100, %c0_101, %c0_102] : memref<3x3x16x16xf32, #tpu.memory_space<vmem>>, vector<1x1x16x16xf32>
    %85 = vector.shape_cast %84 : vector<1x1x16x16xf32> to vector<16x16xf32>
    %cst_103 = arith.constant dense<0.000000e+00> : vector<80x16xf32>
    %86 = tpu.matmul %83, %85, %cst_103 {dimension_numbers = #tpu.dot_dimension_numbers<[1], [0], [0], [1], [0, 0, 1, 1], [], []>} : vector<80x16xf32>, vector<16x16xf32>, vector<80x16xf32> -> vector<80x16xf32>
    %87 = arith.addf %82, %86 : vector<80x16xf32>
    %c22_104 = arith.constant 22 : index
    %c0_105 = arith.constant 0 : index
    %88 = vector.load %arg8[%c22_104, %c0_105] : memref<120x16xf32, #tpu.memory_space<vmem>>, vector<80x16xf32>
    %c1_106 = arith.constant 1 : index
    %c2_107 = arith.constant 2 : index
    %c0_108 = arith.constant 0 : index
    %c0_109 = arith.constant 0 : index
    %89 = vector.load %arg5[%c1_106, %c2_107, %c0_108, %c0_109] : memref<3x3x16x16xf32, #tpu.memory_space<vmem>>, vector<1x1x16x16xf32>
    %90 = vector.shape_cast %89 : vector<1x1x16x16xf32> to vector<16x16xf32>
    %cst_110 = arith.constant dense<0.000000e+00> : vector<80x16xf32>
    %91 = tpu.matmul %88, %90, %cst_110 {dimension_numbers = #tpu.dot_dimension_numbers<[1], [0], [0], [1], [0, 0, 1, 1], [], []>} : vector<80x16xf32>, vector<16x16xf32>, vector<80x16xf32> -> vector<80x16xf32>
    %92 = arith.addf %87, %91 : vector<80x16xf32>
    %c30_111 = arith.constant 30 : index
    %c0_112 = arith.constant 0 : index
    %93 = vector.load %arg8[%c30_111, %c0_112] : memref<120x16xf32, #tpu.memory_space<vmem>>, vector<80x16xf32>
    %c2_113 = arith.constant 2 : index
    %c0_114 = arith.constant 0 : index
    %c0_115 = arith.constant 0 : index
    %c0_116 = arith.constant 0 : index
    %94 = vector.load %arg5[%c2_113, %c0_114, %c0_115, %c0_116] : memref<3x3x16x16xf32, #tpu.memory_space<vmem>>, vector<1x1x16x16xf32>
    %95 = vector.shape_cast %94 : vector<1x1x16x16xf32> to vector<16x16xf32>
    %cst_117 = arith.constant dense<0.000000e+00> : vector<80x16xf32>
    %96 = tpu.matmul %93, %95, %cst_117 {dimension_numbers = #tpu.dot_dimension_numbers<[1], [0], [0], [1], [0, 0, 1, 1], [], []>} : vector<80x16xf32>, vector<16x16xf32>, vector<80x16xf32> -> vector<80x16xf32>
    %97 = arith.addf %92, %96 : vector<80x16xf32>
    %c31_118 = arith.constant 31 : index
    %c0_119 = arith.constant 0 : index
    %98 = vector.load %arg8[%c31_118, %c0_119] : memref<120x16xf32, #tpu.memory_space<vmem>>, vector<80x16xf32>
    %c2_120 = arith.constant 2 : index
    %c1_121 = arith.constant 1 : index
    %c0_122 = arith.constant 0 : index
    %c0_123 = arith.constant 0 : index
    %99 = vector.load %arg5[%c2_120, %c1_121, %c0_122, %c0_123] : memref<3x3x16x16xf32, #tpu.memory_space<vmem>>, vector<1x1x16x16xf32>
    %100 = vector.shape_cast %99 : vector<1x1x16x16xf32> to vector<16x16xf32>
    %cst_124 = arith.constant dense<0.000000e+00> : vector<80x16xf32>
    %101 = tpu.matmul %98, %100, %cst_124 {dimension_numbers = #tpu.dot_dimension_numbers<[1], [0], [0], [1], [0, 0, 1, 1], [], []>} : vector<80x16xf32>, vector<16x16xf32>, vector<80x16xf32> -> vector<80x16xf32>
    %102 = arith.addf %97, %101 : vector<80x16xf32>
    %c32_125 = arith.constant 32 : index
    %c0_126 = arith.constant 0 : index
    %103 = vector.load %arg8[%c32_125, %c0_126] : memref<120x16xf32, #tpu.memory_space<vmem>>, vector<80x16xf32>
    %c2_127 = arith.constant 2 : index
    %c2_128 = arith.constant 2 : index
    %c0_129 = arith.constant 0 : index
    %c0_130 = arith.constant 0 : index
    %104 = vector.load %arg5[%c2_127, %c2_128, %c0_129, %c0_130] : memref<3x3x16x16xf32, #tpu.memory_space<vmem>>, vector<1x1x16x16xf32>
    %105 = vector.shape_cast %104 : vector<1x1x16x16xf32> to vector<16x16xf32>
    %cst_131 = arith.constant dense<0.000000e+00> : vector<80x16xf32>
    %106 = tpu.matmul %103, %105, %cst_131 {dimension_numbers = #tpu.dot_dimension_numbers<[1], [0], [0], [1], [0, 0, 1, 1], [], []>} : vector<80x16xf32>, vector<16x16xf32>, vector<80x16xf32> -> vector<80x16xf32>
    %107 = arith.addf %102, %106 : vector<80x16xf32>
    %c0_132 = arith.constant 0 : index
    %c0_133 = arith.constant 0 : index
    %108 = vector.load %arg6[%c0_132, %c0_133] : memref<1x16xf32, #tpu.memory_space<vmem>>, vector<1x16xf32>
    %109 = vector.broadcast %108 : vector<1x16xf32> to vector<80x16xf32>
    %110 = arith.addf %107, %109 : vector<80x16xf32>
    %cst_134 = arith.constant 0.000000e+00 : f32
    %111 = vector.broadcast %cst_134 : f32 to vector<80x16xf32>
    %112 = arith.maximumf %110, %111 : vector<80x16xf32>
    %113 = vector.broadcast %0 : vector<80x1xf32> to vector<80x16xf32>
    %114 = arith.mulf %112, %113 : vector<80x16xf32>
    %c0_135 = arith.constant 0 : index
    %c0_136 = arith.constant 0 : index
    %c0_137 = arith.constant 0 : index
    %115 = vector.load %arg7[%c0_135, %c0_136, %c0_137] : memref<1x80x16xf32, #tpu.memory_space<vmem>>, vector<1x80x16xf32>
    %116 = vector.shape_cast %115 : vector<1x80x16xf32> to vector<80x16xf32>
    %117 = vector.shape_cast %114 : vector<80x16xf32> to vector<1x80x16xf32>
    tpu.vector_store %arg7[%c0_135, %c0_136, %c0_137], %117 {strides = array<i32>} : memref<1x80x16xf32, #tpu.memory_space<vmem>>, vector<1x80x16xf32>,
    return
  }
  func.func @transform_0(%arg0: i32) -> (i32, i32, i32) {
    %c0_i32 = arith.constant 0 : i32
    %c0_i32_0 = arith.constant 0 : i32
    %c0_i32_1 = arith.constant 0 : i32
    return %arg0, %c0_i32, %c0_i32_0 : i32, i32, i32
  }
  func.func @transform_1(%arg0: i32) -> (i32, i32) {
    %c0_i32 = arith.constant 0 : i32
    %c0_i32_0 = arith.constant 0 : i32
    %c0_i32_1 = arith.constant 0 : i32
    return %c0_i32, %c0_i32_0 : i32, i32
  }
  func.func @transform_2(%arg0: i32) -> (i32, i32, i32, i32) {
    %c0_i32 = arith.constant 0 : i32
    %c0_i32_0 = arith.constant 0 : i32
    %c0_i32_1 = arith.constant 0 : i32
    %c0_i32_2 = arith.constant 0 : i32
    %c0_i32_3 = arith.constant 0 : i32
    return %c0_i32, %c0_i32_0, %c0_i32_1, %c0_i32_2 : i32, i32, i32, i32
  }
  func.func @transform_3(%arg0: i32) -> (i32, i32) {
    %c0_i32 = arith.constant 0 : i32
    %c0_i32_0 = arith.constant 0 : i32
    %c0_i32_1 = arith.constant 0 : i32
    return %c0_i32, %c0_i32_0 : i32, i32
  }
  func.func @transform_4(%arg0: i32) -> (i32, i32, i32, i32) {
    %c0_i32 = arith.constant 0 : i32
    %c0_i32_0 = arith.constant 0 : i32
    %c0_i32_1 = arith.constant 0 : i32
    %c0_i32_2 = arith.constant 0 : i32
    %c0_i32_3 = arith.constant 0 : i32
    return %c0_i32, %c0_i32_0, %c0_i32_1, %c0_i32_2 : i32, i32, i32, i32
  }
  func.func @transform_5(%arg0: i32) -> (i32, i32) {
    %c0_i32 = arith.constant 0 : i32
    %c0_i32_0 = arith.constant 0 : i32
    %c0_i32_1 = arith.constant 0 : i32
    return %c0_i32, %c0_i32_0 : i32, i32
  }
  func.func @transform_6(%arg0: i32) -> (i32, i32, i32) {
    %c0_i32 = arith.constant 0 : i32
    %c0_i32_0 = arith.constant 0 : i32
    %c0_i32_1 = arith.constant 0 : i32
    return %arg0, %c0_i32, %c0_i32_0 : i32, i32, i32
  }
}

module attributes {stable_mosaic.version = 11 : i64} {
  func.func @kernel(%arg0: i32, %arg1: memref<1x48x16xf32, #tpu.memory_space<vmem>>, %arg2: memref<24x1xf32, #tpu.memory_space<vmem>>, %arg3: memref<3x3x16x32xf32, #tpu.memory_space<vmem>>, %arg4: memref<1x32xf32, #tpu.memory_space<vmem>>, %arg5: memref<3x3x32x32xf32, #tpu.memory_space<vmem>>, %arg6: memref<1x32xf32, #tpu.memory_space<vmem>>, %arg7: memref<1x24x32xf32, #tpu.memory_space<vmem>>, %arg8: memref<48x32xf32, #tpu.memory_space<vmem>>) attributes {dimension_semantics = [#tpu.dimension_semantics<parallel>], iteration_bounds = array<i64: 2>, scalar_prefetch = 0 : i64, scratch_operands = 1 : i64, tpu.core_type = #tpu.core_type<tc>, window_params = [{transform_indices = @transform_0, window_bounds = array<i64: 1, 48, 16>}, {pipeline_mode = #tpu.pipeline_mode<synchronous>, transform_indices = @transform_1, window_bounds = array<i64: 24, 1>}, {pipeline_mode = #tpu.pipeline_mode<synchronous>, transform_indices = @transform_2, window_bounds = array<i64: 3, 3, 16, 32>}, {pipeline_mode = #tpu.pipeline_mode<synchronous>, transform_indices = @transform_3, window_bounds = array<i64: 1, 32>}, {pipeline_mode = #tpu.pipeline_mode<synchronous>, transform_indices = @transform_4, window_bounds = array<i64: 3, 3, 32, 32>}, {pipeline_mode = #tpu.pipeline_mode<synchronous>, transform_indices = @transform_5, window_bounds = array<i64: 1, 32>}, {transform_indices = @transform_6, window_bounds = array<i64: 1, 24, 32>}]} {
    %c0 = arith.constant 0 : index
    %c0_0 = arith.constant 0 : index
    %0 = vector.load %arg2[%c0, %c0_0] : memref<24x1xf32, #tpu.memory_space<vmem>>, vector<24x1xf32>
    %c0_1 = arith.constant 0 : index
    %c6 = arith.constant 6 : index
    %c0_2 = arith.constant 0 : index
    %1 = vector.load %arg1[%c0_1, %c6, %c0_2] : memref<1x48x16xf32, #tpu.memory_space<vmem>>, vector<1x24x16xf32>
    %2 = vector.shape_cast %1 : vector<1x24x16xf32> to vector<24x16xf32>
    %c0_3 = arith.constant 0 : index
    %c0_4 = arith.constant 0 : index
    %c0_5 = arith.constant 0 : index
    %c0_6 = arith.constant 0 : index
    %3 = vector.load %arg3[%c0_3, %c0_4, %c0_5, %c0_6] : memref<3x3x16x32xf32, #tpu.memory_space<vmem>>, vector<1x1x16x32xf32>
    %4 = vector.shape_cast %3 : vector<1x1x16x32xf32> to vector<16x32xf32>
    %cst = arith.constant dense<0.000000e+00> : vector<24x32xf32>
    %5 = tpu.matmul %2, %4, %cst {dimension_numbers = #tpu.dot_dimension_numbers<[1], [0], [0], [1], [0, 0, 1, 1], [], []>} : vector<24x16xf32>, vector<16x32xf32>, vector<24x32xf32> -> vector<24x32xf32>
    %c0_7 = arith.constant 0 : index
    %c7 = arith.constant 7 : index
    %c0_8 = arith.constant 0 : index
    %6 = vector.load %arg1[%c0_7, %c7, %c0_8] : memref<1x48x16xf32, #tpu.memory_space<vmem>>, vector<1x24x16xf32>
    %7 = vector.shape_cast %6 : vector<1x24x16xf32> to vector<24x16xf32>
    %c0_9 = arith.constant 0 : index
    %c1 = arith.constant 1 : index
    %c0_10 = arith.constant 0 : index
    %c0_11 = arith.constant 0 : index
    %8 = vector.load %arg3[%c0_9, %c1, %c0_10, %c0_11] : memref<3x3x16x32xf32, #tpu.memory_space<vmem>>, vector<1x1x16x32xf32>
    %9 = vector.shape_cast %8 : vector<1x1x16x32xf32> to vector<16x32xf32>
    %cst_12 = arith.constant dense<0.000000e+00> : vector<24x32xf32>
    %10 = tpu.matmul %7, %9, %cst_12 {dimension_numbers = #tpu.dot_dimension_numbers<[1], [0], [0], [1], [0, 0, 1, 1], [], []>} : vector<24x16xf32>, vector<16x32xf32>, vector<24x32xf32> -> vector<24x32xf32>
    %11 = arith.addf %5, %10 : vector<24x32xf32>
    %c0_13 = arith.constant 0 : index
    %c8 = arith.constant 8 : index
    %c0_14 = arith.constant 0 : index
    %12 = vector.load %arg1[%c0_13, %c8, %c0_14] : memref<1x48x16xf32, #tpu.memory_space<vmem>>, vector<1x24x16xf32>
    %13 = vector.shape_cast %12 : vector<1x24x16xf32> to vector<24x16xf32>
    %c0_15 = arith.constant 0 : index
    %c2 = arith.constant 2 : index
    %c0_16 = arith.constant 0 : index
    %c0_17 = arith.constant 0 : index
    %14 = vector.load %arg3[%c0_15, %c2, %c0_16, %c0_17] : memref<3x3x16x32xf32, #tpu.memory_space<vmem>>, vector<1x1x16x32xf32>
    %15 = vector.shape_cast %14 : vector<1x1x16x32xf32> to vector<16x32xf32>
    %cst_18 = arith.constant dense<0.000000e+00> : vector<24x32xf32>
    %16 = tpu.matmul %13, %15, %cst_18 {dimension_numbers = #tpu.dot_dimension_numbers<[1], [0], [0], [1], [0, 0, 1, 1], [], []>} : vector<24x16xf32>, vector<16x32xf32>, vector<24x32xf32> -> vector<24x32xf32>
    %17 = arith.addf %11, %16 : vector<24x32xf32>
    %c0_19 = arith.constant 0 : index
    %c12 = arith.constant 12 : index
    %c0_20 = arith.constant 0 : index
    %18 = vector.load %arg1[%c0_19, %c12, %c0_20] : memref<1x48x16xf32, #tpu.memory_space<vmem>>, vector<1x24x16xf32>
    %19 = vector.shape_cast %18 : vector<1x24x16xf32> to vector<24x16xf32>
    %c1_21 = arith.constant 1 : index
    %c0_22 = arith.constant 0 : index
    %c0_23 = arith.constant 0 : index
    %c0_24 = arith.constant 0 : index
    %20 = vector.load %arg3[%c1_21, %c0_22, %c0_23, %c0_24] : memref<3x3x16x32xf32, #tpu.memory_space<vmem>>, vector<1x1x16x32xf32>
    %21 = vector.shape_cast %20 : vector<1x1x16x32xf32> to vector<16x32xf32>
    %cst_25 = arith.constant dense<0.000000e+00> : vector<24x32xf32>
    %22 = tpu.matmul %19, %21, %cst_25 {dimension_numbers = #tpu.dot_dimension_numbers<[1], [0], [0], [1], [0, 0, 1, 1], [], []>} : vector<24x16xf32>, vector<16x32xf32>, vector<24x32xf32> -> vector<24x32xf32>
    %23 = arith.addf %17, %22 : vector<24x32xf32>
    %c0_26 = arith.constant 0 : index
    %c13 = arith.constant 13 : index
    %c0_27 = arith.constant 0 : index
    %24 = vector.load %arg1[%c0_26, %c13, %c0_27] : memref<1x48x16xf32, #tpu.memory_space<vmem>>, vector<1x24x16xf32>
    %25 = vector.shape_cast %24 : vector<1x24x16xf32> to vector<24x16xf32>
    %c1_28 = arith.constant 1 : index
    %c1_29 = arith.constant 1 : index
    %c0_30 = arith.constant 0 : index
    %c0_31 = arith.constant 0 : index
    %26 = vector.load %arg3[%c1_28, %c1_29, %c0_30, %c0_31] : memref<3x3x16x32xf32, #tpu.memory_space<vmem>>, vector<1x1x16x32xf32>
    %27 = vector.shape_cast %26 : vector<1x1x16x32xf32> to vector<16x32xf32>
    %cst_32 = arith.constant dense<0.000000e+00> : vector<24x32xf32>
    %28 = tpu.matmul %25, %27, %cst_32 {dimension_numbers = #tpu.dot_dimension_numbers<[1], [0], [0], [1], [0, 0, 1, 1], [], []>} : vector<24x16xf32>, vector<16x32xf32>, vector<24x32xf32> -> vector<24x32xf32>
    %29 = arith.addf %23, %28 : vector<24x32xf32>
    %c0_33 = arith.constant 0 : index
    %c14 = arith.constant 14 : index
    %c0_34 = arith.constant 0 : index
    %30 = vector.load %arg1[%c0_33, %c14, %c0_34] : memref<1x48x16xf32, #tpu.memory_space<vmem>>, vector<1x24x16xf32>
    %31 = vector.shape_cast %30 : vector<1x24x16xf32> to vector<24x16xf32>
    %c1_35 = arith.constant 1 : index
    %c2_36 = arith.constant 2 : index
    %c0_37 = arith.constant 0 : index
    %c0_38 = arith.constant 0 : index
    %32 = vector.load %arg3[%c1_35, %c2_36, %c0_37, %c0_38] : memref<3x3x16x32xf32, #tpu.memory_space<vmem>>, vector<1x1x16x32xf32>
    %33 = vector.shape_cast %32 : vector<1x1x16x32xf32> to vector<16x32xf32>
    %cst_39 = arith.constant dense<0.000000e+00> : vector<24x32xf32>
    %34 = tpu.matmul %31, %33, %cst_39 {dimension_numbers = #tpu.dot_dimension_numbers<[1], [0], [0], [1], [0, 0, 1, 1], [], []>} : vector<24x16xf32>, vector<16x32xf32>, vector<24x32xf32> -> vector<24x32xf32>
    %35 = arith.addf %29, %34 : vector<24x32xf32>
    %c0_40 = arith.constant 0 : index
    %c18 = arith.constant 18 : index
    %c0_41 = arith.constant 0 : index
    %36 = vector.load %arg1[%c0_40, %c18, %c0_41] : memref<1x48x16xf32, #tpu.memory_space<vmem>>, vector<1x24x16xf32>
    %37 = vector.shape_cast %36 : vector<1x24x16xf32> to vector<24x16xf32>
    %c2_42 = arith.constant 2 : index
    %c0_43 = arith.constant 0 : index
    %c0_44 = arith.constant 0 : index
    %c0_45 = arith.constant 0 : index
    %38 = vector.load %arg3[%c2_42, %c0_43, %c0_44, %c0_45] : memref<3x3x16x32xf32, #tpu.memory_space<vmem>>, vector<1x1x16x32xf32>
    %39 = vector.shape_cast %38 : vector<1x1x16x32xf32> to vector<16x32xf32>
    %cst_46 = arith.constant dense<0.000000e+00> : vector<24x32xf32>
    %40 = tpu.matmul %37, %39, %cst_46 {dimension_numbers = #tpu.dot_dimension_numbers<[1], [0], [0], [1], [0, 0, 1, 1], [], []>} : vector<24x16xf32>, vector<16x32xf32>, vector<24x32xf32> -> vector<24x32xf32>
    %41 = arith.addf %35, %40 : vector<24x32xf32>
    %c0_47 = arith.constant 0 : index
    %c19 = arith.constant 19 : index
    %c0_48 = arith.constant 0 : index
    %42 = vector.load %arg1[%c0_47, %c19, %c0_48] : memref<1x48x16xf32, #tpu.memory_space<vmem>>, vector<1x24x16xf32>
    %43 = vector.shape_cast %42 : vector<1x24x16xf32> to vector<24x16xf32>
    %c2_49 = arith.constant 2 : index
    %c1_50 = arith.constant 1 : index
    %c0_51 = arith.constant 0 : index
    %c0_52 = arith.constant 0 : index
    %44 = vector.load %arg3[%c2_49, %c1_50, %c0_51, %c0_52] : memref<3x3x16x32xf32, #tpu.memory_space<vmem>>, vector<1x1x16x32xf32>
    %45 = vector.shape_cast %44 : vector<1x1x16x32xf32> to vector<16x32xf32>
    %cst_53 = arith.constant dense<0.000000e+00> : vector<24x32xf32>
    %46 = tpu.matmul %43, %45, %cst_53 {dimension_numbers = #tpu.dot_dimension_numbers<[1], [0], [0], [1], [0, 0, 1, 1], [], []>} : vector<24x16xf32>, vector<16x32xf32>, vector<24x32xf32> -> vector<24x32xf32>
    %47 = arith.addf %41, %46 : vector<24x32xf32>
    %c0_54 = arith.constant 0 : index
    %c20 = arith.constant 20 : index
    %c0_55 = arith.constant 0 : index
    %48 = vector.load %arg1[%c0_54, %c20, %c0_55] : memref<1x48x16xf32, #tpu.memory_space<vmem>>, vector<1x24x16xf32>
    %49 = vector.shape_cast %48 : vector<1x24x16xf32> to vector<24x16xf32>
    %c2_56 = arith.constant 2 : index
    %c2_57 = arith.constant 2 : index
    %c0_58 = arith.constant 0 : index
    %c0_59 = arith.constant 0 : index
    %50 = vector.load %arg3[%c2_56, %c2_57, %c0_58, %c0_59] : memref<3x3x16x32xf32, #tpu.memory_space<vmem>>, vector<1x1x16x32xf32>
    %51 = vector.shape_cast %50 : vector<1x1x16x32xf32> to vector<16x32xf32>
    %cst_60 = arith.constant dense<0.000000e+00> : vector<24x32xf32>
    %52 = tpu.matmul %49, %51, %cst_60 {dimension_numbers = #tpu.dot_dimension_numbers<[1], [0], [0], [1], [0, 0, 1, 1], [], []>} : vector<24x16xf32>, vector<16x32xf32>, vector<24x32xf32> -> vector<24x32xf32>
    %53 = arith.addf %47, %52 : vector<24x32xf32>
    %c0_61 = arith.constant 0 : index
    %c0_62 = arith.constant 0 : index
    %54 = vector.load %arg4[%c0_61, %c0_62] : memref<1x32xf32, #tpu.memory_space<vmem>>, vector<1x32xf32>
    %55 = vector.broadcast %54 : vector<1x32xf32> to vector<24x32xf32>
    %56 = arith.addf %53, %55 : vector<24x32xf32>
    %cst_63 = arith.constant 0.000000e+00 : f32
    %57 = vector.broadcast %cst_63 : f32 to vector<24x32xf32>
    %58 = arith.maximumf %56, %57 : vector<24x32xf32>
    %59 = vector.broadcast %0 : vector<24x1xf32> to vector<24x32xf32>
    %60 = arith.mulf %58, %59 : vector<24x32xf32>
    %cst_64 = arith.constant 0.000000e+00 : f32
    %61 = vector.broadcast %cst_64 : f32 to vector<48x32xf32>
    %c0_65 = arith.constant 0 : index
    %c0_66 = arith.constant 0 : index
    %62 = vector.load %arg8[%c0_65, %c0_66] : memref<48x32xf32, #tpu.memory_space<vmem>>, vector<48x32xf32>
    tpu.vector_store %arg8[%c0_65, %c0_66], %61 {strides = array<i32>} : memref<48x32xf32, #tpu.memory_space<vmem>>, vector<48x32xf32>,
    %c13_67 = arith.constant 13 : index
    %c0_68 = arith.constant 0 : index
    %63 = vector.load %arg8[%c13_67, %c0_68] : memref<48x32xf32, #tpu.memory_space<vmem>>, vector<24x32xf32>
    tpu.vector_store %arg8[%c13_67, %c0_68], %60 {strides = array<i32>} : memref<48x32xf32, #tpu.memory_space<vmem>>, vector<24x32xf32>,
    %c6_69 = arith.constant 6 : index
    %c0_70 = arith.constant 0 : index
    %64 = vector.load %arg8[%c6_69, %c0_70] : memref<48x32xf32, #tpu.memory_space<vmem>>, vector<24x32xf32>
    %c0_71 = arith.constant 0 : index
    %c0_72 = arith.constant 0 : index
    %c0_73 = arith.constant 0 : index
    %c0_74 = arith.constant 0 : index
    %65 = vector.load %arg5[%c0_71, %c0_72, %c0_73, %c0_74] : memref<3x3x32x32xf32, #tpu.memory_space<vmem>>, vector<1x1x32x32xf32>
    %66 = vector.shape_cast %65 : vector<1x1x32x32xf32> to vector<32x32xf32>
    %cst_75 = arith.constant dense<0.000000e+00> : vector<24x32xf32>
    %67 = tpu.matmul %64, %66, %cst_75 {dimension_numbers = #tpu.dot_dimension_numbers<[1], [0], [0], [1], [0, 0, 1, 1], [], []>} : vector<24x32xf32>, vector<32x32xf32>, vector<24x32xf32> -> vector<24x32xf32>
    %c7_76 = arith.constant 7 : index
    %c0_77 = arith.constant 0 : index
    %68 = vector.load %arg8[%c7_76, %c0_77] : memref<48x32xf32, #tpu.memory_space<vmem>>, vector<24x32xf32>
    %c0_78 = arith.constant 0 : index
    %c1_79 = arith.constant 1 : index
    %c0_80 = arith.constant 0 : index
    %c0_81 = arith.constant 0 : index
    %69 = vector.load %arg5[%c0_78, %c1_79, %c0_80, %c0_81] : memref<3x3x32x32xf32, #tpu.memory_space<vmem>>, vector<1x1x32x32xf32>
    %70 = vector.shape_cast %69 : vector<1x1x32x32xf32> to vector<32x32xf32>
    %cst_82 = arith.constant dense<0.000000e+00> : vector<24x32xf32>
    %71 = tpu.matmul %68, %70, %cst_82 {dimension_numbers = #tpu.dot_dimension_numbers<[1], [0], [0], [1], [0, 0, 1, 1], [], []>} : vector<24x32xf32>, vector<32x32xf32>, vector<24x32xf32> -> vector<24x32xf32>
    %72 = arith.addf %67, %71 : vector<24x32xf32>
    %c8_83 = arith.constant 8 : index
    %c0_84 = arith.constant 0 : index
    %73 = vector.load %arg8[%c8_83, %c0_84] : memref<48x32xf32, #tpu.memory_space<vmem>>, vector<24x32xf32>
    %c0_85 = arith.constant 0 : index
    %c2_86 = arith.constant 2 : index
    %c0_87 = arith.constant 0 : index
    %c0_88 = arith.constant 0 : index
    %74 = vector.load %arg5[%c0_85, %c2_86, %c0_87, %c0_88] : memref<3x3x32x32xf32, #tpu.memory_space<vmem>>, vector<1x1x32x32xf32>
    %75 = vector.shape_cast %74 : vector<1x1x32x32xf32> to vector<32x32xf32>
    %cst_89 = arith.constant dense<0.000000e+00> : vector<24x32xf32>
    %76 = tpu.matmul %73, %75, %cst_89 {dimension_numbers = #tpu.dot_dimension_numbers<[1], [0], [0], [1], [0, 0, 1, 1], [], []>} : vector<24x32xf32>, vector<32x32xf32>, vector<24x32xf32> -> vector<24x32xf32>
    %77 = arith.addf %72, %76 : vector<24x32xf32>
    %c12_90 = arith.constant 12 : index
    %c0_91 = arith.constant 0 : index
    %78 = vector.load %arg8[%c12_90, %c0_91] : memref<48x32xf32, #tpu.memory_space<vmem>>, vector<24x32xf32>
    %c1_92 = arith.constant 1 : index
    %c0_93 = arith.constant 0 : index
    %c0_94 = arith.constant 0 : index
    %c0_95 = arith.constant 0 : index
    %79 = vector.load %arg5[%c1_92, %c0_93, %c0_94, %c0_95] : memref<3x3x32x32xf32, #tpu.memory_space<vmem>>, vector<1x1x32x32xf32>
    %80 = vector.shape_cast %79 : vector<1x1x32x32xf32> to vector<32x32xf32>
    %cst_96 = arith.constant dense<0.000000e+00> : vector<24x32xf32>
    %81 = tpu.matmul %78, %80, %cst_96 {dimension_numbers = #tpu.dot_dimension_numbers<[1], [0], [0], [1], [0, 0, 1, 1], [], []>} : vector<24x32xf32>, vector<32x32xf32>, vector<24x32xf32> -> vector<24x32xf32>
    %82 = arith.addf %77, %81 : vector<24x32xf32>
    %c13_97 = arith.constant 13 : index
    %c0_98 = arith.constant 0 : index
    %83 = vector.load %arg8[%c13_97, %c0_98] : memref<48x32xf32, #tpu.memory_space<vmem>>, vector<24x32xf32>
    %c1_99 = arith.constant 1 : index
    %c1_100 = arith.constant 1 : index
    %c0_101 = arith.constant 0 : index
    %c0_102 = arith.constant 0 : index
    %84 = vector.load %arg5[%c1_99, %c1_100, %c0_101, %c0_102] : memref<3x3x32x32xf32, #tpu.memory_space<vmem>>, vector<1x1x32x32xf32>
    %85 = vector.shape_cast %84 : vector<1x1x32x32xf32> to vector<32x32xf32>
    %cst_103 = arith.constant dense<0.000000e+00> : vector<24x32xf32>
    %86 = tpu.matmul %83, %85, %cst_103 {dimension_numbers = #tpu.dot_dimension_numbers<[1], [0], [0], [1], [0, 0, 1, 1], [], []>} : vector<24x32xf32>, vector<32x32xf32>, vector<24x32xf32> -> vector<24x32xf32>
    %87 = arith.addf %82, %86 : vector<24x32xf32>
    %c14_104 = arith.constant 14 : index
    %c0_105 = arith.constant 0 : index
    %88 = vector.load %arg8[%c14_104, %c0_105] : memref<48x32xf32, #tpu.memory_space<vmem>>, vector<24x32xf32>
    %c1_106 = arith.constant 1 : index
    %c2_107 = arith.constant 2 : index
    %c0_108 = arith.constant 0 : index
    %c0_109 = arith.constant 0 : index
    %89 = vector.load %arg5[%c1_106, %c2_107, %c0_108, %c0_109] : memref<3x3x32x32xf32, #tpu.memory_space<vmem>>, vector<1x1x32x32xf32>
    %90 = vector.shape_cast %89 : vector<1x1x32x32xf32> to vector<32x32xf32>
    %cst_110 = arith.constant dense<0.000000e+00> : vector<24x32xf32>
    %91 = tpu.matmul %88, %90, %cst_110 {dimension_numbers = #tpu.dot_dimension_numbers<[1], [0], [0], [1], [0, 0, 1, 1], [], []>} : vector<24x32xf32>, vector<32x32xf32>, vector<24x32xf32> -> vector<24x32xf32>
    %92 = arith.addf %87, %91 : vector<24x32xf32>
    %c18_111 = arith.constant 18 : index
    %c0_112 = arith.constant 0 : index
    %93 = vector.load %arg8[%c18_111, %c0_112] : memref<48x32xf32, #tpu.memory_space<vmem>>, vector<24x32xf32>
    %c2_113 = arith.constant 2 : index
    %c0_114 = arith.constant 0 : index
    %c0_115 = arith.constant 0 : index
    %c0_116 = arith.constant 0 : index
    %94 = vector.load %arg5[%c2_113, %c0_114, %c0_115, %c0_116] : memref<3x3x32x32xf32, #tpu.memory_space<vmem>>, vector<1x1x32x32xf32>
    %95 = vector.shape_cast %94 : vector<1x1x32x32xf32> to vector<32x32xf32>
    %cst_117 = arith.constant dense<0.000000e+00> : vector<24x32xf32>
    %96 = tpu.matmul %93, %95, %cst_117 {dimension_numbers = #tpu.dot_dimension_numbers<[1], [0], [0], [1], [0, 0, 1, 1], [], []>} : vector<24x32xf32>, vector<32x32xf32>, vector<24x32xf32> -> vector<24x32xf32>
    %97 = arith.addf %92, %96 : vector<24x32xf32>
    %c19_118 = arith.constant 19 : index
    %c0_119 = arith.constant 0 : index
    %98 = vector.load %arg8[%c19_118, %c0_119] : memref<48x32xf32, #tpu.memory_space<vmem>>, vector<24x32xf32>
    %c2_120 = arith.constant 2 : index
    %c1_121 = arith.constant 1 : index
    %c0_122 = arith.constant 0 : index
    %c0_123 = arith.constant 0 : index
    %99 = vector.load %arg5[%c2_120, %c1_121, %c0_122, %c0_123] : memref<3x3x32x32xf32, #tpu.memory_space<vmem>>, vector<1x1x32x32xf32>
    %100 = vector.shape_cast %99 : vector<1x1x32x32xf32> to vector<32x32xf32>
    %cst_124 = arith.constant dense<0.000000e+00> : vector<24x32xf32>
    %101 = tpu.matmul %98, %100, %cst_124 {dimension_numbers = #tpu.dot_dimension_numbers<[1], [0], [0], [1], [0, 0, 1, 1], [], []>} : vector<24x32xf32>, vector<32x32xf32>, vector<24x32xf32> -> vector<24x32xf32>
    %102 = arith.addf %97, %101 : vector<24x32xf32>
    %c20_125 = arith.constant 20 : index
    %c0_126 = arith.constant 0 : index
    %103 = vector.load %arg8[%c20_125, %c0_126] : memref<48x32xf32, #tpu.memory_space<vmem>>, vector<24x32xf32>
    %c2_127 = arith.constant 2 : index
    %c2_128 = arith.constant 2 : index
    %c0_129 = arith.constant 0 : index
    %c0_130 = arith.constant 0 : index
    %104 = vector.load %arg5[%c2_127, %c2_128, %c0_129, %c0_130] : memref<3x3x32x32xf32, #tpu.memory_space<vmem>>, vector<1x1x32x32xf32>
    %105 = vector.shape_cast %104 : vector<1x1x32x32xf32> to vector<32x32xf32>
    %cst_131 = arith.constant dense<0.000000e+00> : vector<24x32xf32>
    %106 = tpu.matmul %103, %105, %cst_131 {dimension_numbers = #tpu.dot_dimension_numbers<[1], [0], [0], [1], [0, 0, 1, 1], [], []>} : vector<24x32xf32>, vector<32x32xf32>, vector<24x32xf32> -> vector<24x32xf32>
    %107 = arith.addf %102, %106 : vector<24x32xf32>
    %c0_132 = arith.constant 0 : index
    %c0_133 = arith.constant 0 : index
    %108 = vector.load %arg6[%c0_132, %c0_133] : memref<1x32xf32, #tpu.memory_space<vmem>>, vector<1x32xf32>
    %109 = vector.broadcast %108 : vector<1x32xf32> to vector<24x32xf32>
    %110 = arith.addf %107, %109 : vector<24x32xf32>
    %cst_134 = arith.constant 0.000000e+00 : f32
    %111 = vector.broadcast %cst_134 : f32 to vector<24x32xf32>
    %112 = arith.maximumf %110, %111 : vector<24x32xf32>
    %113 = vector.broadcast %0 : vector<24x1xf32> to vector<24x32xf32>
    %114 = arith.mulf %112, %113 : vector<24x32xf32>
    %c0_135 = arith.constant 0 : index
    %c0_136 = arith.constant 0 : index
    %c0_137 = arith.constant 0 : index
    %115 = vector.load %arg7[%c0_135, %c0_136, %c0_137] : memref<1x24x32xf32, #tpu.memory_space<vmem>>, vector<1x24x32xf32>
    %116 = vector.shape_cast %115 : vector<1x24x32xf32> to vector<24x32xf32>
    %117 = vector.shape_cast %114 : vector<24x32xf32> to vector<1x24x32xf32>
    tpu.vector_store %arg7[%c0_135, %c0_136, %c0_137], %117 {strides = array<i32>} : memref<1x24x32xf32, #tpu.memory_space<vmem>>, vector<1x24x32xf32>,
    return
  }
  func.func @transform_0(%arg0: i32) -> (i32, i32, i32) {
    %c0_i32 = arith.constant 0 : i32
    %c0_i32_0 = arith.constant 0 : i32
    %c0_i32_1 = arith.constant 0 : i32
    return %arg0, %c0_i32, %c0_i32_0 : i32, i32, i32
  }
  func.func @transform_1(%arg0: i32) -> (i32, i32) {
    %c0_i32 = arith.constant 0 : i32
    %c0_i32_0 = arith.constant 0 : i32
    %c0_i32_1 = arith.constant 0 : i32
    return %c0_i32, %c0_i32_0 : i32, i32
  }
  func.func @transform_2(%arg0: i32) -> (i32, i32, i32, i32) {
    %c0_i32 = arith.constant 0 : i32
    %c0_i32_0 = arith.constant 0 : i32
    %c0_i32_1 = arith.constant 0 : i32
    %c0_i32_2 = arith.constant 0 : i32
    %c0_i32_3 = arith.constant 0 : i32
    return %c0_i32, %c0_i32_0, %c0_i32_1, %c0_i32_2 : i32, i32, i32, i32
  }
  func.func @transform_3(%arg0: i32) -> (i32, i32) {
    %c0_i32 = arith.constant 0 : i32
    %c0_i32_0 = arith.constant 0 : i32
    %c0_i32_1 = arith.constant 0 : i32
    return %c0_i32, %c0_i32_0 : i32, i32
  }
  func.func @transform_4(%arg0: i32) -> (i32, i32, i32, i32) {
    %c0_i32 = arith.constant 0 : i32
    %c0_i32_0 = arith.constant 0 : i32
    %c0_i32_1 = arith.constant 0 : i32
    %c0_i32_2 = arith.constant 0 : i32
    %c0_i32_3 = arith.constant 0 : i32
    return %c0_i32, %c0_i32_0, %c0_i32_1, %c0_i32_2 : i32, i32, i32, i32
  }
  func.func @transform_5(%arg0: i32) -> (i32, i32) {
    %c0_i32 = arith.constant 0 : i32
    %c0_i32_0 = arith.constant 0 : i32
    %c0_i32_1 = arith.constant 0 : i32
    return %c0_i32, %c0_i32_0 : i32, i32
  }
  func.func @transform_6(%arg0: i32) -> (i32, i32, i32) {
    %c0_i32 = arith.constant 0 : i32
    %c0_i32_0 = arith.constant 0 : i32
    %c0_i32_1 = arith.constant 0 : i32
    return %arg0, %c0_i32, %c0_i32_0 : i32, i32, i32
  }
}

module attributes {stable_mosaic.version = 11 : i64} {
  func.func @kernel(%arg0: i32, %arg1: i32, %arg2: memref<1x2x3x64xf32, #tpu.memory_space<vmem>>, %arg3: memref<1x1x2x32xf32, #tpu.memory_space<vmem>>) attributes {dimension_semantics = [#tpu.dimension_semantics<parallel>, #tpu.dimension_semantics<parallel>], iteration_bounds = array<i64: 2, 2>, scalar_prefetch = 0 : i64, scratch_operands = 0 : i64, tpu.core_type = #tpu.core_type<tc>, window_params = [{transform_indices = @transform_0, window_bounds = array<i64: 1, 2, 3, 64>}, {transform_indices = @transform_1, window_bounds = array<i64: 1, 1, 2, 32>}]} {
    %c0 = arith.constant 0 : index
    %c0_0 = arith.constant 0 : index
    %c0_1 = arith.constant 0 : index
    %c0_2 = arith.constant 0 : index
    %0 = vector.load %arg2[%c0, %c0_0, %c0_1, %c0_2] : memref<1x2x3x64xf32, #tpu.memory_space<vmem>>, vector<1x1x3x64xf32>
    %1 = vector.shape_cast %0 : vector<1x1x3x64xf32> to vector<3x64xf32>
    %c0_3 = arith.constant 0 : index
    %c1 = arith.constant 1 : index
    %c0_4 = arith.constant 0 : index
    %c0_5 = arith.constant 0 : index
    %2 = vector.load %arg2[%c0_3, %c1, %c0_4, %c0_5] : memref<1x2x3x64xf32, #tpu.memory_space<vmem>>, vector<1x1x3x64xf32>
    %3 = vector.shape_cast %2 : vector<1x1x3x64xf32> to vector<3x64xf32>
    %4 = arith.maximumf %1, %3 : vector<3x64xf32>
    %5 = vector.extract_strided_slice %4 {offsets = [0, 0], sizes = [3, 32], strides = [1, 1]} : vector<3x64xf32> to vector<3x32xf32>
    %6 = vector.extract_strided_slice %4 {offsets = [0, 32], sizes = [3, 32], strides = [1, 1]} : vector<3x64xf32> to vector<3x32xf32>
    %7 = arith.maximumf %5, %6 : vector<3x32xf32>
    %8 = vector.extract_strided_slice %7 {offsets = [0, 0], sizes = [2, 32], strides = [1, 1]} : vector<3x32xf32> to vector<2x32xf32>
    %c0_6 = arith.constant 0 : index
    %c0_7 = arith.constant 0 : index
    %c0_8 = arith.constant 0 : index
    %c0_9 = arith.constant 0 : index
    %9 = vector.load %arg3[%c0_6, %c0_7, %c0_8, %c0_9] : memref<1x1x2x32xf32, #tpu.memory_space<vmem>>, vector<1x1x2x32xf32>
    %10 = vector.shape_cast %9 : vector<1x1x2x32xf32> to vector<2x32xf32>
    %11 = vector.shape_cast %8 : vector<2x32xf32> to vector<1x1x2x32xf32>
    tpu.vector_store %arg3[%c0_6, %c0_7, %c0_8, %c0_9], %11 {strides = array<i32>} : memref<1x1x2x32xf32, #tpu.memory_space<vmem>>, vector<1x1x2x32xf32>,
    return
  }
  func.func @transform_0(%arg0: i32, %arg1: i32) -> (i32, i32, i32, i32) {
    %c0_i32 = arith.constant 0 : i32
    %c0_i32_0 = arith.constant 0 : i32
    %c0_i32_1 = arith.constant 0 : i32
    return %arg0, %arg1, %c0_i32, %c0_i32_0 : i32, i32, i32, i32
  }
  func.func @transform_1(%arg0: i32, %arg1: i32) -> (i32, i32, i32, i32) {
    %c0_i32 = arith.constant 0 : i32
    %c0_i32_0 = arith.constant 0 : i32
    %c0_i32_1 = arith.constant 0 : i32
    return %arg0, %arg1, %c0_i32, %c0_i32_0 : i32, i32, i32, i32
  }
}

module attributes {stable_mosaic.version = 11 : i64} {
  func.func @kernel(%arg0: i32, %arg1: memref<1x24x32xf32, #tpu.memory_space<vmem>>, %arg2: memref<8x1xf32, #tpu.memory_space<vmem>>, %arg3: memref<3x3x32x64xf32, #tpu.memory_space<vmem>>, %arg4: memref<1x64xf32, #tpu.memory_space<vmem>>, %arg5: memref<1x8x64xf32, #tpu.memory_space<vmem>>) attributes {dimension_semantics = [#tpu.dimension_semantics<parallel>], iteration_bounds = array<i64: 2>, scalar_prefetch = 0 : i64, scratch_operands = 0 : i64, tpu.core_type = #tpu.core_type<tc>, window_params = [{transform_indices = @transform_0, window_bounds = array<i64: 1, 24, 32>}, {pipeline_mode = #tpu.pipeline_mode<synchronous>, transform_indices = @transform_1, window_bounds = array<i64: 8, 1>}, {pipeline_mode = #tpu.pipeline_mode<synchronous>, transform_indices = @transform_2, window_bounds = array<i64: 3, 3, 32, 64>}, {pipeline_mode = #tpu.pipeline_mode<synchronous>, transform_indices = @transform_3, window_bounds = array<i64: 1, 64>}, {transform_indices = @transform_4, window_bounds = array<i64: 1, 8, 64>}]} {
    %c0 = arith.constant 0 : index
    %c0_0 = arith.constant 0 : index
    %0 = vector.load %arg2[%c0, %c0_0] : memref<8x1xf32, #tpu.memory_space<vmem>>, vector<8x1xf32>
    %c0_1 = arith.constant 0 : index
    %c4 = arith.constant 4 : index
    %c0_2 = arith.constant 0 : index
    %1 = vector.load %arg1[%c0_1, %c4, %c0_2] : memref<1x24x32xf32, #tpu.memory_space<vmem>>, vector<1x8x32xf32>
    %2 = vector.shape_cast %1 : vector<1x8x32xf32> to vector<8x32xf32>
    %c0_3 = arith.constant 0 : index
    %c0_4 = arith.constant 0 : index
    %c0_5 = arith.constant 0 : index
    %c0_6 = arith.constant 0 : index
    %3 = vector.load %arg3[%c0_3, %c0_4, %c0_5, %c0_6] : memref<3x3x32x64xf32, #tpu.memory_space<vmem>>, vector<1x1x32x64xf32>
    %4 = vector.shape_cast %3 : vector<1x1x32x64xf32> to vector<32x64xf32>
    %cst = arith.constant dense<0.000000e+00> : vector<8x64xf32>
    %5 = tpu.matmul %2, %4, %cst {dimension_numbers = #tpu.dot_dimension_numbers<[1], [0], [0], [1], [0, 0, 1, 1], [], []>} : vector<8x32xf32>, vector<32x64xf32>, vector<8x64xf32> -> vector<8x64xf32>
    %c0_7 = arith.constant 0 : index
    %c5 = arith.constant 5 : index
    %c0_8 = arith.constant 0 : index
    %6 = vector.load %arg1[%c0_7, %c5, %c0_8] : memref<1x24x32xf32, #tpu.memory_space<vmem>>, vector<1x8x32xf32>
    %7 = vector.shape_cast %6 : vector<1x8x32xf32> to vector<8x32xf32>
    %c0_9 = arith.constant 0 : index
    %c1 = arith.constant 1 : index
    %c0_10 = arith.constant 0 : index
    %c0_11 = arith.constant 0 : index
    %8 = vector.load %arg3[%c0_9, %c1, %c0_10, %c0_11] : memref<3x3x32x64xf32, #tpu.memory_space<vmem>>, vector<1x1x32x64xf32>
    %9 = vector.shape_cast %8 : vector<1x1x32x64xf32> to vector<32x64xf32>
    %cst_12 = arith.constant dense<0.000000e+00> : vector<8x64xf32>
    %10 = tpu.matmul %7, %9, %cst_12 {dimension_numbers = #tpu.dot_dimension_numbers<[1], [0], [0], [1], [0, 0, 1, 1], [], []>} : vector<8x32xf32>, vector<32x64xf32>, vector<8x64xf32> -> vector<8x64xf32>
    %11 = arith.addf %5, %10 : vector<8x64xf32>
    %c0_13 = arith.constant 0 : index
    %c6 = arith.constant 6 : index
    %c0_14 = arith.constant 0 : index
    %12 = vector.load %arg1[%c0_13, %c6, %c0_14] : memref<1x24x32xf32, #tpu.memory_space<vmem>>, vector<1x8x32xf32>
    %13 = vector.shape_cast %12 : vector<1x8x32xf32> to vector<8x32xf32>
    %c0_15 = arith.constant 0 : index
    %c2 = arith.constant 2 : index
    %c0_16 = arith.constant 0 : index
    %c0_17 = arith.constant 0 : index
    %14 = vector.load %arg3[%c0_15, %c2, %c0_16, %c0_17] : memref<3x3x32x64xf32, #tpu.memory_space<vmem>>, vector<1x1x32x64xf32>
    %15 = vector.shape_cast %14 : vector<1x1x32x64xf32> to vector<32x64xf32>
    %cst_18 = arith.constant dense<0.000000e+00> : vector<8x64xf32>
    %16 = tpu.matmul %13, %15, %cst_18 {dimension_numbers = #tpu.dot_dimension_numbers<[1], [0], [0], [1], [0, 0, 1, 1], [], []>} : vector<8x32xf32>, vector<32x64xf32>, vector<8x64xf32> -> vector<8x64xf32>
    %17 = arith.addf %11, %16 : vector<8x64xf32>
    %c0_19 = arith.constant 0 : index
    %c8 = arith.constant 8 : index
    %c0_20 = arith.constant 0 : index
    %18 = vector.load %arg1[%c0_19, %c8, %c0_20] : memref<1x24x32xf32, #tpu.memory_space<vmem>>, vector<1x8x32xf32>
    %19 = vector.shape_cast %18 : vector<1x8x32xf32> to vector<8x32xf32>
    %c1_21 = arith.constant 1 : index
    %c0_22 = arith.constant 0 : index
    %c0_23 = arith.constant 0 : index
    %c0_24 = arith.constant 0 : index
    %20 = vector.load %arg3[%c1_21, %c0_22, %c0_23, %c0_24] : memref<3x3x32x64xf32, #tpu.memory_space<vmem>>, vector<1x1x32x64xf32>
    %21 = vector.shape_cast %20 : vector<1x1x32x64xf32> to vector<32x64xf32>
    %cst_25 = arith.constant dense<0.000000e+00> : vector<8x64xf32>
    %22 = tpu.matmul %19, %21, %cst_25 {dimension_numbers = #tpu.dot_dimension_numbers<[1], [0], [0], [1], [0, 0, 1, 1], [], []>} : vector<8x32xf32>, vector<32x64xf32>, vector<8x64xf32> -> vector<8x64xf32>
    %23 = arith.addf %17, %22 : vector<8x64xf32>
    %c0_26 = arith.constant 0 : index
    %c9 = arith.constant 9 : index
    %c0_27 = arith.constant 0 : index
    %24 = vector.load %arg1[%c0_26, %c9, %c0_27] : memref<1x24x32xf32, #tpu.memory_space<vmem>>, vector<1x8x32xf32>
    %25 = vector.shape_cast %24 : vector<1x8x32xf32> to vector<8x32xf32>
    %c1_28 = arith.constant 1 : index
    %c1_29 = arith.constant 1 : index
    %c0_30 = arith.constant 0 : index
    %c0_31 = arith.constant 0 : index
    %26 = vector.load %arg3[%c1_28, %c1_29, %c0_30, %c0_31] : memref<3x3x32x64xf32, #tpu.memory_space<vmem>>, vector<1x1x32x64xf32>
    %27 = vector.shape_cast %26 : vector<1x1x32x64xf32> to vector<32x64xf32>
    %cst_32 = arith.constant dense<0.000000e+00> : vector<8x64xf32>
    %28 = tpu.matmul %25, %27, %cst_32 {dimension_numbers = #tpu.dot_dimension_numbers<[1], [0], [0], [1], [0, 0, 1, 1], [], []>} : vector<8x32xf32>, vector<32x64xf32>, vector<8x64xf32> -> vector<8x64xf32>
    %29 = arith.addf %23, %28 : vector<8x64xf32>
    %c0_33 = arith.constant 0 : index
    %c10 = arith.constant 10 : index
    %c0_34 = arith.constant 0 : index
    %30 = vector.load %arg1[%c0_33, %c10, %c0_34] : memref<1x24x32xf32, #tpu.memory_space<vmem>>, vector<1x8x32xf32>
    %31 = vector.shape_cast %30 : vector<1x8x32xf32> to vector<8x32xf32>
    %c1_35 = arith.constant 1 : index
    %c2_36 = arith.constant 2 : index
    %c0_37 = arith.constant 0 : index
    %c0_38 = arith.constant 0 : index
    %32 = vector.load %arg3[%c1_35, %c2_36, %c0_37, %c0_38] : memref<3x3x32x64xf32, #tpu.memory_space<vmem>>, vector<1x1x32x64xf32>
    %33 = vector.shape_cast %32 : vector<1x1x32x64xf32> to vector<32x64xf32>
    %cst_39 = arith.constant dense<0.000000e+00> : vector<8x64xf32>
    %34 = tpu.matmul %31, %33, %cst_39 {dimension_numbers = #tpu.dot_dimension_numbers<[1], [0], [0], [1], [0, 0, 1, 1], [], []>} : vector<8x32xf32>, vector<32x64xf32>, vector<8x64xf32> -> vector<8x64xf32>
    %35 = arith.addf %29, %34 : vector<8x64xf32>
    %c0_40 = arith.constant 0 : index
    %c12 = arith.constant 12 : index
    %c0_41 = arith.constant 0 : index
    %36 = vector.load %arg1[%c0_40, %c12, %c0_41] : memref<1x24x32xf32, #tpu.memory_space<vmem>>, vector<1x8x32xf32>
    %37 = vector.shape_cast %36 : vector<1x8x32xf32> to vector<8x32xf32>
    %c2_42 = arith.constant 2 : index
    %c0_43 = arith.constant 0 : index
    %c0_44 = arith.constant 0 : index
    %c0_45 = arith.constant 0 : index
    %38 = vector.load %arg3[%c2_42, %c0_43, %c0_44, %c0_45] : memref<3x3x32x64xf32, #tpu.memory_space<vmem>>, vector<1x1x32x64xf32>
    %39 = vector.shape_cast %38 : vector<1x1x32x64xf32> to vector<32x64xf32>
    %cst_46 = arith.constant dense<0.000000e+00> : vector<8x64xf32>
    %40 = tpu.matmul %37, %39, %cst_46 {dimension_numbers = #tpu.dot_dimension_numbers<[1], [0], [0], [1], [0, 0, 1, 1], [], []>} : vector<8x32xf32>, vector<32x64xf32>, vector<8x64xf32> -> vector<8x64xf32>
    %41 = arith.addf %35, %40 : vector<8x64xf32>
    %c0_47 = arith.constant 0 : index
    %c13 = arith.constant 13 : index
    %c0_48 = arith.constant 0 : index
    %42 = vector.load %arg1[%c0_47, %c13, %c0_48] : memref<1x24x32xf32, #tpu.memory_space<vmem>>, vector<1x8x32xf32>
    %43 = vector.shape_cast %42 : vector<1x8x32xf32> to vector<8x32xf32>
    %c2_49 = arith.constant 2 : index
    %c1_50 = arith.constant 1 : index
    %c0_51 = arith.constant 0 : index
    %c0_52 = arith.constant 0 : index
    %44 = vector.load %arg3[%c2_49, %c1_50, %c0_51, %c0_52] : memref<3x3x32x64xf32, #tpu.memory_space<vmem>>, vector<1x1x32x64xf32>
    %45 = vector.shape_cast %44 : vector<1x1x32x64xf32> to vector<32x64xf32>
    %cst_53 = arith.constant dense<0.000000e+00> : vector<8x64xf32>
    %46 = tpu.matmul %43, %45, %cst_53 {dimension_numbers = #tpu.dot_dimension_numbers<[1], [0], [0], [1], [0, 0, 1, 1], [], []>} : vector<8x32xf32>, vector<32x64xf32>, vector<8x64xf32> -> vector<8x64xf32>
    %47 = arith.addf %41, %46 : vector<8x64xf32>
    %c0_54 = arith.constant 0 : index
    %c14 = arith.constant 14 : index
    %c0_55 = arith.constant 0 : index
    %48 = vector.load %arg1[%c0_54, %c14, %c0_55] : memref<1x24x32xf32, #tpu.memory_space<vmem>>, vector<1x8x32xf32>
    %49 = vector.shape_cast %48 : vector<1x8x32xf32> to vector<8x32xf32>
    %c2_56 = arith.constant 2 : index
    %c2_57 = arith.constant 2 : index
    %c0_58 = arith.constant 0 : index
    %c0_59 = arith.constant 0 : index
    %50 = vector.load %arg3[%c2_56, %c2_57, %c0_58, %c0_59] : memref<3x3x32x64xf32, #tpu.memory_space<vmem>>, vector<1x1x32x64xf32>
    %51 = vector.shape_cast %50 : vector<1x1x32x64xf32> to vector<32x64xf32>
    %cst_60 = arith.constant dense<0.000000e+00> : vector<8x64xf32>
    %52 = tpu.matmul %49, %51, %cst_60 {dimension_numbers = #tpu.dot_dimension_numbers<[1], [0], [0], [1], [0, 0, 1, 1], [], []>} : vector<8x32xf32>, vector<32x64xf32>, vector<8x64xf32> -> vector<8x64xf32>
    %53 = arith.addf %47, %52 : vector<8x64xf32>
    %c0_61 = arith.constant 0 : index
    %c0_62 = arith.constant 0 : index
    %54 = vector.load %arg4[%c0_61, %c0_62] : memref<1x64xf32, #tpu.memory_space<vmem>>, vector<1x64xf32>
    %55 = vector.broadcast %54 : vector<1x64xf32> to vector<8x64xf32>
    %56 = arith.addf %53, %55 : vector<8x64xf32>
    %cst_63 = arith.constant 0.000000e+00 : f32
    %57 = vector.broadcast %cst_63 : f32 to vector<8x64xf32>
    %58 = arith.maximumf %56, %57 : vector<8x64xf32>
    %59 = vector.broadcast %0 : vector<8x1xf32> to vector<8x64xf32>
    %60 = arith.mulf %58, %59 : vector<8x64xf32>
    %c0_64 = arith.constant 0 : index
    %c0_65 = arith.constant 0 : index
    %c0_66 = arith.constant 0 : index
    %61 = vector.load %arg5[%c0_64, %c0_65, %c0_66] : memref<1x8x64xf32, #tpu.memory_space<vmem>>, vector<1x8x64xf32>
    %62 = vector.shape_cast %61 : vector<1x8x64xf32> to vector<8x64xf32>
    %63 = vector.shape_cast %60 : vector<8x64xf32> to vector<1x8x64xf32>
    tpu.vector_store %arg5[%c0_64, %c0_65, %c0_66], %63 {strides = array<i32>} : memref<1x8x64xf32, #tpu.memory_space<vmem>>, vector<1x8x64xf32>,
    return
  }
  func.func @transform_0(%arg0: i32) -> (i32, i32, i32) {
    %c0_i32 = arith.constant 0 : i32
    %c0_i32_0 = arith.constant 0 : i32
    %c0_i32_1 = arith.constant 0 : i32
    return %arg0, %c0_i32, %c0_i32_0 : i32, i32, i32
  }
  func.func @transform_1(%arg0: i32) -> (i32, i32) {
    %c0_i32 = arith.constant 0 : i32
    %c0_i32_0 = arith.constant 0 : i32
    %c0_i32_1 = arith.constant 0 : i32
    return %c0_i32, %c0_i32_0 : i32, i32
  }
  func.func @transform_2(%arg0: i32) -> (i32, i32, i32, i32) {
    %c0_i32 = arith.constant 0 : i32
    %c0_i32_0 = arith.constant 0 : i32
    %c0_i32_1 = arith.constant 0 : i32
    %c0_i32_2 = arith.constant 0 : i32
    %c0_i32_3 = arith.constant 0 : i32
    return %c0_i32, %c0_i32_0, %c0_i32_1, %c0_i32_2 : i32, i32, i32, i32
  }
  func.func @transform_3(%arg0: i32) -> (i32, i32) {
    %c0_i32 = arith.constant 0 : i32
    %c0_i32_0 = arith.constant 0 : i32
    %c0_i32_1 = arith.constant 0 : i32
    return %c0_i32, %c0_i32_0 : i32, i32
  }
  func.func @transform_4(%arg0: i32) -> (i32, i32, i32) {
    %c0_i32 = arith.constant 0 : i32
    %c0_i32_0 = arith.constant 0 : i32
    %c0_i32_1 = arith.constant 0 : i32
    return %arg0, %c0_i32, %c0_i32_0 : i32, i32, i32
  }
}

</mosaic_0001>

<llo_original>
// kernel: fe_forward.8
$region0: #{fe_forward.8}
  #allocation0 [shape = 'u32[]', space=smem, size = 0x4, offset = 0x4, fixed_abs, tag = 'smem constant byte address 0x4 - core index']
  #allocation1 [shape = 'u32[72,128]{1,0:T(1,128)}', space=vmem, size = 0x9000, scoped, tag = 'internal scratch']
  %s0 = inlined_call_operand.vmem [shape: f32[2,16,9,16], index: 0, kind: input, shape index: {}]
  %s1 = inlined_call_operand.vmem [shape: f32[2,8,8,8], index: 1, kind: output, shape index: {}]
  %s2 = sld [smem:[#allocation0]]
  $region37: #{fe_forward.8} parent=0
    _
  %s4 = ssub.s32 1, %s2
  %s5 = scalar_select 0, %s4, %s2
  loop: start=0, step=1, limit=18
  $region2: #{fe_forward.8} parent=0 // loop_pre_header
    _
  $region3: #{fe_forward.8} parent=0 // loop_header
    %s7 = sphi 0, %s11
    %p8 = scmp.ge.s32.totalorder %s7, 18
    %s14 = sphi 0, %s26
    %s15 = sphi 0, %s22
    %s16 = sphi 0, %s14
    %s17 = sphi 0, %s15
    %s18 = sphi 0, %s16
    %s19 = sphi 0, %s17
    %s31 = sphi 0, %s33
    %s34 = sphi 0, %s31
    %s35 = sphi 0, %s34
    %s51 = sphi 0, %s35
    %s59 = sphi 0, %s61
    %s62 = sphi 0, %s59
    %s63 = sphi 0, %s62
    %s79 = sphi 0, %s63
  $region4: #{fe_forward.8} parent=0 // loop_header_branch
    %10 = sbr.rel (%p8) target = $region8
  $region5: #{fe_forward.8} parent=0 // loop_body
    %s12 = ssub.s32 %s7, 1
    %s13 = ssub.s32 %s7, 2
    %s20 = sadd.s32 1, %s15
    %p21 = scmp.ge.s32.totalorder %s20, 8
    %s22 = scalar_select %p21, 0, %s20
    %s23 = sadd.s32 1, %s14
    %s24 = scalar_select %p21, %s23, %s14
    %p25 = scmp.ge.s32.totalorder %s24, 2
    %s26 = scalar_select %p25, 0, %s24
    %s27 = ssub.s32 %s14, %s26
    %s28 = ssub.s32 %s15, %s22
    %s29 = sor.u32 %s27, %s28
    %p30 = scmp.eq.s32.totalorder %s29, 0
    %s32 = sadd.s32 %s31, 1
    %s33 = scalar_select %p30, %s31, %s32
    %p36 = pneg %p30
    %p37 = scmp.eq.s32.totalorder %s7, 15
    %p38 = por %p36, %p37
    %p39 = scmp.ne.s32.totalorder %s31, %s34
    %p40 = scmp.eq.s32.totalorder %s7, 0
    %p41 = por %p39, %p40
    %p42 = scmp.ne.s32.totalorder %s31, %s34
    %p43 = scmp.eq.s32.totalorder %s12, 15
    %p44 = por %p42, %p43
    %p45 = scmp.ne.s32.totalorder %s34, %s35
    %p46 = scmp.eq.s32.totalorder %s12, 0
    %p47 = por %p45, %p46
    %p48 = scmp.ne.s32.totalorder %s34, %s35
    %p49 = scmp.eq.s32.totalorder %s13, 15
    %p50 = por %p48, %p49
    %p52 = scmp.ne.s32.totalorder %s35, %s51
    %p53 = scmp.eq.s32.totalorder %s13, 0
    %p54 = por %p52, %p53
    %s55 = ssub.s32 %s14, %s26
    %s56 = ssub.s32 %s15, %s22
    %s57 = sor.u32 %s55, %s56
    %p58 = scmp.eq.s32.totalorder %s57, 0
    %s60 = sadd.s32 %s59, 1
    %s61 = scalar_select %p58, %s59, %s60
    %p64 = pneg %p58
    %p65 = scmp.eq.s32.totalorder %s7, 15
    %p66 = por %p64, %p65
    %p67 = scmp.ne.s32.totalorder %s59, %s62
    %p68 = scmp.eq.s32.totalorder %s7, 0
    %p69 = por %p67, %p68
    %p70 = scmp.ne.s32.totalorder %s59, %s62
    %p71 = scmp.eq.s32.totalorder %s12, 15
    %p72 = por %p70, %p71
    %p73 = scmp.ne.s32.totalorder %s62, %s63
    %p74 = scmp.eq.s32.totalorder %s12, 0
    %p75 = por %p73, %p74
    %p76 = scmp.ne.s32.totalorder %s62, %s63
    %p77 = scmp.eq.s32.totalorder %s13, 15
    %p78 = por %p76, %p77
    %p80 = scmp.ne.s32.totalorder %s63, %s79
    %p81 = scmp.eq.s32.totalorder %s13, 0
    %p82 = por %p80, %p81
    %p83 = scmp.le.s32.totalorder 1, %s7
    %p84 = scmp.lt.s32.totalorder %s7, 17
    %p85 = pnand %p83, %p84
    %p86 = pneg %p85
    // Predicated region
    $region9: #{fe_forward.8} parent=5 // pred_check
      _
    $region10: #{fe_forward.8} parent=5 // pred_check_branch
      %88 = sbr.rel (%p85) target = $region12
    $region11: #{fe_forward.8} parent=5 // pred_region
      %s89 = ssub.s32 %s7, 1
    $region12: #{fe_forward.8} parent=5 // pred_fallthru
      _
    %p90 = scmp.lt.s32.totalorder %s7, 16
    // Predicated region
    $region13: #{fe_forward.8} parent=5 // pred_check
      %p91 = pneg %p90
    $region14: #{fe_forward.8} parent=5 // pred_check_branch
      %93 = sbr.rel (%p91) target = $region16
    $region15: #{fe_forward.8} parent=5 // pred_region
      // Predicated region
      $region17: #{fe_forward.8} parent=15 // pred_check
        %p94 = pneg %p41
      $region18: #{fe_forward.8} parent=15 // pred_check_branch
        %96 = sbr.rel (%p94) target = $region20
      $region19: #{fe_forward.8} parent=15 // pred_region
        %s97 = smul.u32 2, %s15
        %p98 = scmp.lt.s32.totalorder %s14, 1
        %s99 = scalar_select %p98, %s14, 1
        %p100 = scmp.lt.s32.totalorder %s97, 15
        %s101 = scalar_select %p100, %s97, 15
        %s102 = smul.addr %s101, 2
        %s103 = smul.addr %s99, 32
        %s104 = sadd.s32 %s102, %s103
        %s105 = smul.addr %s104, 8
        %s106 = scalar_lea.vmem %s0, %s105
        %s107 = smul.u32 2, %s15
      $region20: #{fe_forward.8} parent=15 // pred_fallthru
        _
    $region16: #{fe_forward.8} parent=5 // pred_fallthru
      _
    %p108 = scmp.le.s32.totalorder 1, %s7
    %p109 = scmp.lt.s32.totalorder %s7, 17
    %p110 = pnand %p108, %p109
    %p111 = pneg %p110
    // Predicated region
    $region21: #{fe_forward.8} parent=5 // pred_check
      _
    $region22: #{fe_forward.8} parent=5 // pred_check_branch
      %113 = sbr.rel (%p110) target = $region24
    $region23: #{fe_forward.8} parent=5 // pred_region
      %s114 = ssub.s32 %s7, 1
      %s115 = smul.u32 2, %s17
      %p116 = scmp.lt.s32.totalorder %s16, 1
      %s117 = scalar_select %p116, %s16, 1
      %p118 = scmp.lt.s32.totalorder %s115, 15
      %s119 = scalar_select %p118, %s115, 15
      %s120 = smul.addr %s119, 2
      %s121 = smul.addr %s117, 32
      %s122 = sadd.s32 %s120, %s121
      %s123 = smul.addr %s122, 8
      %s124 = scalar_lea.vmem %s0, %s123
      %p125 = pneg %p47
      %p126 = pneg %p44
      %p127 = pneg %p75
      %p128 = pneg %p72
      %p129 = scmp.lt.s32.totalorder %s16, 1
      %s130 = scalar_select %p129, %s16, 1
      %p131 = scmp.lt.s32.totalorder %s17, 7
      %s132 = scalar_select %p131, %s17, 7
      %s133 = smul.addr %s130, 8
      %s134 = sadd.s32 %s132, %s133
      %s135 = smul.addr %s134, 8
      %s136 = scalar_lea.vmem %s1, %s135
      %s137 = smul.u32 2, %s17
      %p138 = scmp.lt.s32.totalorder %s16, 1
      %s139 = scalar_select %p138, %s16, 1
      %p140 = scmp.lt.s32.totalorder %s137, 15
      %s141 = scalar_select %p140, %s137, 15
      %s142 = smul.addr %s141, 2
      %s143 = smul.addr %s139, 32
      %s144 = sadd.s32 %s142, %s143
      %s145 = smul.addr %s144, 8
      %s146 = scalar_lea.vmem %s0, %s145
      %s147 = smul.u32 2, %s17
      %p148 = scmp.lt.s32.totalorder %s16, 1
      %s149 = scalar_select %p148, %s16, 1
      %p150 = scmp.lt.s32.totalorder %s17, 7
      %s151 = scalar_select %p150, %s17, 7
      %s152 = smul.addr %s149, 8
      %s153 = sadd.s32 %s151, %s152
      %s154 = smul.addr %s153, 8
      %s155 = scalar_lea.vmem %s1, %s154
      %v156 = vld [vmem:[%s146] sm:$0xff]
      %s157 = scalar_lea.vmem %s146, 16
      %v158 = vld [vmem:[%s157] sm:$0xff]
      %v159 = vmax.f32 %v156, %v158
      %161 = vrot.lane.b32.xlu0 %v159, 120
      %v162 = vpop.permute.xlu0 %161
      %v164 = vmax.f32 %v159, %v162
      %vm165 = vcmask 64512
      %166 = vst.msk [vmem:[%s155] sm:$0xff] %vm165, %v164
      %p167 = scmp.lt.s32.totalorder %s16, 1
      %s168 = scalar_select %p167, %s16, 1
      %p169 = scmp.lt.s32.totalorder %s17, 7
      %s170 = scalar_select %p169, %s17, 7
      %s171 = smul.addr %s168, 8
      %s172 = sadd.s32 %s170, %s171
      %s173 = smul.addr %s172, 8
      %s174 = scalar_lea.vmem %s1, %s173
      // Predicated region
      $region25: #{fe_forward.8} parent=23 // pred_check
        %p175 = pneg %p72
      $region26: #{fe_forward.8} parent=23 // pred_check_branch
        %177 = sbr.rel (%p175) target = $region28
      $region27: #{fe_forward.8} parent=23 // pred_region
        _
      $region28: #{fe_forward.8} parent=23 // pred_fallthru
        _
    $region24: #{fe_forward.8} parent=5 // pred_fallthru
      _
    %p178 = scmp.le.s32.totalorder 2, %s7
    // Predicated region
    $region29: #{fe_forward.8} parent=5 // pred_check
      %p179 = pneg %p178
    $region30: #{fe_forward.8} parent=5 // pred_check_branch
      %181 = sbr.rel (%p179) target = $region32
    $region31: #{fe_forward.8} parent=5 // pred_region
      %s182 = ssub.s32 %s7, 2
      // Predicated region
      $region33: #{fe_forward.8} parent=31 // pred_check
        %p183 = pneg %p78
      $region34: #{fe_forward.8} parent=31 // pred_check_branch
        %185 = sbr.rel (%p183) target = $region36
      $region35: #{fe_forward.8} parent=31 // pred_region
        %p186 = scmp.lt.s32.totalorder %s18, 1
        %s187 = scalar_select %p186, %s18, 1
        %p188 = scmp.lt.s32.totalorder %s19, 7
        %s189 = scalar_select %p188, %s19, 7
        %s190 = smul.addr %s187, 8
        %s191 = sadd.s32 %s189, %s190
        %s192 = smul.addr %s191, 8
        %s193 = scalar_lea.vmem %s1, %s192
      $region36: #{fe_forward.8} parent=31 // pred_fallthru
        _
    $region32: #{fe_forward.8} parent=5 // pred_fallthru
      _
  $region6: #{fe_forward.8} parent=0 // loop_footer
    %s11 = sadd.s32 1, %s7
  $region7: #{fe_forward.8} parent=0 // loop_footer_branch
    %6 = sbr.rel target = $region3
  $region8: #{fe_forward.8} parent=0 // loop_exit
    _

// kernel: fe_forward.10
$region0: #{fe_forward.10}
  #allocation0 [shape = 'u32[]', space=smem, size = 0x4, offset = 0x4, fixed_abs, tag = 'smem constant byte address 0x4 - core index']
  #allocation1 [shape = 'u32[72,128]{1,0:T(1,128)}', space=vmem, size = 0x9000, scoped, tag = 'internal scratch']
  %s0 = inlined_call_operand.vmem [shape: f32[2,8,5,32], index: 0, kind: input, shape index: {}]
  %s1 = inlined_call_operand.vmem [shape: f32[2,4,4,16], index: 1, kind: output, shape index: {}]
  %s2 = sld [smem:[#allocation0]]
  $region37: #{fe_forward.10} parent=0
    _
  %s4 = ssub.s32 1, %s2
  %s5 = scalar_select 0, %s4, %s2
  loop: start=0, step=1, limit=10
  $region2: #{fe_forward.10} parent=0 // loop_pre_header
    _
  $region3: #{fe_forward.10} parent=0 // loop_header
    %s7 = sphi 0, %s11
    %p8 = scmp.ge.s32.totalorder %s7, 10
    %s14 = sphi 0, %s26
    %s15 = sphi 0, %s22
    %s16 = sphi 0, %s14
    %s17 = sphi 0, %s15
    %s18 = sphi 0, %s16
    %s19 = sphi 0, %s17
    %s31 = sphi 0, %s33
    %s34 = sphi 0, %s31
    %s35 = sphi 0, %s34
    %s51 = sphi 0, %s35
    %s59 = sphi 0, %s61
    %s62 = sphi 0, %s59
    %s63 = sphi 0, %s62
    %s79 = sphi 0, %s63
  $region4: #{fe_forward.10} parent=0 // loop_header_branch
    %10 = sbr.rel (%p8) target = $region8
  $region5: #{fe_forward.10} parent=0 // loop_body
    %s12 = ssub.s32 %s7, 1
    %s13 = ssub.s32 %s7, 2
    %s20 = sadd.s32 1, %s15
    %p21 = scmp.ge.s32.totalorder %s20, 4
    %s22 = scalar_select %p21, 0, %s20
    %s23 = sadd.s32 1, %s14
    %s24 = scalar_select %p21, %s23, %s14
    %p25 = scmp.ge.s32.totalorder %s24, 2
    %s26 = scalar_select %p25, 0, %s24
    %s27 = ssub.s32 %s14, %s26
    %s28 = ssub.s32 %s15, %s22
    %s29 = sor.u32 %s27, %s28
    %p30 = scmp.eq.s32.totalorder %s29, 0
    %s32 = sadd.s32 %s31, 1
    %s33 = scalar_select %p30, %s31, %s32
    %p36 = pneg %p30
    %p37 = scmp.eq.s32.totalorder %s7, 7
    %p38 = por %p36, %p37
    %p39 = scmp.ne.s32.totalorder %s31, %s34
    %p40 = scmp.eq.s32.totalorder %s7, 0
    %p41 = por %p39, %p40
    %p42 = scmp.ne.s32.totalorder %s31, %s34
    %p43 = scmp.eq.s32.totalorder %s12, 7
    %p44 = por %p42, %p43
    %p45 = scmp.ne.s32.totalorder %s34, %s35
    %p46 = scmp.eq.s32.totalorder %s12, 0
    %p47 = por %p45, %p46
    %p48 = scmp.ne.s32.totalorder %s34, %s35
    %p49 = scmp.eq.s32.totalorder %s13, 7
    %p50 = por %p48, %p49
    %p52 = scmp.ne.s32.totalorder %s35, %s51
    %p53 = scmp.eq.s32.totalorder %s13, 0
    %p54 = por %p52, %p53
    %s55 = ssub.s32 %s14, %s26
    %s56 = ssub.s32 %s15, %s22
    %s57 = sor.u32 %s55, %s56
    %p58 = scmp.eq.s32.totalorder %s57, 0
    %s60 = sadd.s32 %s59, 1
    %s61 = scalar_select %p58, %s59, %s60
    %p64 = pneg %p58
    %p65 = scmp.eq.s32.totalorder %s7, 7
    %p66 = por %p64, %p65
    %p67 = scmp.ne.s32.totalorder %s59, %s62
    %p68 = scmp.eq.s32.totalorder %s7, 0
    %p69 = por %p67, %p68
    %p70 = scmp.ne.s32.totalorder %s59, %s62
    %p71 = scmp.eq.s32.totalorder %s12, 7
    %p72 = por %p70, %p71
    %p73 = scmp.ne.s32.totalorder %s62, %s63
    %p74 = scmp.eq.s32.totalorder %s12, 0
    %p75 = por %p73, %p74
    %p76 = scmp.ne.s32.totalorder %s62, %s63
    %p77 = scmp.eq.s32.totalorder %s13, 7
    %p78 = por %p76, %p77
    %p80 = scmp.ne.s32.totalorder %s63, %s79
    %p81 = scmp.eq.s32.totalorder %s13, 0
    %p82 = por %p80, %p81
    %p83 = scmp.le.s32.totalorder 1, %s7
    %p84 = scmp.lt.s32.totalorder %s7, 9
    %p85 = pnand %p83, %p84
    %p86 = pneg %p85
    // Predicated region
    $region9: #{fe_forward.10} parent=5 // pred_check
      _
    $region10: #{fe_forward.10} parent=5 // pred_check_branch
      %88 = sbr.rel (%p85) target = $region12
    $region11: #{fe_forward.10} parent=5 // pred_region
      %s89 = ssub.s32 %s7, 1
    $region12: #{fe_forward.10} parent=5 // pred_fallthru
      _
    %p90 = scmp.lt.s32.totalorder %s7, 8
    // Predicated region
    $region13: #{fe_forward.10} parent=5 // pred_check
      %p91 = pneg %p90
    $region14: #{fe_forward.10} parent=5 // pred_check_branch
      %93 = sbr.rel (%p91) target = $region16
    $region15: #{fe_forward.10} parent=5 // pred_region
      // Predicated region
      $region17: #{fe_forward.10} parent=15 // pred_check
        %p94 = pneg %p41
      $region18: #{fe_forward.10} parent=15 // pred_check_branch
        %96 = sbr.rel (%p94) target = $region20
      $region19: #{fe_forward.10} parent=15 // pred_region
        %s97 = smul.u32 2, %s15
        %p98 = scmp.lt.s32.totalorder %s14, 1
        %s99 = scalar_select %p98, %s14, 1
        %p100 = scmp.lt.s32.totalorder %s97, 7
        %s101 = scalar_select %p100, %s97, 7
        %s102 = smul.addr %s99, 8
        %s103 = sadd.s32 %s101, %s102
        %s104 = smul.addr %s103, 8
        %s105 = scalar_lea.vmem %s0, %s104
        %s106 = smul.u32 2, %s15
      $region20: #{fe_forward.10} parent=15 // pred_fallthru
        _
    $region16: #{fe_forward.10} parent=5 // pred_fallthru
      _
    %p107 = scmp.le.s32.totalorder 1, %s7
    %p108 = scmp.lt.s32.totalorder %s7, 9
    %p109 = pnand %p107, %p108
    %p110 = pneg %p109
    // Predicated region
    $region21: #{fe_forward.10} parent=5 // pred_check
      _
    $region22: #{fe_forward.10} parent=5 // pred_check_branch
      %112 = sbr.rel (%p109) target = $region24
    $region23: #{fe_forward.10} parent=5 // pred_region
      %s113 = ssub.s32 %s7, 1
      %s114 = smul.u32 2, %s17
      %p115 = scmp.lt.s32.totalorder %s16, 1
      %s116 = scalar_select %p115, %s16, 1
      %p117 = scmp.lt.s32.totalorder %s114, 7
      %s118 = scalar_select %p117, %s114, 7
      %s119 = smul.addr %s116, 8
      %s120 = sadd.s32 %s118, %s119
      %s121 = smul.addr %s120, 8
      %s122 = scalar_lea.vmem %s0, %s121
      %p123 = pneg %p47
      %p124 = pneg %p44
      %p125 = pneg %p75
      %p126 = pneg %p72
      %p127 = scmp.lt.s32.totalorder %s16, 1
      %s128 = scalar_select %p127, %s16, 1
      %p129 = scmp.lt.s32.totalorder %s17, 3
      %s130 = scalar_select %p129, %s17, 3
      %s131 = smul.addr %s128, 4
      %s132 = sadd.s32 %s130, %s131
      %s133 = smul.addr %s132, 4
      %s134 = scalar_lea.vmem %s1, %s133
      %s135 = smul.u32 2, %s17
      %p136 = scmp.lt.s32.totalorder %s16, 1
      %s137 = scalar_select %p136, %s16, 1
      %p138 = scmp.lt.s32.totalorder %s135, 7
      %s139 = scalar_select %p138, %s135, 7
      %s140 = smul.addr %s137, 8
      %s141 = sadd.s32 %s139, %s140
      %s142 = smul.addr %s141, 8
      %s143 = scalar_lea.vmem %s0, %s142
      %s144 = smul.u32 2, %s17
      %p145 = scmp.lt.s32.totalorder %s16, 1
      %s146 = scalar_select %p145, %s16, 1
      %p147 = scmp.lt.s32.totalorder %s17, 3
      %s148 = scalar_select %p147, %s17, 3
      %s149 = smul.addr %s146, 4
      %s150 = sadd.s32 %s148, %s149
      %s151 = smul.addr %s150, 4
      %s152 = scalar_lea.vmem %s1, %s151
      %v153 = vld [vmem:[%s143] sm:$0x1f]
      %s154 = scalar_lea.vmem %s143, 8
      %v155 = vld [vmem:[%s154] sm:$0x1f]
      %v156 = vmax.f32 %v153, %v155
      %158 = vrot.lane.b32.xlu0 %v156, 112
      %v159 = vpop.permute.xlu0 %158
      %v161 = vmax.f32 %v156, %v159
      %vm162 = vcmask 125952
      %163 = vst.msk [vmem:[%s152] sm:$0xf] %vm162, %v161
      %p164 = scmp.lt.s32.totalorder %s16, 1
      %s165 = scalar_select %p164, %s16, 1
      %p166 = scmp.lt.s32.totalorder %s17, 3
      %s167 = scalar_select %p166, %s17, 3
      %s168 = smul.addr %s165, 4
      %s169 = sadd.s32 %s167, %s168
      %s170 = smul.addr %s169, 4
      %s171 = scalar_lea.vmem %s1, %s170
      // Predicated region
      $region25: #{fe_forward.10} parent=23 // pred_check
        %p172 = pneg %p72
      $region26: #{fe_forward.10} parent=23 // pred_check_branch
        %174 = sbr.rel (%p172) target = $region28
      $region27: #{fe_forward.10} parent=23 // pred_region
        _
      $region28: #{fe_forward.10} parent=23 // pred_fallthru
        _
    $region24: #{fe_forward.10} parent=5 // pred_fallthru
      _
    %p175 = scmp.le.s32.totalorder 2, %s7
    // Predicated region
    $region29: #{fe_forward.10} parent=5 // pred_check
      %p176 = pneg %p175
    $region30: #{fe_forward.10} parent=5 // pred_check_branch
      %178 = sbr.rel (%p176) target = $region32
    $region31: #{fe_forward.10} parent=5 // pred_region
      %s179 = ssub.s32 %s7, 2
      // Predicated region
      $region33: #{fe_forward.10} parent=31 // pred_check
        %p180 = pneg %p78
      $region34: #{fe_forward.10} parent=31 // pred_check_branch
        %182 = sbr.rel (%p180) target = $region36
      $region35: #{fe_forward.10} parent=31 // pred_region
        %p183 = scmp.lt.s32.totalorder %s18, 1
        %s184 = scalar_select %p183, %s18, 1
        %p185 = scmp.lt.s32.totalorder %s19, 3
        %s186 = scalar_select %p185, %s19, 3
        %s187 = smul.addr %s184, 4
        %s188 = sadd.s32 %s186, %s187
        %s189 = smul.addr %s188, 4
        %s190 = scalar_lea.vmem %s1, %s189
      $region36: #{fe_forward.10} parent=31 // pred_fallthru
        _
    $region32: #{fe_forward.10} parent=5 // pred_fallthru
      _
  $region6: #{fe_forward.10} parent=0 // loop_footer
    %s11 = sadd.s32 1, %s7
  $region7: #{fe_forward.10} parent=0 // loop_footer_branch
    %6 = sbr.rel target = $region3
  $region8: #{fe_forward.10} parent=0 // loop_exit
    _

// kernel: fe_forward.9
$region0: #{fe_forward.9}
  #allocation0 [shape = 'u32[]', space=smem, size = 0x4, offset = 0x4, fixed_abs, tag = 'smem constant byte address 0x4 - core index']
  #allocation1 [shape = 'u32[72,128]{1,0:T(1,128)}', space=vmem, size = 0x9000, scoped, tag = 'internal scratch']
  #allocation2 [shape = 'f32[120,16]{1,0:T(8,128)}', space=vmem, size = 0xf000, scoped, tag = 'scratch operand']
  %s0 = inlined_call_operand.vmem [shape: f32[2,120,8], index: 0, kind: input, shape index: {}]
  %s1 = inlined_call_operand.vmem [shape: f32[80,1], index: 1, kind: input, shape index: {}]
  %s2 = inlined_call_operand.vmem [shape: f32[3,3,8,16], index: 2, kind: input, shape index: {}]
  %s3 = inlined_call_operand.vmem [shape: f32[1,16], index: 3, kind: input, shape index: {}]
  %s4 = inlined_call_operand.vmem [shape: f32[3,3,16,16], index: 4, kind: input, shape index: {}]
  %s5 = inlined_call_operand.vmem [shape: f32[1,16], index: 5, kind: input, shape index: {}]
  %s6 = inlined_call_operand.vmem [shape: f32[2,80,16], index: 6, kind: output, shape index: {}]
  %s7 = sld [smem:[#allocation0]]
  $region57: #{fe_forward.9} parent=0
    _
  %s9 = ssub.s32 1, %s7
  %s10 = scalar_select 0, %s9, %s7
  loop: start=0, step=1, limit=4
  $region2: #{fe_forward.9} parent=0 // loop_pre_header
    _
  $region3: #{fe_forward.9} parent=0 // loop_header
    %s12 = sphi 0, %s16
    %p13 = scmp.ge.s32.totalorder %s12, 4
    %s22 = sphi 0, %s24
    %s25 = sphi 0, %s22
    %s26 = sphi 0, %s25
    %s42 = sphi 0, %s26
    %s46 = sphi 0, %s46
    %s48 = sphi 0, %s46
    %s49 = sphi 0, %s48
    %s63 = sphi 0, %s49
    %s67 = sphi 0, %s67
    %s69 = sphi 0, %s67
    %s70 = sphi 0, %s69
    %s84 = sphi 0, %s70
    %s88 = sphi 0, %s88
    %s90 = sphi 0, %s88
    %s91 = sphi 0, %s90
    %s105 = sphi 0, %s91
    %s109 = sphi 0, %s109
    %s111 = sphi 0, %s109
    %s112 = sphi 0, %s111
    %s126 = sphi 0, %s112
    %s130 = sphi 0, %s130
    %s132 = sphi 0, %s130
    %s133 = sphi 0, %s132
    %s147 = sphi 0, %s133
    %s153 = sphi 0, %s155
    %s156 = sphi 0, %s153
    %s157 = sphi 0, %s156
    %s173 = sphi 0, %s157
  $region4: #{fe_forward.9} parent=0 // loop_header_branch
    %15 = sbr.rel (%p13) target = $region8
  $region5: #{fe_forward.9} parent=0 // loop_body
    %s17 = ssub.s32 %s12, 1
    %s18 = ssub.s32 %s12, 2
    %s19 = sadd.s32 %s12, 1
    %s20 = ssub.s32 %s12, %s19
    %p21 = scmp.eq.s32.totalorder %s20, 0
    %s23 = sadd.s32 %s22, 1
    %s24 = scalar_select %p21, %s22, %s23
    %p27 = pneg %p21
    %p28 = scmp.eq.s32.totalorder %s12, 1
    %p29 = por %p27, %p28
    %p30 = scmp.ne.s32.totalorder %s22, %s25
    %p31 = scmp.eq.s32.totalorder %s12, 0
    %p32 = por %p30, %p31
    %p33 = scmp.ne.s32.totalorder %s22, %s25
    %p34 = scmp.eq.s32.totalorder %s17, 1
    %p35 = por %p33, %p34
    %p36 = scmp.ne.s32.totalorder %s25, %s26
    %p37 = scmp.eq.s32.totalorder %s17, 0
    %p38 = por %p36, %p37
    %p39 = scmp.ne.s32.totalorder %s25, %s26
    %p40 = scmp.eq.s32.totalorder %s18, 1
    %p41 = por %p39, %p40
    %p43 = scmp.ne.s32.totalorder %s26, %s42
    %p44 = scmp.eq.s32.totalorder %s18, 0
    %p45 = por %p43, %p44
    %s47 = sadd.s32 %s46, 1
    %p50 = scmp.eq.s32.totalorder %s12, 1
    %p51 = scmp.ne.s32.totalorder %s46, %s48
    %p52 = scmp.eq.s32.totalorder %s12, 0
    %p53 = por %p51, %p52
    %p54 = scmp.ne.s32.totalorder %s46, %s48
    %p55 = scmp.eq.s32.totalorder %s17, 1
    %p56 = por %p54, %p55
    %p57 = scmp.ne.s32.totalorder %s48, %s49
    %p58 = scmp.eq.s32.totalorder %s17, 0
    %p59 = por %p57, %p58
    %p60 = scmp.ne.s32.totalorder %s48, %s49
    %p61 = scmp.eq.s32.totalorder %s18, 1
    %p62 = por %p60, %p61
    %p64 = scmp.ne.s32.totalorder %s49, %s63
    %p65 = scmp.eq.s32.totalorder %s18, 0
    %p66 = por %p64, %p65
    %s68 = sadd.s32 %s67, 1
    %p71 = scmp.eq.s32.totalorder %s12, 1
    %p72 = scmp.ne.s32.totalorder %s67, %s69
    %p73 = scmp.eq.s32.totalorder %s12, 0
    %p74 = por %p72, %p73
    %p75 = scmp.ne.s32.totalorder %s67, %s69
    %p76 = scmp.eq.s32.totalorder %s17, 1
    %p77 = por %p75, %p76
    %p78 = scmp.ne.s32.totalorder %s69, %s70
    %p79 = scmp.eq.s32.totalorder %s17, 0
    %p80 = por %p78, %p79
    %p81 = scmp.ne.s32.totalorder %s69, %s70
    %p82 = scmp.eq.s32.totalorder %s18, 1
    %p83 = por %p81, %p82
    %p85 = scmp.ne.s32.totalorder %s70, %s84
    %p86 = scmp.eq.s32.totalorder %s18, 0
    %p87 = por %p85, %p86
    %s89 = sadd.s32 %s88, 1
    %p92 = scmp.eq.s32.totalorder %s12, 1
    %p93 = scmp.ne.s32.totalorder %s88, %s90
    %p94 = scmp.eq.s32.totalorder %s12, 0
    %p95 = por %p93, %p94
    %p96 = scmp.ne.s32.totalorder %s88, %s90
    %p97 = scmp.eq.s32.totalorder %s17, 1
    %p98 = por %p96, %p97
    %p99 = scmp.ne.s32.totalorder %s90, %s91
    %p100 = scmp.eq.s32.totalorder %s17, 0
    %p101 = por %p99, %p100
    %p102 = scmp.ne.s32.totalorder %s90, %s91
    %p103 = scmp.eq.s32.totalorder %s18, 1
    %p104 = por %p102, %p103
    %p106 = scmp.ne.s32.totalorder %s91, %s105
    %p107 = scmp.eq.s32.totalorder %s18, 0
    %p108 = por %p106, %p107
    %s110 = sadd.s32 %s109, 1
    %p113 = scmp.eq.s32.totalorder %s12, 1
    %p114 = scmp.ne.s32.totalorder %s109, %s111
    %p115 = scmp.eq.s32.totalorder %s12, 0
    %p116 = por %p114, %p115
    %p117 = scmp.ne.s32.totalorder %s109, %s111
    %p118 = scmp.eq.s32.totalorder %s17, 1
    %p119 = por %p117, %p118
    %p120 = scmp.ne.s32.totalorder %s111, %s112
    %p121 = scmp.eq.s32.totalorder %s17, 0
    %p122 = por %p120, %p121
    %p123 = scmp.ne.s32.totalorder %s111, %s112
    %p124 = scmp.eq.s32.totalorder %s18, 1
    %p125 = por %p123, %p124
    %p127 = scmp.ne.s32.totalorder %s112, %s126
    %p128 = scmp.eq.s32.totalorder %s18, 0
    %p129 = por %p127, %p128
    %s131 = sadd.s32 %s130, 1
    %p134 = scmp.eq.s32.totalorder %s12, 1
    %p135 = scmp.ne.s32.totalorder %s130, %s132
    %p136 = scmp.eq.s32.totalorder %s12, 0
    %p137 = por %p135, %p136
    %p138 = scmp.ne.s32.totalorder %s130, %s132
    %p139 = scmp.eq.s32.totalorder %s17, 1
    %p140 = por %p138, %p139
    %p141 = scmp.ne.s32.totalorder %s132, %s133
    %p142 = scmp.eq.s32.totalorder %s17, 0
    %p143 = por %p141, %p142
    %p144 = scmp.ne.s32.totalorder %s132, %s133
    %p145 = scmp.eq.s32.totalorder %s18, 1
    %p146 = por %p144, %p145
    %p148 = scmp.ne.s32.totalorder %s133, %s147
    %p149 = scmp.eq.s32.totalorder %s18, 0
    %p150 = por %p148, %p149
    %s151 = ssub.s32 %s12, %s19
    %p152 = scmp.eq.s32.totalorder %s151, 0
    %s154 = sadd.s32 %s153, 1
    %s155 = scalar_select %p152, %s153, %s154
    %p158 = pneg %p152
    %p159 = scmp.eq.s32.totalorder %s12, 1
    %p160 = por %p158, %p159
    %p161 = scmp.ne.s32.totalorder %s153, %s156
    %p162 = scmp.eq.s32.totalorder %s12, 0
    %p163 = por %p161, %p162
    %p164 = scmp.ne.s32.totalorder %s153, %s156
    %p165 = scmp.eq.s32.totalorder %s17, 1
    %p166 = por %p164, %p165
    %p167 = scmp.ne.s32.totalorder %s156, %s157
    %p168 = scmp.eq.s32.totalorder %s17, 0
    %p169 = por %p167, %p168
    %p170 = scmp.ne.s32.totalorder %s156, %s157
    %p171 = scmp.eq.s32.totalorder %s18, 1
    %p172 = por %p170, %p171
    %p174 = scmp.ne.s32.totalorder %s157, %s173
    %p175 = scmp.eq.s32.totalorder %s18, 0
    %p176 = por %p174, %p175
    %p177 = scmp.le.s32.totalorder 1, %s12
    %p178 = scmp.lt.s32.totalorder %s12, 3
    %p179 = pnand %p177, %p178
    %p180 = pneg %p179
    // Predicated region
    $region9: #{fe_forward.9} parent=5 // pred_check
      _
    $region10: #{fe_forward.9} parent=5 // pred_check_branch
      %182 = sbr.rel (%p179) target = $region12
    $region11: #{fe_forward.9} parent=5 // pred_region
      %s183 = ssub.s32 %s12, 1
      // Predicated region
      $region13: #{fe_forward.9} parent=11 // pred_check
        %p184 = pneg %p59
      $region14: #{fe_forward.9} parent=11 // pred_check_branch
        %186 = sbr.rel (%p184) target = $region16
      $region15: #{fe_forward.9} parent=11 // pred_region
        _
      $region16: #{fe_forward.9} parent=11 // pred_fallthru
        _
      // Predicated region
      $region17: #{fe_forward.9} parent=11 // pred_check
        %p187 = pneg %p80
      $region18: #{fe_forward.9} parent=11 // pred_check_branch
        %189 = sbr.rel (%p187) target = $region20
      $region19: #{fe_forward.9} parent=11 // pred_region
        _
      $region20: #{fe_forward.9} parent=11 // pred_fallthru
        _
      // Predicated region
      $region21: #{fe_forward.9} parent=11 // pred_check
        %p190 = pneg %p101
      $region22: #{fe_forward.9} parent=11 // pred_check_branch
        %192 = sbr.rel (%p190) target = $region24
      $region23: #{fe_forward.9} parent=11 // pred_region
        _
      $region24: #{fe_forward.9} parent=11 // pred_fallthru
        _
      // Predicated region
      $region25: #{fe_forward.9} parent=11 // pred_check
        %p193 = pneg %p122
      $region26: #{fe_forward.9} parent=11 // pred_check_branch
        %195 = sbr.rel (%p193) target = $region28
      $region27: #{fe_forward.9} parent=11 // pred_region
        _
      $region28: #{fe_forward.9} parent=11 // pred_fallthru
        _
      // Predicated region
      $region29: #{fe_forward.9} parent=11 // pred_check
        %p196 = pneg %p143
      $region30: #{fe_forward.9} parent=11 // pred_check_branch
        %198 = sbr.rel (%p196) target = $region32
      $region31: #{fe_forward.9} parent=11 // pred_region
        _
      $region32: #{fe_forward.9} parent=11 // pred_fallthru
        _
    $region12: #{fe_forward.9} parent=5 // pred_fallthru
      _
    %p199 = scmp.lt.s32.totalorder %s12, 2
    // Predicated region
    $region33: #{fe_forward.9} parent=5 // pred_check
      %p200 = pneg %p199
    $region34: #{fe_forward.9} parent=5 // pred_check_branch
      %202 = sbr.rel (%p200) target = $region36
    $region35: #{fe_forward.9} parent=5 // pred_region
      // Predicated region
      $region37: #{fe_forward.9} parent=35 // pred_check
        %p203 = pneg %p32
      $region38: #{fe_forward.9} parent=35 // pred_check_branch
        %205 = sbr.rel (%p203) target = $region40
      $region39: #{fe_forward.9} parent=35 // pred_region
        %p206 = scmp.lt.s32.totalorder %s12, 1
        %s207 = scalar_select %p206, %s12, 1
        %s208 = smul.addr %s207, 15
        %s209 = smul.addr %s208, 8
        %s210 = scalar_lea.vmem %s0, %s209
      $region40: #{fe_forward.9} parent=35 // pred_fallthru
        _
    $region36: #{fe_forward.9} parent=5 // pred_fallthru
      _
    %p211 = scmp.le.s32.totalorder 1, %s12
    %p212 = scmp.lt.s32.totalorder %s12, 3
    %p213 = pnand %p211, %p212
    %p214 = pneg %p213
    // Predicated region
    $region41: #{fe_forward.9} parent=5 // pred_check
      _
    $region42: #{fe_forward.9} parent=5 // pred_check_branch
      %216 = sbr.rel (%p213) target = $region44
    $region43: #{fe_forward.9} parent=5 // pred_region
      %s217 = ssub.s32 %s12, 1
      %p218 = scmp.lt.s32.totalorder %s17, 1
      %s219 = scalar_select %p218, %s17, 1
      %s220 = smul.addr %s219, 15
      %s221 = smul.addr %s220, 8
      %s222 = scalar_lea.vmem %s0, %s221
      %p223 = pneg %p38
      %p224 = pneg %p35
      %p225 = pneg %p59
      %p226 = pneg %p56
      %p227 = pneg %p80
      %p228 = pneg %p77
      %p229 = pneg %p101
      %p230 = pneg %p98
      %p231 = pneg %p122
      %p232 = pneg %p119
      %p233 = pneg %p143
      %p234 = pneg %p140
      %p235 = pneg %p169
      %p236 = pneg %p166
      %p237 = scmp.lt.s32.totalorder %s17, 1
      %s238 = scalar_select %p237, %s17, 1
      %s239 = smul.addr %s238, 10
      %s240 = smul.addr %s239, 8
      %s241 = scalar_lea.vmem %s6, %s240
      %p242 = scmp.lt.s32.totalorder %s17, 1
      %s243 = scalar_select %p242, %s17, 1
      %s244 = smul.addr %s243, 15
      %s245 = smul.addr %s244, 8
      %s246 = scalar_lea.vmem %s0, %s245
      %p247 = scmp.lt.s32.totalorder %s17, 1
      %s248 = scalar_select %p247, %s17, 1
      %s249 = smul.addr %s248, 10
      %s250 = smul.addr %s249, 8
      %s251 = scalar_lea.vmem %s6, %s250
      %v252 = vld [vmem:[%s1] sm:$0xff]
      %v253 = vld [vmem:[%s1 + $0x8] sm:$0xff]
      %v254 = vld [vmem:[%s1 + $0x10] sm:$0xff]
      %v255 = vld [vmem:[%s1 + $0x18] sm:$0xff]
      %v256 = vld [vmem:[%s1 + $0x20] sm:$0xff]
      %v257 = vld [vmem:[%s1 + $0x28] sm:$0xff]
      %v258 = vld [vmem:[%s1 + $0x30] sm:$0xff]
      %v259 = vld [vmem:[%s1 + $0x38] sm:$0xff]
      %v260 = vld [vmem:[%s1 + $0x40] sm:$0xff]
      %v261 = vld [vmem:[%s1 + $0x48] sm:$0xff]
      %v262 = vld [vmem:[%s246 + $0xa] sm:$0xff]
      %v263 = vld [vmem:[%s246 + $0x12] sm:$0xff]
      %v264 = vld [vmem:[%s246 + $0x1a] sm:$0xff]
      %v265 = vld [vmem:[%s246 + $0x22] sm:$0xff]
      %v266 = vld [vmem:[%s246 + $0x2a] sm:$0xff]
      %v267 = vld [vmem:[%s246 + $0x32] sm:$0xff]
      %v268 = vld [vmem:[%s246 + $0x3a] sm:$0xff]
      %v269 = vld [vmem:[%s246 + $0x42] sm:$0xff]
      %v270 = vld [vmem:[%s246 + $0x4a] sm:$0xff]
      %v271 = vld [vmem:[%s246 + $0x52] sm:$0xff]
      %v272 = vld [vmem:[%s2] sm:$0xff]
      %v273 = vld [vmem:[%s246 + $0xb] sm:$0xff]
      %v274 = vld [vmem:[%s246 + $0x13] sm:$0xff]
      %v275 = vld [vmem:[%s246 + $0x1b] sm:$0xff]
      %v276 = vld [vmem:[%s246 + $0x23] sm:$0xff]
      %v277 = vld [vmem:[%s246 + $0x2b] sm:$0xff]
      %v278 = vld [vmem:[%s246 + $0x33] sm:$0xff]
      %v279 = vld [vmem:[%s246 + $0x3b] sm:$0xff]
      %v280 = vld [vmem:[%s246 + $0x43] sm:$0xff]
      %v281 = vld [vmem:[%s246 + $0x4b] sm:$0xff]
      %v282 = vld [vmem:[%s246 + $0x53] sm:$0xff]
      %s283 = scalar_lea.vmem %s2, 8
      %v284 = vld [vmem:[%s283] sm:$0xff]
      %vm285 = vcmask 64512
      %v287 = vsel %vm285, %v273, 0
      %v290 = vsel %vm285, %v274, 0
      %v293 = vsel %vm285, %v275, 0
      %v296 = vsel %vm285, %v276, 0
      %v299 = vsel %vm285, %v277, 0
      %v302 = vsel %vm285, %v278, 0
      %v305 = vsel %vm285, %v279, 0
      %v308 = vsel %vm285, %v280, 0
      %v311 = vsel %vm285, %v281, 0
      %v314 = vsel %vm285, %v282, 0
      %316 = vmatpush.msra.mxu0 0.0
      %317 = vmatpush.msra.mxu0 0.0
      %318 = vmatpush.msra.mxu0 0.0
      %319 = vmatpush.msra.mxu0 0.0
      %320 = vmatpush.msra.mxu0 0.0
      %321 = vmatpush.msra.mxu0 0.0
      %322 = vmatpush.msra.mxu0 0.0
      %323 = vmatpush.msra.mxu0 0.0
      %324 = vmatpush.msra.mxu0 0.0
      %325 = vmatpush.msra.mxu0 0.0
      %326 = vmatpush.msra.mxu0 0.0
      %327 = vmatpush.msra.mxu0 0.0
      %328 = vmatpush.msra.mxu0 0.0
      %329 = vmatpush.msra.mxu0 0.0
      %330 = vmatpush.msra.mxu0 0.0
      %331 = vmatpush.msra.mxu0 %v284
      %332 = vmatmul.f32.gmra.mxu0 %v287
      %v333 = vpop.f32.mrf.mxu0
      %v334 = vadd.f32 0.0, %v333
      %335 = vmatmul.f32.gmra.mxu0 %v290
      %v336 = vpop.f32.mrf.mxu0
      %v337 = vadd.f32 0.0, %v336
      %338 = vmatmul.f32.gmra.mxu0 %v293
      %v339 = vpop.f32.mrf.mxu0
      %v340 = vadd.f32 0.0, %v339
      %341 = vmatmul.f32.gmra.mxu0 %v296
      %v342 = vpop.f32.mrf.mxu0
      %v343 = vadd.f32 0.0, %v342
      %344 = vmatmul.f32.gmra.mxu0 %v299
      %v345 = vpop.f32.mrf.mxu0
      %v346 = vadd.f32 0.0, %v345
      %347 = vmatmul.f32.gmra.mxu0 %v302
      %v348 = vpop.f32.mrf.mxu0
      %v349 = vadd.f32 0.0, %v348
      %350 = vmatmul.f32.gmra.mxu0 %v305
      %v351 = vpop.f32.mrf.mxu0
      %v352 = vadd.f32 0.0, %v351
      %353 = vmatmul.f32.gmra.mxu0 %v308
      %v354 = vpop.f32.mrf.mxu0
      %v355 = vadd.f32 0.0, %v354
      %356 = vmatmul.f32.gmra.mxu0 %v311
      %v357 = vpop.f32.mrf.mxu0
      %v358 = vadd.f32 0.0, %v357
      %359 = vmatmul.f32.gmra.mxu0 %v314
      %v360 = vpop.f32.mrf.mxu0
      %v361 = vadd.f32 0.0, %v360
      %362 = vdwg.mxu0
      %v364 = vsel %vm285, %v262, 0
      %v367 = vsel %vm285, %v263, 0
      %v370 = vsel %vm285, %v264, 0
      %v373 = vsel %vm285, %v265, 0
      %v376 = vsel %vm285, %v266, 0
      %v379 = vsel %vm285, %v267, 0
      %v382 = vsel %vm285, %v268, 0
      %v385 = vsel %vm285, %v269, 0
      %v388 = vsel %vm285, %v270, 0
      %v391 = vsel %vm285, %v271, 0
      %393 = vmatpush.msra.mxu0 0.0
      %394 = vmatpush.msra.mxu0 0.0
      %395 = vmatpush.msra.mxu0 0.0
      %396 = vmatpush.msra.mxu0 0.0
      %397 = vmatpush.msra.mxu0 0.0
      %398 = vmatpush.msra.mxu0 0.0
      %399 = vmatpush.msra.mxu0 0.0
      %400 = vmatpush.msra.mxu0 0.0
      %401 = vmatpush.msra.mxu0 0.0
      %402 = vmatpush.msra.mxu0 0.0
      %403 = vmatpush.msra.mxu0 0.0
      %404 = vmatpush.msra.mxu0 0.0
      %405 = vmatpush.msra.mxu0 0.0
      %406 = vmatpush.msra.mxu0 0.0
      %407 = vmatpush.msra.mxu0 0.0
      %408 = vmatpush.msra.mxu0 %v272
      %409 = vmatmul.f32.gmra.mxu0 %v364
      %v410 = vpop.f32.mrf.mxu0
      %v411 = vadd.f32 %v334, %v410
      %412 = vmatmul.f32.gmra.mxu0 %v367
      %v413 = vpop.f32.mrf.mxu0
      %v414 = vadd.f32 %v337, %v413
      %415 = vmatmul.f32.gmra.mxu0 %v370
      %v416 = vpop.f32.mrf.mxu0
      %v417 = vadd.f32 %v340, %v416
      %418 = vmatmul.f32.gmra.mxu0 %v373
      %v419 = vpop.f32.mrf.mxu0
      %v420 = vadd.f32 %v343, %v419
      %421 = vmatmul.f32.gmra.mxu0 %v376
      %v422 = vpop.f32.mrf.mxu0
      %v423 = vadd.f32 %v346, %v422
      %424 = vmatmul.f32.gmra.mxu0 %v379
      %v425 = vpop.f32.mrf.mxu0
      %v426 = vadd.f32 %v349, %v425
      %427 = vmatmul.f32.gmra.mxu0 %v382
      %v428 = vpop.f32.mrf.mxu0
      %v429 = vadd.f32 %v352, %v428
      %430 = vmatmul.f32.gmra.mxu0 %v385
      %v431 = vpop.f32.mrf.mxu0
      %v432 = vadd.f32 %v355, %v431
      %433 = vmatmul.f32.gmra.mxu0 %v388
      %v434 = vpop.f32.mrf.mxu0
      %v435 = vadd.f32 %v358, %v434
      %436 = vmatmul.f32.gmra.mxu0 %v391
      %v437 = vpop.f32.mrf.mxu0
      %v438 = vadd.f32 %v361, %v437
      %439 = vdwg.mxu0
      %v440 = vld [vmem:[%s246 + $0xc] sm:$0xff]
      %v441 = vld [vmem:[%s246 + $0x14] sm:$0xff]
      %v442 = vld [vmem:[%s246 + $0x1c] sm:$0xff]
      %v443 = vld [vmem:[%s246 + $0x24] sm:$0xff]
      %v444 = vld [vmem:[%s246 + $0x2c] sm:$0xff]
      %v445 = vld [vmem:[%s246 + $0x34] sm:$0xff]
      %v446 = vld [vmem:[%s246 + $0x3c] sm:$0xff]
      %v447 = vld [vmem:[%s246 + $0x44] sm:$0xff]
      %v448 = vld [vmem:[%s246 + $0x4c] sm:$0xff]
      %v449 = vld [vmem:[%s246 + $0x54] sm:$0xff]
      %s450 = scalar_lea.vmem %s2, 16
      %v451 = vld [vmem:[%s450] sm:$0xff]
      %v453 = vsel %vm285, %v440, 0
      %v456 = vsel %vm285, %v441, 0
      %v459 = vsel %vm285, %v442, 0
      %v462 = vsel %vm285, %v443, 0
      %v465 = vsel %vm285, %v444, 0
      %v468 = vsel %vm285, %v445, 0
      %v471 = vsel %vm285, %v446, 0
      %v474 = vsel %vm285, %v447, 0
      %v477 = vsel %vm285, %v448, 0
      %v480 = vsel %vm285, %v449, 0
      %482 = vmatpush.msra.mxu0 0.0
      %483 = vmatpush.msra.mxu0 0.0
      %484 = vmatpush.msra.mxu0 0.0
      %485 = vmatpush.msra.mxu0 0.0
      %486 = vmatpush.msra.mxu0 0.0
      %487 = vmatpush.msra.mxu0 0.0
      %488 = vmatpush.msra.mxu0 0.0
      %489 = vmatpush.msra.mxu0 0.0
      %490 = vmatpush.msra.mxu0 0.0
      %491 = vmatpush.msra.mxu0 0.0
      %492 = vmatpush.msra.mxu0 0.0
      %493 = vmatpush.msra.mxu0 0.0
      %494 = vmatpush.msra.mxu0 0.0
      %495 = vmatpush.msra.mxu0 0.0
      %496 = vmatpush.msra.mxu0 0.0
      %497 = vmatpush.msra.mxu0 %v451
      %498 = vmatmul.f32.gmra.mxu0 %v453
      %v499 = vpop.f32.mrf.mxu0
      %v500 = vadd.f32 0.0, %v499
      %501 = vmatmul.f32.gmra.mxu0 %v456
      %v502 = vpop.f32.mrf.mxu0
      %v503 = vadd.f32 0.0, %v502
      %504 = vmatmul.f32.gmra.mxu0 %v459
      %v505 = vpop.f32.mrf.mxu0
      %v506 = vadd.f32 0.0, %v505
      %507 = vmatmul.f32.gmra.mxu0 %v462
      %v508 = vpop.f32.mrf.mxu0
      %v509 = vadd.f32 0.0, %v508
      %510 = vmatmul.f32.gmra.mxu0 %v465
      %v511 = vpop.f32.mrf.mxu0
      %v512 = vadd.f32 0.0, %v511
      %513 = vmatmul.f32.gmra.mxu0 %v468
      %v514 = vpop.f32.mrf.mxu0
      %v515 = vadd.f32 0.0, %v514
      %516 = vmatmul.f32.gmra.mxu0 %v471
      %v517 = vpop.f32.mrf.mxu0
      %v518 = vadd.f32 0.0, %v517
      %519 = vmatmul.f32.gmra.mxu0 %v474
      %v520 = vpop.f32.mrf.mxu0
      %v521 = vadd.f32 0.0, %v520
      %522 = vmatmul.f32.gmra.mxu0 %v477
      %v523 = vpop.f32.mrf.mxu0
      %v524 = vadd.f32 0.0, %v523
      %525 = vmatmul.f32.gmra.mxu0 %v480
      %v526 = vpop.f32.mrf.mxu0
      %v527 = vadd.f32 0.0, %v526
      %528 = vdwg.mxu0
      %v529 = vadd.f32 %v411, %v500
      %v530 = vadd.f32 %v414, %v503
      %v531 = vadd.f32 %v417, %v506
      %v532 = vadd.f32 %v420, %v509
      %v533 = vadd.f32 %v423, %v512
      %v534 = vadd.f32 %v426, %v515
      %v535 = vadd.f32 %v429, %v518
      %v536 = vadd.f32 %v432, %v521
      %v537 = vadd.f32 %v435, %v524
      %v538 = vadd.f32 %v438, %v527
      %v539 = vld [vmem:[%s246 + $0x14] sm:$0xff]
      %v540 = vld [vmem:[%s246 + $0x1c] sm:$0xff]
      %v541 = vld [vmem:[%s246 + $0x24] sm:$0xff]
      %v542 = vld [vmem:[%s246 + $0x2c] sm:$0xff]
      %v543 = vld [vmem:[%s246 + $0x34] sm:$0xff]
      %v544 = vld [vmem:[%s246 + $0x3c] sm:$0xff]
      %v545 = vld [vmem:[%s246 + $0x44] sm:$0xff]
      %v546 = vld [vmem:[%s246 + $0x4c] sm:$0xff]
      %v547 = vld [vmem:[%s246 + $0x54] sm:$0xff]
      %v548 = vld [vmem:[%s246 + $0x5c] sm:$0xff]
      %s549 = scalar_lea.vmem %s2, 24
      %v550 = vld [vmem:[%s549] sm:$0xff]
      %v552 = vsel %vm285, %v539, 0
      %v555 = vsel %vm285, %v540, 0
      %v558 = vsel %vm285, %v541, 0
      %v561 = vsel %vm285, %v542, 0
      %v564 = vsel %vm285, %v543, 0
      %v567 = vsel %vm285, %v544, 0
      %v570 = vsel %vm285, %v545, 0
      %v573 = vsel %vm285, %v546, 0
      %v576 = vsel %vm285, %v547, 0
      %v579 = vsel %vm285, %v548, 0
      %581 = vmatpush.msra.mxu0 0.0
      %582 = vmatpush.msra.mxu0 0.0
      %583 = vmatpush.msra.mxu0 0.0
      %584 = vmatpush.msra.mxu0 0.0
      %585 = vmatpush.msra.mxu0 0.0
      %586 = vmatpush.msra.mxu0 0.0
      %587 = vmatpush.msra.mxu0 0.0
      %588 = vmatpush.msra.mxu0 0.0
      %589 = vmatpush.msra.mxu0 0.0
      %590 = vmatpush.msra.mxu0 0.0
      %591 = vmatpush.msra.mxu0 0.0
      %592 = vmatpush.msra.mxu0 0.0
      %593 = vmatpush.msra.mxu0 0.0
      %594 = vmatpush.msra.mxu0 0.0
      %595 = vmatpush.msra.mxu0 0.0
      %596 = vmatpush.msra.mxu0 %v550
      %597 = vmatmul.f32.gmra.mxu0 %v552
      %v598 = vpop.f32.mrf.mxu0
      %v599 = vadd.f32 0.0, %v598
      %600 = vmatmul.f32.gmra.mxu0 %v555
      %v601 = vpop.f32.mrf.mxu0
      %v602 = vadd.f32 0.0, %v601
      %603 = vmatmul.f32.gmra.mxu0 %v558
      %v604 = vpop.f32.mrf.mxu0
      %v605 = vadd.f32 0.0, %v604
      %606 = vmatmul.f32.gmra.mxu0 %v561
      %v607 = vpop.f32.mrf.mxu0
      %v608 = vadd.f32 0.0, %v607
      %609 = vmatmul.f32.gmra.mxu0 %v564
      %v610 = vpop.f32.mrf.mxu0
      %v611 = vadd.f32 0.0, %v610
      %612 = vmatmul.f32.gmra.mxu0 %v567
      %v613 = vpop.f32.mrf.mxu0
      %v614 = vadd.f32 0.0, %v613
      %615 = vmatmul.f32.gmra.mxu0 %v570
      %v616 = vpop.f32.mrf.mxu0
      %v617 = vadd.f32 0.0, %v616
      %618 = vmatmul.f32.gmra.mxu0 %v573
      %v619 = vpop.f32.mrf.mxu0
      %v620 = vadd.f32 0.0, %v619
      %621 = vmatmul.f32.gmra.mxu0 %v576
      %v622 = vpop.f32.mrf.mxu0
      %v623 = vadd.f32 0.0, %v622
      %624 = vmatmul.f32.gmra.mxu0 %v579
      %v625 = vpop.f32.mrf.mxu0
      %v626 = vadd.f32 0.0, %v625
      %627 = vdwg.mxu0
      %v628 = vadd.f32 %v529, %v599
      %v629 = vadd.f32 %v530, %v602
      %v630 = vadd.f32 %v531, %v605
      %v631 = vadd.f32 %v532, %v608
      %v632 = vadd.f32 %v533, %v611
      %v633 = vadd.f32 %v534, %v614
      %v634 = vadd.f32 %v535, %v617
      %v635 = vadd.f32 %v536, %v620
      %v636 = vadd.f32 %v537, %v623
      %v637 = vadd.f32 %v538, %v626
      %v638 = vld [vmem:[%s246 + $0x15] sm:$0xff]
      %v639 = vld [vmem:[%s246 + $0x1d] sm:$0xff]
      %v640 = vld [vmem:[%s246 + $0x25] sm:$0xff]
      %v641 = vld [vmem:[%s246 + $0x2d] sm:$0xff]
      %v642 = vld [vmem:[%s246 + $0x35] sm:$0xff]
      %v643 = vld [vmem:[%s246 + $0x3d] sm:$0xff]
      %v644 = vld [vmem:[%s246 + $0x45] sm:$0xff]
      %v645 = vld [vmem:[%s246 + $0x4d] sm:$0xff]
      %v646 = vld [vmem:[%s246 + $0x55] sm:$0xff]
      %v647 = vld [vmem:[%s246 + $0x5d] sm:$0xff]
      %s648 = scalar_lea.vmem %s2, 32
      %v649 = vld [vmem:[%s648] sm:$0xff]
      %v651 = vsel %vm285, %v638, 0
      %v654 = vsel %vm285, %v639, 0
      %v657 = vsel %vm285, %v640, 0
      %v660 = vsel %vm285, %v641, 0
      %v663 = vsel %vm285, %v642, 0
      %v666 = vsel %vm285, %v643, 0
      %v669 = vsel %vm285, %v644, 0
      %v672 = vsel %vm285, %v645, 0
      %v675 = vsel %vm285, %v646, 0
      %v678 = vsel %vm285, %v647, 0
      %680 = vmatpush.msra.mxu0 0.0
      %681 = vmatpush.msra.mxu0 0.0
      %682 = vmatpush.msra.mxu0 0.0
      %683 = vmatpush.msra.mxu0 0.0
      %684 = vmatpush.msra.mxu0 0.0
      %685 = vmatpush.msra.mxu0 0.0
      %686 = vmatpush.msra.mxu0 0.0
      %687 = vmatpush.msra.mxu0 0.0
      %688 = vmatpush.msra.mxu0 0.0
      %689 = vmatpush.msra.mxu0 0.0
      %690 = vmatpush.msra.mxu0 0.0
      %691 = vmatpush.msra.mxu0 0.0
      %692 = vmatpush.msra.mxu0 0.0
      %693 = vmatpush.msra.mxu0 0.0
      %694 = vmatpush.msra.mxu0 0.0
      %695 = vmatpush.msra.mxu0 %v649
      %696 = vmatmul.f32.gmra.mxu0 %v651
      %v697 = vpop.f32.mrf.mxu0
      %v698 = vadd.f32 0.0, %v697
      %699 = vmatmul.f32.gmra.mxu0 %v654
      %v700 = vpop.f32.mrf.mxu0
      %v701 = vadd.f32 0.0, %v700
      %702 = vmatmul.f32.gmra.mxu0 %v657
      %v703 = vpop.f32.mrf.mxu0
      %v704 = vadd.f32 0.0, %v703
      %705 = vmatmul.f32.gmra.mxu0 %v660
      %v706 = vpop.f32.mrf.mxu0
      %v707 = vadd.f32 0.0, %v706
      %708 = vmatmul.f32.gmra.mxu0 %v663
      %v709 = vpop.f32.mrf.mxu0
      %v710 = vadd.f32 0.0, %v709
      %711 = vmatmul.f32.gmra.mxu0 %v666
      %v712 = vpop.f32.mrf.mxu0
      %v713 = vadd.f32 0.0, %v712
      %714 = vmatmul.f32.gmra.mxu0 %v669
      %v715 = vpop.f32.mrf.mxu0
      %v716 = vadd.f32 0.0, %v715
      %717 = vmatmul.f32.gmra.mxu0 %v672
      %v718 = vpop.f32.mrf.mxu0
      %v719 = vadd.f32 0.0, %v718
      %720 = vmatmul.f32.gmra.mxu0 %v675
      %v721 = vpop.f32.mrf.mxu0
      %v722 = vadd.f32 0.0, %v721
      %723 = vmatmul.f32.gmra.mxu0 %v678
      %v724 = vpop.f32.mrf.mxu0
      %v725 = vadd.f32 0.0, %v724
      %726 = vdwg.mxu0
      %v727 = vadd.f32 %v628, %v698
      %v728 = vadd.f32 %v629, %v701
      %v729 = vadd.f32 %v630, %v704
      %v730 = vadd.f32 %v631, %v707
      %v731 = vadd.f32 %v632, %v710
      %v732 = vadd.f32 %v633, %v713
      %v733 = vadd.f32 %v634, %v716
      %v734 = vadd.f32 %v635, %v719
      %v735 = vadd.f32 %v636, %v722
      %v736 = vadd.f32 %v637, %v725
      %v737 = vld [vmem:[%s246 + $0x16] sm:$0xff]
      %v738 = vld [vmem:[%s246 + $0x1e] sm:$0xff]
      %v739 = vld [vmem:[%s246 + $0x26] sm:$0xff]
      %v740 = vld [vmem:[%s246 + $0x2e] sm:$0xff]
      %v741 = vld [vmem:[%s246 + $0x36] sm:$0xff]
      %v742 = vld [vmem:[%s246 + $0x3e] sm:$0xff]
      %v743 = vld [vmem:[%s246 + $0x46] sm:$0xff]
      %v744 = vld [vmem:[%s246 + $0x4e] sm:$0xff]
      %v745 = vld [vmem:[%s246 + $0x56] sm:$0xff]
      %v746 = vld [vmem:[%s246 + $0x5e] sm:$0xff]
      %s747 = scalar_lea.vmem %s2, 40
      %v748 = vld [vmem:[%s747] sm:$0xff]
      %v750 = vsel %vm285, %v737, 0
      %v753 = vsel %vm285, %v738, 0
      %v756 = vsel %vm285, %v739, 0
      %v759 = vsel %vm285, %v740, 0
      %v762 = vsel %vm285, %v741, 0
      %v765 = vsel %vm285, %v742, 0
      %v768 = vsel %vm285, %v743, 0
      %v771 = vsel %vm285, %v744, 0
      %v774 = vsel %vm285, %v745, 0
      %v777 = vsel %vm285, %v746, 0
      %779 = vmatpush.msra.mxu0 0.0
      %780 = vmatpush.msra.mxu0 0.0
      %781 = vmatpush.msra.mxu0 0.0
      %782 = vmatpush.msra.mxu0 0.0
      %783 = vmatpush.msra.mxu0 0.0
      %784 = vmatpush.msra.mxu0 0.0
      %785 = vmatpush.msra.mxu0 0.0
      %786 = vmatpush.msra.mxu0 0.0
      %787 = vmatpush.msra.mxu0 0.0
      %788 = vmatpush.msra.mxu0 0.0
      %789 = vmatpush.msra.mxu0 0.0
      %790 = vmatpush.msra.mxu0 0.0
      %791 = vmatpush.msra.mxu0 0.0
      %792 = vmatpush.msra.mxu0 0.0
      %793 = vmatpush.msra.mxu0 0.0
      %794 = vmatpush.msra.mxu0 %v748
      %795 = vmatmul.f32.gmra.mxu0 %v750
      %v796 = vpop.f32.mrf.mxu0
      %v797 = vadd.f32 0.0, %v796
      %798 = vmatmul.f32.gmra.mxu0 %v753
      %v799 = vpop.f32.mrf.mxu0
      %v800 = vadd.f32 0.0, %v799
      %801 = vmatmul.f32.gmra.mxu0 %v756
      %v802 = vpop.f32.mrf.mxu0
      %v803 = vadd.f32 0.0, %v802
      %804 = vmatmul.f32.gmra.mxu0 %v759
      %v805 = vpop.f32.mrf.mxu0
      %v806 = vadd.f32 0.0, %v805
      %807 = vmatmul.f32.gmra.mxu0 %v762
      %v808 = vpop.f32.mrf.mxu0
      %v809 = vadd.f32 0.0, %v808
      %810 = vmatmul.f32.gmra.mxu0 %v765
      %v811 = vpop.f32.mrf.mxu0
      %v812 = vadd.f32 0.0, %v811
      %813 = vmatmul.f32.gmra.mxu0 %v768
      %v814 = vpop.f32.mrf.mxu0
      %v815 = vadd.f32 0.0, %v814
      %816 = vmatmul.f32.gmra.mxu0 %v771
      %v817 = vpop.f32.mrf.mxu0
      %v818 = vadd.f32 0.0, %v817
      %819 = vmatmul.f32.gmra.mxu0 %v774
      %v820 = vpop.f32.mrf.mxu0
      %v821 = vadd.f32 0.0, %v820
      %822 = vmatmul.f32.gmra.mxu0 %v777
      %v823 = vpop.f32.mrf.mxu0
      %v824 = vadd.f32 0.0, %v823
      %825 = vdwg.mxu0
      %v826 = vadd.f32 %v727, %v797
      %v827 = vadd.f32 %v728, %v800
      %v828 = vadd.f32 %v729, %v803
      %v829 = vadd.f32 %v730, %v806
      %v830 = vadd.f32 %v731, %v809
      %v831 = vadd.f32 %v732, %v812
      %v832 = vadd.f32 %v733, %v815
      %v833 = vadd.f32 %v734, %v818
      %v834 = vadd.f32 %v735, %v821
      %v835 = vadd.f32 %v736, %v824
      %v836 = vld [vmem:[%s246 + $0x1e] sm:$0xff]
      %v837 = vld [vmem:[%s246 + $0x26] sm:$0xff]
      %v838 = vld [vmem:[%s246 + $0x2e] sm:$0xff]
      %v839 = vld [vmem:[%s246 + $0x36] sm:$0xff]
      %v840 = vld [vmem:[%s246 + $0x3e] sm:$0xff]
      %v841 = vld [vmem:[%s246 + $0x46] sm:$0xff]
      %v842 = vld [vmem:[%s246 + $0x4e] sm:$0xff]
      %v843 = vld [vmem:[%s246 + $0x56] sm:$0xff]
      %v844 = vld [vmem:[%s246 + $0x5e] sm:$0xff]
      %v845 = vld [vmem:[%s246 + $0x66] sm:$0xff]
      %s846 = scalar_lea.vmem %s2, 48
      %v847 = vld [vmem:[%s846] sm:$0xff]
      %v849 = vsel %vm285, %v836, 0
      %v852 = vsel %vm285, %v837, 0
      %v855 = vsel %vm285, %v838, 0
      %v858 = vsel %vm285, %v839, 0
      %v861 = vsel %vm285, %v840, 0
      %v864 = vsel %vm285, %v841, 0
      %v867 = vsel %vm285, %v842, 0
      %v870 = vsel %vm285, %v843, 0
      %v873 = vsel %vm285, %v844, 0
      %v876 = vsel %vm285, %v845, 0
      %878 = vmatpush.msra.mxu0 0.0
      %879 = vmatpush.msra.mxu0 0.0
      %880 = vmatpush.msra.mxu0 0.0
      %881 = vmatpush.msra.mxu0 0.0
      %882 = vmatpush.msra.mxu0 0.0
      %883 = vmatpush.msra.mxu0 0.0
      %884 = vmatpush.msra.mxu0 0.0
      %885 = vmatpush.msra.mxu0 0.0
      %886 = vmatpush.msra.mxu0 0.0
      %887 = vmatpush.msra.mxu0 0.0
      %888 = vmatpush.msra.mxu0 0.0
      %889 = vmatpush.msra.mxu0 0.0
      %890 = vmatpush.msra.mxu0 0.0
      %891 = vmatpush.msra.mxu0 0.0
      %892 = vmatpush.msra.mxu0 0.0
      %893 = vmatpush.msra.mxu0 %v847
      %894 = vmatmul.f32.gmra.mxu0 %v849
      %v895 = vpop.f32.mrf.mxu0
      %v896 = vadd.f32 0.0, %v895
      %897 = vmatmul.f32.gmra.mxu0 %v852
      %v898 = vpop.f32.mrf.mxu0
      %v899 = vadd.f32 0.0, %v898
      %900 = vmatmul.f32.gmra.mxu0 %v855
      %v901 = vpop.f32.mrf.mxu0
      %v902 = vadd.f32 0.0, %v901
      %903 = vmatmul.f32.gmra.mxu0 %v858
      %v904 = vpop.f32.mrf.mxu0
      %v905 = vadd.f32 0.0, %v904
      %906 = vmatmul.f32.gmra.mxu0 %v861
      %v907 = vpop.f32.mrf.mxu0
      %v908 = vadd.f32 0.0, %v907
      %909 = vmatmul.f32.gmra.mxu0 %v864
      %v910 = vpop.f32.mrf.mxu0
      %v911 = vadd.f32 0.0, %v910
      %912 = vmatmul.f32.gmra.mxu0 %v867
      %v913 = vpop.f32.mrf.mxu0
      %v914 = vadd.f32 0.0, %v913
      %915 = vmatmul.f32.gmra.mxu0 %v870
      %v916 = vpop.f32.mrf.mxu0
      %v917 = vadd.f32 0.0, %v916
      %918 = vmatmul.f32.gmra.mxu0 %v873
      %v919 = vpop.f32.mrf.mxu0
      %v920 = vadd.f32 0.0, %v919
      %921 = vmatmul.f32.gmra.mxu0 %v876
      %v922 = vpop.f32.mrf.mxu0
      %v923 = vadd.f32 0.0, %v922
      %924 = vdwg.mxu0
      %v925 = vadd.f32 %v826, %v896
      %v926 = vadd.f32 %v827, %v899
      %v927 = vadd.f32 %v828, %v902
      %v928 = vadd.f32 %v829, %v905
      %v929 = vadd.f32 %v830, %v908
      %v930 = vadd.f32 %v831, %v911
      %v931 = vadd.f32 %v832, %v914
      %v932 = vadd.f32 %v833, %v917
      %v933 = vadd.f32 %v834, %v920
      %v934 = vadd.f32 %v835, %v923
      %v935 = vld [vmem:[%s246 + $0x1f] sm:$0xff]
      %v936 = vld [vmem:[%s246 + $0x27] sm:$0xff]
      %v937 = vld [vmem:[%s246 + $0x2f] sm:$0xff]
      %v938 = vld [vmem:[%s246 + $0x37] sm:$0xff]
      %v939 = vld [vmem:[%s246 + $0x3f] sm:$0xff]
      %v940 = vld [vmem:[%s246 + $0x47] sm:$0xff]
      %v941 = vld [vmem:[%s246 + $0x4f] sm:$0xff]
      %v942 = vld [vmem:[%s246 + $0x57] sm:$0xff]
      %v943 = vld [vmem:[%s246 + $0x5f] sm:$0xff]
      %v944 = vld [vmem:[%s246 + $0x67] sm:$0xff]
      %s945 = scalar_lea.vmem %s2, 56
      %v946 = vld [vmem:[%s945] sm:$0xff]
      %v948 = vsel %vm285, %v935, 0
      %v951 = vsel %vm285, %v936, 0
      %v954 = vsel %vm285, %v937, 0
      %v957 = vsel %vm285, %v938, 0
      %v960 = vsel %vm285, %v939, 0
      %v963 = vsel %vm285, %v940, 0
      %v966 = vsel %vm285, %v941, 0
      %v969 = vsel %vm285, %v942, 0
      %v972 = vsel %vm285, %v943, 0
      %v975 = vsel %vm285, %v944, 0
      %977 = vmatpush.msra.mxu0 0.0
      %978 = vmatpush.msra.mxu0 0.0
      %979 = vmatpush.msra.mxu0 0.0
      %980 = vmatpush.msra.mxu0 0.0
      %981 = vmatpush.msra.mxu0 0.0
      %982 = vmatpush.msra.mxu0 0.0
      %983 = vmatpush.msra.mxu0 0.0
      %984 = vmatpush.msra.mxu0 0.0
      %985 = vmatpush.msra.mxu0 0.0
      %986 = vmatpush.msra.mxu0 0.0
      %987 = vmatpush.msra.mxu0 0.0
      %988 = vmatpush.msra.mxu0 0.0
      %989 = vmatpush.msra.mxu0 0.0
      %990 = vmatpush.msra.mxu0 0.0
      %991 = vmatpush.msra.mxu0 0.0
      %992 = vmatpush.msra.mxu0 %v946
      %993 = vmatmul.f32.gmra.mxu0 %v948
      %v994 = vpop.f32.mrf.mxu0
      %v995 = vadd.f32 0.0, %v994
      %996 = vmatmul.f32.gmra.mxu0 %v951
      %v997 = vpop.f32.mrf.mxu0
      %v998 = vadd.f32 0.0, %v997
      %999 = vmatmul.f32.gmra.mxu0 %v954
      %v1000 = vpop.f32.mrf.mxu0
      %v1001 = vadd.f32 0.0, %v1000
      %1002 = vmatmul.f32.gmra.mxu0 %v957
      %v1003 = vpop.f32.mrf.mxu0
      %v1004 = vadd.f32 0.0, %v1003
      %1005 = vmatmul.f32.gmra.mxu0 %v960
      %v1006 = vpop.f32.mrf.mxu0
      %v1007 = vadd.f32 0.0, %v1006
      %1008 = vmatmul.f32.gmra.mxu0 %v963
      %v1009 = vpop.f32.mrf.mxu0
      %v1010 = vadd.f32 0.0, %v1009
      %1011 = vmatmul.f32.gmra.mxu0 %v966
      %v1012 = vpop.f32.mrf.mxu0
      %v1013 = vadd.f32 0.0, %v1012
      %1014 = vmatmul.f32.gmra.mxu0 %v969
      %v1015 = vpop.f32.mrf.mxu0
      %v1016 = vadd.f32 0.0, %v1015
      %1017 = vmatmul.f32.gmra.mxu0 %v972
      %v1018 = vpop.f32.mrf.mxu0
      %v1019 = vadd.f32 0.0, %v1018
      %1020 = vmatmul.f32.gmra.mxu0 %v975
      %v1021 = vpop.f32.mrf.mxu0
      %v1022 = vadd.f32 0.0, %v1021
      %1023 = vdwg.mxu0
      %v1024 = vadd.f32 %v925, %v995
      %v1025 = vadd.f32 %v926, %v998
      %v1026 = vadd.f32 %v927, %v1001
      %v1027 = vadd.f32 %v928, %v1004
      %v1028 = vadd.f32 %v929, %v1007
      %v1029 = vadd.f32 %v930, %v1010
      %v1030 = vadd.f32 %v931, %v1013
      %v1031 = vadd.f32 %v932, %v1016
      %v1032 = vadd.f32 %v933, %v1019
      %v1033 = vadd.f32 %v934, %v1022
      %v1034 = vld [vmem:[%s246 + $0x20] sm:$0xff]
      %v1035 = vld [vmem:[%s246 + $0x28] sm:$0xff]
      %v1036 = vld [vmem:[%s246 + $0x30] sm:$0xff]
      %v1037 = vld [vmem:[%s246 + $0x38] sm:$0xff]
      %v1038 = vld [vmem:[%s246 + $0x40] sm:$0xff]
      %v1039 = vld [vmem:[%s246 + $0x48] sm:$0xff]
      %v1040 = vld [vmem:[%s246 + $0x50] sm:$0xff]
      %v1041 = vld [vmem:[%s246 + $0x58] sm:$0xff]
      %v1042 = vld [vmem:[%s246 + $0x60] sm:$0xff]
      %v1043 = vld [vmem:[%s246 + $0x68] sm:$0xff]
      %s1044 = scalar_lea.vmem %s2, 64
      %v1045 = vld [vmem:[%s1044] sm:$0xff]
      %v1047 = vsel %vm285, %v1034, 0
      %v1050 = vsel %vm285, %v1035, 0
      %v1053 = vsel %vm285, %v1036, 0
      %v1056 = vsel %vm285, %v1037, 0
      %v1059 = vsel %vm285, %v1038, 0
      %v1062 = vsel %vm285, %v1039, 0
      %v1065 = vsel %vm285, %v1040, 0
      %v1068 = vsel %vm285, %v1041, 0
      %v1071 = vsel %vm285, %v1042, 0
      %v1074 = vsel %vm285, %v1043, 0
      %1076 = vmatpush.msra.mxu0 0.0
      %1077 = vmatpush.msra.mxu0 0.0
      %1078 = vmatpush.msra.mxu0 0.0
      %1079 = vmatpush.msra.mxu0 0.0
      %1080 = vmatpush.msra.mxu0 0.0
      %1081 = vmatpush.msra.mxu0 0.0
      %1082 = vmatpush.msra.mxu0 0.0
      %1083 = vmatpush.msra.mxu0 0.0
      %1084 = vmatpush.msra.mxu0 0.0
      %1085 = vmatpush.msra.mxu0 0.0
      %1086 = vmatpush.msra.mxu0 0.0
      %1087 = vmatpush.msra.mxu0 0.0
      %1088 = vmatpush.msra.mxu0 0.0
      %1089 = vmatpush.msra.mxu0 0.0
      %1090 = vmatpush.msra.mxu0 0.0
      %1091 = vmatpush.msra.mxu0 %v1045
      %1092 = vmatmul.f32.gmra.mxu0 %v1047
      %v1093 = vpop.f32.mrf.mxu0
      %v1094 = vadd.f32 0.0, %v1093
      %1095 = vmatmul.f32.gmra.mxu0 %v1050
      %v1096 = vpop.f32.mrf.mxu0
      %v1097 = vadd.f32 0.0, %v1096
      %1098 = vmatmul.f32.gmra.mxu0 %v1053
      %v1099 = vpop.f32.mrf.mxu0
      %v1100 = vadd.f32 0.0, %v1099
      %1101 = vmatmul.f32.gmra.mxu0 %v1056
      %v1102 = vpop.f32.mrf.mxu0
      %v1103 = vadd.f32 0.0, %v1102
      %1104 = vmatmul.f32.gmra.mxu0 %v1059
      %v1105 = vpop.f32.mrf.mxu0
      %v1106 = vadd.f32 0.0, %v1105
      %1107 = vmatmul.f32.gmra.mxu0 %v1062
      %v1108 = vpop.f32.mrf.mxu0
      %v1109 = vadd.f32 0.0, %v1108
      %1110 = vmatmul.f32.gmra.mxu0 %v1065
      %v1111 = vpop.f32.mrf.mxu0
      %v1112 = vadd.f32 0.0, %v1111
      %1113 = vmatmul.f32.gmra.mxu0 %v1068
      %v1114 = vpop.f32.mrf.mxu0
      %v1115 = vadd.f32 0.0, %v1114
      %1116 = vmatmul.f32.gmra.mxu0 %v1071
      %v1117 = vpop.f32.mrf.mxu0
      %v1118 = vadd.f32 0.0, %v1117
      %1119 = vmatmul.f32.gmra.mxu0 %v1074
      %v1120 = vpop.f32.mrf.mxu0
      %v1121 = vadd.f32 0.0, %v1120
      %1122 = vdwg.mxu0
      %v1123 = vadd.f32 %v1024, %v1094
      %v1124 = vadd.f32 %v1025, %v1097
      %v1125 = vadd.f32 %v1026, %v1100
      %v1126 = vadd.f32 %v1027, %v1103
      %v1127 = vadd.f32 %v1028, %v1106
      %v1128 = vadd.f32 %v1029, %v1109
      %v1129 = vadd.f32 %v1030, %v1112
      %v1130 = vadd.f32 %v1031, %v1115
      %v1131 = vadd.f32 %v1032, %v1118
      %v1132 = vadd.f32 %v1033, %v1121
      %v1133 = vld [vmem:[%s3] sm:$0x1]
      %v1135 = vperm.slane %v1133, 0
      %v1137 = vadd.f32 %v1123, %v1135
      %v1138 = vadd.f32 %v1124, %v1135
      %v1139 = vadd.f32 %v1125, %v1135
      %v1140 = vadd.f32 %v1126, %v1135
      %v1141 = vadd.f32 %v1127, %v1135
      %v1142 = vadd.f32 %v1128, %v1135
      %v1143 = vadd.f32 %v1129, %v1135
      %v1144 = vadd.f32 %v1130, %v1135
      %v1145 = vadd.f32 %v1131, %v1135
      %v1146 = vadd.f32 %v1132, %v1135
      %v1147 = vmax.f32 %v1137, 0.0
      %v1148 = vmax.f32 %v1138, 0.0
      %v1149 = vmax.f32 %v1139, 0.0
      %v1150 = vmax.f32 %v1140, 0.0
      %v1151 = vmax.f32 %v1141, 0.0
      %v1152 = vmax.f32 %v1142, 0.0
      %v1153 = vmax.f32 %v1143, 0.0
      %v1154 = vmax.f32 %v1144, 0.0
      %v1155 = vmax.f32 %v1145, 0.0
      %v1156 = vmax.f32 %v1146, 0.0
      %1158 = vset.pattern.permute.xlu0 0
      %1159 = vperm.xlu0 %1158, %v252
      %v1160 = vpop.permute.xlu0 %1159
      %1163 = vset.pattern.permute.xlu0 0
      %1164 = vperm.xlu0 %1163, %v253
      %v1165 = vpop.permute.xlu0 %1164
      %1168 = vset.pattern.permute.xlu0 0
      %1169 = vperm.xlu0 %1168, %v254
      %v1170 = vpop.permute.xlu0 %1169
      %1173 = vset.pattern.permute.xlu0 0
      %1174 = vperm.xlu0 %1173, %v255
      %v1175 = vpop.permute.xlu0 %1174
      %1178 = vset.pattern.permute.xlu0 0
      %1179 = vperm.xlu0 %1178, %v256
      %v1180 = vpop.permute.xlu0 %1179
      %1183 = vset.pattern.permute.xlu0 0
      %1184 = vperm.xlu0 %1183, %v257
      %v1185 = vpop.permute.xlu0 %1184
      %1188 = vset.pattern.permute.xlu0 0
      %1189 = vperm.xlu0 %1188, %v258
      %v1190 = vpop.permute.xlu0 %1189
      %1193 = vset.pattern.permute.xlu0 0
      %1194 = vperm.xlu0 %1193, %v259
      %v1195 = vpop.permute.xlu0 %1194
      %1198 = vset.pattern.permute.xlu0 0
      %1199 = vperm.xlu0 %1198, %v260
      %v1200 = vpop.permute.xlu0 %1199
      %1203 = vset.pattern.permute.xlu0 0
      %1204 = vperm.xlu0 %1203, %v261
      %v1205 = vpop.permute.xlu0 %1204
      %v1207 = vmul.f32 %v1147, %v1160
      %v1208 = vmul.f32 %v1148, %v1165
      %v1209 = vmul.f32 %v1149, %v1170
      %v1210 = vmul.f32 %v1150, %v1175
      %v1211 = vmul.f32 %v1151, %v1180
      %v1212 = vmul.f32 %v1152, %v1185
      %v1213 = vmul.f32 %v1153, %v1190
      %v1214 = vmul.f32 %v1154, %v1195
      %v1215 = vmul.f32 %v1155, %v1200
      %v1216 = vmul.f32 %v1156, %v1205
      %vm1217 = vcmask 130048
      %1218 = vst.msk [vmem:[#allocation2] sm:$0xff] %vm1217, 0.0
      %1219 = vst.msk [vmem:[#allocation2 + $0x8] sm:$0xff] %vm1217, 0.0
      %1220 = vst.msk [vmem:[#allocation2 + $0x10] sm:$0xff] %vm1217, 0.0
      %1221 = vst.msk [vmem:[#allocation2 + $0x18] sm:$0xff] %vm1217, 0.0
      %1222 = vst.msk [vmem:[#allocation2 + $0x20] sm:$0xff] %vm1217, 0.0
      %1223 = vst.msk [vmem:[#allocation2 + $0x28] sm:$0xff] %vm1217, 0.0
      %1224 = vst.msk [vmem:[#allocation2 + $0x30] sm:$0xff] %vm1217, 0.0
      %1225 = vst.msk [vmem:[#allocation2 + $0x38] sm:$0xff] %vm1217, 0.0
      %1226 = vst.msk [vmem:[#allocation2 + $0x40] sm:$0xff] %vm1217, 0.0
      %1227 = vst.msk [vmem:[#allocation2 + $0x48] sm:$0xff] %vm1217, 0.0
      %1228 = vst.msk [vmem:[#allocation2 + $0x50] sm:$0xff] %vm1217, 0.0
      %1229 = vst.msk [vmem:[#allocation2 + $0x58] sm:$0xff] %vm1217, 0.0
      %1230 = vst.msk [vmem:[#allocation2 + $0x60] sm:$0xff] %vm1217, 0.0
      %1231 = vst.msk [vmem:[#allocation2 + $0x68] sm:$0xff] %vm1217, 0.0
      %1232 = vst.msk [vmem:[#allocation2 + $0x70] sm:$0xff] %vm1217, 0.0
      %1233 = vst.msk [vmem:[#allocation2 + $0x15] sm:$0xff] %vm1217, %v1207
      %1234 = vst.msk [vmem:[#allocation2 + $0x1d] sm:$0xff] %vm1217, %v1208
      %1235 = vst.msk [vmem:[#allocation2 + $0x25] sm:$0xff] %vm1217, %v1209
      %1236 = vst.msk [vmem:[#allocation2 + $0x2d] sm:$0xff] %vm1217, %v1210
      %1237 = vst.msk [vmem:[#allocation2 + $0x35] sm:$0xff] %vm1217, %v1211
      %1238 = vst.msk [vmem:[#allocation2 + $0x3d] sm:$0xff] %vm1217, %v1212
      %1239 = vst.msk [vmem:[#allocation2 + $0x45] sm:$0xff] %vm1217, %v1213
      %1240 = vst.msk [vmem:[#allocation2 + $0x4d] sm:$0xff] %vm1217, %v1214
      %1241 = vst.msk [vmem:[#allocation2 + $0x55] sm:$0xff] %vm1217, %v1215
      %1242 = vst.msk [vmem:[#allocation2 + $0x5d] sm:$0xff] %vm1217, %v1216
      %v1243 = vld [vmem:[#allocation2 + $0xa] sm:$0xff]
      %v1244 = vld [vmem:[#allocation2 + $0x12] sm:$0xff]
      %v1245 = vld [vmem:[#allocation2 + $0x1a] sm:$0xff]
      %v1246 = vld [vmem:[#allocation2 + $0x22] sm:$0xff]
      %v1247 = vld [vmem:[#allocation2 + $0x2a] sm:$0xff]
      %v1248 = vld [vmem:[#allocation2 + $0x32] sm:$0xff]
      %v1249 = vld [vmem:[#allocation2 + $0x3a] sm:$0xff]
      %v1250 = vld [vmem:[#allocation2 + $0x42] sm:$0xff]
      %v1251 = vld [vmem:[#allocation2 + $0x4a] sm:$0xff]
      %v1252 = vld [vmem:[#allocation2 + $0x52] sm:$0xff]
      %v1253 = vld [vmem:[%s4] sm:$0xff]
      %v1254 = vld [vmem:[%s4 + $0x8] sm:$0xff]
      %v1255 = vld [vmem:[#allocation2 + $0xb] sm:$0xff]
      %v1256 = vld [vmem:[#allocation2 + $0x13] sm:$0xff]
      %v1257 = vld [vmem:[#allocation2 + $0x1b] sm:$0xff]
      %v1258 = vld [vmem:[#allocation2 + $0x23] sm:$0xff]
      %v1259 = vld [vmem:[#allocation2 + $0x2b] sm:$0xff]
      %v1260 = vld [vmem:[#allocation2 + $0x33] sm:$0xff]
      %v1261 = vld [vmem:[#allocation2 + $0x3b] sm:$0xff]
      %v1262 = vld [vmem:[#allocation2 + $0x43] sm:$0xff]
      %v1263 = vld [vmem:[#allocation2 + $0x4b] sm:$0xff]
      %v1264 = vld [vmem:[#allocation2 + $0x53] sm:$0xff]
      %s1265 = scalar_lea.vmem %s4, 16
      %v1266 = vld [vmem:[%s1265] sm:$0xff]
      %v1267 = vld [vmem:[%s1265 + $0x8] sm:$0xff]
      %v1269 = vsel %vm1217, %v1255, 0
      %v1272 = vsel %vm1217, %v1256, 0
      %v1275 = vsel %vm1217, %v1257, 0
      %v1278 = vsel %vm1217, %v1258, 0
      %v1281 = vsel %vm1217, %v1259, 0
      %v1284 = vsel %vm1217, %v1260, 0
      %v1287 = vsel %vm1217, %v1261, 0
      %v1290 = vsel %vm1217, %v1262, 0
      %v1293 = vsel %vm1217, %v1263, 0
      %v1296 = vsel %vm1217, %v1264, 0
      %1298 = vmatpush.msra.mxu0 0.0
      %1299 = vmatpush.msra.mxu0 0.0
      %1300 = vmatpush.msra.mxu0 0.0
      %1301 = vmatpush.msra.mxu0 0.0
      %1302 = vmatpush.msra.mxu0 0.0
      %1303 = vmatpush.msra.mxu0 0.0
      %1304 = vmatpush.msra.mxu0 0.0
      %1305 = vmatpush.msra.mxu0 0.0
      %1306 = vmatpush.msra.mxu0 0.0
      %1307 = vmatpush.msra.mxu0 0.0
      %1308 = vmatpush.msra.mxu0 0.0
      %1309 = vmatpush.msra.mxu0 0.0
      %1310 = vmatpush.msra.mxu0 0.0
      %1311 = vmatpush.msra.mxu0 0.0
      %1312 = vmatpush.msra.mxu0 %v1267
      %1313 = vmatpush.msra.mxu0 %v1266
      %1314 = vmatmul.f32.gmra.mxu0 %v1269
      %v1315 = vpop.f32.mrf.mxu0
      %v1316 = vadd.f32 0.0, %v1315
      %1317 = vmatmul.f32.gmra.mxu0 %v1272
      %v1318 = vpop.f32.mrf.mxu0
      %v1319 = vadd.f32 0.0, %v1318
      %1320 = vmatmul.f32.gmra.mxu0 %v1275
      %v1321 = vpop.f32.mrf.mxu0
      %v1322 = vadd.f32 0.0, %v1321
      %1323 = vmatmul.f32.gmra.mxu0 %v1278
      %v1324 = vpop.f32.mrf.mxu0
      %v1325 = vadd.f32 0.0, %v1324
      %1326 = vmatmul.f32.gmra.mxu0 %v1281
      %v1327 = vpop.f32.mrf.mxu0
      %v1328 = vadd.f32 0.0, %v1327
      %1329 = vmatmul.f32.gmra.mxu0 %v1284
      %v1330 = vpop.f32.mrf.mxu0
      %v1331 = vadd.f32 0.0, %v1330
      %1332 = vmatmul.f32.gmra.mxu0 %v1287
      %v1333 = vpop.f32.mrf.mxu0
      %v1334 = vadd.f32 0.0, %v1333
      %1335 = vmatmul.f32.gmra.mxu0 %v1290
      %v1336 = vpop.f32.mrf.mxu0
      %v1337 = vadd.f32 0.0, %v1336
      %1338 = vmatmul.f32.gmra.mxu0 %v1293
      %v1339 = vpop.f32.mrf.mxu0
      %v1340 = vadd.f32 0.0, %v1339
      %1341 = vmatmul.f32.gmra.mxu0 %v1296
      %v1342 = vpop.f32.mrf.mxu0
      %v1343 = vadd.f32 0.0, %v1342
      %1344 = vdwg.mxu0
      %v1346 = vsel %vm1217, %v1243, 0
      %v1349 = vsel %vm1217, %v1244, 0
      %v1352 = vsel %vm1217, %v1245, 0
      %v1355 = vsel %vm1217, %v1246, 0
      %v1358 = vsel %vm1217, %v1247, 0
      %v1361 = vsel %vm1217, %v1248, 0
      %v1364 = vsel %vm1217, %v1249, 0
      %v1367 = vsel %vm1217, %v1250, 0
      %v1370 = vsel %vm1217, %v1251, 0
      %v1373 = vsel %vm1217, %v1252, 0
      %1375 = vmatpush.msra.mxu0 0.0
      %1376 = vmatpush.msra.mxu0 0.0
      %1377 = vmatpush.msra.mxu0 0.0
      %1378 = vmatpush.msra.mxu0 0.0
      %1379 = vmatpush.msra.mxu0 0.0
      %1380 = vmatpush.msra.mxu0 0.0
      %1381 = vmatpush.msra.mxu0 0.0
      %1382 = vmatpush.msra.mxu0 0.0
      %1383 = vmatpush.msra.mxu0 0.0
      %1384 = vmatpush.msra.mxu0 0.0
      %1385 = vmatpush.msra.mxu0 0.0
      %1386 = vmatpush.msra.mxu0 0.0
      %1387 = vmatpush.msra.mxu0 0.0
      %1388 = vmatpush.msra.mxu0 0.0
      %1389 = vmatpush.msra.mxu0 %v1254
      %1390 = vmatpush.msra.mxu0 %v1253
      %1391 = vmatmul.f32.gmra.mxu0 %v1346
      %v1392 = vpop.f32.mrf.mxu0
      %v1393 = vadd.f32 %v1316, %v1392
      %1394 = vmatmul.f32.gmra.mxu0 %v1349
      %v1395 = vpop.f32.mrf.mxu0
      %v1396 = vadd.f32 %v1319, %v1395
      %1397 = vmatmul.f32.gmra.mxu0 %v1352
      %v1398 = vpop.f32.mrf.mxu0
      %v1399 = vadd.f32 %v1322, %v1398
      %1400 = vmatmul.f32.gmra.mxu0 %v1355
      %v1401 = vpop.f32.mrf.mxu0
      %v1402 = vadd.f32 %v1325, %v1401
      %1403 = vmatmul.f32.gmra.mxu0 %v1358
      %v1404 = vpop.f32.mrf.mxu0
      %v1405 = vadd.f32 %v1328, %v1404
      %1406 = vmatmul.f32.gmra.mxu0 %v1361
      %v1407 = vpop.f32.mrf.mxu0
      %v1408 = vadd.f32 %v1331, %v1407
      %1409 = vmatmul.f32.gmra.mxu0 %v1364
      %v1410 = vpop.f32.mrf.mxu0
      %v1411 = vadd.f32 %v1334, %v1410
      %1412 = vmatmul.f32.gmra.mxu0 %v1367
      %v1413 = vpop.f32.mrf.mxu0
      %v1414 = vadd.f32 %v1337, %v1413
      %1415 = vmatmul.f32.gmra.mxu0 %v1370
      %v1416 = vpop.f32.mrf.mxu0
      %v1417 = vadd.f32 %v1340, %v1416
      %1418 = vmatmul.f32.gmra.mxu0 %v1373
      %v1419 = vpop.f32.mrf.mxu0
      %v1420 = vadd.f32 %v1343, %v1419
      %1421 = vdwg.mxu0
      %v1422 = vld [vmem:[#allocation2 + $0xc] sm:$0xff]
      %v1423 = vld [vmem:[#allocation2 + $0x14] sm:$0xff]
      %v1424 = vld [vmem:[#allocation2 + $0x1c] sm:$0xff]
      %v1425 = vld [vmem:[#allocation2 + $0x24] sm:$0xff]
      %v1426 = vld [vmem:[#allocation2 + $0x2c] sm:$0xff]
      %v1427 = vld [vmem:[#allocation2 + $0x34] sm:$0xff]
      %v1428 = vld [vmem:[#allocation2 + $0x3c] sm:$0xff]
      %v1429 = vld [vmem:[#allocation2 + $0x44] sm:$0xff]
      %v1430 = vld [vmem:[#allocation2 + $0x4c] sm:$0xff]
      %v1431 = vld [vmem:[#allocation2 + $0x54] sm:$0xff]
      %s1432 = scalar_lea.vmem %s4, 32
      %v1433 = vld [vmem:[%s1432] sm:$0xff]
      %v1434 = vld [vmem:[%s1432 + $0x8] sm:$0xff]
      %v1436 = vsel %vm1217, %v1422, 0
      %v1439 = vsel %vm1217, %v1423, 0
      %v1442 = vsel %vm1217, %v1424, 0
      %v1445 = vsel %vm1217, %v1425, 0
      %v1448 = vsel %vm1217, %v1426, 0
      %v1451 = vsel %vm1217, %v1427, 0
      %v1454 = vsel %vm1217, %v1428, 0
      %v1457 = vsel %vm1217, %v1429, 0
      %v1460 = vsel %vm1217, %v1430, 0
      %v1463 = vsel %vm1217, %v1431, 0
      %1465 = vmatpush.msra.mxu0 0.0
      %1466 = vmatpush.msra.mxu0 0.0
      %1467 = vmatpush.msra.mxu0 0.0
      %1468 = vmatpush.msra.mxu0 0.0
      %1469 = vmatpush.msra.mxu0 0.0
      %1470 = vmatpush.msra.mxu0 0.0
      %1471 = vmatpush.msra.mxu0 0.0
      %1472 = vmatpush.msra.mxu0 0.0
      %1473 = vmatpush.msra.mxu0 0.0
      %1474 = vmatpush.msra.mxu0 0.0
      %1475 = vmatpush.msra.mxu0 0.0
      %1476 = vmatpush.msra.mxu0 0.0
      %1477 = vmatpush.msra.mxu0 0.0
      %1478 = vmatpush.msra.mxu0 0.0
      %1479 = vmatpush.msra.mxu0 %v1434
      %1480 = vmatpush.msra.mxu0 %v1433
      %1481 = vmatmul.f32.gmra.mxu0 %v1436
      %v1482 = vpop.f32.mrf.mxu0
      %v1483 = vadd.f32 0.0, %v1482
      %1484 = vmatmul.f32.gmra.mxu0 %v1439
      %v1485 = vpop.f32.mrf.mxu0
      %v1486 = vadd.f32 0.0, %v1485
      %1487 = vmatmul.f32.gmra.mxu0 %v1442
      %v1488 = vpop.f32.mrf.mxu0
      %v1489 = vadd.f32 0.0, %v1488
      %1490 = vmatmul.f32.gmra.mxu0 %v1445
      %v1491 = vpop.f32.mrf.mxu0
      %v1492 = vadd.f32 0.0, %v1491
      %1493 = vmatmul.f32.gmra.mxu0 %v1448
      %v1494 = vpop.f32.mrf.mxu0
      %v1495 = vadd.f32 0.0, %v1494
      %1496 = vmatmul.f32.gmra.mxu0 %v1451
      %v1497 = vpop.f32.mrf.mxu0
      %v1498 = vadd.f32 0.0, %v1497
      %1499 = vmatmul.f32.gmra.mxu0 %v1454
      %v1500 = vpop.f32.mrf.mxu0
      %v1501 = vadd.f32 0.0, %v1500
      %1502 = vmatmul.f32.gmra.mxu0 %v1457
      %v1503 = vpop.f32.mrf.mxu0
      %v1504 = vadd.f32 0.0, %v1503
      %1505 = vmatmul.f32.gmra.mxu0 %v1460
      %v1506 = vpop.f32.mrf.mxu0
      %v1507 = vadd.f32 0.0, %v1506
      %1508 = vmatmul.f32.gmra.mxu0 %v1463
      %v1509 = vpop.f32.mrf.mxu0
      %v1510 = vadd.f32 0.0, %v1509
      %1511 = vdwg.mxu0
      %v1512 = vadd.f32 %v1393, %v1483
      %v1513 = vadd.f32 %v1396, %v1486
      %v1514 = vadd.f32 %v1399, %v1489
      %v1515 = vadd.f32 %v1402, %v1492
      %v1516 = vadd.f32 %v1405, %v1495
      %v1517 = vadd.f32 %v1408, %v1498
      %v1518 = vadd.f32 %v1411, %v1501
      %v1519 = vadd.f32 %v1414, %v1504
      %v1520 = vadd.f32 %v1417, %v1507
      %v1521 = vadd.f32 %v1420, %v1510
      %v1522 = vld [vmem:[#allocation2 + $0x14] sm:$0xff]
      %v1523 = vld [vmem:[#allocation2 + $0x1c] sm:$0xff]
      %v1524 = vld [vmem:[#allocation2 + $0x24] sm:$0xff]
      %v1525 = vld [vmem:[#allocation2 + $0x2c] sm:$0xff]
      %v1526 = vld [vmem:[#allocation2 + $0x34] sm:$0xff]
      %v1527 = vld [vmem:[#allocation2 + $0x3c] sm:$0xff]
      %v1528 = vld [vmem:[#allocation2 + $0x44] sm:$0xff]
      %v1529 = vld [vmem:[#allocation2 + $0x4c] sm:$0xff]
      %v1530 = vld [vmem:[#allocation2 + $0x54] sm:$0xff]
      %v1531 = vld [vmem:[#allocation2 + $0x5c] sm:$0xff]
      %s1532 = scalar_lea.vmem %s4, 48
      %v1533 = vld [vmem:[%s1532] sm:$0xff]
      %v1534 = vld [vmem:[%s1532 + $0x8] sm:$0xff]
      %v1536 = vsel %vm1217, %v1522, 0
      %v1539 = vsel %vm1217, %v1523, 0
      %v1542 = vsel %vm1217, %v1524, 0
      %v1545 = vsel %vm1217, %v1525, 0
      %v1548 = vsel %vm1217, %v1526, 0
      %v1551 = vsel %vm1217, %v1527, 0
      %v1554 = vsel %vm1217, %v1528, 0
      %v1557 = vsel %vm1217, %v1529, 0
      %v1560 = vsel %vm1217, %v1530, 0
      %v1563 = vsel %vm1217, %v1531, 0
      %1565 = vmatpush.msra.mxu0 0.0
      %1566 = vmatpush.msra.mxu0 0.0
      %1567 = vmatpush.msra.mxu0 0.0
      %1568 = vmatpush.msra.mxu0 0.0
      %1569 = vmatpush.msra.mxu0 0.0
      %1570 = vmatpush.msra.mxu0 0.0
      %1571 = vmatpush.msra.mxu0 0.0
      %1572 = vmatpush.msra.mxu0 0.0
      %1573 = vmatpush.msra.mxu0 0.0
      %1574 = vmatpush.msra.mxu0 0.0
      %1575 = vmatpush.msra.mxu0 0.0
      %1576 = vmatpush.msra.mxu0 0.0
      %1577 = vmatpush.msra.mxu0 0.0
      %1578 = vmatpush.msra.mxu0 0.0
      %1579 = vmatpush.msra.mxu0 %v1534
      %1580 = vmatpush.msra.mxu0 %v1533
      %1581 = vmatmul.f32.gmra.mxu0 %v1536
      %v1582 = vpop.f32.mrf.mxu0
      %v1583 = vadd.f32 0.0, %v1582
      %1584 = vmatmul.f32.gmra.mxu0 %v1539
      %v1585 = vpop.f32.mrf.mxu0
      %v1586 = vadd.f32 0.0, %v1585
      %1587 = vmatmul.f32.gmra.mxu0 %v1542
      %v1588 = vpop.f32.mrf.mxu0
      %v1589 = vadd.f32 0.0, %v1588
      %1590 = vmatmul.f32.gmra.mxu0 %v1545
      %v1591 = vpop.f32.mrf.mxu0
      %v1592 = vadd.f32 0.0, %v1591
      %1593 = vmatmul.f32.gmra.mxu0 %v1548
      %v1594 = vpop.f32.mrf.mxu0
      %v1595 = vadd.f32 0.0, %v1594
      %1596 = vmatmul.f32.gmra.mxu0 %v1551
      %v1597 = vpop.f32.mrf.mxu0
      %v1598 = vadd.f32 0.0, %v1597
      %1599 = vmatmul.f32.gmra.mxu0 %v1554
      %v1600 = vpop.f32.mrf.mxu0
      %v1601 = vadd.f32 0.0, %v1600
      %1602 = vmatmul.f32.gmra.mxu0 %v1557
      %v1603 = vpop.f32.mrf.mxu0
      %v1604 = vadd.f32 0.0, %v1603
      %1605 = vmatmul.f32.gmra.mxu0 %v1560
      %v1606 = vpop.f32.mrf.mxu0
      %v1607 = vadd.f32 0.0, %v1606
      %1608 = vmatmul.f32.gmra.mxu0 %v1563
      %v1609 = vpop.f32.mrf.mxu0
      %v1610 = vadd.f32 0.0, %v1609
      %1611 = vdwg.mxu0
      %v1612 = vadd.f32 %v1512, %v1583
      %v1613 = vadd.f32 %v1513, %v1586
      %v1614 = vadd.f32 %v1514, %v1589
      %v1615 = vadd.f32 %v1515, %v1592
      %v1616 = vadd.f32 %v1516, %v1595
      %v1617 = vadd.f32 %v1517, %v1598
      %v1618 = vadd.f32 %v1518, %v1601
      %v1619 = vadd.f32 %v1519, %v1604
      %v1620 = vadd.f32 %v1520, %v1607
      %v1621 = vadd.f32 %v1521, %v1610
      %v1622 = vld [vmem:[#allocation2 + $0x15] sm:$0xff]
      %v1623 = vld [vmem:[#allocation2 + $0x1d] sm:$0xff]
      %v1624 = vld [vmem:[#allocation2 + $0x25] sm:$0xff]
      %v1625 = vld [vmem:[#allocation2 + $0x2d] sm:$0xff]
      %v1626 = vld [vmem:[#allocation2 + $0x35] sm:$0xff]
      %v1627 = vld [vmem:[#allocation2 + $0x3d] sm:$0xff]
      %v1628 = vld [vmem:[#allocation2 + $0x45] sm:$0xff]
      %v1629 = vld [vmem:[#allocation2 + $0x4d] sm:$0xff]
      %v1630 = vld [vmem:[#allocation2 + $0x55] sm:$0xff]
      %v1631 = vld [vmem:[#allocation2 + $0x5d] sm:$0xff]
      %s1632 = scalar_lea.vmem %s4, 64
      %v1633 = vld [vmem:[%s1632] sm:$0xff]
      %v1634 = vld [vmem:[%s1632 + $0x8] sm:$0xff]
      %v1636 = vsel %vm1217, %v1622, 0
      %v1639 = vsel %vm1217, %v1623, 0
      %v1642 = vsel %vm1217, %v1624, 0
      %v1645 = vsel %vm1217, %v1625, 0
      %v1648 = vsel %vm1217, %v1626, 0
      %v1651 = vsel %vm1217, %v1627, 0
      %v1654 = vsel %vm1217, %v1628, 0
      %v1657 = vsel %vm1217, %v1629, 0
      %v1660 = vsel %vm1217, %v1630, 0
      %v1663 = vsel %vm1217, %v1631, 0
      %1665 = vmatpush.msra.mxu0 0.0
      %1666 = vmatpush.msra.mxu0 0.0
      %1667 = vmatpush.msra.mxu0 0.0
      %1668 = vmatpush.msra.mxu0 0.0
      %1669 = vmatpush.msra.mxu0 0.0
      %1670 = vmatpush.msra.mxu0 0.0
      %1671 = vmatpush.msra.mxu0 0.0
      %1672 = vmatpush.msra.mxu0 0.0
      %1673 = vmatpush.msra.mxu0 0.0
      %1674 = vmatpush.msra.mxu0 0.0
      %1675 = vmatpush.msra.mxu0 0.0
      %1676 = vmatpush.msra.mxu0 0.0
      %1677 = vmatpush.msra.mxu0 0.0
      %1678 = vmatpush.msra.mxu0 0.0
      %1679 = vmatpush.msra.mxu0 %v1634
      %1680 = vmatpush.msra.mxu0 %v1633
      %1681 = vmatmul.f32.gmra.mxu0 %v1636
      %v1682 = vpop.f32.mrf.mxu0
      %v1683 = vadd.f32 0.0, %v1682
      %1684 = vmatmul.f32.gmra.mxu0 %v1639
      %v1685 = vpop.f32.mrf.mxu0
      %v1686 = vadd.f32 0.0, %v1685
      %1687 = vmatmul.f32.gmra.mxu0 %v1642
      %v1688 = vpop.f32.mrf.mxu0
      %v1689 = vadd.f32 0.0, %v1688
      %1690 = vmatmul.f32.gmra.mxu0 %v1645
      %v1691 = vpop.f32.mrf.mxu0
      %v1692 = vadd.f32 0.0, %v1691
      %1693 = vmatmul.f32.gmra.mxu0 %v1648
      %v1694 = vpop.f32.mrf.mxu0
      %v1695 = vadd.f32 0.0, %v1694
      %1696 = vmatmul.f32.gmra.mxu0 %v1651
      %v1697 = vpop.f32.mrf.mxu0
      %v1698 = vadd.f32 0.0, %v1697
      %1699 = vmatmul.f32.gmra.mxu0 %v1654
      %v1700 = vpop.f32.mrf.mxu0
      %v1701 = vadd.f32 0.0, %v1700
      %1702 = vmatmul.f32.gmra.mxu0 %v1657
      %v1703 = vpop.f32.mrf.mxu0
      %v1704 = vadd.f32 0.0, %v1703
      %1705 = vmatmul.f32.gmra.mxu0 %v1660
      %v1706 = vpop.f32.mrf.mxu0
      %v1707 = vadd.f32 0.0, %v1706
      %1708 = vmatmul.f32.gmra.mxu0 %v1663
      %v1709 = vpop.f32.mrf.mxu0
      %v1710 = vadd.f32 0.0, %v1709
      %1711 = vdwg.mxu0
      %v1712 = vadd.f32 %v1612, %v1683
      %v1713 = vadd.f32 %v1613, %v1686
      %v1714 = vadd.f32 %v1614, %v1689
      %v1715 = vadd.f32 %v1615, %v1692
      %v1716 = vadd.f32 %v1616, %v1695
      %v1717 = vadd.f32 %v1617, %v1698
      %v1718 = vadd.f32 %v1618, %v1701
      %v1719 = vadd.f32 %v1619, %v1704
      %v1720 = vadd.f32 %v1620, %v1707
      %v1721 = vadd.f32 %v1621, %v1710
      %v1722 = vld [vmem:[#allocation2 + $0x16] sm:$0xff]
      %v1723 = vld [vmem:[#allocation2 + $0x1e] sm:$0xff]
      %v1724 = vld [vmem:[#allocation2 + $0x26] sm:$0xff]
      %v1725 = vld [vmem:[#allocation2 + $0x2e] sm:$0xff]
      %v1726 = vld [vmem:[#allocation2 + $0x36] sm:$0xff]
      %v1727 = vld [vmem:[#allocation2 + $0x3e] sm:$0xff]
      %v1728 = vld [vmem:[#allocation2 + $0x46] sm:$0xff]
      %v1729 = vld [vmem:[#allocation2 + $0x4e] sm:$0xff]
      %v1730 = vld [vmem:[#allocation2 + $0x56] sm:$0xff]
      %v1731 = vld [vmem:[#allocation2 + $0x5e] sm:$0xff]
      %s1732 = scalar_lea.vmem %s4, 80
      %v1733 = vld [vmem:[%s1732] sm:$0xff]
      %v1734 = vld [vmem:[%s1732 + $0x8] sm:$0xff]
      %v1736 = vsel %vm1217, %v1722, 0
      %v1739 = vsel %vm1217, %v1723, 0
      %v1742 = vsel %vm1217, %v1724, 0
      %v1745 = vsel %vm1217, %v1725, 0
      %v1748 = vsel %vm1217, %v1726, 0
      %v1751 = vsel %vm1217, %v1727, 0
      %v1754 = vsel %vm1217, %v1728, 0
      %v1757 = vsel %vm1217, %v1729, 0
      %v1760 = vsel %vm1217, %v1730, 0
      %v1763 = vsel %vm1217, %v1731, 0
      %1765 = vmatpush.msra.mxu0 0.0
      %1766 = vmatpush.msra.mxu0 0.0
      %1767 = vmatpush.msra.mxu0 0.0
      %1768 = vmatpush.msra.mxu0 0.0
      %1769 = vmatpush.msra.mxu0 0.0
      %1770 = vmatpush.msra.mxu0 0.0
      %1771 = vmatpush.msra.mxu0 0.0
      %1772 = vmatpush.msra.mxu0 0.0
      %1773 = vmatpush.msra.mxu0 0.0
      %1774 = vmatpush.msra.mxu0 0.0
      %1775 = vmatpush.msra.mxu0 0.0
      %1776 = vmatpush.msra.mxu0 0.0
      %1777 = vmatpush.msra.mxu0 0.0
      %1778 = vmatpush.msra.mxu0 0.0
      %1779 = vmatpush.msra.mxu0 %v1734
      %1780 = vmatpush.msra.mxu0 %v1733
      %1781 = vmatmul.f32.gmra.mxu0 %v1736
      %v1782 = vpop.f32.mrf.mxu0
      %v1783 = vadd.f32 0.0, %v1782
      %1784 = vmatmul.f32.gmra.mxu0 %v1739
      %v1785 = vpop.f32.mrf.mxu0
      %v1786 = vadd.f32 0.0, %v1785
      %1787 = vmatmul.f32.gmra.mxu0 %v1742
      %v1788 = vpop.f32.mrf.mxu0
      %v1789 = vadd.f32 0.0, %v1788
      %1790 = vmatmul.f32.gmra.mxu0 %v1745
      %v1791 = vpop.f32.mrf.mxu0
      %v1792 = vadd.f32 0.0, %v1791
      %1793 = vmatmul.f32.gmra.mxu0 %v1748
      %v1794 = vpop.f32.mrf.mxu0
      %v1795 = vadd.f32 0.0, %v1794
      %1796 = vmatmul.f32.gmra.mxu0 %v1751
      %v1797 = vpop.f32.mrf.mxu0
      %v1798 = vadd.f32 0.0, %v1797
      %1799 = vmatmul.f32.gmra.mxu0 %v1754
      %v1800 = vpop.f32.mrf.mxu0
      %v1801 = vadd.f32 0.0, %v1800
      %1802 = vmatmul.f32.gmra.mxu0 %v1757
      %v1803 = vpop.f32.mrf.mxu0
      %v1804 = vadd.f32 0.0, %v1803
      %1805 = vmatmul.f32.gmra.mxu0 %v1760
      %v1806 = vpop.f32.mrf.mxu0
      %v1807 = vadd.f32 0.0, %v1806
      %1808 = vmatmul.f32.gmra.mxu0 %v1763
      %v1809 = vpop.f32.mrf.mxu0
      %v1810 = vadd.f32 0.0, %v1809
      %1811 = vdwg.mxu0
      %v1812 = vadd.f32 %v1712, %v1783
      %v1813 = vadd.f32 %v1713, %v1786
      %v1814 = vadd.f32 %v1714, %v1789
      %v1815 = vadd.f32 %v1715, %v1792
      %v1816 = vadd.f32 %v1716, %v1795
      %v1817 = vadd.f32 %v1717, %v1798
      %v1818 = vadd.f32 %v1718, %v1801
      %v1819 = vadd.f32 %v1719, %v1804
      %v1820 = vadd.f32 %v1720, %v1807
      %v1821 = vadd.f32 %v1721, %v1810
      %v1822 = vld [vmem:[#allocation2 + $0x1e] sm:$0xff]
      %v1823 = vld [vmem:[#allocation2 + $0x26] sm:$0xff]
      %v1824 = vld [vmem:[#allocation2 + $0x2e] sm:$0xff]
      %v1825 = vld [vmem:[#allocation2 + $0x36] sm:$0xff]
      %v1826 = vld [vmem:[#allocation2 + $0x3e] sm:$0xff]
      %v1827 = vld [vmem:[#allocation2 + $0x46] sm:$0xff]
      %v1828 = vld [vmem:[#allocation2 + $0x4e] sm:$0xff]
      %v1829 = vld [vmem:[#allocation2 + $0x56] sm:$0xff]
      %v1830 = vld [vmem:[#allocation2 + $0x5e] sm:$0xff]
      %v1831 = vld [vmem:[#allocation2 + $0x66] sm:$0xff]
      %s1832 = scalar_lea.vmem %s4, 96
      %v1833 = vld [vmem:[%s1832] sm:$0xff]
      %v1834 = vld [vmem:[%s1832 + $0x8] sm:$0xff]
      %v1836 = vsel %vm1217, %v1822, 0
      %v1839 = vsel %vm1217, %v1823, 0
      %v1842 = vsel %vm1217, %v1824, 0
      %v1845 = vsel %vm1217, %v1825, 0
      %v1848 = vsel %vm1217, %v1826, 0
      %v1851 = vsel %vm1217, %v1827, 0
      %v1854 = vsel %vm1217, %v1828, 0
      %v1857 = vsel %vm1217, %v1829, 0
      %v1860 = vsel %vm1217, %v1830, 0
      %v1863 = vsel %vm1217, %v1831, 0
      %1865 = vmatpush.msra.mxu0 0.0
      %1866 = vmatpush.msra.mxu0 0.0
      %1867 = vmatpush.msra.mxu0 0.0
      %1868 = vmatpush.msra.mxu0 0.0
      %1869 = vmatpush.msra.mxu0 0.0
      %1870 = vmatpush.msra.mxu0 0.0
      %1871 = vmatpush.msra.mxu0 0.0
      %1872 = vmatpush.msra.mxu0 0.0
      %1873 = vmatpush.msra.mxu0 0.0
      %1874 = vmatpush.msra.mxu0 0.0
      %1875 = vmatpush.msra.mxu0 0.0
      %1876 = vmatpush.msra.mxu0 0.0
      %1877 = vmatpush.msra.mxu0 0.0
      %1878 = vmatpush.msra.mxu0 0.0
      %1879 = vmatpush.msra.mxu0 %v1834
      %1880 = vmatpush.msra.mxu0 %v1833
      %1881 = vmatmul.f32.gmra.mxu0 %v1836
      %v1882 = vpop.f32.mrf.mxu0
      %v1883 = vadd.f32 0.0, %v1882
      %1884 = vmatmul.f32.gmra.mxu0 %v1839
      %v1885 = vpop.f32.mrf.mxu0
      %v1886 = vadd.f32 0.0, %v1885
      %1887 = vmatmul.f32.gmra.mxu0 %v1842
      %v1888 = vpop.f32.mrf.mxu0
      %v1889 = vadd.f32 0.0, %v1888
      %1890 = vmatmul.f32.gmra.mxu0 %v1845
      %v1891 = vpop.f32.mrf.mxu0
      %v1892 = vadd.f32 0.0, %v1891
      %1893 = vmatmul.f32.gmra.mxu0 %v1848
      %v1894 = vpop.f32.mrf.mxu0
      %v1895 = vadd.f32 0.0, %v1894
      %1896 = vmatmul.f32.gmra.mxu0 %v1851
      %v1897 = vpop.f32.mrf.mxu0
      %v1898 = vadd.f32 0.0, %v1897
      %1899 = vmatmul.f32.gmra.mxu0 %v1854
      %v1900 = vpop.f32.mrf.mxu0
      %v1901 = vadd.f32 0.0, %v1900
      %1902 = vmatmul.f32.gmra.mxu0 %v1857
      %v1903 = vpop.f32.mrf.mxu0
      %v1904 = vadd.f32 0.0, %v1903
      %1905 = vmatmul.f32.gmra.mxu0 %v1860
      %v1906 = vpop.f32.mrf.mxu0
      %v1907 = vadd.f32 0.0, %v1906
      %1908 = vmatmul.f32.gmra.mxu0 %v1863
      %v1909 = vpop.f32.mrf.mxu0
      %v1910 = vadd.f32 0.0, %v1909
      %1911 = vdwg.mxu0
      %v1912 = vadd.f32 %v1812, %v1883
      %v1913 = vadd.f32 %v1813, %v1886
      %v1914 = vadd.f32 %v1814, %v1889
      %v1915 = vadd.f32 %v1815, %v1892
      %v1916 = vadd.f32 %v1816, %v1895
      %v1917 = vadd.f32 %v1817, %v1898
      %v1918 = vadd.f32 %v1818, %v1901
      %v1919 = vadd.f32 %v1819, %v1904
      %v1920 = vadd.f32 %v1820, %v1907
      %v1921 = vadd.f32 %v1821, %v1910
      %v1922 = vld [vmem:[#allocation2 + $0x1f] sm:$0xff]
      %v1923 = vld [vmem:[#allocation2 + $0x27] sm:$0xff]
      %v1924 = vld [vmem:[#allocation2 + $0x2f] sm:$0xff]
      %v1925 = vld [vmem:[#allocation2 + $0x37] sm:$0xff]
      %v1926 = vld [vmem:[#allocation2 + $0x3f] sm:$0xff]
      %v1927 = vld [vmem:[#allocation2 + $0x47] sm:$0xff]
      %v1928 = vld [vmem:[#allocation2 + $0x4f] sm:$0xff]
      %v1929 = vld [vmem:[#allocation2 + $0x57] sm:$0xff]
      %v1930 = vld [vmem:[#allocation2 + $0x5f] sm:$0xff]
      %v1931 = vld [vmem:[#allocation2 + $0x67] sm:$0xff]
      %s1932 = scalar_lea.vmem %s4, 112
      %v1933 = vld [vmem:[%s1932] sm:$0xff]
      %v1934 = vld [vmem:[%s1932 + $0x8] sm:$0xff]
      %v1936 = vsel %vm1217, %v1922, 0
      %v1939 = vsel %vm1217, %v1923, 0
      %v1942 = vsel %vm1217, %v1924, 0
      %v1945 = vsel %vm1217, %v1925, 0
      %v1948 = vsel %vm1217, %v1926, 0
      %v1951 = vsel %vm1217, %v1927, 0
      %v1954 = vsel %vm1217, %v1928, 0
      %v1957 = vsel %vm1217, %v1929, 0
      %v1960 = vsel %vm1217, %v1930, 0
      %v1963 = vsel %vm1217, %v1931, 0
      %1965 = vmatpush.msra.mxu0 0.0
      %1966 = vmatpush.msra.mxu0 0.0
      %1967 = vmatpush.msra.mxu0 0.0
      %1968 = vmatpush.msra.mxu0 0.0
      %1969 = vmatpush.msra.mxu0 0.0
      %1970 = vmatpush.msra.mxu0 0.0
      %1971 = vmatpush.msra.mxu0 0.0
      %1972 = vmatpush.msra.mxu0 0.0
      %1973 = vmatpush.msra.mxu0 0.0
      %1974 = vmatpush.msra.mxu0 0.0
      %1975 = vmatpush.msra.mxu0 0.0
      %1976 = vmatpush.msra.mxu0 0.0
      %1977 = vmatpush.msra.mxu0 0.0
      %1978 = vmatpush.msra.mxu0 0.0
      %1979 = vmatpush.msra.mxu0 %v1934
      %1980 = vmatpush.msra.mxu0 %v1933
      %1981 = vmatmul.f32.gmra.mxu0 %v1936
      %v1982 = vpop.f32.mrf.mxu0
      %v1983 = vadd.f32 0.0, %v1982
      %1984 = vmatmul.f32.gmra.mxu0 %v1939
      %v1985 = vpop.f32.mrf.mxu0
      %v1986 = vadd.f32 0.0, %v1985
      %1987 = vmatmul.f32.gmra.mxu0 %v1942
      %v1988 = vpop.f32.mrf.mxu0
      %v1989 = vadd.f32 0.0, %v1988
      %1990 = vmatmul.f32.gmra.mxu0 %v1945
      %v1991 = vpop.f32.mrf.mxu0
      %v1992 = vadd.f32 0.0, %v1991
      %1993 = vmatmul.f32.gmra.mxu0 %v1948
      %v1994 = vpop.f32.mrf.mxu0
      %v1995 = vadd.f32 0.0, %v1994
      %1996 = vmatmul.f32.gmra.mxu0 %v1951
      %v1997 = vpop.f32.mrf.mxu0
      %v1998 = vadd.f32 0.0, %v1997
      %1999 = vmatmul.f32.gmra.mxu0 %v1954
      %v2000 = vpop.f32.mrf.mxu0
      %v2001 = vadd.f32 0.0, %v2000
      %2002 = vmatmul.f32.gmra.mxu0 %v1957
      %v2003 = vpop.f32.mrf.mxu0
      %v2004 = vadd.f32 0.0, %v2003
      %2005 = vmatmul.f32.gmra.mxu0 %v1960
      %v2006 = vpop.f32.mrf.mxu0
      %v2007 = vadd.f32 0.0, %v2006
      %2008 = vmatmul.f32.gmra.mxu0 %v1963
      %v2009 = vpop.f32.mrf.mxu0
      %v2010 = vadd.f32 0.0, %v2009
      %2011 = vdwg.mxu0
      %v2012 = vadd.f32 %v1912, %v1983
      %v2013 = vadd.f32 %v1913, %v1986
      %v2014 = vadd.f32 %v1914, %v1989
      %v2015 = vadd.f32 %v1915, %v1992
      %v2016 = vadd.f32 %v1916, %v1995
      %v2017 = vadd.f32 %v1917, %v1998
      %v2018 = vadd.f32 %v1918, %v2001
      %v2019 = vadd.f32 %v1919, %v2004
      %v2020 = vadd.f32 %v1920, %v2007
      %v2021 = vadd.f32 %v1921, %v2010
      %v2022 = vld [vmem:[#allocation2 + $0x20] sm:$0xff]
      %v2023 = vld [vmem:[#allocation2 + $0x28] sm:$0xff]
      %v2024 = vld [vmem:[#allocation2 + $0x30] sm:$0xff]
      %v2025 = vld [vmem:[#allocation2 + $0x38] sm:$0xff]
      %v2026 = vld [vmem:[#allocation2 + $0x40] sm:$0xff]
      %v2027 = vld [vmem:[#allocation2 + $0x48] sm:$0xff]
      %v2028 = vld [vmem:[#allocation2 + $0x50] sm:$0xff]
      %v2029 = vld [vmem:[#allocation2 + $0x58] sm:$0xff]
      %v2030 = vld [vmem:[#allocation2 + $0x60] sm:$0xff]
      %v2031 = vld [vmem:[#allocation2 + $0x68] sm:$0xff]
      %s2032 = scalar_lea.vmem %s4, 128
      %v2033 = vld [vmem:[%s2032] sm:$0xff]
      %v2034 = vld [vmem:[%s2032 + $0x8] sm:$0xff]
      %v2036 = vsel %vm1217, %v2022, 0
      %v2039 = vsel %vm1217, %v2023, 0
      %v2042 = vsel %vm1217, %v2024, 0
      %v2045 = vsel %vm1217, %v2025, 0
      %v2048 = vsel %vm1217, %v2026, 0
      %v2051 = vsel %vm1217, %v2027, 0
      %v2054 = vsel %vm1217, %v2028, 0
      %v2057 = vsel %vm1217, %v2029, 0
      %v2060 = vsel %vm1217, %v2030, 0
      %v2063 = vsel %vm1217, %v2031, 0
      %2065 = vmatpush.msra.mxu0 0.0
      %2066 = vmatpush.msra.mxu0 0.0
      %2067 = vmatpush.msra.mxu0 0.0
      %2068 = vmatpush.msra.mxu0 0.0
      %2069 = vmatpush.msra.mxu0 0.0
      %2070 = vmatpush.msra.mxu0 0.0
      %2071 = vmatpush.msra.mxu0 0.0
      %2072 = vmatpush.msra.mxu0 0.0
      %2073 = vmatpush.msra.mxu0 0.0
      %2074 = vmatpush.msra.mxu0 0.0
      %2075 = vmatpush.msra.mxu0 0.0
      %2076 = vmatpush.msra.mxu0 0.0
      %2077 = vmatpush.msra.mxu0 0.0
      %2078 = vmatpush.msra.mxu0 0.0
      %2079 = vmatpush.msra.mxu0 %v2034
      %2080 = vmatpush.msra.mxu0 %v2033
      %2081 = vmatmul.f32.gmra.mxu0 %v2036
      %v2082 = vpop.f32.mrf.mxu0
      %v2083 = vadd.f32 0.0, %v2082
      %2084 = vmatmul.f32.gmra.mxu0 %v2039
      %v2085 = vpop.f32.mrf.mxu0
      %v2086 = vadd.f32 0.0, %v2085
      %2087 = vmatmul.f32.gmra.mxu0 %v2042
      %v2088 = vpop.f32.mrf.mxu0
      %v2089 = vadd.f32 0.0, %v2088
      %2090 = vmatmul.f32.gmra.mxu0 %v2045
      %v2091 = vpop.f32.mrf.mxu0
      %v2092 = vadd.f32 0.0, %v2091
      %2093 = vmatmul.f32.gmra.mxu0 %v2048
      %v2094 = vpop.f32.mrf.mxu0
      %v2095 = vadd.f32 0.0, %v2094
      %2096 = vmatmul.f32.gmra.mxu0 %v2051
      %v2097 = vpop.f32.mrf.mxu0
      %v2098 = vadd.f32 0.0, %v2097
      %2099 = vmatmul.f32.gmra.mxu0 %v2054
      %v2100 = vpop.f32.mrf.mxu0
      %v2101 = vadd.f32 0.0, %v2100
      %2102 = vmatmul.f32.gmra.mxu0 %v2057
      %v2103 = vpop.f32.mrf.mxu0
      %v2104 = vadd.f32 0.0, %v2103
      %2105 = vmatmul.f32.gmra.mxu0 %v2060
      %v2106 = vpop.f32.mrf.mxu0
      %v2107 = vadd.f32 0.0, %v2106
      %2108 = vmatmul.f32.gmra.mxu0 %v2063
      %v2109 = vpop.f32.mrf.mxu0
      %v2110 = vadd.f32 0.0, %v2109
      %2111 = vdwg.mxu0
      %v2112 = vadd.f32 %v2012, %v2083
      %v2113 = vadd.f32 %v2013, %v2086
      %v2114 = vadd.f32 %v2014, %v2089
      %v2115 = vadd.f32 %v2015, %v2092
      %v2116 = vadd.f32 %v2016, %v2095
      %v2117 = vadd.f32 %v2017, %v2098
      %v2118 = vadd.f32 %v2018, %v2101
      %v2119 = vadd.f32 %v2019, %v2104
      %v2120 = vadd.f32 %v2020, %v2107
      %v2121 = vadd.f32 %v2021, %v2110
      %v2122 = vld [vmem:[%s5] sm:$0x1]
      %v2124 = vperm.slane %v2122, 0
      %v2126 = vadd.f32 %v2112, %v2124
      %v2127 = vadd.f32 %v2113, %v2124
      %v2128 = vadd.f32 %v2114, %v2124
      %v2129 = vadd.f32 %v2115, %v2124
      %v2130 = vadd.f32 %v2116, %v2124
      %v2131 = vadd.f32 %v2117, %v2124
      %v2132 = vadd.f32 %v2118, %v2124
      %v2133 = vadd.f32 %v2119, %v2124
      %v2134 = vadd.f32 %v2120, %v2124
      %v2135 = vadd.f32 %v2121, %v2124
      %v2136 = vmax.f32 %v2126, 0.0
      %v2137 = vmax.f32 %v2127, 0.0
      %v2138 = vmax.f32 %v2128, 0.0
      %v2139 = vmax.f32 %v2129, 0.0
      %v2140 = vmax.f32 %v2130, 0.0
      %v2141 = vmax.f32 %v2131, 0.0
      %v2142 = vmax.f32 %v2132, 0.0
      %v2143 = vmax.f32 %v2133, 0.0
      %v2144 = vmax.f32 %v2134, 0.0
      %v2145 = vmax.f32 %v2135, 0.0
      %v2146 = vmul.f32 %v2136, %v1160
      %v2147 = vmul.f32 %v2137, %v1165
      %v2148 = vmul.f32 %v2138, %v1170
      %v2149 = vmul.f32 %v2139, %v1175
      %v2150 = vmul.f32 %v2140, %v1180
      %v2151 = vmul.f32 %v2141, %v1185
      %v2152 = vmul.f32 %v2142, %v1190
      %v2153 = vmul.f32 %v2143, %v1195
      %v2154 = vmul.f32 %v2144, %v1200
      %v2155 = vmul.f32 %v2145, %v1205
      %2156 = vst.msk [vmem:[%s251] sm:$0xff] %vm1217, %v2146
      %2157 = vst.msk [vmem:[%s251 + $0x8] sm:$0xff] %vm1217, %v2147
      %2158 = vst.msk [vmem:[%s251 + $0x10] sm:$0xff] %vm1217, %v2148
      %2159 = vst.msk [vmem:[%s251 + $0x18] sm:$0xff] %vm1217, %v2149
      %2160 = vst.msk [vmem:[%s251 + $0x20] sm:$0xff] %vm1217, %v2150
      %2161 = vst.msk [vmem:[%s251 + $0x28] sm:$0xff] %vm1217, %v2151
      %2162 = vst.msk [vmem:[%s251 + $0x30] sm:$0xff] %vm1217, %v2152
      %2163 = vst.msk [vmem:[%s251 + $0x38] sm:$0xff] %vm1217, %v2153
      %2164 = vst.msk [vmem:[%s251 + $0x40] sm:$0xff] %vm1217, %v2154
      %2165 = vst.msk [vmem:[%s251 + $0x48] sm:$0xff] %vm1217, %v2155
      %p2166 = scmp.lt.s32.totalorder %s17, 1
      %s2167 = scalar_select %p2166, %s17, 1
      %s2168 = smul.addr %s2167, 10
      %s2169 = smul.addr %s2168, 8
      %s2170 = scalar_lea.vmem %s6, %s2169
      // Predicated region
      $region45: #{fe_forward.9} parent=43 // pred_check
        %p2171 = pneg %p166
      $region46: #{fe_forward.9} parent=43 // pred_check_branch
        %2173 = sbr.rel (%p2171) target = $region48
      $region47: #{fe_forward.9} parent=43 // pred_region
        _
      $region48: #{fe_forward.9} parent=43 // pred_fallthru
        _
    $region44: #{fe_forward.9} parent=5 // pred_fallthru
      _
    %p2174 = scmp.le.s32.totalorder 2, %s12
    // Predicated region
    $region49: #{fe_forward.9} parent=5 // pred_check
      %p2175 = pneg %p2174
    $region50: #{fe_forward.9} parent=5 // pred_check_branch
      %2177 = sbr.rel (%p2175) target = $region52
    $region51: #{fe_forward.9} parent=5 // pred_region
      %s2178 = ssub.s32 %s12, 2
      // Predicated region
      $region53: #{fe_forward.9} parent=51 // pred_check
        %p2179 = pneg %p172
      $region54: #{fe_forward.9} parent=51 // pred_check_branch
        %2181 = sbr.rel (%p2179) target = $region56
      $region55: #{fe_forward.9} parent=51 // pred_region
        %p2182 = scmp.lt.s32.totalorder %s18, 1
        %s2183 = scalar_select %p2182, %s18, 1
        %s2184 = smul.addr %s2183, 10
        %s2185 = smul.addr %s2184, 8
        %s2186 = scalar_lea.vmem %s6, %s2185
      $region56: #{fe_forward.9} parent=51 // pred_fallthru
        _
    $region52: #{fe_forward.9} parent=5 // pred_fallthru
      _
  $region6: #{fe_forward.9} parent=0 // loop_footer
    %s16 = sadd.s32 1, %s12
  $region7: #{fe_forward.9} parent=0 // loop_footer_branch
    %11 = sbr.rel target = $region3
  $region8: #{fe_forward.9} parent=0 // loop_exit
    _

// kernel: fe_forward.12
$region0: #{fe_forward.12}
  #allocation0 [shape = 'u32[]', space=smem, size = 0x4, offset = 0x4, fixed_abs, tag = 'smem constant byte address 0x4 - core index']
  #allocation1 [shape = 'u32[72,128]{1,0:T(1,128)}', space=vmem, size = 0x9000, scoped, tag = 'internal scratch']
  %s0 = inlined_call_operand.vmem [shape: f32[2,4,3,64], index: 0, kind: input, shape index: {}]
  %s1 = inlined_call_operand.vmem [shape: f32[2,2,2,32], index: 1, kind: output, shape index: {}]
  %s2 = sld [smem:[#allocation0]]
  $region37: #{fe_forward.12} parent=0
    _
  %s4 = ssub.s32 1, %s2
  %s5 = scalar_select 0, %s4, %s2
  loop: start=0, step=1, limit=6
  $region2: #{fe_forward.12} parent=0 // loop_pre_header
    _
  $region3: #{fe_forward.12} parent=0 // loop_header
    %s7 = sphi 0, %s11
    %p8 = scmp.ge.s32.totalorder %s7, 6
    %s14 = sphi 0, %s26
    %s15 = sphi 0, %s22
    %s16 = sphi 0, %s14
    %s17 = sphi 0, %s15
    %s18 = sphi 0, %s16
    %s19 = sphi 0, %s17
    %s31 = sphi 0, %s33
    %s34 = sphi 0, %s31
    %s35 = sphi 0, %s34
    %s51 = sphi 0, %s35
    %s59 = sphi 0, %s61
    %s62 = sphi 0, %s59
    %s63 = sphi 0, %s62
    %s79 = sphi 0, %s63
  $region4: #{fe_forward.12} parent=0 // loop_header_branch
    %10 = sbr.rel (%p8) target = $region8
  $region5: #{fe_forward.12} parent=0 // loop_body
    %s12 = ssub.s32 %s7, 1
    %s13 = ssub.s32 %s7, 2
    %s20 = sadd.s32 1, %s15
    %p21 = scmp.ge.s32.totalorder %s20, 2
    %s22 = scalar_select %p21, 0, %s20
    %s23 = sadd.s32 1, %s14
    %s24 = scalar_select %p21, %s23, %s14
    %p25 = scmp.ge.s32.totalorder %s24, 2
    %s26 = scalar_select %p25, 0, %s24
    %s27 = ssub.s32 %s14, %s26
    %s28 = ssub.s32 %s15, %s22
    %s29 = sor.u32 %s27, %s28
    %p30 = scmp.eq.s32.totalorder %s29, 0
    %s32 = sadd.s32 %s31, 1
    %s33 = scalar_select %p30, %s31, %s32
    %p36 = pneg %p30
    %p37 = scmp.eq.s32.totalorder %s7, 3
    %p38 = por %p36, %p37
    %p39 = scmp.ne.s32.totalorder %s31, %s34
    %p40 = scmp.eq.s32.totalorder %s7, 0
    %p41 = por %p39, %p40
    %p42 = scmp.ne.s32.totalorder %s31, %s34
    %p43 = scmp.eq.s32.totalorder %s12, 3
    %p44 = por %p42, %p43
    %p45 = scmp.ne.s32.totalorder %s34, %s35
    %p46 = scmp.eq.s32.totalorder %s12, 0
    %p47 = por %p45, %p46
    %p48 = scmp.ne.s32.totalorder %s34, %s35
    %p49 = scmp.eq.s32.totalorder %s13, 3
    %p50 = por %p48, %p49
    %p52 = scmp.ne.s32.totalorder %s35, %s51
    %p53 = scmp.eq.s32.totalorder %s13, 0
    %p54 = por %p52, %p53
    %s55 = ssub.s32 %s14, %s26
    %s56 = ssub.s32 %s15, %s22
    %s57 = sor.u32 %s55, %s56
    %p58 = scmp.eq.s32.totalorder %s57, 0
    %s60 = sadd.s32 %s59, 1
    %s61 = scalar_select %p58, %s59, %s60
    %p64 = pneg %p58
    %p65 = scmp.eq.s32.totalorder %s7, 3
    %p66 = por %p64, %p65
    %p67 = scmp.ne.s32.totalorder %s59, %s62
    %p68 = scmp.eq.s32.totalorder %s7, 0
    %p69 = por %p67, %p68
    %p70 = scmp.ne.s32.totalorder %s59, %s62
    %p71 = scmp.eq.s32.totalorder %s12, 3
    %p72 = por %p70, %p71
    %p73 = scmp.ne.s32.totalorder %s62, %s63
    %p74 = scmp.eq.s32.totalorder %s12, 0
    %p75 = por %p73, %p74
    %p76 = scmp.ne.s32.totalorder %s62, %s63
    %p77 = scmp.eq.s32.totalorder %s13, 3
    %p78 = por %p76, %p77
    %p80 = scmp.ne.s32.totalorder %s63, %s79
    %p81 = scmp.eq.s32.totalorder %s13, 0
    %p82 = por %p80, %p81
    %p83 = scmp.le.s32.totalorder 1, %s7
    %p84 = scmp.lt.s32.totalorder %s7, 5
    %p85 = pnand %p83, %p84
    %p86 = pneg %p85
    // Predicated region
    $region9: #{fe_forward.12} parent=5 // pred_check
      _
    $region10: #{fe_forward.12} parent=5 // pred_check_branch
      %88 = sbr.rel (%p85) target = $region12
    $region11: #{fe_forward.12} parent=5 // pred_region
      %s89 = ssub.s32 %s7, 1
    $region12: #{fe_forward.12} parent=5 // pred_fallthru
      _
    %p90 = scmp.lt.s32.totalorder %s7, 4
    // Predicated region
    $region13: #{fe_forward.12} parent=5 // pred_check
      %p91 = pneg %p90
    $region14: #{fe_forward.12} parent=5 // pred_check_branch
      %93 = sbr.rel (%p91) target = $region16
    $region15: #{fe_forward.12} parent=5 // pred_region
      // Predicated region
      $region17: #{fe_forward.12} parent=15 // pred_check
        %p94 = pneg %p41
      $region18: #{fe_forward.12} parent=15 // pred_check_branch
        %96 = sbr.rel (%p94) target = $region20
      $region19: #{fe_forward.12} parent=15 // pred_region
        %s97 = smul.u32 2, %s15
        %p98 = scmp.lt.s32.totalorder %s14, 1
        %s99 = scalar_select %p98, %s14, 1
        %p100 = scmp.lt.s32.totalorder %s97, 3
        %s101 = scalar_select %p100, %s97, 3
        %s102 = smul.addr %s99, 4
        %s103 = sadd.s32 %s101, %s102
        %s104 = smul.addr %s103, 4
        %s105 = scalar_lea.vmem %s0, %s104
        %s106 = smul.u32 2, %s15
      $region20: #{fe_forward.12} parent=15 // pred_fallthru
        _
    $region16: #{fe_forward.12} parent=5 // pred_fallthru
      _
    %p107 = scmp.le.s32.totalorder 1, %s7
    %p108 = scmp.lt.s32.totalorder %s7, 5
    %p109 = pnand %p107, %p108
    %p110 = pneg %p109
    // Predicated region
    $region21: #{fe_forward.12} parent=5 // pred_check
      _
    $region22: #{fe_forward.12} parent=5 // pred_check_branch
      %112 = sbr.rel (%p109) target = $region24
    $region23: #{fe_forward.12} parent=5 // pred_region
      %s113 = ssub.s32 %s7, 1
      %s114 = smul.u32 2, %s17
      %p115 = scmp.lt.s32.totalorder %s16, 1
      %s116 = scalar_select %p115, %s16, 1
      %p117 = scmp.lt.s32.totalorder %s114, 3
      %s118 = scalar_select %p117, %s114, 3
      %s119 = smul.addr %s116, 4
      %s120 = sadd.s32 %s118, %s119
      %s121 = smul.addr %s120, 4
      %s122 = scalar_lea.vmem %s0, %s121
      %p123 = pneg %p47
      %p124 = pneg %p44
      %p125 = pneg %p75
      %p126 = pneg %p72
      %p127 = scmp.lt.s32.totalorder %s16, 1
      %s128 = scalar_select %p127, %s16, 1
      %p129 = scmp.lt.s32.totalorder %s17, 1
      %s130 = scalar_select %p129, %s17, 1
      %s131 = smul.addr %s128, 2
      %s132 = sadd.s32 %s130, %s131
      %s133 = smul.addr %s132, 2
      %s134 = scalar_lea.vmem %s1, %s133
      %s135 = smul.u32 2, %s17
      %p136 = scmp.lt.s32.totalorder %s16, 1
      %s137 = scalar_select %p136, %s16, 1
      %p138 = scmp.lt.s32.totalorder %s135, 3
      %s139 = scalar_select %p138, %s135, 3
      %s140 = smul.addr %s137, 4
      %s141 = sadd.s32 %s139, %s140
      %s142 = smul.addr %s141, 4
      %s143 = scalar_lea.vmem %s0, %s142
      %s144 = smul.u32 2, %s17
      %p145 = scmp.lt.s32.totalorder %s16, 1
      %s146 = scalar_select %p145, %s16, 1
      %p147 = scmp.lt.s32.totalorder %s17, 1
      %s148 = scalar_select %p147, %s17, 1
      %s149 = smul.addr %s146, 2
      %s150 = sadd.s32 %s148, %s149
      %s151 = smul.addr %s150, 2
      %s152 = scalar_lea.vmem %s1, %s151
      %v153 = vld [vmem:[%s143] sm:$0x7]
      %s154 = scalar_lea.vmem %s143, 4
      %v155 = vld [vmem:[%s154] sm:$0x7]
      %v156 = vmax.f32 %v153, %v155
      %158 = vrot.lane.b32.xlu0 %v156, 96
      %v159 = vpop.permute.xlu0 %158
      %v161 = vmax.f32 %v156, %v159
      %vm162 = vcmask 254976
      %163 = vst.msk [vmem:[%s152] sm:$0x3] %vm162, %v161
      %p164 = scmp.lt.s32.totalorder %s16, 1
      %s165 = scalar_select %p164, %s16, 1
      %p166 = scmp.lt.s32.totalorder %s17, 1
      %s167 = scalar_select %p166, %s17, 1
      %s168 = smul.addr %s165, 2
      %s169 = sadd.s32 %s167, %s168
      %s170 = smul.addr %s169, 2
      %s171 = scalar_lea.vmem %s1, %s170
      // Predicated region
      $region25: #{fe_forward.12} parent=23 // pred_check
        %p172 = pneg %p72
      $region26: #{fe_forward.12} parent=23 // pred_check_branch
        %174 = sbr.rel (%p172) target = $region28
      $region27: #{fe_forward.12} parent=23 // pred_region
        _
      $region28: #{fe_forward.12} parent=23 // pred_fallthru
        _
    $region24: #{fe_forward.12} parent=5 // pred_fallthru
      _
    %p175 = scmp.le.s32.totalorder 2, %s7
    // Predicated region
    $region29: #{fe_forward.12} parent=5 // pred_check
      %p176 = pneg %p175
    $region30: #{fe_forward.12} parent=5 // pred_check_branch
      %178 = sbr.rel (%p176) target = $region32
    $region31: #{fe_forward.12} parent=5 // pred_region
      %s179 = ssub.s32 %s7, 2
      // Predicated region
      $region33: #{fe_forward.12} parent=31 // pred_check
        %p180 = pneg %p78
      $region34: #{fe_forward.12} parent=31 // pred_check_branch
        %182 = sbr.rel (%p180) target = $region36
      $region35: #{fe_forward.12} parent=31 // pred_region
        %p183 = scmp.lt.s32.totalorder %s18, 1
        %s184 = scalar_select %p183, %s18, 1
        %p185 = scmp.lt.s32.totalorder %s19, 1
        %s186 = scalar_select %p185, %s19, 1
        %s187 = smul.addr %s184, 2
        %s188 = sadd.s32 %s186, %s187
        %s189 = smul.addr %s188, 2
        %s190 = scalar_lea.vmem %s1, %s189
      $region36: #{fe_forward.12} parent=31 // pred_fallthru
        _
    $region32: #{fe_forward.12} parent=5 // pred_fallthru
      _
  $region6: #{fe_forward.12} parent=0 // loop_footer
    %s11 = sadd.s32 1, %s7
  $region7: #{fe_forward.12} parent=0 // loop_footer_branch
    %6 = sbr.rel target = $region3
  $region8: #{fe_forward.12} parent=0 // loop_exit
    _

// kernel: fe_forward.11
$region0: #{fe_forward.11}
  #allocation0 [shape = 'u32[]', space=smem, size = 0x4, offset = 0x4, fixed_abs, tag = 'smem constant byte address 0x4 - core index']
  #allocation1 [shape = 'u32[72,128]{1,0:T(1,128)}', space=vmem, size = 0x9000, scoped, tag = 'internal scratch']
  #allocation2 [shape = 'f32[48,32]{1,0:T(8,128)}', space=vmem, size = 0x6000, scoped, tag = 'scratch operand']
  %s0 = inlined_call_operand.vmem [shape: f32[2,48,16], index: 0, kind: input, shape index: {}]
  %s1 = inlined_call_operand.vmem [shape: f32[24,1], index: 1, kind: input, shape index: {}]
  %s2 = inlined_call_operand.vmem [shape: f32[3,3,16,32], index: 2, kind: input, shape index: {}]
  %s3 = inlined_call_operand.vmem [shape: f32[1,32], index: 3, kind: input, shape index: {}]
  %s4 = inlined_call_operand.vmem [shape: f32[3,3,32,32], index: 4, kind: input, shape index: {}]
  %s5 = inlined_call_operand.vmem [shape: f32[1,32], index: 5, kind: input, shape index: {}]
  %s6 = inlined_call_operand.vmem [shape: f32[2,24,32], index: 6, kind: output, shape index: {}]
  %s7 = sld [smem:[#allocation0]]
  $region57: #{fe_forward.11} parent=0
    _
  %s9 = ssub.s32 1, %s7
  %s10 = scalar_select 0, %s9, %s7
  loop: start=0, step=1, limit=4
  $region2: #{fe_forward.11} parent=0 // loop_pre_header
    _
  $region3: #{fe_forward.11} parent=0 // loop_header
    %s12 = sphi 0, %s16
    %p13 = scmp.ge.s32.totalorder %s12, 4
    %s22 = sphi 0, %s24
    %s25 = sphi 0, %s22
    %s26 = sphi 0, %s25
    %s42 = sphi 0, %s26
    %s46 = sphi 0, %s46
    %s48 = sphi 0, %s46
    %s49 = sphi 0, %s48
    %s63 = sphi 0, %s49
    %s67 = sphi 0, %s67
    %s69 = sphi 0, %s67
    %s70 = sphi 0, %s69
    %s84 = sphi 0, %s70
    %s88 = sphi 0, %s88
    %s90 = sphi 0, %s88
    %s91 = sphi 0, %s90
    %s105 = sphi 0, %s91
    %s109 = sphi 0, %s109
    %s111 = sphi 0, %s109
    %s112 = sphi 0, %s111
    %s126 = sphi 0, %s112
    %s130 = sphi 0, %s130
    %s132 = sphi 0, %s130
    %s133 = sphi 0, %s132
    %s147 = sphi 0, %s133
    %s153 = sphi 0, %s155
    %s156 = sphi 0, %s153
    %s157 = sphi 0, %s156
    %s173 = sphi 0, %s157
  $region4: #{fe_forward.11} parent=0 // loop_header_branch
    %15 = sbr.rel (%p13) target = $region8
  $region5: #{fe_forward.11} parent=0 // loop_body
    %s17 = ssub.s32 %s12, 1
    %s18 = ssub.s32 %s12, 2
    %s19 = sadd.s32 %s12, 1
    %s20 = ssub.s32 %s12, %s19
    %p21 = scmp.eq.s32.totalorder %s20, 0
    %s23 = sadd.s32 %s22, 1
    %s24 = scalar_select %p21, %s22, %s23
    %p27 = pneg %p21
    %p28 = scmp.eq.s32.totalorder %s12, 1
    %p29 = por %p27, %p28
    %p30 = scmp.ne.s32.totalorder %s22, %s25
    %p31 = scmp.eq.s32.totalorder %s12, 0
    %p32 = por %p30, %p31
    %p33 = scmp.ne.s32.totalorder %s22, %s25
    %p34 = scmp.eq.s32.totalorder %s17, 1
    %p35 = por %p33, %p34
    %p36 = scmp.ne.s32.totalorder %s25, %s26
    %p37 = scmp.eq.s32.totalorder %s17, 0
    %p38 = por %p36, %p37
    %p39 = scmp.ne.s32.totalorder %s25, %s26
    %p40 = scmp.eq.s32.totalorder %s18, 1
    %p41 = por %p39, %p40
    %p43 = scmp.ne.s32.totalorder %s26, %s42
    %p44 = scmp.eq.s32.totalorder %s18, 0
    %p45 = por %p43, %p44
    %s47 = sadd.s32 %s46, 1
    %p50 = scmp.eq.s32.totalorder %s12, 1
    %p51 = scmp.ne.s32.totalorder %s46, %s48
    %p52 = scmp.eq.s32.totalorder %s12, 0
    %p53 = por %p51, %p52
    %p54 = scmp.ne.s32.totalorder %s46, %s48
    %p55 = scmp.eq.s32.totalorder %s17, 1
    %p56 = por %p54, %p55
    %p57 = scmp.ne.s32.totalorder %s48, %s49
    %p58 = scmp.eq.s32.totalorder %s17, 0
    %p59 = por %p57, %p58
    %p60 = scmp.ne.s32.totalorder %s48, %s49
    %p61 = scmp.eq.s32.totalorder %s18, 1
    %p62 = por %p60, %p61
    %p64 = scmp.ne.s32.totalorder %s49, %s63
    %p65 = scmp.eq.s32.totalorder %s18, 0
    %p66 = por %p64, %p65
    %s68 = sadd.s32 %s67, 1
    %p71 = scmp.eq.s32.totalorder %s12, 1
    %p72 = scmp.ne.s32.totalorder %s67, %s69
    %p73 = scmp.eq.s32.totalorder %s12, 0
    %p74 = por %p72, %p73
    %p75 = scmp.ne.s32.totalorder %s67, %s69
    %p76 = scmp.eq.s32.totalorder %s17, 1
    %p77 = por %p75, %p76
    %p78 = scmp.ne.s32.totalorder %s69, %s70
    %p79 = scmp.eq.s32.totalorder %s17, 0
    %p80 = por %p78, %p79
    %p81 = scmp.ne.s32.totalorder %s69, %s70
    %p82 = scmp.eq.s32.totalorder %s18, 1
    %p83 = por %p81, %p82
    %p85 = scmp.ne.s32.totalorder %s70, %s84
    %p86 = scmp.eq.s32.totalorder %s18, 0
    %p87 = por %p85, %p86
    %s89 = sadd.s32 %s88, 1
    %p92 = scmp.eq.s32.totalorder %s12, 1
    %p93 = scmp.ne.s32.totalorder %s88, %s90
    %p94 = scmp.eq.s32.totalorder %s12, 0
    %p95 = por %p93, %p94
    %p96 = scmp.ne.s32.totalorder %s88, %s90
    %p97 = scmp.eq.s32.totalorder %s17, 1
    %p98 = por %p96, %p97
    %p99 = scmp.ne.s32.totalorder %s90, %s91
    %p100 = scmp.eq.s32.totalorder %s17, 0
    %p101 = por %p99, %p100
    %p102 = scmp.ne.s32.totalorder %s90, %s91
    %p103 = scmp.eq.s32.totalorder %s18, 1
    %p104 = por %p102, %p103
    %p106 = scmp.ne.s32.totalorder %s91, %s105
    %p107 = scmp.eq.s32.totalorder %s18, 0
    %p108 = por %p106, %p107
    %s110 = sadd.s32 %s109, 1
    %p113 = scmp.eq.s32.totalorder %s12, 1
    %p114 = scmp.ne.s32.totalorder %s109, %s111
    %p115 = scmp.eq.s32.totalorder %s12, 0
    %p116 = por %p114, %p115
    %p117 = scmp.ne.s32.totalorder %s109, %s111
    %p118 = scmp.eq.s32.totalorder %s17, 1
    %p119 = por %p117, %p118
    %p120 = scmp.ne.s32.totalorder %s111, %s112
    %p121 = scmp.eq.s32.totalorder %s17, 0
    %p122 = por %p120, %p121
    %p123 = scmp.ne.s32.totalorder %s111, %s112
    %p124 = scmp.eq.s32.totalorder %s18, 1
    %p125 = por %p123, %p124
    %p127 = scmp.ne.s32.totalorder %s112, %s126
    %p128 = scmp.eq.s32.totalorder %s18, 0
    %p129 = por %p127, %p128
    %s131 = sadd.s32 %s130, 1
    %p134 = scmp.eq.s32.totalorder %s12, 1
    %p135 = scmp.ne.s32.totalorder %s130, %s132
    %p136 = scmp.eq.s32.totalorder %s12, 0
    %p137 = por %p135, %p136
    %p138 = scmp.ne.s32.totalorder %s130, %s132
    %p139 = scmp.eq.s32.totalorder %s17, 1
    %p140 = por %p138, %p139
    %p141 = scmp.ne.s32.totalorder %s132, %s133
    %p142 = scmp.eq.s32.totalorder %s17, 0
    %p143 = por %p141, %p142
    %p144 = scmp.ne.s32.totalorder %s132, %s133
    %p145 = scmp.eq.s32.totalorder %s18, 1
    %p146 = por %p144, %p145
    %p148 = scmp.ne.s32.totalorder %s133, %s147
    %p149 = scmp.eq.s32.totalorder %s18, 0
    %p150 = por %p148, %p149
    %s151 = ssub.s32 %s12, %s19
    %p152 = scmp.eq.s32.totalorder %s151, 0
    %s154 = sadd.s32 %s153, 1
    %s155 = scalar_select %p152, %s153, %s154
    %p158 = pneg %p152
    %p159 = scmp.eq.s32.totalorder %s12, 1
    %p160 = por %p158, %p159
    %p161 = scmp.ne.s32.totalorder %s153, %s156
    %p162 = scmp.eq.s32.totalorder %s12, 0
    %p163 = por %p161, %p162
    %p164 = scmp.ne.s32.totalorder %s153, %s156
    %p165 = scmp.eq.s32.totalorder %s17, 1
    %p166 = por %p164, %p165
    %p167 = scmp.ne.s32.totalorder %s156, %s157
    %p168 = scmp.eq.s32.totalorder %s17, 0
    %p169 = por %p167, %p168
    %p170 = scmp.ne.s32.totalorder %s156, %s157
    %p171 = scmp.eq.s32.totalorder %s18, 1
    %p172 = por %p170, %p171
    %p174 = scmp.ne.s32.totalorder %s157, %s173
    %p175 = scmp.eq.s32.totalorder %s18, 0
    %p176 = por %p174, %p175
    %p177 = scmp.le.s32.totalorder 1, %s12
    %p178 = scmp.lt.s32.totalorder %s12, 3
    %p179 = pnand %p177, %p178
    %p180 = pneg %p179
    // Predicated region
    $region9: #{fe_forward.11} parent=5 // pred_check
      _
    $region10: #{fe_forward.11} parent=5 // pred_check_branch
      %182 = sbr.rel (%p179) target = $region12
    $region11: #{fe_forward.11} parent=5 // pred_region
      %s183 = ssub.s32 %s12, 1
      // Predicated region
      $region13: #{fe_forward.11} parent=11 // pred_check
        %p184 = pneg %p59
      $region14: #{fe_forward.11} parent=11 // pred_check_branch
        %186 = sbr.rel (%p184) target = $region16
      $region15: #{fe_forward.11} parent=11 // pred_region
        _
      $region16: #{fe_forward.11} parent=11 // pred_fallthru
        _
      // Predicated region
      $region17: #{fe_forward.11} parent=11 // pred_check
        %p187 = pneg %p80
      $region18: #{fe_forward.11} parent=11 // pred_check_branch
        %189 = sbr.rel (%p187) target = $region20
      $region19: #{fe_forward.11} parent=11 // pred_region
        _
      $region20: #{fe_forward.11} parent=11 // pred_fallthru
        _
      // Predicated region
      $region21: #{fe_forward.11} parent=11 // pred_check
        %p190 = pneg %p101
      $region22: #{fe_forward.11} parent=11 // pred_check_branch
        %192 = sbr.rel (%p190) target = $region24
      $region23: #{fe_forward.11} parent=11 // pred_region
        _
      $region24: #{fe_forward.11} parent=11 // pred_fallthru
        _
      // Predicated region
      $region25: #{fe_forward.11} parent=11 // pred_check
        %p193 = pneg %p122
      $region26: #{fe_forward.11} parent=11 // pred_check_branch
        %195 = sbr.rel (%p193) target = $region28
      $region27: #{fe_forward.11} parent=11 // pred_region
        _
      $region28: #{fe_forward.11} parent=11 // pred_fallthru
        _
      // Predicated region
      $region29: #{fe_forward.11} parent=11 // pred_check
        %p196 = pneg %p143
      $region30: #{fe_forward.11} parent=11 // pred_check_branch
        %198 = sbr.rel (%p196) target = $region32
      $region31: #{fe_forward.11} parent=11 // pred_region
        _
      $region32: #{fe_forward.11} parent=11 // pred_fallthru
        _
    $region12: #{fe_forward.11} parent=5 // pred_fallthru
      _
    %p199 = scmp.lt.s32.totalorder %s12, 2
    // Predicated region
    $region33: #{fe_forward.11} parent=5 // pred_check
      %p200 = pneg %p199
    $region34: #{fe_forward.11} parent=5 // pred_check_branch
      %202 = sbr.rel (%p200) target = $region36
    $region35: #{fe_forward.11} parent=5 // pred_region
      // Predicated region
      $region37: #{fe_forward.11} parent=35 // pred_check
        %p203 = pneg %p32
      $region38: #{fe_forward.11} parent=35 // pred_check_branch
        %205 = sbr.rel (%p203) target = $region40
      $region39: #{fe_forward.11} parent=35 // pred_region
        %p206 = scmp.lt.s32.totalorder %s12, 1
        %s207 = scalar_select %p206, %s12, 1
        %s208 = smul.addr %s207, 6
        %s209 = smul.addr %s208, 8
        %s210 = scalar_lea.vmem %s0, %s209
      $region40: #{fe_forward.11} parent=35 // pred_fallthru
        _
    $region36: #{fe_forward.11} parent=5 // pred_fallthru
      _
    %p211 = scmp.le.s32.totalorder 1, %s12
    %p212 = scmp.lt.s32.totalorder %s12, 3
    %p213 = pnand %p211, %p212
    %p214 = pneg %p213
    // Predicated region
    $region41: #{fe_forward.11} parent=5 // pred_check
      _
    $region42: #{fe_forward.11} parent=5 // pred_check_branch
      %216 = sbr.rel (%p213) target = $region44
    $region43: #{fe_forward.11} parent=5 // pred_region
      %s217 = ssub.s32 %s12, 1
      %p218 = scmp.lt.s32.totalorder %s17, 1
      %s219 = scalar_select %p218, %s17, 1
      %s220 = smul.addr %s219, 6
      %s221 = smul.addr %s220, 8
      %s222 = scalar_lea.vmem %s0, %s221
      %p223 = pneg %p38
      %p224 = pneg %p35
      %p225 = pneg %p59
      %p226 = pneg %p56
      %p227 = pneg %p80
      %p228 = pneg %p77
      %p229 = pneg %p101
      %p230 = pneg %p98
      %p231 = pneg %p122
      %p232 = pneg %p119
      %p233 = pneg %p143
      %p234 = pneg %p140
      %p235 = pneg %p169
      %p236 = pneg %p166
      %p237 = scmp.lt.s32.totalorder %s17, 1
      %s238 = scalar_select %p237, %s17, 1
      %s239 = smul.addr %s238, 3
      %s240 = smul.addr %s239, 8
      %s241 = scalar_lea.vmem %s6, %s240
      %p242 = scmp.lt.s32.totalorder %s17, 1
      %s243 = scalar_select %p242, %s17, 1
      %s244 = smul.addr %s243, 6
      %s245 = smul.addr %s244, 8
      %s246 = scalar_lea.vmem %s0, %s245
      %p247 = scmp.lt.s32.totalorder %s17, 1
      %s248 = scalar_select %p247, %s17, 1
      %s249 = smul.addr %s248, 3
      %s250 = smul.addr %s249, 8
      %s251 = scalar_lea.vmem %s6, %s250
      %v252 = vld [vmem:[%s1] sm:$0xff]
      %v253 = vld [vmem:[%s1 + $0x8] sm:$0xff]
      %v254 = vld [vmem:[%s1 + $0x10] sm:$0xff]
      %v255 = vld [vmem:[%s246 + $0x6] sm:$0xff]
      %v256 = vld [vmem:[%s246 + $0xe] sm:$0xff]
      %v257 = vld [vmem:[%s246 + $0x16] sm:$0xff]
      %v258 = vld [vmem:[%s2] sm:$0xff]
      %v259 = vld [vmem:[%s2 + $0x8] sm:$0xff]
      %v260 = vld [vmem:[%s246 + $0x7] sm:$0xff]
      %v261 = vld [vmem:[%s246 + $0xf] sm:$0xff]
      %v262 = vld [vmem:[%s246 + $0x17] sm:$0xff]
      %s263 = scalar_lea.vmem %s2, 16
      %v264 = vld [vmem:[%s263] sm:$0xff]
      %v265 = vld [vmem:[%s263 + $0x8] sm:$0xff]
      %vm266 = vcmask 130048
      %v268 = vsel %vm266, %v260, 0
      %v271 = vsel %vm266, %v261, 0
      %v274 = vsel %vm266, %v262, 0
      %276 = vmatpush.msra.mxu0 0.0
      %277 = vmatpush.msra.mxu0 0.0
      %278 = vmatpush.msra.mxu0 0.0
      %279 = vmatpush.msra.mxu0 0.0
      %280 = vmatpush.msra.mxu0 0.0
      %281 = vmatpush.msra.mxu0 0.0
      %282 = vmatpush.msra.mxu0 0.0
      %283 = vmatpush.msra.mxu0 0.0
      %284 = vmatpush.msra.mxu0 0.0
      %285 = vmatpush.msra.mxu0 0.0
      %286 = vmatpush.msra.mxu0 0.0
      %287 = vmatpush.msra.mxu0 0.0
      %288 = vmatpush.msra.mxu0 0.0
      %289 = vmatpush.msra.mxu0 0.0
      %290 = vmatpush.msra.mxu0 %v265
      %291 = vmatpush.msra.mxu0 %v264
      %292 = vmatmul.f32.gmra.mxu0 %v268
      %v293 = vpop.f32.mrf.mxu0
      %v294 = vadd.f32 0.0, %v293
      %295 = vmatmul.f32.gmra.mxu0 %v271
      %v296 = vpop.f32.mrf.mxu0
      %v297 = vadd.f32 0.0, %v296
      %298 = vmatmul.f32.gmra.mxu0 %v274
      %v299 = vpop.f32.mrf.mxu0
      %v300 = vadd.f32 0.0, %v299
      %301 = vdwg.mxu0
      %v303 = vsel %vm266, %v255, 0
      %v306 = vsel %vm266, %v256, 0
      %v309 = vsel %vm266, %v257, 0
      %311 = vmatpush.msra.mxu0 0.0
      %312 = vmatpush.msra.mxu0 0.0
      %313 = vmatpush.msra.mxu0 0.0
      %314 = vmatpush.msra.mxu0 0.0
      %315 = vmatpush.msra.mxu0 0.0
      %316 = vmatpush.msra.mxu0 0.0
      %317 = vmatpush.msra.mxu0 0.0
      %318 = vmatpush.msra.mxu0 0.0
      %319 = vmatpush.msra.mxu0 0.0
      %320 = vmatpush.msra.mxu0 0.0
      %321 = vmatpush.msra.mxu0 0.0
      %322 = vmatpush.msra.mxu0 0.0
      %323 = vmatpush.msra.mxu0 0.0
      %324 = vmatpush.msra.mxu0 0.0
      %325 = vmatpush.msra.mxu0 %v259
      %326 = vmatpush.msra.mxu0 %v258
      %327 = vmatmul.f32.gmra.mxu0 %v303
      %v328 = vpop.f32.mrf.mxu0
      %v329 = vadd.f32 %v294, %v328
      %330 = vmatmul.f32.gmra.mxu0 %v306
      %v331 = vpop.f32.mrf.mxu0
      %v332 = vadd.f32 %v297, %v331
      %333 = vmatmul.f32.gmra.mxu0 %v309
      %v334 = vpop.f32.mrf.mxu0
      %v335 = vadd.f32 %v300, %v334
      %336 = vdwg.mxu0
      %v337 = vld [vmem:[%s246 + $0x8] sm:$0xff]
      %v338 = vld [vmem:[%s246 + $0x10] sm:$0xff]
      %v339 = vld [vmem:[%s246 + $0x18] sm:$0xff]
      %s340 = scalar_lea.vmem %s2, 32
      %v341 = vld [vmem:[%s340] sm:$0xff]
      %v342 = vld [vmem:[%s340 + $0x8] sm:$0xff]
      %v344 = vsel %vm266, %v337, 0
      %v347 = vsel %vm266, %v338, 0
      %v350 = vsel %vm266, %v339, 0
      %352 = vmatpush.msra.mxu0 0.0
      %353 = vmatpush.msra.mxu0 0.0
      %354 = vmatpush.msra.mxu0 0.0
      %355 = vmatpush.msra.mxu0 0.0
      %356 = vmatpush.msra.mxu0 0.0
      %357 = vmatpush.msra.mxu0 0.0
      %358 = vmatpush.msra.mxu0 0.0
      %359 = vmatpush.msra.mxu0 0.0
      %360 = vmatpush.msra.mxu0 0.0
      %361 = vmatpush.msra.mxu0 0.0
      %362 = vmatpush.msra.mxu0 0.0
      %363 = vmatpush.msra.mxu0 0.0
      %364 = vmatpush.msra.mxu0 0.0
      %365 = vmatpush.msra.mxu0 0.0
      %366 = vmatpush.msra.mxu0 %v342
      %367 = vmatpush.msra.mxu0 %v341
      %368 = vmatmul.f32.gmra.mxu0 %v344
      %v369 = vpop.f32.mrf.mxu0
      %v370 = vadd.f32 0.0, %v369
      %371 = vmatmul.f32.gmra.mxu0 %v347
      %v372 = vpop.f32.mrf.mxu0
      %v373 = vadd.f32 0.0, %v372
      %374 = vmatmul.f32.gmra.mxu0 %v350
      %v375 = vpop.f32.mrf.mxu0
      %v376 = vadd.f32 0.0, %v375
      %377 = vdwg.mxu0
      %v378 = vadd.f32 %v329, %v370
      %v379 = vadd.f32 %v332, %v373
      %v380 = vadd.f32 %v335, %v376
      %v381 = vld [vmem:[%s246 + $0xc] sm:$0xff]
      %v382 = vld [vmem:[%s246 + $0x14] sm:$0xff]
      %v383 = vld [vmem:[%s246 + $0x1c] sm:$0xff]
      %s384 = scalar_lea.vmem %s2, 48
      %v385 = vld [vmem:[%s384] sm:$0xff]
      %v386 = vld [vmem:[%s384 + $0x8] sm:$0xff]
      %v388 = vsel %vm266, %v381, 0
      %v391 = vsel %vm266, %v382, 0
      %v394 = vsel %vm266, %v383, 0
      %396 = vmatpush.msra.mxu0 0.0
      %397 = vmatpush.msra.mxu0 0.0
      %398 = vmatpush.msra.mxu0 0.0
      %399 = vmatpush.msra.mxu0 0.0
      %400 = vmatpush.msra.mxu0 0.0
      %401 = vmatpush.msra.mxu0 0.0
      %402 = vmatpush.msra.mxu0 0.0
      %403 = vmatpush.msra.mxu0 0.0
      %404 = vmatpush.msra.mxu0 0.0
      %405 = vmatpush.msra.mxu0 0.0
      %406 = vmatpush.msra.mxu0 0.0
      %407 = vmatpush.msra.mxu0 0.0
      %408 = vmatpush.msra.mxu0 0.0
      %409 = vmatpush.msra.mxu0 0.0
      %410 = vmatpush.msra.mxu0 %v386
      %411 = vmatpush.msra.mxu0 %v385
      %412 = vmatmul.f32.gmra.mxu0 %v388
      %v413 = vpop.f32.mrf.mxu0
      %v414 = vadd.f32 0.0, %v413
      %415 = vmatmul.f32.gmra.mxu0 %v391
      %v416 = vpop.f32.mrf.mxu0
      %v417 = vadd.f32 0.0, %v416
      %418 = vmatmul.f32.gmra.mxu0 %v394
      %v419 = vpop.f32.mrf.mxu0
      %v420 = vadd.f32 0.0, %v419
      %421 = vdwg.mxu0
      %v422 = vadd.f32 %v378, %v414
      %v423 = vadd.f32 %v379, %v417
      %v424 = vadd.f32 %v380, %v420
      %v425 = vld [vmem:[%s246 + $0xd] sm:$0xff]
      %v426 = vld [vmem:[%s246 + $0x15] sm:$0xff]
      %v427 = vld [vmem:[%s246 + $0x1d] sm:$0xff]
      %s428 = scalar_lea.vmem %s2, 64
      %v429 = vld [vmem:[%s428] sm:$0xff]
      %v430 = vld [vmem:[%s428 + $0x8] sm:$0xff]
      %v432 = vsel %vm266, %v425, 0
      %v435 = vsel %vm266, %v426, 0
      %v438 = vsel %vm266, %v427, 0
      %440 = vmatpush.msra.mxu0 0.0
      %441 = vmatpush.msra.mxu0 0.0
      %442 = vmatpush.msra.mxu0 0.0
      %443 = vmatpush.msra.mxu0 0.0
      %444 = vmatpush.msra.mxu0 0.0
      %445 = vmatpush.msra.mxu0 0.0
      %446 = vmatpush.msra.mxu0 0.0
      %447 = vmatpush.msra.mxu0 0.0
      %448 = vmatpush.msra.mxu0 0.0
      %449 = vmatpush.msra.mxu0 0.0
      %450 = vmatpush.msra.mxu0 0.0
      %451 = vmatpush.msra.mxu0 0.0
      %452 = vmatpush.msra.mxu0 0.0
      %453 = vmatpush.msra.mxu0 0.0
      %454 = vmatpush.msra.mxu0 %v430
      %455 = vmatpush.msra.mxu0 %v429
      %456 = vmatmul.f32.gmra.mxu0 %v432
      %v457 = vpop.f32.mrf.mxu0
      %v458 = vadd.f32 0.0, %v457
      %459 = vmatmul.f32.gmra.mxu0 %v435
      %v460 = vpop.f32.mrf.mxu0
      %v461 = vadd.f32 0.0, %v460
      %462 = vmatmul.f32.gmra.mxu0 %v438
      %v463 = vpop.f32.mrf.mxu0
      %v464 = vadd.f32 0.0, %v463
      %465 = vdwg.mxu0
      %v466 = vadd.f32 %v422, %v458
      %v467 = vadd.f32 %v423, %v461
      %v468 = vadd.f32 %v424, %v464
      %v469 = vld [vmem:[%s246 + $0xe] sm:$0xff]
      %v470 = vld [vmem:[%s246 + $0x16] sm:$0xff]
      %v471 = vld [vmem:[%s246 + $0x1e] sm:$0xff]
      %s472 = scalar_lea.vmem %s2, 80
      %v473 = vld [vmem:[%s472] sm:$0xff]
      %v474 = vld [vmem:[%s472 + $0x8] sm:$0xff]
      %v476 = vsel %vm266, %v469, 0
      %v479 = vsel %vm266, %v470, 0
      %v482 = vsel %vm266, %v471, 0
      %484 = vmatpush.msra.mxu0 0.0
      %485 = vmatpush.msra.mxu0 0.0
      %486 = vmatpush.msra.mxu0 0.0
      %487 = vmatpush.msra.mxu0 0.0
      %488 = vmatpush.msra.mxu0 0.0
      %489 = vmatpush.msra.mxu0 0.0
      %490 = vmatpush.msra.mxu0 0.0
      %491 = vmatpush.msra.mxu0 0.0
      %492 = vmatpush.msra.mxu0 0.0
      %493 = vmatpush.msra.mxu0 0.0
      %494 = vmatpush.msra.mxu0 0.0
      %495 = vmatpush.msra.mxu0 0.0
      %496 = vmatpush.msra.mxu0 0.0
      %497 = vmatpush.msra.mxu0 0.0
      %498 = vmatpush.msra.mxu0 %v474
      %499 = vmatpush.msra.mxu0 %v473
      %500 = vmatmul.f32.gmra.mxu0 %v476
      %v501 = vpop.f32.mrf.mxu0
      %v502 = vadd.f32 0.0, %v501
      %503 = vmatmul.f32.gmra.mxu0 %v479
      %v504 = vpop.f32.mrf.mxu0
      %v505 = vadd.f32 0.0, %v504
      %506 = vmatmul.f32.gmra.mxu0 %v482
      %v507 = vpop.f32.mrf.mxu0
      %v508 = vadd.f32 0.0, %v507
      %509 = vdwg.mxu0
      %v510 = vadd.f32 %v466, %v502
      %v511 = vadd.f32 %v467, %v505
      %v512 = vadd.f32 %v468, %v508
      %v513 = vld [vmem:[%s246 + $0x12] sm:$0xff]
      %v514 = vld [vmem:[%s246 + $0x1a] sm:$0xff]
      %v515 = vld [vmem:[%s246 + $0x22] sm:$0xff]
      %s516 = scalar_lea.vmem %s2, 96
      %v517 = vld [vmem:[%s516] sm:$0xff]
      %v518 = vld [vmem:[%s516 + $0x8] sm:$0xff]
      %v520 = vsel %vm266, %v513, 0
      %v523 = vsel %vm266, %v514, 0
      %v526 = vsel %vm266, %v515, 0
      %528 = vmatpush.msra.mxu0 0.0
      %529 = vmatpush.msra.mxu0 0.0
      %530 = vmatpush.msra.mxu0 0.0
      %531 = vmatpush.msra.mxu0 0.0
      %532 = vmatpush.msra.mxu0 0.0
      %533 = vmatpush.msra.mxu0 0.0
      %534 = vmatpush.msra.mxu0 0.0
      %535 = vmatpush.msra.mxu0 0.0
      %536 = vmatpush.msra.mxu0 0.0
      %537 = vmatpush.msra.mxu0 0.0
      %538 = vmatpush.msra.mxu0 0.0
      %539 = vmatpush.msra.mxu0 0.0
      %540 = vmatpush.msra.mxu0 0.0
      %541 = vmatpush.msra.mxu0 0.0
      %542 = vmatpush.msra.mxu0 %v518
      %543 = vmatpush.msra.mxu0 %v517
      %544 = vmatmul.f32.gmra.mxu0 %v520
      %v545 = vpop.f32.mrf.mxu0
      %v546 = vadd.f32 0.0, %v545
      %547 = vmatmul.f32.gmra.mxu0 %v523
      %v548 = vpop.f32.mrf.mxu0
      %v549 = vadd.f32 0.0, %v548
      %550 = vmatmul.f32.gmra.mxu0 %v526
      %v551 = vpop.f32.mrf.mxu0
      %v552 = vadd.f32 0.0, %v551
      %553 = vdwg.mxu0
      %v554 = vadd.f32 %v510, %v546
      %v555 = vadd.f32 %v511, %v549
      %v556 = vadd.f32 %v512, %v552
      %v557 = vld [vmem:[%s246 + $0x13] sm:$0xff]
      %v558 = vld [vmem:[%s246 + $0x1b] sm:$0xff]
      %v559 = vld [vmem:[%s246 + $0x23] sm:$0xff]
      %s560 = scalar_lea.vmem %s2, 112
      %v561 = vld [vmem:[%s560] sm:$0xff]
      %v562 = vld [vmem:[%s560 + $0x8] sm:$0xff]
      %v564 = vsel %vm266, %v557, 0
      %v567 = vsel %vm266, %v558, 0
      %v570 = vsel %vm266, %v559, 0
      %572 = vmatpush.msra.mxu0 0.0
      %573 = vmatpush.msra.mxu0 0.0
      %574 = vmatpush.msra.mxu0 0.0
      %575 = vmatpush.msra.mxu0 0.0
      %576 = vmatpush.msra.mxu0 0.0
      %577 = vmatpush.msra.mxu0 0.0
      %578 = vmatpush.msra.mxu0 0.0
      %579 = vmatpush.msra.mxu0 0.0
      %580 = vmatpush.msra.mxu0 0.0
      %581 = vmatpush.msra.mxu0 0.0
      %582 = vmatpush.msra.mxu0 0.0
      %583 = vmatpush.msra.mxu0 0.0
      %584 = vmatpush.msra.mxu0 0.0
      %585 = vmatpush.msra.mxu0 0.0
      %586 = vmatpush.msra.mxu0 %v562
      %587 = vmatpush.msra.mxu0 %v561
      %588 = vmatmul.f32.gmra.mxu0 %v564
      %v589 = vpop.f32.mrf.mxu0
      %v590 = vadd.f32 0.0, %v589
      %591 = vmatmul.f32.gmra.mxu0 %v567
      %v592 = vpop.f32.mrf.mxu0
      %v593 = vadd.f32 0.0, %v592
      %594 = vmatmul.f32.gmra.mxu0 %v570
      %v595 = vpop.f32.mrf.mxu0
      %v596 = vadd.f32 0.0, %v595
      %597 = vdwg.mxu0
      %v598 = vadd.f32 %v554, %v590
      %v599 = vadd.f32 %v555, %v593
      %v600 = vadd.f32 %v556, %v596
      %v601 = vld [vmem:[%s246 + $0x14] sm:$0xff]
      %v602 = vld [vmem:[%s246 + $0x1c] sm:$0xff]
      %v603 = vld [vmem:[%s246 + $0x24] sm:$0xff]
      %s604 = scalar_lea.vmem %s2, 128
      %v605 = vld [vmem:[%s604] sm:$0xff]
      %v606 = vld [vmem:[%s604 + $0x8] sm:$0xff]
      %v608 = vsel %vm266, %v601, 0
      %v611 = vsel %vm266, %v602, 0
      %v614 = vsel %vm266, %v603, 0
      %616 = vmatpush.msra.mxu0 0.0
      %617 = vmatpush.msra.mxu0 0.0
      %618 = vmatpush.msra.mxu0 0.0
      %619 = vmatpush.msra.mxu0 0.0
      %620 = vmatpush.msra.mxu0 0.0
      %621 = vmatpush.msra.mxu0 0.0
      %622 = vmatpush.msra.mxu0 0.0
      %623 = vmatpush.msra.mxu0 0.0
      %624 = vmatpush.msra.mxu0 0.0
      %625 = vmatpush.msra.mxu0 0.0
      %626 = vmatpush.msra.mxu0 0.0
      %627 = vmatpush.msra.mxu0 0.0
      %628 = vmatpush.msra.mxu0 0.0
      %629 = vmatpush.msra.mxu0 0.0
      %630 = vmatpush.msra.mxu0 %v606
      %631 = vmatpush.msra.mxu0 %v605
      %632 = vmatmul.f32.gmra.mxu0 %v608
      %v633 = vpop.f32.mrf.mxu0
      %v634 = vadd.f32 0.0, %v633
      %635 = vmatmul.f32.gmra.mxu0 %v611
      %v636 = vpop.f32.mrf.mxu0
      %v637 = vadd.f32 0.0, %v636
      %638 = vmatmul.f32.gmra.mxu0 %v614
      %v639 = vpop.f32.mrf.mxu0
      %v640 = vadd.f32 0.0, %v639
      %641 = vdwg.mxu0
      %v642 = vadd.f32 %v598, %v634
      %v643 = vadd.f32 %v599, %v637
      %v644 = vadd.f32 %v600, %v640
      %v645 = vld [vmem:[%s3] sm:$0x1]
      %v647 = vperm.slane %v645, 0
      %v649 = vadd.f32 %v642, %v647
      %v650 = vadd.f32 %v643, %v647
      %v651 = vadd.f32 %v644, %v647
      %v652 = vmax.f32 %v649, 0.0
      %v653 = vmax.f32 %v650, 0.0
      %v654 = vmax.f32 %v651, 0.0
      %656 = vset.pattern.permute.xlu0 0
      %657 = vperm.xlu0 %656, %v252
      %v658 = vpop.permute.xlu0 %657
      %661 = vset.pattern.permute.xlu0 0
      %662 = vperm.xlu0 %661, %v253
      %v663 = vpop.permute.xlu0 %662
      %666 = vset.pattern.permute.xlu0 0
      %667 = vperm.xlu0 %666, %v254
      %v668 = vpop.permute.xlu0 %667
      %v670 = vmul.f32 %v652, %v658
      %v671 = vmul.f32 %v653, %v663
      %v672 = vmul.f32 %v654, %v668
      %vm673 = vcmask 261120
      %674 = vst.msk [vmem:[#allocation2] sm:$0xff] %vm673, 0.0
      %675 = vst.msk [vmem:[#allocation2 + $0x8] sm:$0xff] %vm673, 0.0
      %676 = vst.msk [vmem:[#allocation2 + $0x10] sm:$0xff] %vm673, 0.0
      %677 = vst.msk [vmem:[#allocation2 + $0x18] sm:$0xff] %vm673, 0.0
      %678 = vst.msk [vmem:[#allocation2 + $0x20] sm:$0xff] %vm673, 0.0
      %679 = vst.msk [vmem:[#allocation2 + $0x28] sm:$0xff] %vm673, 0.0
      %680 = vst.msk [vmem:[#allocation2 + $0xd] sm:$0xff] %vm673, %v670
      %681 = vst.msk [vmem:[#allocation2 + $0x15] sm:$0xff] %vm673, %v671
      %682 = vst.msk [vmem:[#allocation2 + $0x1d] sm:$0xff] %vm673, %v672
      %v683 = vld [vmem:[#allocation2 + $0x6] sm:$0xff]
      %v684 = vld [vmem:[#allocation2 + $0xe] sm:$0xff]
      %v685 = vld [vmem:[#allocation2 + $0x16] sm:$0xff]
      %v686 = vld [vmem:[%s4] sm:$0xff]
      %v687 = vld [vmem:[%s4 + $0x8] sm:$0xff]
      %v688 = vld [vmem:[%s4 + $0x10] sm:$0xff]
      %v689 = vld [vmem:[%s4 + $0x18] sm:$0xff]
      %v690 = vld [vmem:[#allocation2 + $0x7] sm:$0xff]
      %v691 = vld [vmem:[#allocation2 + $0xf] sm:$0xff]
      %v692 = vld [vmem:[#allocation2 + $0x17] sm:$0xff]
      %s693 = scalar_lea.vmem %s4, 32
      %v694 = vld [vmem:[%s693] sm:$0xff]
      %v695 = vld [vmem:[%s693 + $0x8] sm:$0xff]
      %v696 = vld [vmem:[%s693 + $0x10] sm:$0xff]
      %v697 = vld [vmem:[%s693 + $0x18] sm:$0xff]
      %v699 = vsel %vm673, %v690, 0
      %v702 = vsel %vm673, %v691, 0
      %v705 = vsel %vm673, %v692, 0
      %707 = vmatpush.msra.mxu0 0.0
      %708 = vmatpush.msra.mxu0 0.0
      %709 = vmatpush.msra.mxu0 0.0
      %710 = vmatpush.msra.mxu0 0.0
      %711 = vmatpush.msra.mxu0 0.0
      %712 = vmatpush.msra.mxu0 0.0
      %713 = vmatpush.msra.mxu0 0.0
      %714 = vmatpush.msra.mxu0 0.0
      %715 = vmatpush.msra.mxu0 0.0
      %716 = vmatpush.msra.mxu0 0.0
      %717 = vmatpush.msra.mxu0 0.0
      %718 = vmatpush.msra.mxu0 0.0
      %719 = vmatpush.msra.mxu0 %v697
      %720 = vmatpush.msra.mxu0 %v696
      %721 = vmatpush.msra.mxu0 %v695
      %722 = vmatpush.msra.mxu0 %v694
      %723 = vmatmul.f32.gmra.mxu0 %v699
      %v724 = vpop.f32.mrf.mxu0
      %v725 = vadd.f32 0.0, %v724
      %726 = vmatmul.f32.gmra.mxu0 %v702
      %v727 = vpop.f32.mrf.mxu0
      %v728 = vadd.f32 0.0, %v727
      %729 = vmatmul.f32.gmra.mxu0 %v705
      %v730 = vpop.f32.mrf.mxu0
      %v731 = vadd.f32 0.0, %v730
      %732 = vdwg.mxu0
      %v734 = vsel %vm673, %v683, 0
      %v737 = vsel %vm673, %v684, 0
      %v740 = vsel %vm673, %v685, 0
      %742 = vmatpush.msra.mxu0 0.0
      %743 = vmatpush.msra.mxu0 0.0
      %744 = vmatpush.msra.mxu0 0.0
      %745 = vmatpush.msra.mxu0 0.0
      %746 = vmatpush.msra.mxu0 0.0
      %747 = vmatpush.msra.mxu0 0.0
      %748 = vmatpush.msra.mxu0 0.0
      %749 = vmatpush.msra.mxu0 0.0
      %750 = vmatpush.msra.mxu0 0.0
      %751 = vmatpush.msra.mxu0 0.0
      %752 = vmatpush.msra.mxu0 0.0
      %753 = vmatpush.msra.mxu0 0.0
      %754 = vmatpush.msra.mxu0 %v689
      %755 = vmatpush.msra.mxu0 %v688
      %756 = vmatpush.msra.mxu0 %v687
      %757 = vmatpush.msra.mxu0 %v686
      %758 = vmatmul.f32.gmra.mxu0 %v734
      %v759 = vpop.f32.mrf.mxu0
      %v760 = vadd.f32 %v725, %v759
      %761 = vmatmul.f32.gmra.mxu0 %v737
      %v762 = vpop.f32.mrf.mxu0
      %v763 = vadd.f32 %v728, %v762
      %764 = vmatmul.f32.gmra.mxu0 %v740
      %v765 = vpop.f32.mrf.mxu0
      %v766 = vadd.f32 %v731, %v765
      %767 = vdwg.mxu0
      %v768 = vld [vmem:[#allocation2 + $0x8] sm:$0xff]
      %v769 = vld [vmem:[#allocation2 + $0x10] sm:$0xff]
      %v770 = vld [vmem:[#allocation2 + $0x18] sm:$0xff]
      %s771 = scalar_lea.vmem %s4, 64
      %v772 = vld [vmem:[%s771] sm:$0xff]
      %v773 = vld [vmem:[%s771 + $0x8] sm:$0xff]
      %v774 = vld [vmem:[%s771 + $0x10] sm:$0xff]
      %v775 = vld [vmem:[%s771 + $0x18] sm:$0xff]
      %v777 = vsel %vm673, %v768, 0
      %v780 = vsel %vm673, %v769, 0
      %v783 = vsel %vm673, %v770, 0
      %785 = vmatpush.msra.mxu0 0.0
      %786 = vmatpush.msra.mxu0 0.0
      %787 = vmatpush.msra.mxu0 0.0
      %788 = vmatpush.msra.mxu0 0.0
      %789 = vmatpush.msra.mxu0 0.0
      %790 = vmatpush.msra.mxu0 0.0
      %791 = vmatpush.msra.mxu0 0.0
      %792 = vmatpush.msra.mxu0 0.0
      %793 = vmatpush.msra.mxu0 0.0
      %794 = vmatpush.msra.mxu0 0.0
      %795 = vmatpush.msra.mxu0 0.0
      %796 = vmatpush.msra.mxu0 0.0
      %797 = vmatpush.msra.mxu0 %v775
      %798 = vmatpush.msra.mxu0 %v774
      %799 = vmatpush.msra.mxu0 %v773
      %800 = vmatpush.msra.mxu0 %v772
      %801 = vmatmul.f32.gmra.mxu0 %v777
      %v802 = vpop.f32.mrf.mxu0
      %v803 = vadd.f32 0.0, %v802
      %804 = vmatmul.f32.gmra.mxu0 %v780
      %v805 = vpop.f32.mrf.mxu0
      %v806 = vadd.f32 0.0, %v805
      %807 = vmatmul.f32.gmra.mxu0 %v783
      %v808 = vpop.f32.mrf.mxu0
      %v809 = vadd.f32 0.0, %v808
      %810 = vdwg.mxu0
      %v811 = vadd.f32 %v760, %v803
      %v812 = vadd.f32 %v763, %v806
      %v813 = vadd.f32 %v766, %v809
      %v814 = vld [vmem:[#allocation2 + $0xc] sm:$0xff]
      %v815 = vld [vmem:[#allocation2 + $0x14] sm:$0xff]
      %v816 = vld [vmem:[#allocation2 + $0x1c] sm:$0xff]
      %s817 = scalar_lea.vmem %s4, 96
      %v818 = vld [vmem:[%s817] sm:$0xff]
      %v819 = vld [vmem:[%s817 + $0x8] sm:$0xff]
      %v820 = vld [vmem:[%s817 + $0x10] sm:$0xff]
      %v821 = vld [vmem:[%s817 + $0x18] sm:$0xff]
      %v823 = vsel %vm673, %v814, 0
      %v826 = vsel %vm673, %v815, 0
      %v829 = vsel %vm673, %v816, 0
      %831 = vmatpush.msra.mxu0 0.0
      %832 = vmatpush.msra.mxu0 0.0
      %833 = vmatpush.msra.mxu0 0.0
      %834 = vmatpush.msra.mxu0 0.0
      %835 = vmatpush.msra.mxu0 0.0
      %836 = vmatpush.msra.mxu0 0.0
      %837 = vmatpush.msra.mxu0 0.0
      %838 = vmatpush.msra.mxu0 0.0
      %839 = vmatpush.msra.mxu0 0.0
      %840 = vmatpush.msra.mxu0 0.0
      %841 = vmatpush.msra.mxu0 0.0
      %842 = vmatpush.msra.mxu0 0.0
      %843 = vmatpush.msra.mxu0 %v821
      %844 = vmatpush.msra.mxu0 %v820
      %845 = vmatpush.msra.mxu0 %v819
      %846 = vmatpush.msra.mxu0 %v818
      %847 = vmatmul.f32.gmra.mxu0 %v823
      %v848 = vpop.f32.mrf.mxu0
      %v849 = vadd.f32 0.0, %v848
      %850 = vmatmul.f32.gmra.mxu0 %v826
      %v851 = vpop.f32.mrf.mxu0
      %v852 = vadd.f32 0.0, %v851
      %853 = vmatmul.f32.gmra.mxu0 %v829
      %v854 = vpop.f32.mrf.mxu0
      %v855 = vadd.f32 0.0, %v854
      %856 = vdwg.mxu0
      %v857 = vadd.f32 %v811, %v849
      %v858 = vadd.f32 %v812, %v852
      %v859 = vadd.f32 %v813, %v855
      %v860 = vld [vmem:[#allocation2 + $0xd] sm:$0xff]
      %v861 = vld [vmem:[#allocation2 + $0x15] sm:$0xff]
      %v862 = vld [vmem:[#allocation2 + $0x1d] sm:$0xff]
      %s863 = scalar_lea.vmem %s4, 128
      %v864 = vld [vmem:[%s863] sm:$0xff]
      %v865 = vld [vmem:[%s863 + $0x8] sm:$0xff]
      %v866 = vld [vmem:[%s863 + $0x10] sm:$0xff]
      %v867 = vld [vmem:[%s863 + $0x18] sm:$0xff]
      %v869 = vsel %vm673, %v860, 0
      %v872 = vsel %vm673, %v861, 0
      %v875 = vsel %vm673, %v862, 0
      %877 = vmatpush.msra.mxu0 0.0
      %878 = vmatpush.msra.mxu0 0.0
      %879 = vmatpush.msra.mxu0 0.0
      %880 = vmatpush.msra.mxu0 0.0
      %881 = vmatpush.msra.mxu0 0.0
      %882 = vmatpush.msra.mxu0 0.0
      %883 = vmatpush.msra.mxu0 0.0
      %884 = vmatpush.msra.mxu0 0.0
      %885 = vmatpush.msra.mxu0 0.0
      %886 = vmatpush.msra.mxu0 0.0
      %887 = vmatpush.msra.mxu0 0.0
      %888 = vmatpush.msra.mxu0 0.0
      %889 = vmatpush.msra.mxu0 %v867
      %890 = vmatpush.msra.mxu0 %v866
      %891 = vmatpush.msra.mxu0 %v865
      %892 = vmatpush.msra.mxu0 %v864
      %893 = vmatmul.f32.gmra.mxu0 %v869
      %v894 = vpop.f32.mrf.mxu0
      %v895 = vadd.f32 0.0, %v894
      %896 = vmatmul.f32.gmra.mxu0 %v872
      %v897 = vpop.f32.mrf.mxu0
      %v898 = vadd.f32 0.0, %v897
      %899 = vmatmul.f32.gmra.mxu0 %v875
      %v900 = vpop.f32.mrf.mxu0
      %v901 = vadd.f32 0.0, %v900
      %902 = vdwg.mxu0
      %v903 = vadd.f32 %v857, %v895
      %v904 = vadd.f32 %v858, %v898
      %v905 = vadd.f32 %v859, %v901
      %v906 = vld [vmem:[#allocation2 + $0xe] sm:$0xff]
      %v907 = vld [vmem:[#allocation2 + $0x16] sm:$0xff]
      %v908 = vld [vmem:[#allocation2 + $0x1e] sm:$0xff]
      %s909 = scalar_lea.vmem %s4, 160
      %v910 = vld [vmem:[%s909] sm:$0xff]
      %v911 = vld [vmem:[%s909 + $0x8] sm:$0xff]
      %v912 = vld [vmem:[%s909 + $0x10] sm:$0xff]
      %v913 = vld [vmem:[%s909 + $0x18] sm:$0xff]
      %v915 = vsel %vm673, %v906, 0
      %v918 = vsel %vm673, %v907, 0
      %v921 = vsel %vm673, %v908, 0
      %923 = vmatpush.msra.mxu0 0.0
      %924 = vmatpush.msra.mxu0 0.0
      %925 = vmatpush.msra.mxu0 0.0
      %926 = vmatpush.msra.mxu0 0.0
      %927 = vmatpush.msra.mxu0 0.0
      %928 = vmatpush.msra.mxu0 0.0
      %929 = vmatpush.msra.mxu0 0.0
      %930 = vmatpush.msra.mxu0 0.0
      %931 = vmatpush.msra.mxu0 0.0
      %932 = vmatpush.msra.mxu0 0.0
      %933 = vmatpush.msra.mxu0 0.0
      %934 = vmatpush.msra.mxu0 0.0
      %935 = vmatpush.msra.mxu0 %v913
      %936 = vmatpush.msra.mxu0 %v912
      %937 = vmatpush.msra.mxu0 %v911
      %938 = vmatpush.msra.mxu0 %v910
      %939 = vmatmul.f32.gmra.mxu0 %v915
      %v940 = vpop.f32.mrf.mxu0
      %v941 = vadd.f32 0.0, %v940
      %942 = vmatmul.f32.gmra.mxu0 %v918
      %v943 = vpop.f32.mrf.mxu0
      %v944 = vadd.f32 0.0, %v943
      %945 = vmatmul.f32.gmra.mxu0 %v921
      %v946 = vpop.f32.mrf.mxu0
      %v947 = vadd.f32 0.0, %v946
      %948 = vdwg.mxu0
      %v949 = vadd.f32 %v903, %v941
      %v950 = vadd.f32 %v904, %v944
      %v951 = vadd.f32 %v905, %v947
      %v952 = vld [vmem:[#allocation2 + $0x12] sm:$0xff]
      %v953 = vld [vmem:[#allocation2 + $0x1a] sm:$0xff]
      %v954 = vld [vmem:[#allocation2 + $0x22] sm:$0xff]
      %s955 = scalar_lea.vmem %s4, 192
      %v956 = vld [vmem:[%s955] sm:$0xff]
      %v957 = vld [vmem:[%s955 + $0x8] sm:$0xff]
      %v958 = vld [vmem:[%s955 + $0x10] sm:$0xff]
      %v959 = vld [vmem:[%s955 + $0x18] sm:$0xff]
      %v961 = vsel %vm673, %v952, 0
      %v964 = vsel %vm673, %v953, 0
      %v967 = vsel %vm673, %v954, 0
      %969 = vmatpush.msra.mxu0 0.0
      %970 = vmatpush.msra.mxu0 0.0
      %971 = vmatpush.msra.mxu0 0.0
      %972 = vmatpush.msra.mxu0 0.0
      %973 = vmatpush.msra.mxu0 0.0
      %974 = vmatpush.msra.mxu0 0.0
      %975 = vmatpush.msra.mxu0 0.0
      %976 = vmatpush.msra.mxu0 0.0
      %977 = vmatpush.msra.mxu0 0.0
      %978 = vmatpush.msra.mxu0 0.0
      %979 = vmatpush.msra.mxu0 0.0
      %980 = vmatpush.msra.mxu0 0.0
      %981 = vmatpush.msra.mxu0 %v959
      %982 = vmatpush.msra.mxu0 %v958
      %983 = vmatpush.msra.mxu0 %v957
      %984 = vmatpush.msra.mxu0 %v956
      %985 = vmatmul.f32.gmra.mxu0 %v961
      %v986 = vpop.f32.mrf.mxu0
      %v987 = vadd.f32 0.0, %v986
      %988 = vmatmul.f32.gmra.mxu0 %v964
      %v989 = vpop.f32.mrf.mxu0
      %v990 = vadd.f32 0.0, %v989
      %991 = vmatmul.f32.gmra.mxu0 %v967
      %v992 = vpop.f32.mrf.mxu0
      %v993 = vadd.f32 0.0, %v992
      %994 = vdwg.mxu0
      %v995 = vadd.f32 %v949, %v987
      %v996 = vadd.f32 %v950, %v990
      %v997 = vadd.f32 %v951, %v993
      %v998 = vld [vmem:[#allocation2 + $0x13] sm:$0xff]
      %v999 = vld [vmem:[#allocation2 + $0x1b] sm:$0xff]
      %v1000 = vld [vmem:[#allocation2 + $0x23] sm:$0xff]
      %s1001 = scalar_lea.vmem %s4, 224
      %v1002 = vld [vmem:[%s1001] sm:$0xff]
      %v1003 = vld [vmem:[%s1001 + $0x8] sm:$0xff]
      %v1004 = vld [vmem:[%s1001 + $0x10] sm:$0xff]
      %v1005 = vld [vmem:[%s1001 + $0x18] sm:$0xff]
      %v1007 = vsel %vm673, %v998, 0
      %v1010 = vsel %vm673, %v999, 0
      %v1013 = vsel %vm673, %v1000, 0
      %1015 = vmatpush.msra.mxu0 0.0
      %1016 = vmatpush.msra.mxu0 0.0
      %1017 = vmatpush.msra.mxu0 0.0
      %1018 = vmatpush.msra.mxu0 0.0
      %1019 = vmatpush.msra.mxu0 0.0
      %1020 = vmatpush.msra.mxu0 0.0
      %1021 = vmatpush.msra.mxu0 0.0
      %1022 = vmatpush.msra.mxu0 0.0
      %1023 = vmatpush.msra.mxu0 0.0
      %1024 = vmatpush.msra.mxu0 0.0
      %1025 = vmatpush.msra.mxu0 0.0
      %1026 = vmatpush.msra.mxu0 0.0
      %1027 = vmatpush.msra.mxu0 %v1005
      %1028 = vmatpush.msra.mxu0 %v1004
      %1029 = vmatpush.msra.mxu0 %v1003
      %1030 = vmatpush.msra.mxu0 %v1002
      %1031 = vmatmul.f32.gmra.mxu0 %v1007
      %v1032 = vpop.f32.mrf.mxu0
      %v1033 = vadd.f32 0.0, %v1032
      %1034 = vmatmul.f32.gmra.mxu0 %v1010
      %v1035 = vpop.f32.mrf.mxu0
      %v1036 = vadd.f32 0.0, %v1035
      %1037 = vmatmul.f32.gmra.mxu0 %v1013
      %v1038 = vpop.f32.mrf.mxu0
      %v1039 = vadd.f32 0.0, %v1038
      %1040 = vdwg.mxu0
      %v1041 = vadd.f32 %v995, %v1033
      %v1042 = vadd.f32 %v996, %v1036
      %v1043 = vadd.f32 %v997, %v1039
      %v1044 = vld [vmem:[#allocation2 + $0x14] sm:$0xff]
      %v1045 = vld [vmem:[#allocation2 + $0x1c] sm:$0xff]
      %v1046 = vld [vmem:[#allocation2 + $0x24] sm:$0xff]
      %s1047 = scalar_lea.vmem %s4, 256
      %v1048 = vld [vmem:[%s1047] sm:$0xff]
      %v1049 = vld [vmem:[%s1047 + $0x8] sm:$0xff]
      %v1050 = vld [vmem:[%s1047 + $0x10] sm:$0xff]
      %v1051 = vld [vmem:[%s1047 + $0x18] sm:$0xff]
      %v1053 = vsel %vm673, %v1044, 0
      %v1056 = vsel %vm673, %v1045, 0
      %v1059 = vsel %vm673, %v1046, 0
      %1061 = vmatpush.msra.mxu0 0.0
      %1062 = vmatpush.msra.mxu0 0.0
      %1063 = vmatpush.msra.mxu0 0.0
      %1064 = vmatpush.msra.mxu0 0.0
      %1065 = vmatpush.msra.mxu0 0.0
      %1066 = vmatpush.msra.mxu0 0.0
      %1067 = vmatpush.msra.mxu0 0.0
      %1068 = vmatpush.msra.mxu0 0.0
      %1069 = vmatpush.msra.mxu0 0.0
      %1070 = vmatpush.msra.mxu0 0.0
      %1071 = vmatpush.msra.mxu0 0.0
      %1072 = vmatpush.msra.mxu0 0.0
      %1073 = vmatpush.msra.mxu0 %v1051
      %1074 = vmatpush.msra.mxu0 %v1050
      %1075 = vmatpush.msra.mxu0 %v1049
      %1076 = vmatpush.msra.mxu0 %v1048
      %1077 = vmatmul.f32.gmra.mxu0 %v1053
      %v1078 = vpop.f32.mrf.mxu0
      %v1079 = vadd.f32 0.0, %v1078
      %1080 = vmatmul.f32.gmra.mxu0 %v1056
      %v1081 = vpop.f32.mrf.mxu0
      %v1082 = vadd.f32 0.0, %v1081
      %1083 = vmatmul.f32.gmra.mxu0 %v1059
      %v1084 = vpop.f32.mrf.mxu0
      %v1085 = vadd.f32 0.0, %v1084
      %1086 = vdwg.mxu0
      %v1087 = vadd.f32 %v1041, %v1079
      %v1088 = vadd.f32 %v1042, %v1082
      %v1089 = vadd.f32 %v1043, %v1085
      %v1090 = vld [vmem:[%s5] sm:$0x1]
      %v1092 = vperm.slane %v1090, 0
      %v1094 = vadd.f32 %v1087, %v1092
      %v1095 = vadd.f32 %v1088, %v1092
      %v1096 = vadd.f32 %v1089, %v1092
      %v1097 = vmax.f32 %v1094, 0.0
      %v1098 = vmax.f32 %v1095, 0.0
      %v1099 = vmax.f32 %v1096, 0.0
      %v1100 = vmul.f32 %v1097, %v658
      %v1101 = vmul.f32 %v1098, %v663
      %v1102 = vmul.f32 %v1099, %v668
      %1103 = vst.msk [vmem:[%s251] sm:$0xff] %vm673, %v1100
      %1104 = vst.msk [vmem:[%s251 + $0x8] sm:$0xff] %vm673, %v1101
      %1105 = vst.msk [vmem:[%s251 + $0x10] sm:$0xff] %vm673, %v1102
      %p1106 = scmp.lt.s32.totalorder %s17, 1
      %s1107 = scalar_select %p1106, %s17, 1
      %s1108 = smul.addr %s1107, 3
      %s1109 = smul.addr %s1108, 8
      %s1110 = scalar_lea.vmem %s6, %s1109
      // Predicated region
      $region45: #{fe_forward.11} parent=43 // pred_check
        %p1111 = pneg %p166
      $region46: #{fe_forward.11} parent=43 // pred_check_branch
        %1113 = sbr.rel (%p1111) target = $region48
      $region47: #{fe_forward.11} parent=43 // pred_region
        _
      $region48: #{fe_forward.11} parent=43 // pred_fallthru
        _
    $region44: #{fe_forward.11} parent=5 // pred_fallthru
      _
    %p1114 = scmp.le.s32.totalorder 2, %s12
    // Predicated region
    $region49: #{fe_forward.11} parent=5 // pred_check
      %p1115 = pneg %p1114
    $region50: #{fe_forward.11} parent=5 // pred_check_branch
      %1117 = sbr.rel (%p1115) target = $region52
    $region51: #{fe_forward.11} parent=5 // pred_region
      %s1118 = ssub.s32 %s12, 2
      // Predicated region
      $region53: #{fe_forward.11} parent=51 // pred_check
        %p1119 = pneg %p172
      $region54: #{fe_forward.11} parent=51 // pred_check_branch
        %1121 = sbr.rel (%p1119) target = $region56
      $region55: #{fe_forward.11} parent=51 // pred_region
        %p1122 = scmp.lt.s32.totalorder %s18, 1
        %s1123 = scalar_select %p1122, %s18, 1
        %s1124 = smul.addr %s1123, 3
        %s1125 = smul.addr %s1124, 8
        %s1126 = scalar_lea.vmem %s6, %s1125
      $region56: #{fe_forward.11} parent=51 // pred_fallthru
        _
    $region52: #{fe_forward.11} parent=5 // pred_fallthru
      _
  $region6: #{fe_forward.11} parent=0 // loop_footer
    %s16 = sadd.s32 1, %s12
  $region7: #{fe_forward.11} parent=0 // loop_footer_branch
    %11 = sbr.rel target = $region3
  $region8: #{fe_forward.11} parent=0 // loop_exit
    _

// kernel: fe_forward.13
$region0: #{fe_forward.13}
  #allocation0 [shape = 'u32[]', space=smem, size = 0x4, offset = 0x4, fixed_abs, tag = 'smem constant byte address 0x4 - core index']
  #allocation1 [shape = 'u32[72,128]{1,0:T(1,128)}', space=vmem, size = 0x9000, scoped, tag = 'internal scratch']
  %s0 = inlined_call_operand.vmem [shape: f32[2,24,32], index: 0, kind: input, shape index: {}]
  %s1 = inlined_call_operand.vmem [shape: f32[8,1], index: 1, kind: input, shape index: {}]
  %s2 = inlined_call_operand.vmem [shape: f32[3,3,32,64], index: 2, kind: input, shape index: {}]
  %s3 = inlined_call_operand.vmem [shape: f32[1,64], index: 3, kind: input, shape index: {}]
  %s4 = inlined_call_operand.vmem [shape: f32[2,8,64], index: 4, kind: output, shape index: {}]
  %s5 = sld [smem:[#allocation0]]
  $region49: #{fe_forward.13} parent=0
    _
  %s7 = ssub.s32 1, %s5
  %s8 = scalar_select 0, %s7, %s5
  loop: start=0, step=1, limit=4
  $region2: #{fe_forward.13} parent=0 // loop_pre_header
    _
  $region3: #{fe_forward.13} parent=0 // loop_header
    %s10 = sphi 0, %s14
    %p11 = scmp.ge.s32.totalorder %s10, 4
    %s20 = sphi 0, %s22
    %s23 = sphi 0, %s20
    %s24 = sphi 0, %s23
    %s40 = sphi 0, %s24
    %s44 = sphi 0, %s44
    %s46 = sphi 0, %s44
    %s47 = sphi 0, %s46
    %s61 = sphi 0, %s47
    %s65 = sphi 0, %s65
    %s67 = sphi 0, %s65
    %s68 = sphi 0, %s67
    %s82 = sphi 0, %s68
    %s86 = sphi 0, %s86
    %s88 = sphi 0, %s86
    %s89 = sphi 0, %s88
    %s103 = sphi 0, %s89
    %s109 = sphi 0, %s111
    %s112 = sphi 0, %s109
    %s113 = sphi 0, %s112
    %s129 = sphi 0, %s113
  $region4: #{fe_forward.13} parent=0 // loop_header_branch
    %13 = sbr.rel (%p11) target = $region8
  $region5: #{fe_forward.13} parent=0 // loop_body
    %s15 = ssub.s32 %s10, 1
    %s16 = ssub.s32 %s10, 2
    %s17 = sadd.s32 %s10, 1
    %s18 = ssub.s32 %s10, %s17
    %p19 = scmp.eq.s32.totalorder %s18, 0
    %s21 = sadd.s32 %s20, 1
    %s22 = scalar_select %p19, %s20, %s21
    %p25 = pneg %p19
    %p26 = scmp.eq.s32.totalorder %s10, 1
    %p27 = por %p25, %p26
    %p28 = scmp.ne.s32.totalorder %s20, %s23
    %p29 = scmp.eq.s32.totalorder %s10, 0
    %p30 = por %p28, %p29
    %p31 = scmp.ne.s32.totalorder %s20, %s23
    %p32 = scmp.eq.s32.totalorder %s15, 1
    %p33 = por %p31, %p32
    %p34 = scmp.ne.s32.totalorder %s23, %s24
    %p35 = scmp.eq.s32.totalorder %s15, 0
    %p36 = por %p34, %p35
    %p37 = scmp.ne.s32.totalorder %s23, %s24
    %p38 = scmp.eq.s32.totalorder %s16, 1
    %p39 = por %p37, %p38
    %p41 = scmp.ne.s32.totalorder %s24, %s40
    %p42 = scmp.eq.s32.totalorder %s16, 0
    %p43 = por %p41, %p42
    %s45 = sadd.s32 %s44, 1
    %p48 = scmp.eq.s32.totalorder %s10, 1
    %p49 = scmp.ne.s32.totalorder %s44, %s46
    %p50 = scmp.eq.s32.totalorder %s10, 0
    %p51 = por %p49, %p50
    %p52 = scmp.ne.s32.totalorder %s44, %s46
    %p53 = scmp.eq.s32.totalorder %s15, 1
    %p54 = por %p52, %p53
    %p55 = scmp.ne.s32.totalorder %s46, %s47
    %p56 = scmp.eq.s32.totalorder %s15, 0
    %p57 = por %p55, %p56
    %p58 = scmp.ne.s32.totalorder %s46, %s47
    %p59 = scmp.eq.s32.totalorder %s16, 1
    %p60 = por %p58, %p59
    %p62 = scmp.ne.s32.totalorder %s47, %s61
    %p63 = scmp.eq.s32.totalorder %s16, 0
    %p64 = por %p62, %p63
    %s66 = sadd.s32 %s65, 1
    %p69 = scmp.eq.s32.totalorder %s10, 1
    %p70 = scmp.ne.s32.totalorder %s65, %s67
    %p71 = scmp.eq.s32.totalorder %s10, 0
    %p72 = por %p70, %p71
    %p73 = scmp.ne.s32.totalorder %s65, %s67
    %p74 = scmp.eq.s32.totalorder %s15, 1
    %p75 = por %p73, %p74
    %p76 = scmp.ne.s32.totalorder %s67, %s68
    %p77 = scmp.eq.s32.totalorder %s15, 0
    %p78 = por %p76, %p77
    %p79 = scmp.ne.s32.totalorder %s67, %s68
    %p80 = scmp.eq.s32.totalorder %s16, 1
    %p81 = por %p79, %p80
    %p83 = scmp.ne.s32.totalorder %s68, %s82
    %p84 = scmp.eq.s32.totalorder %s16, 0
    %p85 = por %p83, %p84
    %s87 = sadd.s32 %s86, 1
    %p90 = scmp.eq.s32.totalorder %s10, 1
    %p91 = scmp.ne.s32.totalorder %s86, %s88
    %p92 = scmp.eq.s32.totalorder %s10, 0
    %p93 = por %p91, %p92
    %p94 = scmp.ne.s32.totalorder %s86, %s88
    %p95 = scmp.eq.s32.totalorder %s15, 1
    %p96 = por %p94, %p95
    %p97 = scmp.ne.s32.totalorder %s88, %s89
    %p98 = scmp.eq.s32.totalorder %s15, 0
    %p99 = por %p97, %p98
    %p100 = scmp.ne.s32.totalorder %s88, %s89
    %p101 = scmp.eq.s32.totalorder %s16, 1
    %p102 = por %p100, %p101
    %p104 = scmp.ne.s32.totalorder %s89, %s103
    %p105 = scmp.eq.s32.totalorder %s16, 0
    %p106 = por %p104, %p105
    %s107 = ssub.s32 %s10, %s17
    %p108 = scmp.eq.s32.totalorder %s107, 0
    %s110 = sadd.s32 %s109, 1
    %s111 = scalar_select %p108, %s109, %s110
    %p114 = pneg %p108
    %p115 = scmp.eq.s32.totalorder %s10, 1
    %p116 = por %p114, %p115
    %p117 = scmp.ne.s32.totalorder %s109, %s112
    %p118 = scmp.eq.s32.totalorder %s10, 0
    %p119 = por %p117, %p118
    %p120 = scmp.ne.s32.totalorder %s109, %s112
    %p121 = scmp.eq.s32.totalorder %s15, 1
    %p122 = por %p120, %p121
    %p123 = scmp.ne.s32.totalorder %s112, %s113
    %p124 = scmp.eq.s32.totalorder %s15, 0
    %p125 = por %p123, %p124
    %p126 = scmp.ne.s32.totalorder %s112, %s113
    %p127 = scmp.eq.s32.totalorder %s16, 1
    %p128 = por %p126, %p127
    %p130 = scmp.ne.s32.totalorder %s113, %s129
    %p131 = scmp.eq.s32.totalorder %s16, 0
    %p132 = por %p130, %p131
    %p133 = scmp.le.s32.totalorder 1, %s10
    %p134 = scmp.lt.s32.totalorder %s10, 3
    %p135 = pnand %p133, %p134
    %p136 = pneg %p135
    // Predicated region
    $region9: #{fe_forward.13} parent=5 // pred_check
      _
    $region10: #{fe_forward.13} parent=5 // pred_check_branch
      %138 = sbr.rel (%p135) target = $region12
    $region11: #{fe_forward.13} parent=5 // pred_region
      %s139 = ssub.s32 %s10, 1
      // Predicated region
      $region13: #{fe_forward.13} parent=11 // pred_check
        %p140 = pneg %p57
      $region14: #{fe_forward.13} parent=11 // pred_check_branch
        %142 = sbr.rel (%p140) target = $region16
      $region15: #{fe_forward.13} parent=11 // pred_region
        _
      $region16: #{fe_forward.13} parent=11 // pred_fallthru
        _
      // Predicated region
      $region17: #{fe_forward.13} parent=11 // pred_check
        %p143 = pneg %p78
      $region18: #{fe_forward.13} parent=11 // pred_check_branch
        %145 = sbr.rel (%p143) target = $region20
      $region19: #{fe_forward.13} parent=11 // pred_region
        _
      $region20: #{fe_forward.13} parent=11 // pred_fallthru
        _
      // Predicated region
      $region21: #{fe_forward.13} parent=11 // pred_check
        %p146 = pneg %p99
      $region22: #{fe_forward.13} parent=11 // pred_check_branch
        %148 = sbr.rel (%p146) target = $region24
      $region23: #{fe_forward.13} parent=11 // pred_region
        _
      $region24: #{fe_forward.13} parent=11 // pred_fallthru
        _
    $region12: #{fe_forward.13} parent=5 // pred_fallthru
      _
    %p149 = scmp.lt.s32.totalorder %s10, 2
    // Predicated region
    $region25: #{fe_forward.13} parent=5 // pred_check
      %p150 = pneg %p149
    $region26: #{fe_forward.13} parent=5 // pred_check_branch
      %152 = sbr.rel (%p150) target = $region28
    $region27: #{fe_forward.13} parent=5 // pred_region
      // Predicated region
      $region29: #{fe_forward.13} parent=27 // pred_check
        %p153 = pneg %p30
      $region30: #{fe_forward.13} parent=27 // pred_check_branch
        %155 = sbr.rel (%p153) target = $region32
      $region31: #{fe_forward.13} parent=27 // pred_region
        %p156 = scmp.lt.s32.totalorder %s10, 1
        %s157 = scalar_select %p156, %s10, 1
        %s158 = smul.addr %s157, 3
        %s159 = smul.addr %s158, 8
        %s160 = scalar_lea.vmem %s0, %s159
      $region32: #{fe_forward.13} parent=27 // pred_fallthru
        _
    $region28: #{fe_forward.13} parent=5 // pred_fallthru
      _
    %p161 = scmp.le.s32.totalorder 1, %s10
    %p162 = scmp.lt.s32.totalorder %s10, 3
    %p163 = pnand %p161, %p162
    %p164 = pneg %p163
    // Predicated region
    $region33: #{fe_forward.13} parent=5 // pred_check
      _
    $region34: #{fe_forward.13} parent=5 // pred_check_branch
      %166 = sbr.rel (%p163) target = $region36
    $region35: #{fe_forward.13} parent=5 // pred_region
      %s167 = ssub.s32 %s10, 1
      %p168 = scmp.lt.s32.totalorder %s15, 1
      %s169 = scalar_select %p168, %s15, 1
      %s170 = smul.addr %s169, 3
      %s171 = smul.addr %s170, 8
      %s172 = scalar_lea.vmem %s0, %s171
      %p173 = pneg %p36
      %p174 = pneg %p33
      %p175 = pneg %p57
      %p176 = pneg %p54
      %p177 = pneg %p78
      %p178 = pneg %p75
      %p179 = pneg %p99
      %p180 = pneg %p96
      %p181 = pneg %p125
      %p182 = pneg %p122
      %p183 = scmp.lt.s32.totalorder %s15, 1
      %s184 = scalar_select %p183, %s15, 1
      %s185 = smul.addr %s184, 8
      %s186 = scalar_lea.vmem %s4, %s185
      %p187 = scmp.lt.s32.totalorder %s15, 1
      %s188 = scalar_select %p187, %s15, 1
      %s189 = smul.addr %s188, 3
      %s190 = smul.addr %s189, 8
      %s191 = scalar_lea.vmem %s0, %s190
      %p192 = scmp.lt.s32.totalorder %s15, 1
      %s193 = scalar_select %p192, %s15, 1
      %s194 = smul.addr %s193, 8
      %s195 = scalar_lea.vmem %s4, %s194
      %v196 = vld [vmem:[%s1] sm:$0xff]
      %v197 = vld [vmem:[%s191 + $0x4] sm:$0xff]
      %v198 = vld [vmem:[%s2] sm:$0xff]
      %v199 = vld [vmem:[%s2 + $0x8] sm:$0xff]
      %v200 = vld [vmem:[%s2 + $0x10] sm:$0xff]
      %v201 = vld [vmem:[%s2 + $0x18] sm:$0xff]
      %v202 = vld [vmem:[%s191 + $0x5] sm:$0xff]
      %s203 = scalar_lea.vmem %s2, 32
      %v204 = vld [vmem:[%s203] sm:$0xff]
      %v205 = vld [vmem:[%s203 + $0x8] sm:$0xff]
      %v206 = vld [vmem:[%s203 + $0x10] sm:$0xff]
      %v207 = vld [vmem:[%s203 + $0x18] sm:$0xff]
      %vm208 = vcmask 261120
      %v210 = vsel %vm208, %v202, 0
      %212 = vmatpush.msra.mxu0 0.0
      %213 = vmatpush.msra.mxu0 0.0
      %214 = vmatpush.msra.mxu0 0.0
      %215 = vmatpush.msra.mxu0 0.0
      %216 = vmatpush.msra.mxu0 0.0
      %217 = vmatpush.msra.mxu0 0.0
      %218 = vmatpush.msra.mxu0 0.0
      %219 = vmatpush.msra.mxu0 0.0
      %220 = vmatpush.msra.mxu0 0.0
      %221 = vmatpush.msra.mxu0 0.0
      %222 = vmatpush.msra.mxu0 0.0
      %223 = vmatpush.msra.mxu0 0.0
      %224 = vmatpush.msra.mxu0 %v207
      %225 = vmatpush.msra.mxu0 %v206
      %226 = vmatpush.msra.mxu0 %v205
      %227 = vmatpush.msra.mxu0 %v204
      %228 = vmatmul.f32.gmra.mxu0 %v210
      %v229 = vpop.f32.mrf.mxu0
      %v230 = vadd.f32 0.0, %v229
      %231 = vdwg.mxu0
      %v233 = vsel %vm208, %v197, 0
      %235 = vmatpush.msra.mxu0 0.0
      %236 = vmatpush.msra.mxu0 0.0
      %237 = vmatpush.msra.mxu0 0.0
      %238 = vmatpush.msra.mxu0 0.0
      %239 = vmatpush.msra.mxu0 0.0
      %240 = vmatpush.msra.mxu0 0.0
      %241 = vmatpush.msra.mxu0 0.0
      %242 = vmatpush.msra.mxu0 0.0
      %243 = vmatpush.msra.mxu0 0.0
      %244 = vmatpush.msra.mxu0 0.0
      %245 = vmatpush.msra.mxu0 0.0
      %246 = vmatpush.msra.mxu0 0.0
      %247 = vmatpush.msra.mxu0 %v201
      %248 = vmatpush.msra.mxu0 %v200
      %249 = vmatpush.msra.mxu0 %v199
      %250 = vmatpush.msra.mxu0 %v198
      %251 = vmatmul.f32.gmra.mxu0 %v233
      %v252 = vpop.f32.mrf.mxu0
      %v253 = vadd.f32 %v230, %v252
      %254 = vdwg.mxu0
      %v255 = vld [vmem:[%s191 + $0x6] sm:$0xff]
      %s256 = scalar_lea.vmem %s2, 64
      %v257 = vld [vmem:[%s256] sm:$0xff]
      %v258 = vld [vmem:[%s256 + $0x8] sm:$0xff]
      %v259 = vld [vmem:[%s256 + $0x10] sm:$0xff]
      %v260 = vld [vmem:[%s256 + $0x18] sm:$0xff]
      %v262 = vsel %vm208, %v255, 0
      %264 = vmatpush.msra.mxu0 0.0
      %265 = vmatpush.msra.mxu0 0.0
      %266 = vmatpush.msra.mxu0 0.0
      %267 = vmatpush.msra.mxu0 0.0
      %268 = vmatpush.msra.mxu0 0.0
      %269 = vmatpush.msra.mxu0 0.0
      %270 = vmatpush.msra.mxu0 0.0
      %271 = vmatpush.msra.mxu0 0.0
      %272 = vmatpush.msra.mxu0 0.0
      %273 = vmatpush.msra.mxu0 0.0
      %274 = vmatpush.msra.mxu0 0.0
      %275 = vmatpush.msra.mxu0 0.0
      %276 = vmatpush.msra.mxu0 %v260
      %277 = vmatpush.msra.mxu0 %v259
      %278 = vmatpush.msra.mxu0 %v258
      %279 = vmatpush.msra.mxu0 %v257
      %280 = vmatmul.f32.gmra.mxu0 %v262
      %v281 = vpop.f32.mrf.mxu0
      %v282 = vadd.f32 0.0, %v281
      %283 = vdwg.mxu0
      %v284 = vadd.f32 %v253, %v282
      %v285 = vld [vmem:[%s191 + $0x8] sm:$0xff]
      %s286 = scalar_lea.vmem %s2, 96
      %v287 = vld [vmem:[%s286] sm:$0xff]
      %v288 = vld [vmem:[%s286 + $0x8] sm:$0xff]
      %v289 = vld [vmem:[%s286 + $0x10] sm:$0xff]
      %v290 = vld [vmem:[%s286 + $0x18] sm:$0xff]
      %v292 = vsel %vm208, %v285, 0
      %294 = vmatpush.msra.mxu0 0.0
      %295 = vmatpush.msra.mxu0 0.0
      %296 = vmatpush.msra.mxu0 0.0
      %297 = vmatpush.msra.mxu0 0.0
      %298 = vmatpush.msra.mxu0 0.0
      %299 = vmatpush.msra.mxu0 0.0
      %300 = vmatpush.msra.mxu0 0.0
      %301 = vmatpush.msra.mxu0 0.0
      %302 = vmatpush.msra.mxu0 0.0
      %303 = vmatpush.msra.mxu0 0.0
      %304 = vmatpush.msra.mxu0 0.0
      %305 = vmatpush.msra.mxu0 0.0
      %306 = vmatpush.msra.mxu0 %v290
      %307 = vmatpush.msra.mxu0 %v289
      %308 = vmatpush.msra.mxu0 %v288
      %309 = vmatpush.msra.mxu0 %v287
      %310 = vmatmul.f32.gmra.mxu0 %v292
      %v311 = vpop.f32.mrf.mxu0
      %v312 = vadd.f32 0.0, %v311
      %313 = vdwg.mxu0
      %v314 = vadd.f32 %v284, %v312
      %v315 = vld [vmem:[%s191 + $0x9] sm:$0xff]
      %s316 = scalar_lea.vmem %s2, 128
      %v317 = vld [vmem:[%s316] sm:$0xff]
      %v318 = vld [vmem:[%s316 + $0x8] sm:$0xff]
      %v319 = vld [vmem:[%s316 + $0x10] sm:$0xff]
      %v320 = vld [vmem:[%s316 + $0x18] sm:$0xff]
      %v322 = vsel %vm208, %v315, 0
      %324 = vmatpush.msra.mxu0 0.0
      %325 = vmatpush.msra.mxu0 0.0
      %326 = vmatpush.msra.mxu0 0.0
      %327 = vmatpush.msra.mxu0 0.0
      %328 = vmatpush.msra.mxu0 0.0
      %329 = vmatpush.msra.mxu0 0.0
      %330 = vmatpush.msra.mxu0 0.0
      %331 = vmatpush.msra.mxu0 0.0
      %332 = vmatpush.msra.mxu0 0.0
      %333 = vmatpush.msra.mxu0 0.0
      %334 = vmatpush.msra.mxu0 0.0
      %335 = vmatpush.msra.mxu0 0.0
      %336 = vmatpush.msra.mxu0 %v320
      %337 = vmatpush.msra.mxu0 %v319
      %338 = vmatpush.msra.mxu0 %v318
      %339 = vmatpush.msra.mxu0 %v317
      %340 = vmatmul.f32.gmra.mxu0 %v322
      %v341 = vpop.f32.mrf.mxu0
      %v342 = vadd.f32 0.0, %v341
      %343 = vdwg.mxu0
      %v344 = vadd.f32 %v314, %v342
      %v345 = vld [vmem:[%s191 + $0xa] sm:$0xff]
      %s346 = scalar_lea.vmem %s2, 160
      %v347 = vld [vmem:[%s346] sm:$0xff]
      %v348 = vld [vmem:[%s346 + $0x8] sm:$0xff]
      %v349 = vld [vmem:[%s346 + $0x10] sm:$0xff]
      %v350 = vld [vmem:[%s346 + $0x18] sm:$0xff]
      %v352 = vsel %vm208, %v345, 0
      %354 = vmatpush.msra.mxu0 0.0
      %355 = vmatpush.msra.mxu0 0.0
      %356 = vmatpush.msra.mxu0 0.0
      %357 = vmatpush.msra.mxu0 0.0
      %358 = vmatpush.msra.mxu0 0.0
      %359 = vmatpush.msra.mxu0 0.0
      %360 = vmatpush.msra.mxu0 0.0
      %361 = vmatpush.msra.mxu0 0.0
      %362 = vmatpush.msra.mxu0 0.0
      %363 = vmatpush.msra.mxu0 0.0
      %364 = vmatpush.msra.mxu0 0.0
      %365 = vmatpush.msra.mxu0 0.0
      %366 = vmatpush.msra.mxu0 %v350
      %367 = vmatpush.msra.mxu0 %v349
      %368 = vmatpush.msra.mxu0 %v348
      %369 = vmatpush.msra.mxu0 %v347
      %370 = vmatmul.f32.gmra.mxu0 %v352
      %v371 = vpop.f32.mrf.mxu0
      %v372 = vadd.f32 0.0, %v371
      %373 = vdwg.mxu0
      %v374 = vadd.f32 %v344, %v372
      %v375 = vld [vmem:[%s191 + $0xc] sm:$0xff]
      %s376 = scalar_lea.vmem %s2, 192
      %v377 = vld [vmem:[%s376] sm:$0xff]
      %v378 = vld [vmem:[%s376 + $0x8] sm:$0xff]
      %v379 = vld [vmem:[%s376 + $0x10] sm:$0xff]
      %v380 = vld [vmem:[%s376 + $0x18] sm:$0xff]
      %v382 = vsel %vm208, %v375, 0
      %384 = vmatpush.msra.mxu0 0.0
      %385 = vmatpush.msra.mxu0 0.0
      %386 = vmatpush.msra.mxu0 0.0
      %387 = vmatpush.msra.mxu0 0.0
      %388 = vmatpush.msra.mxu0 0.0
      %389 = vmatpush.msra.mxu0 0.0
      %390 = vmatpush.msra.mxu0 0.0
      %391 = vmatpush.msra.mxu0 0.0
      %392 = vmatpush.msra.mxu0 0.0
      %393 = vmatpush.msra.mxu0 0.0
      %394 = vmatpush.msra.mxu0 0.0
      %395 = vmatpush.msra.mxu0 0.0
      %396 = vmatpush.msra.mxu0 %v380
      %397 = vmatpush.msra.mxu0 %v379
      %398 = vmatpush.msra.mxu0 %v378
      %399 = vmatpush.msra.mxu0 %v377
      %400 = vmatmul.f32.gmra.mxu0 %v382
      %v401 = vpop.f32.mrf.mxu0
      %v402 = vadd.f32 0.0, %v401
      %403 = vdwg.mxu0
      %v404 = vadd.f32 %v374, %v402
      %v405 = vld [vmem:[%s191 + $0xd] sm:$0xff]
      %s406 = scalar_lea.vmem %s2, 224
      %v407 = vld [vmem:[%s406] sm:$0xff]
      %v408 = vld [vmem:[%s406 + $0x8] sm:$0xff]
      %v409 = vld [vmem:[%s406 + $0x10] sm:$0xff]
      %v410 = vld [vmem:[%s406 + $0x18] sm:$0xff]
      %v412 = vsel %vm208, %v405, 0
      %414 = vmatpush.msra.mxu0 0.0
      %415 = vmatpush.msra.mxu0 0.0
      %416 = vmatpush.msra.mxu0 0.0
      %417 = vmatpush.msra.mxu0 0.0
      %418 = vmatpush.msra.mxu0 0.0
      %419 = vmatpush.msra.mxu0 0.0
      %420 = vmatpush.msra.mxu0 0.0
      %421 = vmatpush.msra.mxu0 0.0
      %422 = vmatpush.msra.mxu0 0.0
      %423 = vmatpush.msra.mxu0 0.0
      %424 = vmatpush.msra.mxu0 0.0
      %425 = vmatpush.msra.mxu0 0.0
      %426 = vmatpush.msra.mxu0 %v410
      %427 = vmatpush.msra.mxu0 %v409
      %428 = vmatpush.msra.mxu0 %v408
      %429 = vmatpush.msra.mxu0 %v407
      %430 = vmatmul.f32.gmra.mxu0 %v412
      %v431 = vpop.f32.mrf.mxu0
      %v432 = vadd.f32 0.0, %v431
      %433 = vdwg.mxu0
      %v434 = vadd.f32 %v404, %v432
      %v435 = vld [vmem:[%s191 + $0xe] sm:$0xff]
      %s436 = scalar_lea.vmem %s2, 256
      %v437 = vld [vmem:[%s436] sm:$0xff]
      %v438 = vld [vmem:[%s436 + $0x8] sm:$0xff]
      %v439 = vld [vmem:[%s436 + $0x10] sm:$0xff]
      %v440 = vld [vmem:[%s436 + $0x18] sm:$0xff]
      %v442 = vsel %vm208, %v435, 0
      %444 = vmatpush.msra.mxu0 0.0
      %445 = vmatpush.msra.mxu0 0.0
      %446 = vmatpush.msra.mxu0 0.0
      %447 = vmatpush.msra.mxu0 0.0
      %448 = vmatpush.msra.mxu0 0.0
      %449 = vmatpush.msra.mxu0 0.0
      %450 = vmatpush.msra.mxu0 0.0
      %451 = vmatpush.msra.mxu0 0.0
      %452 = vmatpush.msra.mxu0 0.0
      %453 = vmatpush.msra.mxu0 0.0
      %454 = vmatpush.msra.mxu0 0.0
      %455 = vmatpush.msra.mxu0 0.0
      %456 = vmatpush.msra.mxu0 %v440
      %457 = vmatpush.msra.mxu0 %v439
      %458 = vmatpush.msra.mxu0 %v438
      %459 = vmatpush.msra.mxu0 %v437
      %460 = vmatmul.f32.gmra.mxu0 %v442
      %v461 = vpop.f32.mrf.mxu0
      %v462 = vadd.f32 0.0, %v461
      %463 = vdwg.mxu0
      %v464 = vadd.f32 %v434, %v462
      %v465 = vld [vmem:[%s3] sm:$0x1]
      %v467 = vperm.slane %v465, 0
      %v469 = vadd.f32 %v464, %v467
      %v470 = vmax.f32 %v469, 0.0
      %472 = vset.pattern.permute.xlu0 0
      %473 = vperm.xlu0 %472, %v196
      %v474 = vpop.permute.xlu0 %473
      %v476 = vmul.f32 %v470, %v474
      %vm477 = vcmask 523264
      %478 = vst.msk [vmem:[%s195] sm:$0xff] %vm477, %v476
      %p479 = scmp.lt.s32.totalorder %s15, 1
      %s480 = scalar_select %p479, %s15, 1
      %s481 = smul.addr %s480, 8
      %s482 = scalar_lea.vmem %s4, %s481
      // Predicated region
      $region37: #{fe_forward.13} parent=35 // pred_check
        %p483 = pneg %p122
      $region38: #{fe_forward.13} parent=35 // pred_check_branch
        %485 = sbr.rel (%p483) target = $region40
      $region39: #{fe_forward.13} parent=35 // pred_region
        _
      $region40: #{fe_forward.13} parent=35 // pred_fallthru
        _
    $region36: #{fe_forward.13} parent=5 // pred_fallthru
      _
    %p486 = scmp.le.s32.totalorder 2, %s10
    // Predicated region
    $region41: #{fe_forward.13} parent=5 // pred_check
      %p487 = pneg %p486
    $region42: #{fe_forward.13} parent=5 // pred_check_branch
      %489 = sbr.rel (%p487) target = $region44
    $region43: #{fe_forward.13} parent=5 // pred_region
      %s490 = ssub.s32 %s10, 2
      // Predicated region
      $region45: #{fe_forward.13} parent=43 // pred_check
        %p491 = pneg %p128
      $region46: #{fe_forward.13} parent=43 // pred_check_branch
        %493 = sbr.rel (%p491) target = $region48
      $region47: #{fe_forward.13} parent=43 // pred_region
        %p494 = scmp.lt.s32.totalorder %s16, 1
        %s495 = scalar_select %p494, %s16, 1
        %s496 = smul.addr %s495, 8
        %s497 = scalar_lea.vmem %s4, %s496
      $region48: #{fe_forward.13} parent=43 // pred_fallthru
        _
    $region44: #{fe_forward.13} parent=5 // pred_fallthru
      _
  $region6: #{fe_forward.13} parent=0 // loop_footer
    %s14 = sadd.s32 1, %s10
  $region7: #{fe_forward.13} parent=0 // loop_footer_branch
    %9 = sbr.rel target = $region3
  $region8: #{fe_forward.13} parent=0 // loop_exit
    _

// kernel: fe_forward.7
$region0: #{fe_forward.7}
  #allocation0 [shape = 'u32[]', space=smem, size = 0x4, offset = 0x4, fixed_abs, tag = 'smem constant byte address 0x4 - core index']
  #allocation1 [shape = 'u32[72,128]{1,0:T(1,128)}', space=vmem, size = 0x9000, scoped, tag = 'internal scratch']
  #allocation2 [shape = 'f32[360,8]{1,0:T(8,128)}', space=vmem, size = 0x2d000, scoped, tag = 'scratch operand']
  %s0 = inlined_call_operand.vmem [shape: f32[2,360,6], index: 0, kind: input, shape index: {}]
  %s1 = inlined_call_operand.vmem [shape: f32[288,1], index: 1, kind: input, shape index: {}]
  %s2 = inlined_call_operand.vmem [shape: f32[3,3,6,8], index: 2, kind: input, shape index: {}]
  %s3 = inlined_call_operand.vmem [shape: f32[1,8], index: 3, kind: input, shape index: {}]
  %s4 = inlined_call_operand.vmem [shape: f32[3,3,8,8], index: 4, kind: input, shape index: {}]
  %s5 = inlined_call_operand.vmem [shape: f32[1,8], index: 5, kind: input, shape index: {}]
  %s6 = inlined_call_operand.vmem [shape: f32[2,288,8], index: 6, kind: output, shape index: {}]
  %s7 = sld [smem:[#allocation0]]
  $region57: #{fe_forward.7} parent=0
    _
  %s9 = ssub.s32 1, %s7
  %s10 = scalar_select 0, %s9, %s7
  loop: start=0, step=1, limit=4
  $region2: #{fe_forward.7} parent=0 // loop_pre_header
    _
  $region3: #{fe_forward.7} parent=0 // loop_header
    %s12 = sphi 0, %s16
    %p13 = scmp.ge.s32.totalorder %s12, 4
    %s22 = sphi 0, %s24
    %s25 = sphi 0, %s22
    %s26 = sphi 0, %s25
    %s42 = sphi 0, %s26
    %s46 = sphi 0, %s46
    %s48 = sphi 0, %s46
    %s49 = sphi 0, %s48
    %s63 = sphi 0, %s49
    %s67 = sphi 0, %s67
    %s69 = sphi 0, %s67
    %s70 = sphi 0, %s69
    %s84 = sphi 0, %s70
    %s88 = sphi 0, %s88
    %s90 = sphi 0, %s88
    %s91 = sphi 0, %s90
    %s105 = sphi 0, %s91
    %s109 = sphi 0, %s109
    %s111 = sphi 0, %s109
    %s112 = sphi 0, %s111
    %s126 = sphi 0, %s112
    %s130 = sphi 0, %s130
    %s132 = sphi 0, %s130
    %s133 = sphi 0, %s132
    %s147 = sphi 0, %s133
    %s153 = sphi 0, %s155
    %s156 = sphi 0, %s153
    %s157 = sphi 0, %s156
    %s173 = sphi 0, %s157
  $region4: #{fe_forward.7} parent=0 // loop_header_branch
    %15 = sbr.rel (%p13) target = $region8
  $region5: #{fe_forward.7} parent=0 // loop_body
    %s17 = ssub.s32 %s12, 1
    %s18 = ssub.s32 %s12, 2
    %s19 = sadd.s32 %s12, 1
    %s20 = ssub.s32 %s12, %s19
    %p21 = scmp.eq.s32.totalorder %s20, 0
    %s23 = sadd.s32 %s22, 1
    %s24 = scalar_select %p21, %s22, %s23
    %p27 = pneg %p21
    %p28 = scmp.eq.s32.totalorder %s12, 1
    %p29 = por %p27, %p28
    %p30 = scmp.ne.s32.totalorder %s22, %s25
    %p31 = scmp.eq.s32.totalorder %s12, 0
    %p32 = por %p30, %p31
    %p33 = scmp.ne.s32.totalorder %s22, %s25
    %p34 = scmp.eq.s32.totalorder %s17, 1
    %p35 = por %p33, %p34
    %p36 = scmp.ne.s32.totalorder %s25, %s26
    %p37 = scmp.eq.s32.totalorder %s17, 0
    %p38 = por %p36, %p37
    %p39 = scmp.ne.s32.totalorder %s25, %s26
    %p40 = scmp.eq.s32.totalorder %s18, 1
    %p41 = por %p39, %p40
    %p43 = scmp.ne.s32.totalorder %s26, %s42
    %p44 = scmp.eq.s32.totalorder %s18, 0
    %p45 = por %p43, %p44
    %s47 = sadd.s32 %s46, 1
    %p50 = scmp.eq.s32.totalorder %s12, 1
    %p51 = scmp.ne.s32.totalorder %s46, %s48
    %p52 = scmp.eq.s32.totalorder %s12, 0
    %p53 = por %p51, %p52
    %p54 = scmp.ne.s32.totalorder %s46, %s48
    %p55 = scmp.eq.s32.totalorder %s17, 1
    %p56 = por %p54, %p55
    %p57 = scmp.ne.s32.totalorder %s48, %s49
    %p58 = scmp.eq.s32.totalorder %s17, 0
    %p59 = por %p57, %p58
    %p60 = scmp.ne.s32.totalorder %s48, %s49
    %p61 = scmp.eq.s32.totalorder %s18, 1
    %p62 = por %p60, %p61
    %p64 = scmp.ne.s32.totalorder %s49, %s63
    %p65 = scmp.eq.s32.totalorder %s18, 0
    %p66 = por %p64, %p65
    %s68 = sadd.s32 %s67, 1
    %p71 = scmp.eq.s32.totalorder %s12, 1
    %p72 = scmp.ne.s32.totalorder %s67, %s69
    %p73 = scmp.eq.s32.totalorder %s12, 0
    %p74 = por %p72, %p73
    %p75 = scmp.ne.s32.totalorder %s67, %s69
    %p76 = scmp.eq.s32.totalorder %s17, 1
    %p77 = por %p75, %p76
    %p78 = scmp.ne.s32.totalorder %s69, %s70
    %p79 = scmp.eq.s32.totalorder %s17, 0
    %p80 = por %p78, %p79
    %p81 = scmp.ne.s32.totalorder %s69, %s70
    %p82 = scmp.eq.s32.totalorder %s18, 1
    %p83 = por %p81, %p82
    %p85 = scmp.ne.s32.totalorder %s70, %s84
    %p86 = scmp.eq.s32.totalorder %s18, 0
    %p87 = por %p85, %p86
    %s89 = sadd.s32 %s88, 1
    %p92 = scmp.eq.s32.totalorder %s12, 1
    %p93 = scmp.ne.s32.totalorder %s88, %s90
    %p94 = scmp.eq.s32.totalorder %s12, 0
    %p95 = por %p93, %p94
    %p96 = scmp.ne.s32.totalorder %s88, %s90
    %p97 = scmp.eq.s32.totalorder %s17, 1
    %p98 = por %p96, %p97
    %p99 = scmp.ne.s32.totalorder %s90, %s91
    %p100 = scmp.eq.s32.totalorder %s17, 0
    %p101 = por %p99, %p100
    %p102 = scmp.ne.s32.totalorder %s90, %s91
    %p103 = scmp.eq.s32.totalorder %s18, 1
    %p104 = por %p102, %p103
    %p106 = scmp.ne.s32.totalorder %s91, %s105
    %p107 = scmp.eq.s32.totalorder %s18, 0
    %p108 = por %p106, %p107
    %s110 = sadd.s32 %s109, 1
    %p113 = scmp.eq.s32.totalorder %s12, 1
    %p114 = scmp.ne.s32.totalorder %s109, %s111
    %p115 = scmp.eq.s32.totalorder %s12, 0
    %p116 = por %p114, %p115
    %p117 = scmp.ne.s32.totalorder %s109, %s111
    %p118 = scmp.eq.s32.totalorder %s17, 1
    %p119 = por %p117, %p118
    %p120 = scmp.ne.s32.totalorder %s111, %s112
    %p121 = scmp.eq.s32.totalorder %s17, 0
    %p122 = por %p120, %p121
    %p123 = scmp.ne.s32.totalorder %s111, %s112
    %p124 = scmp.eq.s32.totalorder %s18, 1
    %p125 = por %p123, %p124
    %p127 = scmp.ne.s32.totalorder %s112, %s126
    %p128 = scmp.eq.s32.totalorder %s18, 0
    %p129 = por %p127, %p128
    %s131 = sadd.s32 %s130, 1
    %p134 = scmp.eq.s32.totalorder %s12, 1
    %p135 = scmp.ne.s32.totalorder %s130, %s132
    %p136 = scmp.eq.s32.totalorder %s12, 0
    %p137 = por %p135, %p136
    %p138 = scmp.ne.s32.totalorder %s130, %s132
    %p139 = scmp.eq.s32.totalorder %s17, 1
    %p140 = por %p138, %p139
    %p141 = scmp.ne.s32.totalorder %s132, %s133
    %p142 = scmp.eq.s32.totalorder %s17, 0
    %p143 = por %p141, %p142
    %p144 = scmp.ne.s32.totalorder %s132, %s133
    %p145 = scmp.eq.s32.totalorder %s18, 1
    %p146 = por %p144, %p145
    %p148 = scmp.ne.s32.totalorder %s133, %s147
    %p149 = scmp.eq.s32.totalorder %s18, 0
    %p150 = por %p148, %p149
    %s151 = ssub.s32 %s12, %s19
    %p152 = scmp.eq.s32.totalorder %s151, 0
    %s154 = sadd.s32 %s153, 1
    %s155 = scalar_select %p152, %s153, %s154
    %p158 = pneg %p152
    %p159 = scmp.eq.s32.totalorder %s12, 1
    %p160 = por %p158, %p159
    %p161 = scmp.ne.s32.totalorder %s153, %s156
    %p162 = scmp.eq.s32.totalorder %s12, 0
    %p163 = por %p161, %p162
    %p164 = scmp.ne.s32.totalorder %s153, %s156
    %p165 = scmp.eq.s32.totalorder %s17, 1
    %p166 = por %p164, %p165
    %p167 = scmp.ne.s32.totalorder %s156, %s157
    %p168 = scmp.eq.s32.totalorder %s17, 0
    %p169 = por %p167, %p168
    %p170 = scmp.ne.s32.totalorder %s156, %s157
    %p171 = scmp.eq.s32.totalorder %s18, 1
    %p172 = por %p170, %p171
    %p174 = scmp.ne.s32.totalorder %s157, %s173
    %p175 = scmp.eq.s32.totalorder %s18, 0
    %p176 = por %p174, %p175
    %p177 = scmp.le.s32.totalorder 1, %s12
    %p178 = scmp.lt.s32.totalorder %s12, 3
    %p179 = pnand %p177, %p178
    %p180 = pneg %p179
    // Predicated region
    $region9: #{fe_forward.7} parent=5 // pred_check
      _
    $region10: #{fe_forward.7} parent=5 // pred_check_branch
      %182 = sbr.rel (%p179) target = $region12
    $region11: #{fe_forward.7} parent=5 // pred_region
      %s183 = ssub.s32 %s12, 1
      // Predicated region
      $region13: #{fe_forward.7} parent=11 // pred_check
        %p184 = pneg %p59
      $region14: #{fe_forward.7} parent=11 // pred_check_branch
        %186 = sbr.rel (%p184) target = $region16
      $region15: #{fe_forward.7} parent=11 // pred_region
        _
      $region16: #{fe_forward.7} parent=11 // pred_fallthru
        _
      // Predicated region
      $region17: #{fe_forward.7} parent=11 // pred_check
        %p187 = pneg %p80
      $region18: #{fe_forward.7} parent=11 // pred_check_branch
        %189 = sbr.rel (%p187) target = $region20
      $region19: #{fe_forward.7} parent=11 // pred_region
        _
      $region20: #{fe_forward.7} parent=11 // pred_fallthru
        _
      // Predicated region
      $region21: #{fe_forward.7} parent=11 // pred_check
        %p190 = pneg %p101
      $region22: #{fe_forward.7} parent=11 // pred_check_branch
        %192 = sbr.rel (%p190) target = $region24
      $region23: #{fe_forward.7} parent=11 // pred_region
        _
      $region24: #{fe_forward.7} parent=11 // pred_fallthru
        _
      // Predicated region
      $region25: #{fe_forward.7} parent=11 // pred_check
        %p193 = pneg %p122
      $region26: #{fe_forward.7} parent=11 // pred_check_branch
        %195 = sbr.rel (%p193) target = $region28
      $region27: #{fe_forward.7} parent=11 // pred_region
        _
      $region28: #{fe_forward.7} parent=11 // pred_fallthru
        _
      // Predicated region
      $region29: #{fe_forward.7} parent=11 // pred_check
        %p196 = pneg %p143
      $region30: #{fe_forward.7} parent=11 // pred_check_branch
        %198 = sbr.rel (%p196) target = $region32
      $region31: #{fe_forward.7} parent=11 // pred_region
        _
      $region32: #{fe_forward.7} parent=11 // pred_fallthru
        _
    $region12: #{fe_forward.7} parent=5 // pred_fallthru
      _
    %p199 = scmp.lt.s32.totalorder %s12, 2
    // Predicated region
    $region33: #{fe_forward.7} parent=5 // pred_check
      %p200 = pneg %p199
    $region34: #{fe_forward.7} parent=5 // pred_check_branch
      %202 = sbr.rel (%p200) target = $region36
    $region35: #{fe_forward.7} parent=5 // pred_region
      // Predicated region
      $region37: #{fe_forward.7} parent=35 // pred_check
        %p203 = pneg %p32
      $region38: #{fe_forward.7} parent=35 // pred_check_branch
        %205 = sbr.rel (%p203) target = $region40
      $region39: #{fe_forward.7} parent=35 // pred_region
        %p206 = scmp.lt.s32.totalorder %s12, 1
        %s207 = scalar_select %p206, %s12, 1
        %s208 = smul.addr %s207, 45
        %s209 = smul.addr %s208, 8
        %s210 = scalar_lea.vmem %s0, %s209
      $region40: #{fe_forward.7} parent=35 // pred_fallthru
        _
    $region36: #{fe_forward.7} parent=5 // pred_fallthru
      _
    %p211 = scmp.le.s32.totalorder 1, %s12
    %p212 = scmp.lt.s32.totalorder %s12, 3
    %p213 = pnand %p211, %p212
    %p214 = pneg %p213
    // Predicated region
    $region41: #{fe_forward.7} parent=5 // pred_check
      _
    $region42: #{fe_forward.7} parent=5 // pred_check_branch
      %216 = sbr.rel (%p213) target = $region44
    $region43: #{fe_forward.7} parent=5 // pred_region
      %s217 = ssub.s32 %s12, 1
      %p218 = scmp.lt.s32.totalorder %s17, 1
      %s219 = scalar_select %p218, %s17, 1
      %s220 = smul.addr %s219, 45
      %s221 = smul.addr %s220, 8
      %s222 = scalar_lea.vmem %s0, %s221
      %p223 = pneg %p38
      %p224 = pneg %p35
      %p225 = pneg %p59
      %p226 = pneg %p56
      %p227 = pneg %p80
      %p228 = pneg %p77
      %p229 = pneg %p101
      %p230 = pneg %p98
      %p231 = pneg %p122
      %p232 = pneg %p119
      %p233 = pneg %p143
      %p234 = pneg %p140
      %p235 = pneg %p169
      %p236 = pneg %p166
      %p237 = scmp.lt.s32.totalorder %s17, 1
      %s238 = scalar_select %p237, %s17, 1
      %s239 = smul.addr %s238, 36
      %s240 = smul.addr %s239, 8
      %s241 = scalar_lea.vmem %s6, %s240
      %p242 = scmp.lt.s32.totalorder %s17, 1
      %s243 = scalar_select %p242, %s17, 1
      %s244 = smul.addr %s243, 45
      %s245 = smul.addr %s244, 8
      %s246 = scalar_lea.vmem %s0, %s245
      %p247 = scmp.lt.s32.totalorder %s17, 1
      %s248 = scalar_select %p247, %s17, 1
      %s249 = smul.addr %s248, 36
      %s250 = smul.addr %s249, 8
      %s251 = scalar_lea.vmem %s6, %s250
      %v252 = vld [vmem:[%s1] sm:$0xff]
      %v253 = vld [vmem:[%s1 + $0x8] sm:$0xff]
      %v254 = vld [vmem:[%s1 + $0x10] sm:$0xff]
      %v255 = vld [vmem:[%s1 + $0x18] sm:$0xff]
      %v256 = vld [vmem:[%s1 + $0x20] sm:$0xff]
      %v257 = vld [vmem:[%s1 + $0x28] sm:$0xff]
      %v258 = vld [vmem:[%s1 + $0x30] sm:$0xff]
      %v259 = vld [vmem:[%s1 + $0x38] sm:$0xff]
      %v260 = vld [vmem:[%s1 + $0x40] sm:$0xff]
      %v261 = vld [vmem:[%s1 + $0x48] sm:$0xff]
      %v262 = vld [vmem:[%s1 + $0x50] sm:$0xff]
      %v263 = vld [vmem:[%s1 + $0x58] sm:$0xff]
      %v264 = vld [vmem:[%s1 + $0x60] sm:$0xff]
      %v265 = vld [vmem:[%s1 + $0x68] sm:$0xff]
      %v266 = vld [vmem:[%s1 + $0x70] sm:$0xff]
      %v267 = vld [vmem:[%s1 + $0x78] sm:$0xff]
      %v268 = vld [vmem:[%s1 + $0x80] sm:$0xff]
      %v269 = vld [vmem:[%s1 + $0x88] sm:$0xff]
      %v270 = vld [vmem:[%s1 + $0x90] sm:$0xff]
      %v271 = vld [vmem:[%s1 + $0x98] sm:$0xff]
      %v272 = vld [vmem:[%s1 + $0xa0] sm:$0xff]
      %v273 = vld [vmem:[%s1 + $0xa8] sm:$0xff]
      %v274 = vld [vmem:[%s1 + $0xb0] sm:$0xff]
      %v275 = vld [vmem:[%s1 + $0xb8] sm:$0xff]
      %v276 = vld [vmem:[%s1 + $0xc0] sm:$0xff]
      %v277 = vld [vmem:[%s1 + $0xc8] sm:$0xff]
      %v278 = vld [vmem:[%s1 + $0xd0] sm:$0xff]
      %v279 = vld [vmem:[%s1 + $0xd8] sm:$0xff]
      %v280 = vld [vmem:[%s1 + $0xe0] sm:$0xff]
      %v281 = vld [vmem:[%s1 + $0xe8] sm:$0xff]
      %v282 = vld [vmem:[%s1 + $0xf0] sm:$0xff]
      %v283 = vld [vmem:[%s1 + $0xf8] sm:$0xff]
      %v284 = vld [vmem:[%s1 + $0x100] sm:$0xff]
      %v285 = vld [vmem:[%s1 + $0x108] sm:$0xff]
      %v286 = vld [vmem:[%s1 + $0x110] sm:$0xff]
      %v287 = vld [vmem:[%s1 + $0x118] sm:$0xff]
      %v288 = vld [vmem:[%s246 + $0x12] sm:$0xff]
      %v289 = vld [vmem:[%s246 + $0x1a] sm:$0xff]
      %v290 = vld [vmem:[%s246 + $0x22] sm:$0xff]
      %v291 = vld [vmem:[%s246 + $0x2a] sm:$0xff]
      %v292 = vld [vmem:[%s246 + $0x32] sm:$0xff]
      %v293 = vld [vmem:[%s246 + $0x3a] sm:$0xff]
      %v294 = vld [vmem:[%s246 + $0x42] sm:$0xff]
      %v295 = vld [vmem:[%s246 + $0x4a] sm:$0xff]
      %v296 = vld [vmem:[%s246 + $0x52] sm:$0xff]
      %v297 = vld [vmem:[%s246 + $0x5a] sm:$0xff]
      %v298 = vld [vmem:[%s246 + $0x62] sm:$0xff]
      %v299 = vld [vmem:[%s246 + $0x6a] sm:$0xff]
      %v300 = vld [vmem:[%s246 + $0x72] sm:$0xff]
      %v301 = vld [vmem:[%s246 + $0x7a] sm:$0xff]
      %v302 = vld [vmem:[%s246 + $0x82] sm:$0xff]
      %v303 = vld [vmem:[%s246 + $0x8a] sm:$0xff]
      %v304 = vld [vmem:[%s246 + $0x92] sm:$0xff]
      %v305 = vld [vmem:[%s246 + $0x9a] sm:$0xff]
      %v306 = vld [vmem:[%s246 + $0xa2] sm:$0xff]
      %v307 = vld [vmem:[%s246 + $0xaa] sm:$0xff]
      %v308 = vld [vmem:[%s246 + $0xb2] sm:$0xff]
      %v309 = vld [vmem:[%s246 + $0xba] sm:$0xff]
      %v310 = vld [vmem:[%s246 + $0xc2] sm:$0xff]
      %v311 = vld [vmem:[%s246 + $0xca] sm:$0xff]
      %v312 = vld [vmem:[%s246 + $0xd2] sm:$0xff]
      %v313 = vld [vmem:[%s246 + $0xda] sm:$0xff]
      %v314 = vld [vmem:[%s246 + $0xe2] sm:$0xff]
      %v315 = vld [vmem:[%s246 + $0xea] sm:$0xff]
      %v316 = vld [vmem:[%s246 + $0xf2] sm:$0xff]
      %v317 = vld [vmem:[%s246 + $0xfa] sm:$0xff]
      %v318 = vld [vmem:[%s246 + $0x102] sm:$0xff]
      %v319 = vld [vmem:[%s246 + $0x10a] sm:$0xff]
      %v320 = vld [vmem:[%s246 + $0x112] sm:$0xff]
      %v321 = vld [vmem:[%s246 + $0x11a] sm:$0xff]
      %v322 = vld [vmem:[%s246 + $0x122] sm:$0xff]
      %v323 = vld [vmem:[%s246 + $0x12a] sm:$0xff]
      %v324 = vld [vmem:[%s2] sm:$0x3f]
      %v325 = vld [vmem:[%s246 + $0x13] sm:$0xff]
      %v326 = vld [vmem:[%s246 + $0x1b] sm:$0xff]
      %v327 = vld [vmem:[%s246 + $0x23] sm:$0xff]
      %v328 = vld [vmem:[%s246 + $0x2b] sm:$0xff]
      %v329 = vld [vmem:[%s246 + $0x33] sm:$0xff]
      %v330 = vld [vmem:[%s246 + $0x3b] sm:$0xff]
      %v331 = vld [vmem:[%s246 + $0x43] sm:$0xff]
      %v332 = vld [vmem:[%s246 + $0x4b] sm:$0xff]
      %v333 = vld [vmem:[%s246 + $0x53] sm:$0xff]
      %v334 = vld [vmem:[%s246 + $0x5b] sm:$0xff]
      %v335 = vld [vmem:[%s246 + $0x63] sm:$0xff]
      %v336 = vld [vmem:[%s246 + $0x6b] sm:$0xff]
      %v337 = vld [vmem:[%s246 + $0x73] sm:$0xff]
      %v338 = vld [vmem:[%s246 + $0x7b] sm:$0xff]
      %v339 = vld [vmem:[%s246 + $0x83] sm:$0xff]
      %v340 = vld [vmem:[%s246 + $0x8b] sm:$0xff]
      %v341 = vld [vmem:[%s246 + $0x93] sm:$0xff]
      %v342 = vld [vmem:[%s246 + $0x9b] sm:$0xff]
      %v343 = vld [vmem:[%s246 + $0xa3] sm:$0xff]
      %v344 = vld [vmem:[%s246 + $0xab] sm:$0xff]
      %v345 = vld [vmem:[%s246 + $0xb3] sm:$0xff]
      %v346 = vld [vmem:[%s246 + $0xbb] sm:$0xff]
      %v347 = vld [vmem:[%s246 + $0xc3] sm:$0xff]
      %v348 = vld [vmem:[%s246 + $0xcb] sm:$0xff]
      %v349 = vld [vmem:[%s246 + $0xd3] sm:$0xff]
      %v350 = vld [vmem:[%s246 + $0xdb] sm:$0xff]
      %v351 = vld [vmem:[%s246 + $0xe3] sm:$0xff]
      %v352 = vld [vmem:[%s246 + $0xeb] sm:$0xff]
      %v353 = vld [vmem:[%s246 + $0xf3] sm:$0xff]
      %v354 = vld [vmem:[%s246 + $0xfb] sm:$0xff]
      %v355 = vld [vmem:[%s246 + $0x103] sm:$0xff]
      %v356 = vld [vmem:[%s246 + $0x10b] sm:$0xff]
      %v357 = vld [vmem:[%s246 + $0x113] sm:$0xff]
      %v358 = vld [vmem:[%s246 + $0x11b] sm:$0xff]
      %v359 = vld [vmem:[%s246 + $0x123] sm:$0xff]
      %v360 = vld [vmem:[%s246 + $0x12b] sm:$0xff]
      %s361 = scalar_lea.vmem %s2, 8
      %v362 = vld [vmem:[%s361] sm:$0x3f]
      %vm363 = vcmask 48128
      %v365 = vsel %vm363, %v325, 0
      %v368 = vsel %vm363, %v326, 0
      %v371 = vsel %vm363, %v327, 0
      %v374 = vsel %vm363, %v328, 0
      %v377 = vsel %vm363, %v329, 0
      %v380 = vsel %vm363, %v330, 0
      %v383 = vsel %vm363, %v331, 0
      %v386 = vsel %vm363, %v332, 0
      %v389 = vsel %vm363, %v333, 0
      %v392 = vsel %vm363, %v334, 0
      %v395 = vsel %vm363, %v335, 0
      %v398 = vsel %vm363, %v336, 0
      %v401 = vsel %vm363, %v337, 0
      %v404 = vsel %vm363, %v338, 0
      %v407 = vsel %vm363, %v339, 0
      %v410 = vsel %vm363, %v340, 0
      %v413 = vsel %vm363, %v341, 0
      %v416 = vsel %vm363, %v342, 0
      %v419 = vsel %vm363, %v343, 0
      %v422 = vsel %vm363, %v344, 0
      %v425 = vsel %vm363, %v345, 0
      %v428 = vsel %vm363, %v346, 0
      %v431 = vsel %vm363, %v347, 0
      %v434 = vsel %vm363, %v348, 0
      %v437 = vsel %vm363, %v349, 0
      %v440 = vsel %vm363, %v350, 0
      %v443 = vsel %vm363, %v351, 0
      %v446 = vsel %vm363, %v352, 0
      %v449 = vsel %vm363, %v353, 0
      %v452 = vsel %vm363, %v354, 0
      %v455 = vsel %vm363, %v355, 0
      %v458 = vsel %vm363, %v356, 0
      %v461 = vsel %vm363, %v357, 0
      %v464 = vsel %vm363, %v358, 0
      %v467 = vsel %vm363, %v359, 0
      %v470 = vsel %vm363, %v360, 0
      %vm472 = vcmask 1045504
      %v474 = vsel %vm472, %v362, 0
      %476 = vmatpush.msra.mxu0 0.0
      %477 = vmatpush.msra.mxu0 0.0
      %478 = vmatpush.msra.mxu0 0.0
      %479 = vmatpush.msra.mxu0 0.0
      %480 = vmatpush.msra.mxu0 0.0
      %481 = vmatpush.msra.mxu0 0.0
      %482 = vmatpush.msra.mxu0 0.0
      %483 = vmatpush.msra.mxu0 0.0
      %484 = vmatpush.msra.mxu0 0.0
      %485 = vmatpush.msra.mxu0 0.0
      %486 = vmatpush.msra.mxu0 0.0
      %487 = vmatpush.msra.mxu0 0.0
      %488 = vmatpush.msra.mxu0 0.0
      %489 = vmatpush.msra.mxu0 0.0
      %490 = vmatpush.msra.mxu0 0.0
      %491 = vmatpush.msra.mxu0 %v474
      %492 = vmatmul.f32.gmra.mxu0 %v365
      %v493 = vpop.f32.mrf.mxu0
      %v494 = vadd.f32 0.0, %v493
      %495 = vmatmul.f32.gmra.mxu0 %v368
      %v496 = vpop.f32.mrf.mxu0
      %v497 = vadd.f32 0.0, %v496
      %498 = vmatmul.f32.gmra.mxu0 %v371
      %v499 = vpop.f32.mrf.mxu0
      %v500 = vadd.f32 0.0, %v499
      %501 = vmatmul.f32.gmra.mxu0 %v374
      %v502 = vpop.f32.mrf.mxu0
      %v503 = vadd.f32 0.0, %v502
      %504 = vmatmul.f32.gmra.mxu0 %v377
      %v505 = vpop.f32.mrf.mxu0
      %v506 = vadd.f32 0.0, %v505
      %507 = vmatmul.f32.gmra.mxu0 %v380
      %v508 = vpop.f32.mrf.mxu0
      %v509 = vadd.f32 0.0, %v508
      %510 = vmatmul.f32.gmra.mxu0 %v383
      %v511 = vpop.f32.mrf.mxu0
      %v512 = vadd.f32 0.0, %v511
      %513 = vmatmul.f32.gmra.mxu0 %v386
      %v514 = vpop.f32.mrf.mxu0
      %v515 = vadd.f32 0.0, %v514
      %516 = vmatmul.f32.gmra.mxu0 %v389
      %v517 = vpop.f32.mrf.mxu0
      %v518 = vadd.f32 0.0, %v517
      %519 = vmatmul.f32.gmra.mxu0 %v392
      %v520 = vpop.f32.mrf.mxu0
      %v521 = vadd.f32 0.0, %v520
      %522 = vmatmul.f32.gmra.mxu0 %v395
      %v523 = vpop.f32.mrf.mxu0
      %v524 = vadd.f32 0.0, %v523
      %525 = vmatmul.f32.gmra.mxu0 %v398
      %v526 = vpop.f32.mrf.mxu0
      %v527 = vadd.f32 0.0, %v526
      %528 = vmatmul.f32.gmra.mxu0 %v401
      %v529 = vpop.f32.mrf.mxu0
      %v530 = vadd.f32 0.0, %v529
      %531 = vmatmul.f32.gmra.mxu0 %v404
      %v532 = vpop.f32.mrf.mxu0
      %v533 = vadd.f32 0.0, %v532
      %534 = vmatmul.f32.gmra.mxu0 %v407
      %v535 = vpop.f32.mrf.mxu0
      %v536 = vadd.f32 0.0, %v535
      %537 = vmatmul.f32.gmra.mxu0 %v410
      %v538 = vpop.f32.mrf.mxu0
      %v539 = vadd.f32 0.0, %v538
      %540 = vmatmul.f32.gmra.mxu0 %v413
      %v541 = vpop.f32.mrf.mxu0
      %v542 = vadd.f32 0.0, %v541
      %543 = vmatmul.f32.gmra.mxu0 %v416
      %v544 = vpop.f32.mrf.mxu0
      %v545 = vadd.f32 0.0, %v544
      %546 = vmatmul.f32.gmra.mxu0 %v419
      %v547 = vpop.f32.mrf.mxu0
      %v548 = vadd.f32 0.0, %v547
      %549 = vmatmul.f32.gmra.mxu0 %v422
      %v550 = vpop.f32.mrf.mxu0
      %v551 = vadd.f32 0.0, %v550
      %552 = vmatmul.f32.gmra.mxu0 %v425
      %v553 = vpop.f32.mrf.mxu0
      %v554 = vadd.f32 0.0, %v553
      %555 = vmatmul.f32.gmra.mxu0 %v428
      %v556 = vpop.f32.mrf.mxu0
      %v557 = vadd.f32 0.0, %v556
      %558 = vmatmul.f32.gmra.mxu0 %v431
      %v559 = vpop.f32.mrf.mxu0
      %v560 = vadd.f32 0.0, %v559
      %561 = vmatmul.f32.gmra.mxu0 %v434
      %v562 = vpop.f32.mrf.mxu0
      %v563 = vadd.f32 0.0, %v562
      %564 = vmatmul.f32.gmra.mxu0 %v437
      %v565 = vpop.f32.mrf.mxu0
      %v566 = vadd.f32 0.0, %v565
      %567 = vmatmul.f32.gmra.mxu0 %v440
      %v568 = vpop.f32.mrf.mxu0
      %v569 = vadd.f32 0.0, %v568
      %570 = vmatmul.f32.gmra.mxu0 %v443
      %v571 = vpop.f32.mrf.mxu0
      %v572 = vadd.f32 0.0, %v571
      %573 = vmatmul.f32.gmra.mxu0 %v446
      %v574 = vpop.f32.mrf.mxu0
      %v575 = vadd.f32 0.0, %v574
      %576 = vmatmul.f32.gmra.mxu0 %v449
      %v577 = vpop.f32.mrf.mxu0
      %v578 = vadd.f32 0.0, %v577
      %579 = vmatmul.f32.gmra.mxu0 %v452
      %v580 = vpop.f32.mrf.mxu0
      %v581 = vadd.f32 0.0, %v580
      %582 = vmatmul.f32.gmra.mxu0 %v455
      %v583 = vpop.f32.mrf.mxu0
      %v584 = vadd.f32 0.0, %v583
      %585 = vmatmul.f32.gmra.mxu0 %v458
      %v586 = vpop.f32.mrf.mxu0
      %v587 = vadd.f32 0.0, %v586
      %588 = vmatmul.f32.gmra.mxu0 %v461
      %v589 = vpop.f32.mrf.mxu0
      %v590 = vadd.f32 0.0, %v589
      %591 = vmatmul.f32.gmra.mxu0 %v464
      %v592 = vpop.f32.mrf.mxu0
      %v593 = vadd.f32 0.0, %v592
      %594 = vmatmul.f32.gmra.mxu0 %v467
      %v595 = vpop.f32.mrf.mxu0
      %v596 = vadd.f32 0.0, %v595
      %597 = vmatmul.f32.gmra.mxu0 %v470
      %v598 = vpop.f32.mrf.mxu0
      %v599 = vadd.f32 0.0, %v598
      %600 = vdwg.mxu0
      %v602 = vsel %vm363, %v288, 0
      %v605 = vsel %vm363, %v289, 0
      %v608 = vsel %vm363, %v290, 0
      %v611 = vsel %vm363, %v291, 0
      %v614 = vsel %vm363, %v292, 0
      %v617 = vsel %vm363, %v293, 0
      %v620 = vsel %vm363, %v294, 0
      %v623 = vsel %vm363, %v295, 0
      %v626 = vsel %vm363, %v296, 0
      %v629 = vsel %vm363, %v297, 0
      %v632 = vsel %vm363, %v298, 0
      %v635 = vsel %vm363, %v299, 0
      %v638 = vsel %vm363, %v300, 0
      %v641 = vsel %vm363, %v301, 0
      %v644 = vsel %vm363, %v302, 0
      %v647 = vsel %vm363, %v303, 0
      %v650 = vsel %vm363, %v304, 0
      %v653 = vsel %vm363, %v305, 0
      %v656 = vsel %vm363, %v306, 0
      %v659 = vsel %vm363, %v307, 0
      %v662 = vsel %vm363, %v308, 0
      %v665 = vsel %vm363, %v309, 0
      %v668 = vsel %vm363, %v310, 0
      %v671 = vsel %vm363, %v311, 0
      %v674 = vsel %vm363, %v312, 0
      %v677 = vsel %vm363, %v313, 0
      %v680 = vsel %vm363, %v314, 0
      %v683 = vsel %vm363, %v315, 0
      %v686 = vsel %vm363, %v316, 0
      %v689 = vsel %vm363, %v317, 0
      %v692 = vsel %vm363, %v318, 0
      %v695 = vsel %vm363, %v319, 0
      %v698 = vsel %vm363, %v320, 0
      %v701 = vsel %vm363, %v321, 0
      %v704 = vsel %vm363, %v322, 0
      %v707 = vsel %vm363, %v323, 0
      %v710 = vsel %vm472, %v324, 0
      %712 = vmatpush.msra.mxu0 0.0
      %713 = vmatpush.msra.mxu0 0.0
      %714 = vmatpush.msra.mxu0 0.0
      %715 = vmatpush.msra.mxu0 0.0
      %716 = vmatpush.msra.mxu0 0.0
      %717 = vmatpush.msra.mxu0 0.0
      %718 = vmatpush.msra.mxu0 0.0
      %719 = vmatpush.msra.mxu0 0.0
      %720 = vmatpush.msra.mxu0 0.0
      %721 = vmatpush.msra.mxu0 0.0
      %722 = vmatpush.msra.mxu0 0.0
      %723 = vmatpush.msra.mxu0 0.0
      %724 = vmatpush.msra.mxu0 0.0
      %725 = vmatpush.msra.mxu0 0.0
      %726 = vmatpush.msra.mxu0 0.0
      %727 = vmatpush.msra.mxu0 %v710
      %728 = vmatmul.f32.gmra.mxu0 %v602
      %v729 = vpop.f32.mrf.mxu0
      %v730 = vadd.f32 %v494, %v729
      %731 = vmatmul.f32.gmra.mxu0 %v605
      %v732 = vpop.f32.mrf.mxu0
      %v733 = vadd.f32 %v497, %v732
      %734 = vmatmul.f32.gmra.mxu0 %v608
      %v735 = vpop.f32.mrf.mxu0
      %v736 = vadd.f32 %v500, %v735
      %737 = vmatmul.f32.gmra.mxu0 %v611
      %v738 = vpop.f32.mrf.mxu0
      %v739 = vadd.f32 %v503, %v738
      %740 = vmatmul.f32.gmra.mxu0 %v614
      %v741 = vpop.f32.mrf.mxu0
      %v742 = vadd.f32 %v506, %v741
      %743 = vmatmul.f32.gmra.mxu0 %v617
      %v744 = vpop.f32.mrf.mxu0
      %v745 = vadd.f32 %v509, %v744
      %746 = vmatmul.f32.gmra.mxu0 %v620
      %v747 = vpop.f32.mrf.mxu0
      %v748 = vadd.f32 %v512, %v747
      %749 = vmatmul.f32.gmra.mxu0 %v623
      %v750 = vpop.f32.mrf.mxu0
      %v751 = vadd.f32 %v515, %v750
      %752 = vmatmul.f32.gmra.mxu0 %v626
      %v753 = vpop.f32.mrf.mxu0
      %v754 = vadd.f32 %v518, %v753
      %755 = vmatmul.f32.gmra.mxu0 %v629
      %v756 = vpop.f32.mrf.mxu0
      %v757 = vadd.f32 %v521, %v756
      %758 = vmatmul.f32.gmra.mxu0 %v632
      %v759 = vpop.f32.mrf.mxu0
      %v760 = vadd.f32 %v524, %v759
      %761 = vmatmul.f32.gmra.mxu0 %v635
      %v762 = vpop.f32.mrf.mxu0
      %v763 = vadd.f32 %v527, %v762
      %764 = vmatmul.f32.gmra.mxu0 %v638
      %v765 = vpop.f32.mrf.mxu0
      %v766 = vadd.f32 %v530, %v765
      %767 = vmatmul.f32.gmra.mxu0 %v641
      %v768 = vpop.f32.mrf.mxu0
      %v769 = vadd.f32 %v533, %v768
      %770 = vmatmul.f32.gmra.mxu0 %v644
      %v771 = vpop.f32.mrf.mxu0
      %v772 = vadd.f32 %v536, %v771
      %773 = vmatmul.f32.gmra.mxu0 %v647
      %v774 = vpop.f32.mrf.mxu0
      %v775 = vadd.f32 %v539, %v774
      %776 = vmatmul.f32.gmra.mxu0 %v650
      %v777 = vpop.f32.mrf.mxu0
      %v778 = vadd.f32 %v542, %v777
      %779 = vmatmul.f32.gmra.mxu0 %v653
      %v780 = vpop.f32.mrf.mxu0
      %v781 = vadd.f32 %v545, %v780
      %782 = vmatmul.f32.gmra.mxu0 %v656
      %v783 = vpop.f32.mrf.mxu0
      %v784 = vadd.f32 %v548, %v783
      %785 = vmatmul.f32.gmra.mxu0 %v659
      %v786 = vpop.f32.mrf.mxu0
      %v787 = vadd.f32 %v551, %v786
      %788 = vmatmul.f32.gmra.mxu0 %v662
      %v789 = vpop.f32.mrf.mxu0
      %v790 = vadd.f32 %v554, %v789
      %791 = vmatmul.f32.gmra.mxu0 %v665
      %v792 = vpop.f32.mrf.mxu0
      %v793 = vadd.f32 %v557, %v792
      %794 = vmatmul.f32.gmra.mxu0 %v668
      %v795 = vpop.f32.mrf.mxu0
      %v796 = vadd.f32 %v560, %v795
      %797 = vmatmul.f32.gmra.mxu0 %v671
      %v798 = vpop.f32.mrf.mxu0
      %v799 = vadd.f32 %v563, %v798
      %800 = vmatmul.f32.gmra.mxu0 %v674
      %v801 = vpop.f32.mrf.mxu0
      %v802 = vadd.f32 %v566, %v801
      %803 = vmatmul.f32.gmra.mxu0 %v677
      %v804 = vpop.f32.mrf.mxu0
      %v805 = vadd.f32 %v569, %v804
      %806 = vmatmul.f32.gmra.mxu0 %v680
      %v807 = vpop.f32.mrf.mxu0
      %v808 = vadd.f32 %v572, %v807
      %809 = vmatmul.f32.gmra.mxu0 %v683
      %v810 = vpop.f32.mrf.mxu0
      %v811 = vadd.f32 %v575, %v810
      %812 = vmatmul.f32.gmra.mxu0 %v686
      %v813 = vpop.f32.mrf.mxu0
      %v814 = vadd.f32 %v578, %v813
      %815 = vmatmul.f32.gmra.mxu0 %v689
      %v816 = vpop.f32.mrf.mxu0
      %v817 = vadd.f32 %v581, %v816
      %818 = vmatmul.f32.gmra.mxu0 %v692
      %v819 = vpop.f32.mrf.mxu0
      %v820 = vadd.f32 %v584, %v819
      %821 = vmatmul.f32.gmra.mxu0 %v695
      %v822 = vpop.f32.mrf.mxu0
      %v823 = vadd.f32 %v587, %v822
      %824 = vmatmul.f32.gmra.mxu0 %v698
      %v825 = vpop.f32.mrf.mxu0
      %v826 = vadd.f32 %v590, %v825
      %827 = vmatmul.f32.gmra.mxu0 %v701
      %v828 = vpop.f32.mrf.mxu0
      %v829 = vadd.f32 %v593, %v828
      %830 = vmatmul.f32.gmra.mxu0 %v704
      %v831 = vpop.f32.mrf.mxu0
      %v832 = vadd.f32 %v596, %v831
      %833 = vmatmul.f32.gmra.mxu0 %v707
      %v834 = vpop.f32.mrf.mxu0
      %v835 = vadd.f32 %v599, %v834
      %836 = vdwg.mxu0
      %v837 = vld [vmem:[%s246 + $0x14] sm:$0xff]
      %v838 = vld [vmem:[%s246 + $0x1c] sm:$0xff]
      %v839 = vld [vmem:[%s246 + $0x24] sm:$0xff]
      %v840 = vld [vmem:[%s246 + $0x2c] sm:$0xff]
      %v841 = vld [vmem:[%s246 + $0x34] sm:$0xff]
      %v842 = vld [vmem:[%s246 + $0x3c] sm:$0xff]
      %v843 = vld [vmem:[%s246 + $0x44] sm:$0xff]
      %v844 = vld [vmem:[%s246 + $0x4c] sm:$0xff]
      %v845 = vld [vmem:[%s246 + $0x54] sm:$0xff]
      %v846 = vld [vmem:[%s246 + $0x5c] sm:$0xff]
      %v847 = vld [vmem:[%s246 + $0x64] sm:$0xff]
      %v848 = vld [vmem:[%s246 + $0x6c] sm:$0xff]
      %v849 = vld [vmem:[%s246 + $0x74] sm:$0xff]
      %v850 = vld [vmem:[%s246 + $0x7c] sm:$0xff]
      %v851 = vld [vmem:[%s246 + $0x84] sm:$0xff]
      %v852 = vld [vmem:[%s246 + $0x8c] sm:$0xff]
      %v853 = vld [vmem:[%s246 + $0x94] sm:$0xff]
      %v854 = vld [vmem:[%s246 + $0x9c] sm:$0xff]
      %v855 = vld [vmem:[%s246 + $0xa4] sm:$0xff]
      %v856 = vld [vmem:[%s246 + $0xac] sm:$0xff]
      %v857 = vld [vmem:[%s246 + $0xb4] sm:$0xff]
      %v858 = vld [vmem:[%s246 + $0xbc] sm:$0xff]
      %v859 = vld [vmem:[%s246 + $0xc4] sm:$0xff]
      %v860 = vld [vmem:[%s246 + $0xcc] sm:$0xff]
      %v861 = vld [vmem:[%s246 + $0xd4] sm:$0xff]
      %v862 = vld [vmem:[%s246 + $0xdc] sm:$0xff]
      %v863 = vld [vmem:[%s246 + $0xe4] sm:$0xff]
      %v864 = vld [vmem:[%s246 + $0xec] sm:$0xff]
      %v865 = vld [vmem:[%s246 + $0xf4] sm:$0xff]
      %v866 = vld [vmem:[%s246 + $0xfc] sm:$0xff]
      %v867 = vld [vmem:[%s246 + $0x104] sm:$0xff]
      %v868 = vld [vmem:[%s246 + $0x10c] sm:$0xff]
      %v869 = vld [vmem:[%s246 + $0x114] sm:$0xff]
      %v870 = vld [vmem:[%s246 + $0x11c] sm:$0xff]
      %v871 = vld [vmem:[%s246 + $0x124] sm:$0xff]
      %v872 = vld [vmem:[%s246 + $0x12c] sm:$0xff]
      %s873 = scalar_lea.vmem %s2, 16
      %v874 = vld [vmem:[%s873] sm:$0x3f]
      %v876 = vsel %vm363, %v837, 0
      %v879 = vsel %vm363, %v838, 0
      %v882 = vsel %vm363, %v839, 0
      %v885 = vsel %vm363, %v840, 0
      %v888 = vsel %vm363, %v841, 0
      %v891 = vsel %vm363, %v842, 0
      %v894 = vsel %vm363, %v843, 0
      %v897 = vsel %vm363, %v844, 0
      %v900 = vsel %vm363, %v845, 0
      %v903 = vsel %vm363, %v846, 0
      %v906 = vsel %vm363, %v847, 0
      %v909 = vsel %vm363, %v848, 0
      %v912 = vsel %vm363, %v849, 0
      %v915 = vsel %vm363, %v850, 0
      %v918 = vsel %vm363, %v851, 0
      %v921 = vsel %vm363, %v852, 0
      %v924 = vsel %vm363, %v853, 0
      %v927 = vsel %vm363, %v854, 0
      %v930 = vsel %vm363, %v855, 0
      %v933 = vsel %vm363, %v856, 0
      %v936 = vsel %vm363, %v857, 0
      %v939 = vsel %vm363, %v858, 0
      %v942 = vsel %vm363, %v859, 0
      %v945 = vsel %vm363, %v860, 0
      %v948 = vsel %vm363, %v861, 0
      %v951 = vsel %vm363, %v862, 0
      %v954 = vsel %vm363, %v863, 0
      %v957 = vsel %vm363, %v864, 0
      %v960 = vsel %vm363, %v865, 0
      %v963 = vsel %vm363, %v866, 0
      %v966 = vsel %vm363, %v867, 0
      %v969 = vsel %vm363, %v868, 0
      %v972 = vsel %vm363, %v869, 0
      %v975 = vsel %vm363, %v870, 0
      %v978 = vsel %vm363, %v871, 0
      %v981 = vsel %vm363, %v872, 0
      %v984 = vsel %vm472, %v874, 0
      %986 = vmatpush.msra.mxu0 0.0
      %987 = vmatpush.msra.mxu0 0.0
      %988 = vmatpush.msra.mxu0 0.0
      %989 = vmatpush.msra.mxu0 0.0
      %990 = vmatpush.msra.mxu0 0.0
      %991 = vmatpush.msra.mxu0 0.0
      %992 = vmatpush.msra.mxu0 0.0
      %993 = vmatpush.msra.mxu0 0.0
      %994 = vmatpush.msra.mxu0 0.0
      %995 = vmatpush.msra.mxu0 0.0
      %996 = vmatpush.msra.mxu0 0.0
      %997 = vmatpush.msra.mxu0 0.0
      %998 = vmatpush.msra.mxu0 0.0
      %999 = vmatpush.msra.mxu0 0.0
      %1000 = vmatpush.msra.mxu0 0.0
      %1001 = vmatpush.msra.mxu0 %v984
      %1002 = vmatmul.f32.gmra.mxu0 %v876
      %v1003 = vpop.f32.mrf.mxu0
      %v1004 = vadd.f32 0.0, %v1003
      %1005 = vmatmul.f32.gmra.mxu0 %v879
      %v1006 = vpop.f32.mrf.mxu0
      %v1007 = vadd.f32 0.0, %v1006
      %1008 = vmatmul.f32.gmra.mxu0 %v882
      %v1009 = vpop.f32.mrf.mxu0
      %v1010 = vadd.f32 0.0, %v1009
      %1011 = vmatmul.f32.gmra.mxu0 %v885
      %v1012 = vpop.f32.mrf.mxu0
      %v1013 = vadd.f32 0.0, %v1012
      %1014 = vmatmul.f32.gmra.mxu0 %v888
      %v1015 = vpop.f32.mrf.mxu0
      %v1016 = vadd.f32 0.0, %v1015
      %1017 = vmatmul.f32.gmra.mxu0 %v891
      %v1018 = vpop.f32.mrf.mxu0
      %v1019 = vadd.f32 0.0, %v1018
      %1020 = vmatmul.f32.gmra.mxu0 %v894
      %v1021 = vpop.f32.mrf.mxu0
      %v1022 = vadd.f32 0.0, %v1021
      %1023 = vmatmul.f32.gmra.mxu0 %v897
      %v1024 = vpop.f32.mrf.mxu0
      %v1025 = vadd.f32 0.0, %v1024
      %1026 = vmatmul.f32.gmra.mxu0 %v900
      %v1027 = vpop.f32.mrf.mxu0
      %v1028 = vadd.f32 0.0, %v1027
      %1029 = vmatmul.f32.gmra.mxu0 %v903
      %v1030 = vpop.f32.mrf.mxu0
      %v1031 = vadd.f32 0.0, %v1030
      %1032 = vmatmul.f32.gmra.mxu0 %v906
      %v1033 = vpop.f32.mrf.mxu0
      %v1034 = vadd.f32 0.0, %v1033
      %1035 = vmatmul.f32.gmra.mxu0 %v909
      %v1036 = vpop.f32.mrf.mxu0
      %v1037 = vadd.f32 0.0, %v1036
      %1038 = vmatmul.f32.gmra.mxu0 %v912
      %v1039 = vpop.f32.mrf.mxu0
      %v1040 = vadd.f32 0.0, %v1039
      %1041 = vmatmul.f32.gmra.mxu0 %v915
      %v1042 = vpop.f32.mrf.mxu0
      %v1043 = vadd.f32 0.0, %v1042
      %1044 = vmatmul.f32.gmra.mxu0 %v918
      %v1045 = vpop.f32.mrf.mxu0
      %v1046 = vadd.f32 0.0, %v1045
      %1047 = vmatmul.f32.gmra.mxu0 %v921
      %v1048 = vpop.f32.mrf.mxu0
      %v1049 = vadd.f32 0.0, %v1048
      %1050 = vmatmul.f32.gmra.mxu0 %v924
      %v1051 = vpop.f32.mrf.mxu0
      %v1052 = vadd.f32 0.0, %v1051
      %1053 = vmatmul.f32.gmra.mxu0 %v927
      %v1054 = vpop.f32.mrf.mxu0
      %v1055 = vadd.f32 0.0, %v1054
      %1056 = vmatmul.f32.gmra.mxu0 %v930
      %v1057 = vpop.f32.mrf.mxu0
      %v1058 = vadd.f32 0.0, %v1057
      %1059 = vmatmul.f32.gmra.mxu0 %v933
      %v1060 = vpop.f32.mrf.mxu0
      %v1061 = vadd.f32 0.0, %v1060
      %1062 = vmatmul.f32.gmra.mxu0 %v936
      %v1063 = vpop.f32.mrf.mxu0
      %v1064 = vadd.f32 0.0, %v1063
      %1065 = vmatmul.f32.gmra.mxu0 %v939
      %v1066 = vpop.f32.mrf.mxu0
      %v1067 = vadd.f32 0.0, %v1066
      %1068 = vmatmul.f32.gmra.mxu0 %v942
      %v1069 = vpop.f32.mrf.mxu0
      %v1070 = vadd.f32 0.0, %v1069
      %1071 = vmatmul.f32.gmra.mxu0 %v945
      %v1072 = vpop.f32.mrf.mxu0
      %v1073 = vadd.f32 0.0, %v1072
      %1074 = vmatmul.f32.gmra.mxu0 %v948
      %v1075 = vpop.f32.mrf.mxu0
      %v1076 = vadd.f32 0.0, %v1075
      %1077 = vmatmul.f32.gmra.mxu0 %v951
      %v1078 = vpop.f32.mrf.mxu0
      %v1079 = vadd.f32 0.0, %v1078
      %1080 = vmatmul.f32.gmra.mxu0 %v954
      %v1081 = vpop.f32.mrf.mxu0
      %v1082 = vadd.f32 0.0, %v1081
      %1083 = vmatmul.f32.gmra.mxu0 %v957
      %v1084 = vpop.f32.mrf.mxu0
      %v1085 = vadd.f32 0.0, %v1084
      %1086 = vmatmul.f32.gmra.mxu0 %v960
      %v1087 = vpop.f32.mrf.mxu0
      %v1088 = vadd.f32 0.0, %v1087
      %1089 = vmatmul.f32.gmra.mxu0 %v963
      %v1090 = vpop.f32.mrf.mxu0
      %v1091 = vadd.f32 0.0, %v1090
      %1092 = vmatmul.f32.gmra.mxu0 %v966
      %v1093 = vpop.f32.mrf.mxu0
      %v1094 = vadd.f32 0.0, %v1093
      %1095 = vmatmul.f32.gmra.mxu0 %v969
      %v1096 = vpop.f32.mrf.mxu0
      %v1097 = vadd.f32 0.0, %v1096
      %1098 = vmatmul.f32.gmra.mxu0 %v972
      %v1099 = vpop.f32.mrf.mxu0
      %v1100 = vadd.f32 0.0, %v1099
      %1101 = vmatmul.f32.gmra.mxu0 %v975
      %v1102 = vpop.f32.mrf.mxu0
      %v1103 = vadd.f32 0.0, %v1102
      %1104 = vmatmul.f32.gmra.mxu0 %v978
      %v1105 = vpop.f32.mrf.mxu0
      %v1106 = vadd.f32 0.0, %v1105
      %1107 = vmatmul.f32.gmra.mxu0 %v981
      %v1108 = vpop.f32.mrf.mxu0
      %v1109 = vadd.f32 0.0, %v1108
      %1110 = vdwg.mxu0
      %v1111 = vadd.f32 %v730, %v1004
      %v1112 = vadd.f32 %v733, %v1007
      %v1113 = vadd.f32 %v736, %v1010
      %v1114 = vadd.f32 %v739, %v1013
      %v1115 = vadd.f32 %v742, %v1016
      %v1116 = vadd.f32 %v745, %v1019
      %v1117 = vadd.f32 %v748, %v1022
      %v1118 = vadd.f32 %v751, %v1025
      %v1119 = vadd.f32 %v754, %v1028
      %v1120 = vadd.f32 %v757, %v1031
      %v1121 = vadd.f32 %v760, %v1034
      %v1122 = vadd.f32 %v763, %v1037
      %v1123 = vadd.f32 %v766, %v1040
      %v1124 = vadd.f32 %v769, %v1043
      %v1125 = vadd.f32 %v772, %v1046
      %v1126 = vadd.f32 %v775, %v1049
      %v1127 = vadd.f32 %v778, %v1052
      %v1128 = vadd.f32 %v781, %v1055
      %v1129 = vadd.f32 %v784, %v1058
      %v1130 = vadd.f32 %v787, %v1061
      %v1131 = vadd.f32 %v790, %v1064
      %v1132 = vadd.f32 %v793, %v1067
      %v1133 = vadd.f32 %v796, %v1070
      %v1134 = vadd.f32 %v799, %v1073
      %v1135 = vadd.f32 %v802, %v1076
      %v1136 = vadd.f32 %v805, %v1079
      %v1137 = vadd.f32 %v808, %v1082
      %v1138 = vadd.f32 %v811, %v1085
      %v1139 = vadd.f32 %v814, %v1088
      %v1140 = vadd.f32 %v817, %v1091
      %v1141 = vadd.f32 %v820, %v1094
      %v1142 = vadd.f32 %v823, %v1097
      %v1143 = vadd.f32 %v826, %v1100
      %v1144 = vadd.f32 %v829, %v1103
      %v1145 = vadd.f32 %v832, %v1106
      %v1146 = vadd.f32 %v835, %v1109
      %v1147 = vld [vmem:[%s246 + $0x24] sm:$0xff]
      %v1148 = vld [vmem:[%s246 + $0x2c] sm:$0xff]
      %v1149 = vld [vmem:[%s246 + $0x34] sm:$0xff]
      %v1150 = vld [vmem:[%s246 + $0x3c] sm:$0xff]
      %v1151 = vld [vmem:[%s246 + $0x44] sm:$0xff]
      %v1152 = vld [vmem:[%s246 + $0x4c] sm:$0xff]
      %v1153 = vld [vmem:[%s246 + $0x54] sm:$0xff]
      %v1154 = vld [vmem:[%s246 + $0x5c] sm:$0xff]
      %v1155 = vld [vmem:[%s246 + $0x64] sm:$0xff]
      %v1156 = vld [vmem:[%s246 + $0x6c] sm:$0xff]
      %v1157 = vld [vmem:[%s246 + $0x74] sm:$0xff]
      %v1158 = vld [vmem:[%s246 + $0x7c] sm:$0xff]
      %v1159 = vld [vmem:[%s246 + $0x84] sm:$0xff]
      %v1160 = vld [vmem:[%s246 + $0x8c] sm:$0xff]
      %v1161 = vld [vmem:[%s246 + $0x94] sm:$0xff]
      %v1162 = vld [vmem:[%s246 + $0x9c] sm:$0xff]
      %v1163 = vld [vmem:[%s246 + $0xa4] sm:$0xff]
      %v1164 = vld [vmem:[%s246 + $0xac] sm:$0xff]
      %v1165 = vld [vmem:[%s246 + $0xb4] sm:$0xff]
      %v1166 = vld [vmem:[%s246 + $0xbc] sm:$0xff]
      %v1167 = vld [vmem:[%s246 + $0xc4] sm:$0xff]
      %v1168 = vld [vmem:[%s246 + $0xcc] sm:$0xff]
      %v1169 = vld [vmem:[%s246 + $0xd4] sm:$0xff]
      %v1170 = vld [vmem:[%s246 + $0xdc] sm:$0xff]
      %v1171 = vld [vmem:[%s246 + $0xe4] sm:$0xff]
      %v1172 = vld [vmem:[%s246 + $0xec] sm:$0xff]
      %v1173 = vld [vmem:[%s246 + $0xf4] sm:$0xff]
      %v1174 = vld [vmem:[%s246 + $0xfc] sm:$0xff]
      %v1175 = vld [vmem:[%s246 + $0x104] sm:$0xff]
      %v1176 = vld [vmem:[%s246 + $0x10c] sm:$0xff]
      %v1177 = vld [vmem:[%s246 + $0x114] sm:$0xff]
      %v1178 = vld [vmem:[%s246 + $0x11c] sm:$0xff]
      %v1179 = vld [vmem:[%s246 + $0x124] sm:$0xff]
      %v1180 = vld [vmem:[%s246 + $0x12c] sm:$0xff]
      %v1181 = vld [vmem:[%s246 + $0x134] sm:$0xff]
      %v1182 = vld [vmem:[%s246 + $0x13c] sm:$0xff]
      %s1183 = scalar_lea.vmem %s2, 24
      %v1184 = vld [vmem:[%s1183] sm:$0x3f]
      %v1186 = vsel %vm363, %v1147, 0
      %v1189 = vsel %vm363, %v1148, 0
      %v1192 = vsel %vm363, %v1149, 0
      %v1195 = vsel %vm363, %v1150, 0
      %v1198 = vsel %vm363, %v1151, 0
      %v1201 = vsel %vm363, %v1152, 0
      %v1204 = vsel %vm363, %v1153, 0
      %v1207 = vsel %vm363, %v1154, 0
      %v1210 = vsel %vm363, %v1155, 0
      %v1213 = vsel %vm363, %v1156, 0
      %v1216 = vsel %vm363, %v1157, 0
      %v1219 = vsel %vm363, %v1158, 0
      %v1222 = vsel %vm363, %v1159, 0
      %v1225 = vsel %vm363, %v1160, 0
      %v1228 = vsel %vm363, %v1161, 0
      %v1231 = vsel %vm363, %v1162, 0
      %v1234 = vsel %vm363, %v1163, 0
      %v1237 = vsel %vm363, %v1164, 0
      %v1240 = vsel %vm363, %v1165, 0
      %v1243 = vsel %vm363, %v1166, 0
      %v1246 = vsel %vm363, %v1167, 0
      %v1249 = vsel %vm363, %v1168, 0
      %v1252 = vsel %vm363, %v1169, 0
      %v1255 = vsel %vm363, %v1170, 0
      %v1258 = vsel %vm363, %v1171, 0
      %v1261 = vsel %vm363, %v1172, 0
      %v1264 = vsel %vm363, %v1173, 0
      %v1267 = vsel %vm363, %v1174, 0
      %v1270 = vsel %vm363, %v1175, 0
      %v1273 = vsel %vm363, %v1176, 0
      %v1276 = vsel %vm363, %v1177, 0
      %v1279 = vsel %vm363, %v1178, 0
      %v1282 = vsel %vm363, %v1179, 0
      %v1285 = vsel %vm363, %v1180, 0
      %v1288 = vsel %vm363, %v1181, 0
      %v1291 = vsel %vm363, %v1182, 0
      %v1294 = vsel %vm472, %v1184, 0
      %1296 = vmatpush.msra.mxu0 0.0
      %1297 = vmatpush.msra.mxu0 0.0
      %1298 = vmatpush.msra.mxu0 0.0
      %1299 = vmatpush.msra.mxu0 0.0
      %1300 = vmatpush.msra.mxu0 0.0
      %1301 = vmatpush.msra.mxu0 0.0
      %1302 = vmatpush.msra.mxu0 0.0
      %1303 = vmatpush.msra.mxu0 0.0
      %1304 = vmatpush.msra.mxu0 0.0
      %1305 = vmatpush.msra.mxu0 0.0
      %1306 = vmatpush.msra.mxu0 0.0
      %1307 = vmatpush.msra.mxu0 0.0
      %1308 = vmatpush.msra.mxu0 0.0
      %1309 = vmatpush.msra.mxu0 0.0
      %1310 = vmatpush.msra.mxu0 0.0
      %1311 = vmatpush.msra.mxu0 %v1294
      %1312 = vmatmul.f32.gmra.mxu0 %v1186
      %v1313 = vpop.f32.mrf.mxu0
      %v1314 = vadd.f32 0.0, %v1313
      %1315 = vmatmul.f32.gmra.mxu0 %v1189
      %v1316 = vpop.f32.mrf.mxu0
      %v1317 = vadd.f32 0.0, %v1316
      %1318 = vmatmul.f32.gmra.mxu0 %v1192
      %v1319 = vpop.f32.mrf.mxu0
      %v1320 = vadd.f32 0.0, %v1319
      %1321 = vmatmul.f32.gmra.mxu0 %v1195
      %v1322 = vpop.f32.mrf.mxu0
      %v1323 = vadd.f32 0.0, %v1322
      %1324 = vmatmul.f32.gmra.mxu0 %v1198
      %v1325 = vpop.f32.mrf.mxu0
      %v1326 = vadd.f32 0.0, %v1325
      %1327 = vmatmul.f32.gmra.mxu0 %v1201
      %v1328 = vpop.f32.mrf.mxu0
      %v1329 = vadd.f32 0.0, %v1328
      %1330 = vmatmul.f32.gmra.mxu0 %v1204
      %v1331 = vpop.f32.mrf.mxu0
      %v1332 = vadd.f32 0.0, %v1331
      %1333 = vmatmul.f32.gmra.mxu0 %v1207
      %v1334 = vpop.f32.mrf.mxu0
      %v1335 = vadd.f32 0.0, %v1334
      %1336 = vmatmul.f32.gmra.mxu0 %v1210
      %v1337 = vpop.f32.mrf.mxu0
      %v1338 = vadd.f32 0.0, %v1337
      %1339 = vmatmul.f32.gmra.mxu0 %v1213
      %v1340 = vpop.f32.mrf.mxu0
      %v1341 = vadd.f32 0.0, %v1340
      %1342 = vmatmul.f32.gmra.mxu0 %v1216
      %v1343 = vpop.f32.mrf.mxu0
      %v1344 = vadd.f32 0.0, %v1343
      %1345 = vmatmul.f32.gmra.mxu0 %v1219
      %v1346 = vpop.f32.mrf.mxu0
      %v1347 = vadd.f32 0.0, %v1346
      %1348 = vmatmul.f32.gmra.mxu0 %v1222
      %v1349 = vpop.f32.mrf.mxu0
      %v1350 = vadd.f32 0.0, %v1349
      %1351 = vmatmul.f32.gmra.mxu0 %v1225
      %v1352 = vpop.f32.mrf.mxu0
      %v1353 = vadd.f32 0.0, %v1352
      %1354 = vmatmul.f32.gmra.mxu0 %v1228
      %v1355 = vpop.f32.mrf.mxu0
      %v1356 = vadd.f32 0.0, %v1355
      %1357 = vmatmul.f32.gmra.mxu0 %v1231
      %v1358 = vpop.f32.mrf.mxu0
      %v1359 = vadd.f32 0.0, %v1358
      %1360 = vmatmul.f32.gmra.mxu0 %v1234
      %v1361 = vpop.f32.mrf.mxu0
      %v1362 = vadd.f32 0.0, %v1361
      %1363 = vmatmul.f32.gmra.mxu0 %v1237
      %v1364 = vpop.f32.mrf.mxu0
      %v1365 = vadd.f32 0.0, %v1364
      %1366 = vmatmul.f32.gmra.mxu0 %v1240
      %v1367 = vpop.f32.mrf.mxu0
      %v1368 = vadd.f32 0.0, %v1367
      %1369 = vmatmul.f32.gmra.mxu0 %v1243
      %v1370 = vpop.f32.mrf.mxu0
      %v1371 = vadd.f32 0.0, %v1370
      %1372 = vmatmul.f32.gmra.mxu0 %v1246
      %v1373 = vpop.f32.mrf.mxu0
      %v1374 = vadd.f32 0.0, %v1373
      %1375 = vmatmul.f32.gmra.mxu0 %v1249
      %v1376 = vpop.f32.mrf.mxu0
      %v1377 = vadd.f32 0.0, %v1376
      %1378 = vmatmul.f32.gmra.mxu0 %v1252
      %v1379 = vpop.f32.mrf.mxu0
      %v1380 = vadd.f32 0.0, %v1379
      %1381 = vmatmul.f32.gmra.mxu0 %v1255
      %v1382 = vpop.f32.mrf.mxu0
      %v1383 = vadd.f32 0.0, %v1382
      %1384 = vmatmul.f32.gmra.mxu0 %v1258
      %v1385 = vpop.f32.mrf.mxu0
      %v1386 = vadd.f32 0.0, %v1385
      %1387 = vmatmul.f32.gmra.mxu0 %v1261
      %v1388 = vpop.f32.mrf.mxu0
      %v1389 = vadd.f32 0.0, %v1388
      %1390 = vmatmul.f32.gmra.mxu0 %v1264
      %v1391 = vpop.f32.mrf.mxu0
      %v1392 = vadd.f32 0.0, %v1391
      %1393 = vmatmul.f32.gmra.mxu0 %v1267
      %v1394 = vpop.f32.mrf.mxu0
      %v1395 = vadd.f32 0.0, %v1394
      %1396 = vmatmul.f32.gmra.mxu0 %v1270
      %v1397 = vpop.f32.mrf.mxu0
      %v1398 = vadd.f32 0.0, %v1397
      %1399 = vmatmul.f32.gmra.mxu0 %v1273
      %v1400 = vpop.f32.mrf.mxu0
      %v1401 = vadd.f32 0.0, %v1400
      %1402 = vmatmul.f32.gmra.mxu0 %v1276
      %v1403 = vpop.f32.mrf.mxu0
      %v1404 = vadd.f32 0.0, %v1403
      %1405 = vmatmul.f32.gmra.mxu0 %v1279
      %v1406 = vpop.f32.mrf.mxu0
      %v1407 = vadd.f32 0.0, %v1406
      %1408 = vmatmul.f32.gmra.mxu0 %v1282
      %v1409 = vpop.f32.mrf.mxu0
      %v1410 = vadd.f32 0.0, %v1409
      %1411 = vmatmul.f32.gmra.mxu0 %v1285
      %v1412 = vpop.f32.mrf.mxu0
      %v1413 = vadd.f32 0.0, %v1412
      %1414 = vmatmul.f32.gmra.mxu0 %v1288
      %v1415 = vpop.f32.mrf.mxu0
      %v1416 = vadd.f32 0.0, %v1415
      %1417 = vmatmul.f32.gmra.mxu0 %v1291
      %v1418 = vpop.f32.mrf.mxu0
      %v1419 = vadd.f32 0.0, %v1418
      %1420 = vdwg.mxu0
      %v1421 = vadd.f32 %v1111, %v1314
      %v1422 = vadd.f32 %v1112, %v1317
      %v1423 = vadd.f32 %v1113, %v1320
      %v1424 = vadd.f32 %v1114, %v1323
      %v1425 = vadd.f32 %v1115, %v1326
      %v1426 = vadd.f32 %v1116, %v1329
      %v1427 = vadd.f32 %v1117, %v1332
      %v1428 = vadd.f32 %v1118, %v1335
      %v1429 = vadd.f32 %v1119, %v1338
      %v1430 = vadd.f32 %v1120, %v1341
      %v1431 = vadd.f32 %v1121, %v1344
      %v1432 = vadd.f32 %v1122, %v1347
      %v1433 = vadd.f32 %v1123, %v1350
      %v1434 = vadd.f32 %v1124, %v1353
      %v1435 = vadd.f32 %v1125, %v1356
      %v1436 = vadd.f32 %v1126, %v1359
      %v1437 = vadd.f32 %v1127, %v1362
      %v1438 = vadd.f32 %v1128, %v1365
      %v1439 = vadd.f32 %v1129, %v1368
      %v1440 = vadd.f32 %v1130, %v1371
      %v1441 = vadd.f32 %v1131, %v1374
      %v1442 = vadd.f32 %v1132, %v1377
      %v1443 = vadd.f32 %v1133, %v1380
      %v1444 = vadd.f32 %v1134, %v1383
      %v1445 = vadd.f32 %v1135, %v1386
      %v1446 = vadd.f32 %v1136, %v1389
      %v1447 = vadd.f32 %v1137, %v1392
      %v1448 = vadd.f32 %v1138, %v1395
      %v1449 = vadd.f32 %v1139, %v1398
      %v1450 = vadd.f32 %v1140, %v1401
      %v1451 = vadd.f32 %v1141, %v1404
      %v1452 = vadd.f32 %v1142, %v1407
      %v1453 = vadd.f32 %v1143, %v1410
      %v1454 = vadd.f32 %v1144, %v1413
      %v1455 = vadd.f32 %v1145, %v1416
      %v1456 = vadd.f32 %v1146, %v1419
      %v1457 = vld [vmem:[%s246 + $0x25] sm:$0xff]
      %v1458 = vld [vmem:[%s246 + $0x2d] sm:$0xff]
      %v1459 = vld [vmem:[%s246 + $0x35] sm:$0xff]
      %v1460 = vld [vmem:[%s246 + $0x3d] sm:$0xff]
      %v1461 = vld [vmem:[%s246 + $0x45] sm:$0xff]
      %v1462 = vld [vmem:[%s246 + $0x4d] sm:$0xff]
      %v1463 = vld [vmem:[%s246 + $0x55] sm:$0xff]
      %v1464 = vld [vmem:[%s246 + $0x5d] sm:$0xff]
      %v1465 = vld [vmem:[%s246 + $0x65] sm:$0xff]
      %v1466 = vld [vmem:[%s246 + $0x6d] sm:$0xff]
      %v1467 = vld [vmem:[%s246 + $0x75] sm:$0xff]
      %v1468 = vld [vmem:[%s246 + $0x7d] sm:$0xff]
      %v1469 = vld [vmem:[%s246 + $0x85] sm:$0xff]
      %v1470 = vld [vmem:[%s246 + $0x8d] sm:$0xff]
      %v1471 = vld [vmem:[%s246 + $0x95] sm:$0xff]
      %v1472 = vld [vmem:[%s246 + $0x9d] sm:$0xff]
      %v1473 = vld [vmem:[%s246 + $0xa5] sm:$0xff]
      %v1474 = vld [vmem:[%s246 + $0xad] sm:$0xff]
      %v1475 = vld [vmem:[%s246 + $0xb5] sm:$0xff]
      %v1476 = vld [vmem:[%s246 + $0xbd] sm:$0xff]
      %v1477 = vld [vmem:[%s246 + $0xc5] sm:$0xff]
      %v1478 = vld [vmem:[%s246 + $0xcd] sm:$0xff]
      %v1479 = vld [vmem:[%s246 + $0xd5] sm:$0xff]
      %v1480 = vld [vmem:[%s246 + $0xdd] sm:$0xff]
      %v1481 = vld [vmem:[%s246 + $0xe5] sm:$0xff]
      %v1482 = vld [vmem:[%s246 + $0xed] sm:$0xff]
      %v1483 = vld [vmem:[%s246 + $0xf5] sm:$0xff]
      %v1484 = vld [vmem:[%s246 + $0xfd] sm:$0xff]
      %v1485 = vld [vmem:[%s246 + $0x105] sm:$0xff]
      %v1486 = vld [vmem:[%s246 + $0x10d] sm:$0xff]
      %v1487 = vld [vmem:[%s246 + $0x115] sm:$0xff]
      %v1488 = vld [vmem:[%s246 + $0x11d] sm:$0xff]
      %v1489 = vld [vmem:[%s246 + $0x125] sm:$0xff]
      %v1490 = vld [vmem:[%s246 + $0x12d] sm:$0xff]
      %v1491 = vld [vmem:[%s246 + $0x135] sm:$0xff]
      %v1492 = vld [vmem:[%s246 + $0x13d] sm:$0xff]
      %s1493 = scalar_lea.vmem %s2, 32
      %v1494 = vld [vmem:[%s1493] sm:$0x3f]
      %v1496 = vsel %vm363, %v1457, 0
      %v1499 = vsel %vm363, %v1458, 0
      %v1502 = vsel %vm363, %v1459, 0
      %v1505 = vsel %vm363, %v1460, 0
      %v1508 = vsel %vm363, %v1461, 0
      %v1511 = vsel %vm363, %v1462, 0
      %v1514 = vsel %vm363, %v1463, 0
      %v1517 = vsel %vm363, %v1464, 0
      %v1520 = vsel %vm363, %v1465, 0
      %v1523 = vsel %vm363, %v1466, 0
      %v1526 = vsel %vm363, %v1467, 0
      %v1529 = vsel %vm363, %v1468, 0
      %v1532 = vsel %vm363, %v1469, 0
      %v1535 = vsel %vm363, %v1470, 0
      %v1538 = vsel %vm363, %v1471, 0
      %v1541 = vsel %vm363, %v1472, 0
      %v1544 = vsel %vm363, %v1473, 0
      %v1547 = vsel %vm363, %v1474, 0
      %v1550 = vsel %vm363, %v1475, 0
      %v1553 = vsel %vm363, %v1476, 0
      %v1556 = vsel %vm363, %v1477, 0
      %v1559 = vsel %vm363, %v1478, 0
      %v1562 = vsel %vm363, %v1479, 0
      %v1565 = vsel %vm363, %v1480, 0
      %v1568 = vsel %vm363, %v1481, 0
      %v1571 = vsel %vm363, %v1482, 0
      %v1574 = vsel %vm363, %v1483, 0
      %v1577 = vsel %vm363, %v1484, 0
      %v1580 = vsel %vm363, %v1485, 0
      %v1583 = vsel %vm363, %v1486, 0
      %v1586 = vsel %vm363, %v1487, 0
      %v1589 = vsel %vm363, %v1488, 0
      %v1592 = vsel %vm363, %v1489, 0
      %v1595 = vsel %vm363, %v1490, 0
      %v1598 = vsel %vm363, %v1491, 0
      %v1601 = vsel %vm363, %v1492, 0
      %v1604 = vsel %vm472, %v1494, 0
      %1606 = vmatpush.msra.mxu0 0.0
      %1607 = vmatpush.msra.mxu0 0.0
      %1608 = vmatpush.msra.mxu0 0.0
      %1609 = vmatpush.msra.mxu0 0.0
      %1610 = vmatpush.msra.mxu0 0.0
      %1611 = vmatpush.msra.mxu0 0.0
      %1612 = vmatpush.msra.mxu0 0.0
      %1613 = vmatpush.msra.mxu0 0.0
      %1614 = vmatpush.msra.mxu0 0.0
      %1615 = vmatpush.msra.mxu0 0.0
      %1616 = vmatpush.msra.mxu0 0.0
      %1617 = vmatpush.msra.mxu0 0.0
      %1618 = vmatpush.msra.mxu0 0.0
      %1619 = vmatpush.msra.mxu0 0.0
      %1620 = vmatpush.msra.mxu0 0.0
      %1621 = vmatpush.msra.mxu0 %v1604
      %1622 = vmatmul.f32.gmra.mxu0 %v1496
      %v1623 = vpop.f32.mrf.mxu0
      %v1624 = vadd.f32 0.0, %v1623
      %1625 = vmatmul.f32.gmra.mxu0 %v1499
      %v1626 = vpop.f32.mrf.mxu0
      %v1627 = vadd.f32 0.0, %v1626
      %1628 = vmatmul.f32.gmra.mxu0 %v1502
      %v1629 = vpop.f32.mrf.mxu0
      %v1630 = vadd.f32 0.0, %v1629
      %1631 = vmatmul.f32.gmra.mxu0 %v1505
      %v1632 = vpop.f32.mrf.mxu0
      %v1633 = vadd.f32 0.0, %v1632
      %1634 = vmatmul.f32.gmra.mxu0 %v1508
      %v1635 = vpop.f32.mrf.mxu0
      %v1636 = vadd.f32 0.0, %v1635
      %1637 = vmatmul.f32.gmra.mxu0 %v1511
      %v1638 = vpop.f32.mrf.mxu0
      %v1639 = vadd.f32 0.0, %v1638
      %1640 = vmatmul.f32.gmra.mxu0 %v1514
      %v1641 = vpop.f32.mrf.mxu0
      %v1642 = vadd.f32 0.0, %v1641
      %1643 = vmatmul.f32.gmra.mxu0 %v1517
      %v1644 = vpop.f32.mrf.mxu0
      %v1645 = vadd.f32 0.0, %v1644
      %1646 = vmatmul.f32.gmra.mxu0 %v1520
      %v1647 = vpop.f32.mrf.mxu0
      %v1648 = vadd.f32 0.0, %v1647
      %1649 = vmatmul.f32.gmra.mxu0 %v1523
      %v1650 = vpop.f32.mrf.mxu0
      %v1651 = vadd.f32 0.0, %v1650
      %1652 = vmatmul.f32.gmra.mxu0 %v1526
      %v1653 = vpop.f32.mrf.mxu0
      %v1654 = vadd.f32 0.0, %v1653
      %1655 = vmatmul.f32.gmra.mxu0 %v1529
      %v1656 = vpop.f32.mrf.mxu0
      %v1657 = vadd.f32 0.0, %v1656
      %1658 = vmatmul.f32.gmra.mxu0 %v1532
      %v1659 = vpop.f32.mrf.mxu0
      %v1660 = vadd.f32 0.0, %v1659
      %1661 = vmatmul.f32.gmra.mxu0 %v1535
      %v1662 = vpop.f32.mrf.mxu0
      %v1663 = vadd.f32 0.0, %v1662
      %1664 = vmatmul.f32.gmra.mxu0 %v1538
      %v1665 = vpop.f32.mrf.mxu0
      %v1666 = vadd.f32 0.0, %v1665
      %1667 = vmatmul.f32.gmra.mxu0 %v1541
      %v1668 = vpop.f32.mrf.mxu0
      %v1669 = vadd.f32 0.0, %v1668
      %1670 = vmatmul.f32.gmra.mxu0 %v1544
      %v1671 = vpop.f32.mrf.mxu0
      %v1672 = vadd.f32 0.0, %v1671
      %1673 = vmatmul.f32.gmra.mxu0 %v1547
      %v1674 = vpop.f32.mrf.mxu0
      %v1675 = vadd.f32 0.0, %v1674
      %1676 = vmatmul.f32.gmra.mxu0 %v1550
      %v1677 = vpop.f32.mrf.mxu0
      %v1678 = vadd.f32 0.0, %v1677
      %1679 = vmatmul.f32.gmra.mxu0 %v1553
      %v1680 = vpop.f32.mrf.mxu0
      %v1681 = vadd.f32 0.0, %v1680
      %1682 = vmatmul.f32.gmra.mxu0 %v1556
      %v1683 = vpop.f32.mrf.mxu0
      %v1684 = vadd.f32 0.0, %v1683
      %1685 = vmatmul.f32.gmra.mxu0 %v1559
      %v1686 = vpop.f32.mrf.mxu0
      %v1687 = vadd.f32 0.0, %v1686
      %1688 = vmatmul.f32.gmra.mxu0 %v1562
      %v1689 = vpop.f32.mrf.mxu0
      %v1690 = vadd.f32 0.0, %v1689
      %1691 = vmatmul.f32.gmra.mxu0 %v1565
      %v1692 = vpop.f32.mrf.mxu0
      %v1693 = vadd.f32 0.0, %v1692
      %1694 = vmatmul.f32.gmra.mxu0 %v1568
      %v1695 = vpop.f32.mrf.mxu0
      %v1696 = vadd.f32 0.0, %v1695
      %1697 = vmatmul.f32.gmra.mxu0 %v1571
      %v1698 = vpop.f32.mrf.mxu0
      %v1699 = vadd.f32 0.0, %v1698
      %1700 = vmatmul.f32.gmra.mxu0 %v1574
      %v1701 = vpop.f32.mrf.mxu0
      %v1702 = vadd.f32 0.0, %v1701
      %1703 = vmatmul.f32.gmra.mxu0 %v1577
      %v1704 = vpop.f32.mrf.mxu0
      %v1705 = vadd.f32 0.0, %v1704
      %1706 = vmatmul.f32.gmra.mxu0 %v1580
      %v1707 = vpop.f32.mrf.mxu0
      %v1708 = vadd.f32 0.0, %v1707
      %1709 = vmatmul.f32.gmra.mxu0 %v1583
      %v1710 = vpop.f32.mrf.mxu0
      %v1711 = vadd.f32 0.0, %v1710
      %1712 = vmatmul.f32.gmra.mxu0 %v1586
      %v1713 = vpop.f32.mrf.mxu0
      %v1714 = vadd.f32 0.0, %v1713
      %1715 = vmatmul.f32.gmra.mxu0 %v1589
      %v1716 = vpop.f32.mrf.mxu0
      %v1717 = vadd.f32 0.0, %v1716
      %1718 = vmatmul.f32.gmra.mxu0 %v1592
      %v1719 = vpop.f32.mrf.mxu0
      %v1720 = vadd.f32 0.0, %v1719
      %1721 = vmatmul.f32.gmra.mxu0 %v1595
      %v1722 = vpop.f32.mrf.mxu0
      %v1723 = vadd.f32 0.0, %v1722
      %1724 = vmatmul.f32.gmra.mxu0 %v1598
      %v1725 = vpop.f32.mrf.mxu0
      %v1726 = vadd.f32 0.0, %v1725
      %1727 = vmatmul.f32.gmra.mxu0 %v1601
      %v1728 = vpop.f32.mrf.mxu0
      %v1729 = vadd.f32 0.0, %v1728
      %1730 = vdwg.mxu0
      %v1731 = vadd.f32 %v1421, %v1624
      %v1732 = vadd.f32 %v1422, %v1627
      %v1733 = vadd.f32 %v1423, %v1630
      %v1734 = vadd.f32 %v1424, %v1633
      %v1735 = vadd.f32 %v1425, %v1636
      %v1736 = vadd.f32 %v1426, %v1639
      %v1737 = vadd.f32 %v1427, %v1642
      %v1738 = vadd.f32 %v1428, %v1645
      %v1739 = vadd.f32 %v1429, %v1648
      %v1740 = vadd.f32 %v1430, %v1651
      %v1741 = vadd.f32 %v1431, %v1654
      %v1742 = vadd.f32 %v1432, %v1657
      %v1743 = vadd.f32 %v1433, %v1660
      %v1744 = vadd.f32 %v1434, %v1663
      %v1745 = vadd.f32 %v1435, %v1666
      %v1746 = vadd.f32 %v1436, %v1669
      %v1747 = vadd.f32 %v1437, %v1672
      %v1748 = vadd.f32 %v1438, %v1675
      %v1749 = vadd.f32 %v1439, %v1678
      %v1750 = vadd.f32 %v1440, %v1681
      %v1751 = vadd.f32 %v1441, %v1684
      %v1752 = vadd.f32 %v1442, %v1687
      %v1753 = vadd.f32 %v1443, %v1690
      %v1754 = vadd.f32 %v1444, %v1693
      %v1755 = vadd.f32 %v1445, %v1696
      %v1756 = vadd.f32 %v1446, %v1699
      %v1757 = vadd.f32 %v1447, %v1702
      %v1758 = vadd.f32 %v1448, %v1705
      %v1759 = vadd.f32 %v1449, %v1708
      %v1760 = vadd.f32 %v1450, %v1711
      %v1761 = vadd.f32 %v1451, %v1714
      %v1762 = vadd.f32 %v1452, %v1717
      %v1763 = vadd.f32 %v1453, %v1720
      %v1764 = vadd.f32 %v1454, %v1723
      %v1765 = vadd.f32 %v1455, %v1726
      %v1766 = vadd.f32 %v1456, %v1729
      %v1767 = vld [vmem:[%s246 + $0x26] sm:$0xff]
      %v1768 = vld [vmem:[%s246 + $0x2e] sm:$0xff]
      %v1769 = vld [vmem:[%s246 + $0x36] sm:$0xff]
      %v1770 = vld [vmem:[%s246 + $0x3e] sm:$0xff]
      %v1771 = vld [vmem:[%s246 + $0x46] sm:$0xff]
      %v1772 = vld [vmem:[%s246 + $0x4e] sm:$0xff]
      %v1773 = vld [vmem:[%s246 + $0x56] sm:$0xff]
      %v1774 = vld [vmem:[%s246 + $0x5e] sm:$0xff]
      %v1775 = vld [vmem:[%s246 + $0x66] sm:$0xff]
      %v1776 = vld [vmem:[%s246 + $0x6e] sm:$0xff]
      %v1777 = vld [vmem:[%s246 + $0x76] sm:$0xff]
      %v1778 = vld [vmem:[%s246 + $0x7e] sm:$0xff]
      %v1779 = vld [vmem:[%s246 + $0x86] sm:$0xff]
      %v1780 = vld [vmem:[%s246 + $0x8e] sm:$0xff]
      %v1781 = vld [vmem:[%s246 + $0x96] sm:$0xff]
      %v1782 = vld [vmem:[%s246 + $0x9e] sm:$0xff]
      %v1783 = vld [vmem:[%s246 + $0xa6] sm:$0xff]
      %v1784 = vld [vmem:[%s246 + $0xae] sm:$0xff]
      %v1785 = vld [vmem:[%s246 + $0xb6] sm:$0xff]
      %v1786 = vld [vmem:[%s246 + $0xbe] sm:$0xff]
      %v1787 = vld [vmem:[%s246 + $0xc6] sm:$0xff]
      %v1788 = vld [vmem:[%s246 + $0xce] sm:$0xff]
      %v1789 = vld [vmem:[%s246 + $0xd6] sm:$0xff]
      %v1790 = vld [vmem:[%s246 + $0xde] sm:$0xff]
      %v1791 = vld [vmem:[%s246 + $0xe6] sm:$0xff]
      %v1792 = vld [vmem:[%s246 + $0xee] sm:$0xff]
      %v1793 = vld [vmem:[%s246 + $0xf6] sm:$0xff]
      %v1794 = vld [vmem:[%s246 + $0xfe] sm:$0xff]
      %v1795 = vld [vmem:[%s246 + $0x106] sm:$0xff]
      %v1796 = vld [vmem:[%s246 + $0x10e] sm:$0xff]
      %v1797 = vld [vmem:[%s246 + $0x116] sm:$0xff]
      %v1798 = vld [vmem:[%s246 + $0x11e] sm:$0xff]
      %v1799 = vld [vmem:[%s246 + $0x126] sm:$0xff]
      %v1800 = vld [vmem:[%s246 + $0x12e] sm:$0xff]
      %v1801 = vld [vmem:[%s246 + $0x136] sm:$0xff]
      %v1802 = vld [vmem:[%s246 + $0x13e] sm:$0xff]
      %s1803 = scalar_lea.vmem %s2, 40
      %v1804 = vld [vmem:[%s1803] sm:$0x3f]
      %v1806 = vsel %vm363, %v1767, 0
      %v1809 = vsel %vm363, %v1768, 0
      %v1812 = vsel %vm363, %v1769, 0
      %v1815 = vsel %vm363, %v1770, 0
      %v1818 = vsel %vm363, %v1771, 0
      %v1821 = vsel %vm363, %v1772, 0
      %v1824 = vsel %vm363, %v1773, 0
      %v1827 = vsel %vm363, %v1774, 0
      %v1830 = vsel %vm363, %v1775, 0
      %v1833 = vsel %vm363, %v1776, 0
      %v1836 = vsel %vm363, %v1777, 0
      %v1839 = vsel %vm363, %v1778, 0
      %v1842 = vsel %vm363, %v1779, 0
      %v1845 = vsel %vm363, %v1780, 0
      %v1848 = vsel %vm363, %v1781, 0
      %v1851 = vsel %vm363, %v1782, 0
      %v1854 = vsel %vm363, %v1783, 0
      %v1857 = vsel %vm363, %v1784, 0
      %v1860 = vsel %vm363, %v1785, 0
      %v1863 = vsel %vm363, %v1786, 0
      %v1866 = vsel %vm363, %v1787, 0
      %v1869 = vsel %vm363, %v1788, 0
      %v1872 = vsel %vm363, %v1789, 0
      %v1875 = vsel %vm363, %v1790, 0
      %v1878 = vsel %vm363, %v1791, 0
      %v1881 = vsel %vm363, %v1792, 0
      %v1884 = vsel %vm363, %v1793, 0
      %v1887 = vsel %vm363, %v1794, 0
      %v1890 = vsel %vm363, %v1795, 0
      %v1893 = vsel %vm363, %v1796, 0
      %v1896 = vsel %vm363, %v1797, 0
      %v1899 = vsel %vm363, %v1798, 0
      %v1902 = vsel %vm363, %v1799, 0
      %v1905 = vsel %vm363, %v1800, 0
      %v1908 = vsel %vm363, %v1801, 0
      %v1911 = vsel %vm363, %v1802, 0
      %v1914 = vsel %vm472, %v1804, 0
      %1916 = vmatpush.msra.mxu0 0.0
      %1917 = vmatpush.msra.mxu0 0.0
      %1918 = vmatpush.msra.mxu0 0.0
      %1919 = vmatpush.msra.mxu0 0.0
      %1920 = vmatpush.msra.mxu0 0.0
      %1921 = vmatpush.msra.mxu0 0.0
      %1922 = vmatpush.msra.mxu0 0.0
      %1923 = vmatpush.msra.mxu0 0.0
      %1924 = vmatpush.msra.mxu0 0.0
      %1925 = vmatpush.msra.mxu0 0.0
      %1926 = vmatpush.msra.mxu0 0.0
      %1927 = vmatpush.msra.mxu0 0.0
      %1928 = vmatpush.msra.mxu0 0.0
      %1929 = vmatpush.msra.mxu0 0.0
      %1930 = vmatpush.msra.mxu0 0.0
      %1931 = vmatpush.msra.mxu0 %v1914
      %1932 = vmatmul.f32.gmra.mxu0 %v1806
      %v1933 = vpop.f32.mrf.mxu0
      %v1934 = vadd.f32 0.0, %v1933
      %1935 = vmatmul.f32.gmra.mxu0 %v1809
      %v1936 = vpop.f32.mrf.mxu0
      %v1937 = vadd.f32 0.0, %v1936
      %1938 = vmatmul.f32.gmra.mxu0 %v1812
      %v1939 = vpop.f32.mrf.mxu0
      %v1940 = vadd.f32 0.0, %v1939
      %1941 = vmatmul.f32.gmra.mxu0 %v1815
      %v1942 = vpop.f32.mrf.mxu0
      %v1943 = vadd.f32 0.0, %v1942
      %1944 = vmatmul.f32.gmra.mxu0 %v1818
      %v1945 = vpop.f32.mrf.mxu0
      %v1946 = vadd.f32 0.0, %v1945
      %1947 = vmatmul.f32.gmra.mxu0 %v1821
      %v1948 = vpop.f32.mrf.mxu0
      %v1949 = vadd.f32 0.0, %v1948
      %1950 = vmatmul.f32.gmra.mxu0 %v1824
      %v1951 = vpop.f32.mrf.mxu0
      %v1952 = vadd.f32 0.0, %v1951
      %1953 = vmatmul.f32.gmra.mxu0 %v1827
      %v1954 = vpop.f32.mrf.mxu0
      %v1955 = vadd.f32 0.0, %v1954
      %1956 = vmatmul.f32.gmra.mxu0 %v1830
      %v1957 = vpop.f32.mrf.mxu0
      %v1958 = vadd.f32 0.0, %v1957
      %1959 = vmatmul.f32.gmra.mxu0 %v1833
      %v1960 = vpop.f32.mrf.mxu0
      %v1961 = vadd.f32 0.0, %v1960
      %1962 = vmatmul.f32.gmra.mxu0 %v1836
      %v1963 = vpop.f32.mrf.mxu0
      %v1964 = vadd.f32 0.0, %v1963
      %1965 = vmatmul.f32.gmra.mxu0 %v1839
      %v1966 = vpop.f32.mrf.mxu0
      %v1967 = vadd.f32 0.0, %v1966
      %1968 = vmatmul.f32.gmra.mxu0 %v1842
      %v1969 = vpop.f32.mrf.mxu0
      %v1970 = vadd.f32 0.0, %v1969
      %1971 = vmatmul.f32.gmra.mxu0 %v1845
      %v1972 = vpop.f32.mrf.mxu0
      %v1973 = vadd.f32 0.0, %v1972
      %1974 = vmatmul.f32.gmra.mxu0 %v1848
      %v1975 = vpop.f32.mrf.mxu0
      %v1976 = vadd.f32 0.0, %v1975
      %1977 = vmatmul.f32.gmra.mxu0 %v1851
      %v1978 = vpop.f32.mrf.mxu0
      %v1979 = vadd.f32 0.0, %v1978
      %1980 = vmatmul.f32.gmra.mxu0 %v1854
      %v1981 = vpop.f32.mrf.mxu0
      %v1982 = vadd.f32 0.0, %v1981
      %1983 = vmatmul.f32.gmra.mxu0 %v1857
      %v1984 = vpop.f32.mrf.mxu0
      %v1985 = vadd.f32 0.0, %v1984
      %1986 = vmatmul.f32.gmra.mxu0 %v1860
      %v1987 = vpop.f32.mrf.mxu0
      %v1988 = vadd.f32 0.0, %v1987
      %1989 = vmatmul.f32.gmra.mxu0 %v1863
      %v1990 = vpop.f32.mrf.mxu0
      %v1991 = vadd.f32 0.0, %v1990
      %1992 = vmatmul.f32.gmra.mxu0 %v1866
      %v1993 = vpop.f32.mrf.mxu0
      %v1994 = vadd.f32 0.0, %v1993
      %1995 = vmatmul.f32.gmra.mxu0 %v1869
      %v1996 = vpop.f32.mrf.mxu0
      %v1997 = vadd.f32 0.0, %v1996
      %1998 = vmatmul.f32.gmra.mxu0 %v1872
      %v1999 = vpop.f32.mrf.mxu0
      %v2000 = vadd.f32 0.0, %v1999
      %2001 = vmatmul.f32.gmra.mxu0 %v1875
      %v2002 = vpop.f32.mrf.mxu0
      %v2003 = vadd.f32 0.0, %v2002
      %2004 = vmatmul.f32.gmra.mxu0 %v1878
      %v2005 = vpop.f32.mrf.mxu0
      %v2006 = vadd.f32 0.0, %v2005
      %2007 = vmatmul.f32.gmra.mxu0 %v1881
      %v2008 = vpop.f32.mrf.mxu0
      %v2009 = vadd.f32 0.0, %v2008
      %2010 = vmatmul.f32.gmra.mxu0 %v1884
      %v2011 = vpop.f32.mrf.mxu0
      %v2012 = vadd.f32 0.0, %v2011
      %2013 = vmatmul.f32.gmra.mxu0 %v1887
      %v2014 = vpop.f32.mrf.mxu0
      %v2015 = vadd.f32 0.0, %v2014
      %2016 = vmatmul.f32.gmra.mxu0 %v1890
      %v2017 = vpop.f32.mrf.mxu0
      %v2018 = vadd.f32 0.0, %v2017
      %2019 = vmatmul.f32.gmra.mxu0 %v1893
      %v2020 = vpop.f32.mrf.mxu0
      %v2021 = vadd.f32 0.0, %v2020
      %2022 = vmatmul.f32.gmra.mxu0 %v1896
      %v2023 = vpop.f32.mrf.mxu0
      %v2024 = vadd.f32 0.0, %v2023
      %2025 = vmatmul.f32.gmra.mxu0 %v1899
      %v2026 = vpop.f32.mrf.mxu0
      %v2027 = vadd.f32 0.0, %v2026
      %2028 = vmatmul.f32.gmra.mxu0 %v1902
      %v2029 = vpop.f32.mrf.mxu0
      %v2030 = vadd.f32 0.0, %v2029
      %2031 = vmatmul.f32.gmra.mxu0 %v1905
      %v2032 = vpop.f32.mrf.mxu0
      %v2033 = vadd.f32 0.0, %v2032
      %2034 = vmatmul.f32.gmra.mxu0 %v1908
      %v2035 = vpop.f32.mrf.mxu0
      %v2036 = vadd.f32 0.0, %v2035
      %2037 = vmatmul.f32.gmra.mxu0 %v1911
      %v2038 = vpop.f32.mrf.mxu0
      %v2039 = vadd.f32 0.0, %v2038
      %2040 = vdwg.mxu0
      %v2041 = vadd.f32 %v1731, %v1934
      %v2042 = vadd.f32 %v1732, %v1937
      %v2043 = vadd.f32 %v1733, %v1940
      %v2044 = vadd.f32 %v1734, %v1943
      %v2045 = vadd.f32 %v1735, %v1946
      %v2046 = vadd.f32 %v1736, %v1949
      %v2047 = vadd.f32 %v1737, %v1952
      %v2048 = vadd.f32 %v1738, %v1955
      %v2049 = vadd.f32 %v1739, %v1958
      %v2050 = vadd.f32 %v1740, %v1961
      %v2051 = vadd.f32 %v1741, %v1964
      %v2052 = vadd.f32 %v1742, %v1967
      %v2053 = vadd.f32 %v1743, %v1970
      %v2054 = vadd.f32 %v1744, %v1973
      %v2055 = vadd.f32 %v1745, %v1976
      %v2056 = vadd.f32 %v1746, %v1979
      %v2057 = vadd.f32 %v1747, %v1982
      %v2058 = vadd.f32 %v1748, %v1985
      %v2059 = vadd.f32 %v1749, %v1988
      %v2060 = vadd.f32 %v1750, %v1991
      %v2061 = vadd.f32 %v1751, %v1994
      %v2062 = vadd.f32 %v1752, %v1997
      %v2063 = vadd.f32 %v1753, %v2000
      %v2064 = vadd.f32 %v1754, %v2003
      %v2065 = vadd.f32 %v1755, %v2006
      %v2066 = vadd.f32 %v1756, %v2009
      %v2067 = vadd.f32 %v1757, %v2012
      %v2068 = vadd.f32 %v1758, %v2015
      %v2069 = vadd.f32 %v1759, %v2018
      %v2070 = vadd.f32 %v1760, %v2021
      %v2071 = vadd.f32 %v1761, %v2024
      %v2072 = vadd.f32 %v1762, %v2027
      %v2073 = vadd.f32 %v1763, %v2030
      %v2074 = vadd.f32 %v1764, %v2033
      %v2075 = vadd.f32 %v1765, %v2036
      %v2076 = vadd.f32 %v1766, %v2039
      %v2077 = vld [vmem:[%s246 + $0x36] sm:$0xff]
      %v2078 = vld [vmem:[%s246 + $0x3e] sm:$0xff]
      %v2079 = vld [vmem:[%s246 + $0x46] sm:$0xff]
      %v2080 = vld [vmem:[%s246 + $0x4e] sm:$0xff]
      %v2081 = vld [vmem:[%s246 + $0x56] sm:$0xff]
      %v2082 = vld [vmem:[%s246 + $0x5e] sm:$0xff]
      %v2083 = vld [vmem:[%s246 + $0x66] sm:$0xff]
      %v2084 = vld [vmem:[%s246 + $0x6e] sm:$0xff]
      %v2085 = vld [vmem:[%s246 + $0x76] sm:$0xff]
      %v2086 = vld [vmem:[%s246 + $0x7e] sm:$0xff]
      %v2087 = vld [vmem:[%s246 + $0x86] sm:$0xff]
      %v2088 = vld [vmem:[%s246 + $0x8e] sm:$0xff]
      %v2089 = vld [vmem:[%s246 + $0x96] sm:$0xff]
      %v2090 = vld [vmem:[%s246 + $0x9e] sm:$0xff]
      %v2091 = vld [vmem:[%s246 + $0xa6] sm:$0xff]
      %v2092 = vld [vmem:[%s246 + $0xae] sm:$0xff]
      %v2093 = vld [vmem:[%s246 + $0xb6] sm:$0xff]
      %v2094 = vld [vmem:[%s246 + $0xbe] sm:$0xff]
      %v2095 = vld [vmem:[%s246 + $0xc6] sm:$0xff]
      %v2096 = vld [vmem:[%s246 + $0xce] sm:$0xff]
      %v2097 = vld [vmem:[%s246 + $0xd6] sm:$0xff]
      %v2098 = vld [vmem:[%s246 + $0xde] sm:$0xff]
      %v2099 = vld [vmem:[%s246 + $0xe6] sm:$0xff]
      %v2100 = vld [vmem:[%s246 + $0xee] sm:$0xff]
      %v2101 = vld [vmem:[%s246 + $0xf6] sm:$0xff]
      %v2102 = vld [vmem:[%s246 + $0xfe] sm:$0xff]
      %v2103 = vld [vmem:[%s246 + $0x106] sm:$0xff]
      %v2104 = vld [vmem:[%s246 + $0x10e] sm:$0xff]
      %v2105 = vld [vmem:[%s246 + $0x116] sm:$0xff]
      %v2106 = vld [vmem:[%s246 + $0x11e] sm:$0xff]
      %v2107 = vld [vmem:[%s246 + $0x126] sm:$0xff]
      %v2108 = vld [vmem:[%s246 + $0x12e] sm:$0xff]
      %v2109 = vld [vmem:[%s246 + $0x136] sm:$0xff]
      %v2110 = vld [vmem:[%s246 + $0x13e] sm:$0xff]
      %v2111 = vld [vmem:[%s246 + $0x146] sm:$0xff]
      %v2112 = vld [vmem:[%s246 + $0x14e] sm:$0xff]
      %s2113 = scalar_lea.vmem %s2, 48
      %v2114 = vld [vmem:[%s2113] sm:$0x3f]
      %v2116 = vsel %vm363, %v2077, 0
      %v2119 = vsel %vm363, %v2078, 0
      %v2122 = vsel %vm363, %v2079, 0
      %v2125 = vsel %vm363, %v2080, 0
      %v2128 = vsel %vm363, %v2081, 0
      %v2131 = vsel %vm363, %v2082, 0
      %v2134 = vsel %vm363, %v2083, 0
      %v2137 = vsel %vm363, %v2084, 0
      %v2140 = vsel %vm363, %v2085, 0
      %v2143 = vsel %vm363, %v2086, 0
      %v2146 = vsel %vm363, %v2087, 0
      %v2149 = vsel %vm363, %v2088, 0
      %v2152 = vsel %vm363, %v2089, 0
      %v2155 = vsel %vm363, %v2090, 0
      %v2158 = vsel %vm363, %v2091, 0
      %v2161 = vsel %vm363, %v2092, 0
      %v2164 = vsel %vm363, %v2093, 0
      %v2167 = vsel %vm363, %v2094, 0
      %v2170 = vsel %vm363, %v2095, 0
      %v2173 = vsel %vm363, %v2096, 0
      %v2176 = vsel %vm363, %v2097, 0
      %v2179 = vsel %vm363, %v2098, 0
      %v2182 = vsel %vm363, %v2099, 0
      %v2185 = vsel %vm363, %v2100, 0
      %v2188 = vsel %vm363, %v2101, 0
      %v2191 = vsel %vm363, %v2102, 0
      %v2194 = vsel %vm363, %v2103, 0
      %v2197 = vsel %vm363, %v2104, 0
      %v2200 = vsel %vm363, %v2105, 0
      %v2203 = vsel %vm363, %v2106, 0
      %v2206 = vsel %vm363, %v2107, 0
      %v2209 = vsel %vm363, %v2108, 0
      %v2212 = vsel %vm363, %v2109, 0
      %v2215 = vsel %vm363, %v2110, 0
      %v2218 = vsel %vm363, %v2111, 0
      %v2221 = vsel %vm363, %v2112, 0
      %v2224 = vsel %vm472, %v2114, 0
      %2226 = vmatpush.msra.mxu0 0.0
      %2227 = vmatpush.msra.mxu0 0.0
      %2228 = vmatpush.msra.mxu0 0.0
      %2229 = vmatpush.msra.mxu0 0.0
      %2230 = vmatpush.msra.mxu0 0.0
      %2231 = vmatpush.msra.mxu0 0.0
      %2232 = vmatpush.msra.mxu0 0.0
      %2233 = vmatpush.msra.mxu0 0.0
      %2234 = vmatpush.msra.mxu0 0.0
      %2235 = vmatpush.msra.mxu0 0.0
      %2236 = vmatpush.msra.mxu0 0.0
      %2237 = vmatpush.msra.mxu0 0.0
      %2238 = vmatpush.msra.mxu0 0.0
      %2239 = vmatpush.msra.mxu0 0.0
      %2240 = vmatpush.msra.mxu0 0.0
      %2241 = vmatpush.msra.mxu0 %v2224
      %2242 = vmatmul.f32.gmra.mxu0 %v2116
      %v2243 = vpop.f32.mrf.mxu0
      %v2244 = vadd.f32 0.0, %v2243
      %2245 = vmatmul.f32.gmra.mxu0 %v2119
      %v2246 = vpop.f32.mrf.mxu0
      %v2247 = vadd.f32 0.0, %v2246
      %2248 = vmatmul.f32.gmra.mxu0 %v2122
      %v2249 = vpop.f32.mrf.mxu0
      %v2250 = vadd.f32 0.0, %v2249
      %2251 = vmatmul.f32.gmra.mxu0 %v2125
      %v2252 = vpop.f32.mrf.mxu0
      %v2253 = vadd.f32 0.0, %v2252
      %2254 = vmatmul.f32.gmra.mxu0 %v2128
      %v2255 = vpop.f32.mrf.mxu0
      %v2256 = vadd.f32 0.0, %v2255
      %2257 = vmatmul.f32.gmra.mxu0 %v2131
      %v2258 = vpop.f32.mrf.mxu0
      %v2259 = vadd.f32 0.0, %v2258
      %2260 = vmatmul.f32.gmra.mxu0 %v2134
      %v2261 = vpop.f32.mrf.mxu0
      %v2262 = vadd.f32 0.0, %v2261
      %2263 = vmatmul.f32.gmra.mxu0 %v2137
      %v2264 = vpop.f32.mrf.mxu0
      %v2265 = vadd.f32 0.0, %v2264
      %2266 = vmatmul.f32.gmra.mxu0 %v2140
      %v2267 = vpop.f32.mrf.mxu0
      %v2268 = vadd.f32 0.0, %v2267
      %2269 = vmatmul.f32.gmra.mxu0 %v2143
      %v2270 = vpop.f32.mrf.mxu0
      %v2271 = vadd.f32 0.0, %v2270
      %2272 = vmatmul.f32.gmra.mxu0 %v2146
      %v2273 = vpop.f32.mrf.mxu0
      %v2274 = vadd.f32 0.0, %v2273
      %2275 = vmatmul.f32.gmra.mxu0 %v2149
      %v2276 = vpop.f32.mrf.mxu0
      %v2277 = vadd.f32 0.0, %v2276
      %2278 = vmatmul.f32.gmra.mxu0 %v2152
      %v2279 = vpop.f32.mrf.mxu0
      %v2280 = vadd.f32 0.0, %v2279
      %2281 = vmatmul.f32.gmra.mxu0 %v2155
      %v2282 = vpop.f32.mrf.mxu0
      %v2283 = vadd.f32 0.0, %v2282
      %2284 = vmatmul.f32.gmra.mxu0 %v2158
      %v2285 = vpop.f32.mrf.mxu0
      %v2286 = vadd.f32 0.0, %v2285
      %2287 = vmatmul.f32.gmra.mxu0 %v2161
      %v2288 = vpop.f32.mrf.mxu0
      %v2289 = vadd.f32 0.0, %v2288
      %2290 = vmatmul.f32.gmra.mxu0 %v2164
      %v2291 = vpop.f32.mrf.mxu0
      %v2292 = vadd.f32 0.0, %v2291
      %2293 = vmatmul.f32.gmra.mxu0 %v2167
      %v2294 = vpop.f32.mrf.mxu0
      %v2295 = vadd.f32 0.0, %v2294
      %2296 = vmatmul.f32.gmra.mxu0 %v2170
      %v2297 = vpop.f32.mrf.mxu0
      %v2298 = vadd.f32 0.0, %v2297
      %2299 = vmatmul.f32.gmra.mxu0 %v2173
      %v2300 = vpop.f32.mrf.mxu0
      %v2301 = vadd.f32 0.0, %v2300
      %2302 = vmatmul.f32.gmra.mxu0 %v2176
      %v2303 = vpop.f32.mrf.mxu0
      %v2304 = vadd.f32 0.0, %v2303
      %2305 = vmatmul.f32.gmra.mxu0 %v2179
      %v2306 = vpop.f32.mrf.mxu0
      %v2307 = vadd.f32 0.0, %v2306
      %2308 = vmatmul.f32.gmra.mxu0 %v2182
      %v2309 = vpop.f32.mrf.mxu0
      %v2310 = vadd.f32 0.0, %v2309
      %2311 = vmatmul.f32.gmra.mxu0 %v2185
      %v2312 = vpop.f32.mrf.mxu0
      %v2313 = vadd.f32 0.0, %v2312
      %2314 = vmatmul.f32.gmra.mxu0 %v2188
      %v2315 = vpop.f32.mrf.mxu0
      %v2316 = vadd.f32 0.0, %v2315
      %2317 = vmatmul.f32.gmra.mxu0 %v2191
      %v2318 = vpop.f32.mrf.mxu0
      %v2319 = vadd.f32 0.0, %v2318
      %2320 = vmatmul.f32.gmra.mxu0 %v2194
      %v2321 = vpop.f32.mrf.mxu0
      %v2322 = vadd.f32 0.0, %v2321
      %2323 = vmatmul.f32.gmra.mxu0 %v2197
      %v2324 = vpop.f32.mrf.mxu0
      %v2325 = vadd.f32 0.0, %v2324
      %2326 = vmatmul.f32.gmra.mxu0 %v2200
      %v2327 = vpop.f32.mrf.mxu0
      %v2328 = vadd.f32 0.0, %v2327
      %2329 = vmatmul.f32.gmra.mxu0 %v2203
      %v2330 = vpop.f32.mrf.mxu0
      %v2331 = vadd.f32 0.0, %v2330
      %2332 = vmatmul.f32.gmra.mxu0 %v2206
      %v2333 = vpop.f32.mrf.mxu0
      %v2334 = vadd.f32 0.0, %v2333
      %2335 = vmatmul.f32.gmra.mxu0 %v2209
      %v2336 = vpop.f32.mrf.mxu0
      %v2337 = vadd.f32 0.0, %v2336
      %2338 = vmatmul.f32.gmra.mxu0 %v2212
      %v2339 = vpop.f32.mrf.mxu0
      %v2340 = vadd.f32 0.0, %v2339
      %2341 = vmatmul.f32.gmra.mxu0 %v2215
      %v2342 = vpop.f32.mrf.mxu0
      %v2343 = vadd.f32 0.0, %v2342
      %2344 = vmatmul.f32.gmra.mxu0 %v2218
      %v2345 = vpop.f32.mrf.mxu0
      %v2346 = vadd.f32 0.0, %v2345
      %2347 = vmatmul.f32.gmra.mxu0 %v2221
      %v2348 = vpop.f32.mrf.mxu0
      %v2349 = vadd.f32 0.0, %v2348
      %2350 = vdwg.mxu0
      %v2351 = vadd.f32 %v2041, %v2244
      %v2352 = vadd.f32 %v2042, %v2247
      %v2353 = vadd.f32 %v2043, %v2250
      %v2354 = vadd.f32 %v2044, %v2253
      %v2355 = vadd.f32 %v2045, %v2256
      %v2356 = vadd.f32 %v2046, %v2259
      %v2357 = vadd.f32 %v2047, %v2262
      %v2358 = vadd.f32 %v2048, %v2265
      %v2359 = vadd.f32 %v2049, %v2268
      %v2360 = vadd.f32 %v2050, %v2271
      %v2361 = vadd.f32 %v2051, %v2274
      %v2362 = vadd.f32 %v2052, %v2277
      %v2363 = vadd.f32 %v2053, %v2280
      %v2364 = vadd.f32 %v2054, %v2283
      %v2365 = vadd.f32 %v2055, %v2286
      %v2366 = vadd.f32 %v2056, %v2289
      %v2367 = vadd.f32 %v2057, %v2292
      %v2368 = vadd.f32 %v2058, %v2295
      %v2369 = vadd.f32 %v2059, %v2298
      %v2370 = vadd.f32 %v2060, %v2301
      %v2371 = vadd.f32 %v2061, %v2304
      %v2372 = vadd.f32 %v2062, %v2307
      %v2373 = vadd.f32 %v2063, %v2310
      %v2374 = vadd.f32 %v2064, %v2313
      %v2375 = vadd.f32 %v2065, %v2316
      %v2376 = vadd.f32 %v2066, %v2319
      %v2377 = vadd.f32 %v2067, %v2322
      %v2378 = vadd.f32 %v2068, %v2325
      %v2379 = vadd.f32 %v2069, %v2328
      %v2380 = vadd.f32 %v2070, %v2331
      %v2381 = vadd.f32 %v2071, %v2334
      %v2382 = vadd.f32 %v2072, %v2337
      %v2383 = vadd.f32 %v2073, %v2340
      %v2384 = vadd.f32 %v2074, %v2343
      %v2385 = vadd.f32 %v2075, %v2346
      %v2386 = vadd.f32 %v2076, %v2349
      %v2387 = vld [vmem:[%s246 + $0x37] sm:$0xff]
      %v2388 = vld [vmem:[%s246 + $0x3f] sm:$0xff]
      %v2389 = vld [vmem:[%s246 + $0x47] sm:$0xff]
      %v2390 = vld [vmem:[%s246 + $0x4f] sm:$0xff]
      %v2391 = vld [vmem:[%s246 + $0x57] sm:$0xff]
      %v2392 = vld [vmem:[%s246 + $0x5f] sm:$0xff]
      %v2393 = vld [vmem:[%s246 + $0x67] sm:$0xff]
      %v2394 = vld [vmem:[%s246 + $0x6f] sm:$0xff]
      %v2395 = vld [vmem:[%s246 + $0x77] sm:$0xff]
      %v2396 = vld [vmem:[%s246 + $0x7f] sm:$0xff]
      %v2397 = vld [vmem:[%s246 + $0x87] sm:$0xff]
      %v2398 = vld [vmem:[%s246 + $0x8f] sm:$0xff]
      %v2399 = vld [vmem:[%s246 + $0x97] sm:$0xff]
      %v2400 = vld [vmem:[%s246 + $0x9f] sm:$0xff]
      %v2401 = vld [vmem:[%s246 + $0xa7] sm:$0xff]
      %v2402 = vld [vmem:[%s246 + $0xaf] sm:$0xff]
      %v2403 = vld [vmem:[%s246 + $0xb7] sm:$0xff]
      %v2404 = vld [vmem:[%s246 + $0xbf] sm:$0xff]
      %v2405 = vld [vmem:[%s246 + $0xc7] sm:$0xff]
      %v2406 = vld [vmem:[%s246 + $0xcf] sm:$0xff]
      %v2407 = vld [vmem:[%s246 + $0xd7] sm:$0xff]
      %v2408 = vld [vmem:[%s246 + $0xdf] sm:$0xff]
      %v2409 = vld [vmem:[%s246 + $0xe7] sm:$0xff]
      %v2410 = vld [vmem:[%s246 + $0xef] sm:$0xff]
      %v2411 = vld [vmem:[%s246 + $0xf7] sm:$0xff]
      %v2412 = vld [vmem:[%s246 + $0xff] sm:$0xff]
      %v2413 = vld [vmem:[%s246 + $0x107] sm:$0xff]
      %v2414 = vld [vmem:[%s246 + $0x10f] sm:$0xff]
      %v2415 = vld [vmem:[%s246 + $0x117] sm:$0xff]
      %v2416 = vld [vmem:[%s246 + $0x11f] sm:$0xff]
      %v2417 = vld [vmem:[%s246 + $0x127] sm:$0xff]
      %v2418 = vld [vmem:[%s246 + $0x12f] sm:$0xff]
      %v2419 = vld [vmem:[%s246 + $0x137] sm:$0xff]
      %v2420 = vld [vmem:[%s246 + $0x13f] sm:$0xff]
      %v2421 = vld [vmem:[%s246 + $0x147] sm:$0xff]
      %v2422 = vld [vmem:[%s246 + $0x14f] sm:$0xff]
      %s2423 = scalar_lea.vmem %s2, 56
      %v2424 = vld [vmem:[%s2423] sm:$0x3f]
      %v2426 = vsel %vm363, %v2387, 0
      %v2429 = vsel %vm363, %v2388, 0
      %v2432 = vsel %vm363, %v2389, 0
      %v2435 = vsel %vm363, %v2390, 0
      %v2438 = vsel %vm363, %v2391, 0
      %v2441 = vsel %vm363, %v2392, 0
      %v2444 = vsel %vm363, %v2393, 0
      %v2447 = vsel %vm363, %v2394, 0
      %v2450 = vsel %vm363, %v2395, 0
      %v2453 = vsel %vm363, %v2396, 0
      %v2456 = vsel %vm363, %v2397, 0
      %v2459 = vsel %vm363, %v2398, 0
      %v2462 = vsel %vm363, %v2399, 0
      %v2465 = vsel %vm363, %v2400, 0
      %v2468 = vsel %vm363, %v2401, 0
      %v2471 = vsel %vm363, %v2402, 0
      %v2474 = vsel %vm363, %v2403, 0
      %v2477 = vsel %vm363, %v2404, 0
      %v2480 = vsel %vm363, %v2405, 0
      %v2483 = vsel %vm363, %v2406, 0
      %v2486 = vsel %vm363, %v2407, 0
      %v2489 = vsel %vm363, %v2408, 0
      %v2492 = vsel %vm363, %v2409, 0
      %v2495 = vsel %vm363, %v2410, 0
      %v2498 = vsel %vm363, %v2411, 0
      %v2501 = vsel %vm363, %v2412, 0
      %v2504 = vsel %vm363, %v2413, 0
      %v2507 = vsel %vm363, %v2414, 0
      %v2510 = vsel %vm363, %v2415, 0
      %v2513 = vsel %vm363, %v2416, 0
      %v2516 = vsel %vm363, %v2417, 0
      %v2519 = vsel %vm363, %v2418, 0
      %v2522 = vsel %vm363, %v2419, 0
      %v2525 = vsel %vm363, %v2420, 0
      %v2528 = vsel %vm363, %v2421, 0
      %v2531 = vsel %vm363, %v2422, 0
      %v2534 = vsel %vm472, %v2424, 0
      %2536 = vmatpush.msra.mxu0 0.0
      %2537 = vmatpush.msra.mxu0 0.0
      %2538 = vmatpush.msra.mxu0 0.0
      %2539 = vmatpush.msra.mxu0 0.0
      %2540 = vmatpush.msra.mxu0 0.0
      %2541 = vmatpush.msra.mxu0 0.0
      %2542 = vmatpush.msra.mxu0 0.0
      %2543 = vmatpush.msra.mxu0 0.0
      %2544 = vmatpush.msra.mxu0 0.0
      %2545 = vmatpush.msra.mxu0 0.0
      %2546 = vmatpush.msra.mxu0 0.0
      %2547 = vmatpush.msra.mxu0 0.0
      %2548 = vmatpush.msra.mxu0 0.0
      %2549 = vmatpush.msra.mxu0 0.0
      %2550 = vmatpush.msra.mxu0 0.0
      %2551 = vmatpush.msra.mxu0 %v2534
      %2552 = vmatmul.f32.gmra.mxu0 %v2426
      %v2553 = vpop.f32.mrf.mxu0
      %v2554 = vadd.f32 0.0, %v2553
      %2555 = vmatmul.f32.gmra.mxu0 %v2429
      %v2556 = vpop.f32.mrf.mxu0
      %v2557 = vadd.f32 0.0, %v2556
      %2558 = vmatmul.f32.gmra.mxu0 %v2432
      %v2559 = vpop.f32.mrf.mxu0
      %v2560 = vadd.f32 0.0, %v2559
      %2561 = vmatmul.f32.gmra.mxu0 %v2435
      %v2562 = vpop.f32.mrf.mxu0
      %v2563 = vadd.f32 0.0, %v2562
      %2564 = vmatmul.f32.gmra.mxu0 %v2438
      %v2565 = vpop.f32.mrf.mxu0
      %v2566 = vadd.f32 0.0, %v2565
      %2567 = vmatmul.f32.gmra.mxu0 %v2441
      %v2568 = vpop.f32.mrf.mxu0
      %v2569 = vadd.f32 0.0, %v2568
      %2570 = vmatmul.f32.gmra.mxu0 %v2444
      %v2571 = vpop.f32.mrf.mxu0
      %v2572 = vadd.f32 0.0, %v2571
      %2573 = vmatmul.f32.gmra.mxu0 %v2447
      %v2574 = vpop.f32.mrf.mxu0
      %v2575 = vadd.f32 0.0, %v2574
      %2576 = vmatmul.f32.gmra.mxu0 %v2450
      %v2577 = vpop.f32.mrf.mxu0
      %v2578 = vadd.f32 0.0, %v2577
      %2579 = vmatmul.f32.gmra.mxu0 %v2453
      %v2580 = vpop.f32.mrf.mxu0
      %v2581 = vadd.f32 0.0, %v2580
      %2582 = vmatmul.f32.gmra.mxu0 %v2456
      %v2583 = vpop.f32.mrf.mxu0
      %v2584 = vadd.f32 0.0, %v2583
      %2585 = vmatmul.f32.gmra.mxu0 %v2459
      %v2586 = vpop.f32.mrf.mxu0
      %v2587 = vadd.f32 0.0, %v2586
      %2588 = vmatmul.f32.gmra.mxu0 %v2462
      %v2589 = vpop.f32.mrf.mxu0
      %v2590 = vadd.f32 0.0, %v2589
      %2591 = vmatmul.f32.gmra.mxu0 %v2465
      %v2592 = vpop.f32.mrf.mxu0
      %v2593 = vadd.f32 0.0, %v2592
      %2594 = vmatmul.f32.gmra.mxu0 %v2468
      %v2595 = vpop.f32.mrf.mxu0
      %v2596 = vadd.f32 0.0, %v2595
      %2597 = vmatmul.f32.gmra.mxu0 %v2471
      %v2598 = vpop.f32.mrf.mxu0
      %v2599 = vadd.f32 0.0, %v2598
      %2600 = vmatmul.f32.gmra.mxu0 %v2474
      %v2601 = vpop.f32.mrf.mxu0
      %v2602 = vadd.f32 0.0, %v2601
      %2603 = vmatmul.f32.gmra.mxu0 %v2477
      %v2604 = vpop.f32.mrf.mxu0
      %v2605 = vadd.f32 0.0, %v2604
      %2606 = vmatmul.f32.gmra.mxu0 %v2480
      %v2607 = vpop.f32.mrf.mxu0
      %v2608 = vadd.f32 0.0, %v2607
      %2609 = vmatmul.f32.gmra.mxu0 %v2483
      %v2610 = vpop.f32.mrf.mxu0
      %v2611 = vadd.f32 0.0, %v2610
      %2612 = vmatmul.f32.gmra.mxu0 %v2486
      %v2613 = vpop.f32.mrf.mxu0
      %v2614 = vadd.f32 0.0, %v2613
      %2615 = vmatmul.f32.gmra.mxu0 %v2489
      %v2616 = vpop.f32.mrf.mxu0
      %v2617 = vadd.f32 0.0, %v2616
      %2618 = vmatmul.f32.gmra.mxu0 %v2492
      %v2619 = vpop.f32.mrf.mxu0
      %v2620 = vadd.f32 0.0, %v2619
      %2621 = vmatmul.f32.gmra.mxu0 %v2495
      %v2622 = vpop.f32.mrf.mxu0
      %v2623 = vadd.f32 0.0, %v2622
      %2624 = vmatmul.f32.gmra.mxu0 %v2498
      %v2625 = vpop.f32.mrf.mxu0
      %v2626 = vadd.f32 0.0, %v2625
      %2627 = vmatmul.f32.gmra.mxu0 %v2501
      %v2628 = vpop.f32.mrf.mxu0
      %v2629 = vadd.f32 0.0, %v2628
      %2630 = vmatmul.f32.gmra.mxu0 %v2504
      %v2631 = vpop.f32.mrf.mxu0
      %v2632 = vadd.f32 0.0, %v2631
      %2633 = vmatmul.f32.gmra.mxu0 %v2507
      %v2634 = vpop.f32.mrf.mxu0
      %v2635 = vadd.f32 0.0, %v2634
      %2636 = vmatmul.f32.gmra.mxu0 %v2510
      %v2637 = vpop.f32.mrf.mxu0
      %v2638 = vadd.f32 0.0, %v2637
      %2639 = vmatmul.f32.gmra.mxu0 %v2513
      %v2640 = vpop.f32.mrf.mxu0
      %v2641 = vadd.f32 0.0, %v2640
      %2642 = vmatmul.f32.gmra.mxu0 %v2516
      %v2643 = vpop.f32.mrf.mxu0
      %v2644 = vadd.f32 0.0, %v2643
      %2645 = vmatmul.f32.gmra.mxu0 %v2519
      %v2646 = vpop.f32.mrf.mxu0
      %v2647 = vadd.f32 0.0, %v2646
      %2648 = vmatmul.f32.gmra.mxu0 %v2522
      %v2649 = vpop.f32.mrf.mxu0
      %v2650 = vadd.f32 0.0, %v2649
      %2651 = vmatmul.f32.gmra.mxu0 %v2525
      %v2652 = vpop.f32.mrf.mxu0
      %v2653 = vadd.f32 0.0, %v2652
      %2654 = vmatmul.f32.gmra.mxu0 %v2528
      %v2655 = vpop.f32.mrf.mxu0
      %v2656 = vadd.f32 0.0, %v2655
      %2657 = vmatmul.f32.gmra.mxu0 %v2531
      %v2658 = vpop.f32.mrf.mxu0
      %v2659 = vadd.f32 0.0, %v2658
      %2660 = vdwg.mxu0
      %v2661 = vadd.f32 %v2351, %v2554
      %v2662 = vadd.f32 %v2352, %v2557
      %v2663 = vadd.f32 %v2353, %v2560
      %v2664 = vadd.f32 %v2354, %v2563
      %v2665 = vadd.f32 %v2355, %v2566
      %v2666 = vadd.f32 %v2356, %v2569
      %v2667 = vadd.f32 %v2357, %v2572
      %v2668 = vadd.f32 %v2358, %v2575
      %v2669 = vadd.f32 %v2359, %v2578
      %v2670 = vadd.f32 %v2360, %v2581
      %v2671 = vadd.f32 %v2361, %v2584
      %v2672 = vadd.f32 %v2362, %v2587
      %v2673 = vadd.f32 %v2363, %v2590
      %v2674 = vadd.f32 %v2364, %v2593
      %v2675 = vadd.f32 %v2365, %v2596
      %v2676 = vadd.f32 %v2366, %v2599
      %v2677 = vadd.f32 %v2367, %v2602
      %v2678 = vadd.f32 %v2368, %v2605
      %v2679 = vadd.f32 %v2369, %v2608
      %v2680 = vadd.f32 %v2370, %v2611
      %v2681 = vadd.f32 %v2371, %v2614
      %v2682 = vadd.f32 %v2372, %v2617
      %v2683 = vadd.f32 %v2373, %v2620
      %v2684 = vadd.f32 %v2374, %v2623
      %v2685 = vadd.f32 %v2375, %v2626
      %v2686 = vadd.f32 %v2376, %v2629
      %v2687 = vadd.f32 %v2377, %v2632
      %v2688 = vadd.f32 %v2378, %v2635
      %v2689 = vadd.f32 %v2379, %v2638
      %v2690 = vadd.f32 %v2380, %v2641
      %v2691 = vadd.f32 %v2381, %v2644
      %v2692 = vadd.f32 %v2382, %v2647
      %v2693 = vadd.f32 %v2383, %v2650
      %v2694 = vadd.f32 %v2384, %v2653
      %v2695 = vadd.f32 %v2385, %v2656
      %v2696 = vadd.f32 %v2386, %v2659
      %v2697 = vld [vmem:[%s246 + $0x38] sm:$0xff]
      %v2698 = vld [vmem:[%s246 + $0x40] sm:$0xff]
      %v2699 = vld [vmem:[%s246 + $0x48] sm:$0xff]
      %v2700 = vld [vmem:[%s246 + $0x50] sm:$0xff]
      %v2701 = vld [vmem:[%s246 + $0x58] sm:$0xff]
      %v2702 = vld [vmem:[%s246 + $0x60] sm:$0xff]
      %v2703 = vld [vmem:[%s246 + $0x68] sm:$0xff]
      %v2704 = vld [vmem:[%s246 + $0x70] sm:$0xff]
      %v2705 = vld [vmem:[%s246 + $0x78] sm:$0xff]
      %v2706 = vld [vmem:[%s246 + $0x80] sm:$0xff]
      %v2707 = vld [vmem:[%s246 + $0x88] sm:$0xff]
      %v2708 = vld [vmem:[%s246 + $0x90] sm:$0xff]
      %v2709 = vld [vmem:[%s246 + $0x98] sm:$0xff]
      %v2710 = vld [vmem:[%s246 + $0xa0] sm:$0xff]
      %v2711 = vld [vmem:[%s246 + $0xa8] sm:$0xff]
      %v2712 = vld [vmem:[%s246 + $0xb0] sm:$0xff]
      %v2713 = vld [vmem:[%s246 + $0xb8] sm:$0xff]
      %v2714 = vld [vmem:[%s246 + $0xc0] sm:$0xff]
      %v2715 = vld [vmem:[%s246 + $0xc8] sm:$0xff]
      %v2716 = vld [vmem:[%s246 + $0xd0] sm:$0xff]
      %v2717 = vld [vmem:[%s246 + $0xd8] sm:$0xff]
      %v2718 = vld [vmem:[%s246 + $0xe0] sm:$0xff]
      %v2719 = vld [vmem:[%s246 + $0xe8] sm:$0xff]
      %v2720 = vld [vmem:[%s246 + $0xf0] sm:$0xff]
      %v2721 = vld [vmem:[%s246 + $0xf8] sm:$0xff]
      %v2722 = vld [vmem:[%s246 + $0x100] sm:$0xff]
      %v2723 = vld [vmem:[%s246 + $0x108] sm:$0xff]
      %v2724 = vld [vmem:[%s246 + $0x110] sm:$0xff]
      %v2725 = vld [vmem:[%s246 + $0x118] sm:$0xff]
      %v2726 = vld [vmem:[%s246 + $0x120] sm:$0xff]
      %v2727 = vld [vmem:[%s246 + $0x128] sm:$0xff]
      %v2728 = vld [vmem:[%s246 + $0x130] sm:$0xff]
      %v2729 = vld [vmem:[%s246 + $0x138] sm:$0xff]
      %v2730 = vld [vmem:[%s246 + $0x140] sm:$0xff]
      %v2731 = vld [vmem:[%s246 + $0x148] sm:$0xff]
      %v2732 = vld [vmem:[%s246 + $0x150] sm:$0xff]
      %s2733 = scalar_lea.vmem %s2, 64
      %v2734 = vld [vmem:[%s2733] sm:$0x3f]
      %v2736 = vsel %vm363, %v2697, 0
      %v2739 = vsel %vm363, %v2698, 0
      %v2742 = vsel %vm363, %v2699, 0
      %v2745 = vsel %vm363, %v2700, 0
      %v2748 = vsel %vm363, %v2701, 0
      %v2751 = vsel %vm363, %v2702, 0
      %v2754 = vsel %vm363, %v2703, 0
      %v2757 = vsel %vm363, %v2704, 0
      %v2760 = vsel %vm363, %v2705, 0
      %v2763 = vsel %vm363, %v2706, 0
      %v2766 = vsel %vm363, %v2707, 0
      %v2769 = vsel %vm363, %v2708, 0
      %v2772 = vsel %vm363, %v2709, 0
      %v2775 = vsel %vm363, %v2710, 0
      %v2778 = vsel %vm363, %v2711, 0
      %v2781 = vsel %vm363, %v2712, 0
      %v2784 = vsel %vm363, %v2713, 0
      %v2787 = vsel %vm363, %v2714, 0
      %v2790 = vsel %vm363, %v2715, 0
      %v2793 = vsel %vm363, %v2716, 0
      %v2796 = vsel %vm363, %v2717, 0
      %v2799 = vsel %vm363, %v2718, 0
      %v2802 = vsel %vm363, %v2719, 0
      %v2805 = vsel %vm363, %v2720, 0
      %v2808 = vsel %vm363, %v2721, 0
      %v2811 = vsel %vm363, %v2722, 0
      %v2814 = vsel %vm363, %v2723, 0
      %v2817 = vsel %vm363, %v2724, 0
      %v2820 = vsel %vm363, %v2725, 0
      %v2823 = vsel %vm363, %v2726, 0
      %v2826 = vsel %vm363, %v2727, 0
      %v2829 = vsel %vm363, %v2728, 0
      %v2832 = vsel %vm363, %v2729, 0
      %v2835 = vsel %vm363, %v2730, 0
      %v2838 = vsel %vm363, %v2731, 0
      %v2841 = vsel %vm363, %v2732, 0
      %v2844 = vsel %vm472, %v2734, 0
      %2846 = vmatpush.msra.mxu0 0.0
      %2847 = vmatpush.msra.mxu0 0.0
      %2848 = vmatpush.msra.mxu0 0.0
      %2849 = vmatpush.msra.mxu0 0.0
      %2850 = vmatpush.msra.mxu0 0.0
      %2851 = vmatpush.msra.mxu0 0.0
      %2852 = vmatpush.msra.mxu0 0.0
      %2853 = vmatpush.msra.mxu0 0.0
      %2854 = vmatpush.msra.mxu0 0.0
      %2855 = vmatpush.msra.mxu0 0.0
      %2856 = vmatpush.msra.mxu0 0.0
      %2857 = vmatpush.msra.mxu0 0.0
      %2858 = vmatpush.msra.mxu0 0.0
      %2859 = vmatpush.msra.mxu0 0.0
      %2860 = vmatpush.msra.mxu0 0.0
      %2861 = vmatpush.msra.mxu0 %v2844
      %2862 = vmatmul.f32.gmra.mxu0 %v2736
      %v2863 = vpop.f32.mrf.mxu0
      %v2864 = vadd.f32 0.0, %v2863
      %2865 = vmatmul.f32.gmra.mxu0 %v2739
      %v2866 = vpop.f32.mrf.mxu0
      %v2867 = vadd.f32 0.0, %v2866
      %2868 = vmatmul.f32.gmra.mxu0 %v2742
      %v2869 = vpop.f32.mrf.mxu0
      %v2870 = vadd.f32 0.0, %v2869
      %2871 = vmatmul.f32.gmra.mxu0 %v2745
      %v2872 = vpop.f32.mrf.mxu0
      %v2873 = vadd.f32 0.0, %v2872
      %2874 = vmatmul.f32.gmra.mxu0 %v2748
      %v2875 = vpop.f32.mrf.mxu0
      %v2876 = vadd.f32 0.0, %v2875
      %2877 = vmatmul.f32.gmra.mxu0 %v2751
      %v2878 = vpop.f32.mrf.mxu0
      %v2879 = vadd.f32 0.0, %v2878
      %2880 = vmatmul.f32.gmra.mxu0 %v2754
      %v2881 = vpop.f32.mrf.mxu0
      %v2882 = vadd.f32 0.0, %v2881
      %2883 = vmatmul.f32.gmra.mxu0 %v2757
      %v2884 = vpop.f32.mrf.mxu0
      %v2885 = vadd.f32 0.0, %v2884
      %2886 = vmatmul.f32.gmra.mxu0 %v2760
      %v2887 = vpop.f32.mrf.mxu0
      %v2888 = vadd.f32 0.0, %v2887
      %2889 = vmatmul.f32.gmra.mxu0 %v2763
      %v2890 = vpop.f32.mrf.mxu0
      %v2891 = vadd.f32 0.0, %v2890
      %2892 = vmatmul.f32.gmra.mxu0 %v2766
      %v2893 = vpop.f32.mrf.mxu0
      %v2894 = vadd.f32 0.0, %v2893
      %2895 = vmatmul.f32.gmra.mxu0 %v2769
      %v2896 = vpop.f32.mrf.mxu0
      %v2897 = vadd.f32 0.0, %v2896
      %2898 = vmatmul.f32.gmra.mxu0 %v2772
      %v2899 = vpop.f32.mrf.mxu0
      %v2900 = vadd.f32 0.0, %v2899
      %2901 = vmatmul.f32.gmra.mxu0 %v2775
      %v2902 = vpop.f32.mrf.mxu0
      %v2903 = vadd.f32 0.0, %v2902
      %2904 = vmatmul.f32.gmra.mxu0 %v2778
      %v2905 = vpop.f32.mrf.mxu0
      %v2906 = vadd.f32 0.0, %v2905
      %2907 = vmatmul.f32.gmra.mxu0 %v2781
      %v2908 = vpop.f32.mrf.mxu0
      %v2909 = vadd.f32 0.0, %v2908
      %2910 = vmatmul.f32.gmra.mxu0 %v2784
      %v2911 = vpop.f32.mrf.mxu0
      %v2912 = vadd.f32 0.0, %v2911
      %2913 = vmatmul.f32.gmra.mxu0 %v2787
      %v2914 = vpop.f32.mrf.mxu0
      %v2915 = vadd.f32 0.0, %v2914
      %2916 = vmatmul.f32.gmra.mxu0 %v2790
      %v2917 = vpop.f32.mrf.mxu0
      %v2918 = vadd.f32 0.0, %v2917
      %2919 = vmatmul.f32.gmra.mxu0 %v2793
      %v2920 = vpop.f32.mrf.mxu0
      %v2921 = vadd.f32 0.0, %v2920
      %2922 = vmatmul.f32.gmra.mxu0 %v2796
      %v2923 = vpop.f32.mrf.mxu0
      %v2924 = vadd.f32 0.0, %v2923
      %2925 = vmatmul.f32.gmra.mxu0 %v2799
      %v2926 = vpop.f32.mrf.mxu0
      %v2927 = vadd.f32 0.0, %v2926
      %2928 = vmatmul.f32.gmra.mxu0 %v2802
      %v2929 = vpop.f32.mrf.mxu0
      %v2930 = vadd.f32 0.0, %v2929
      %2931 = vmatmul.f32.gmra.mxu0 %v2805
      %v2932 = vpop.f32.mrf.mxu0
      %v2933 = vadd.f32 0.0, %v2932
      %2934 = vmatmul.f32.gmra.mxu0 %v2808
      %v2935 = vpop.f32.mrf.mxu0
      %v2936 = vadd.f32 0.0, %v2935
      %2937 = vmatmul.f32.gmra.mxu0 %v2811
      %v2938 = vpop.f32.mrf.mxu0
      %v2939 = vadd.f32 0.0, %v2938
      %2940 = vmatmul.f32.gmra.mxu0 %v2814
      %v2941 = vpop.f32.mrf.mxu0
      %v2942 = vadd.f32 0.0, %v2941
      %2943 = vmatmul.f32.gmra.mxu0 %v2817
      %v2944 = vpop.f32.mrf.mxu0
      %v2945 = vadd.f32 0.0, %v2944
      %2946 = vmatmul.f32.gmra.mxu0 %v2820
      %v2947 = vpop.f32.mrf.mxu0
      %v2948 = vadd.f32 0.0, %v2947
      %2949 = vmatmul.f32.gmra.mxu0 %v2823
      %v2950 = vpop.f32.mrf.mxu0
      %v2951 = vadd.f32 0.0, %v2950
      %2952 = vmatmul.f32.gmra.mxu0 %v2826
      %v2953 = vpop.f32.mrf.mxu0
      %v2954 = vadd.f32 0.0, %v2953
      %2955 = vmatmul.f32.gmra.mxu0 %v2829
      %v2956 = vpop.f32.mrf.mxu0
      %v2957 = vadd.f32 0.0, %v2956
      %2958 = vmatmul.f32.gmra.mxu0 %v2832
      %v2959 = vpop.f32.mrf.mxu0
      %v2960 = vadd.f32 0.0, %v2959
      %2961 = vmatmul.f32.gmra.mxu0 %v2835
      %v2962 = vpop.f32.mrf.mxu0
      %v2963 = vadd.f32 0.0, %v2962
      %2964 = vmatmul.f32.gmra.mxu0 %v2838
      %v2965 = vpop.f32.mrf.mxu0
      %v2966 = vadd.f32 0.0, %v2965
      %2967 = vmatmul.f32.gmra.mxu0 %v2841
      %v2968 = vpop.f32.mrf.mxu0
      %v2969 = vadd.f32 0.0, %v2968
      %2970 = vdwg.mxu0
      %v2971 = vadd.f32 %v2661, %v2864
      %v2972 = vadd.f32 %v2662, %v2867
      %v2973 = vadd.f32 %v2663, %v2870
      %v2974 = vadd.f32 %v2664, %v2873
      %v2975 = vadd.f32 %v2665, %v2876
      %v2976 = vadd.f32 %v2666, %v2879
      %v2977 = vadd.f32 %v2667, %v2882
      %v2978 = vadd.f32 %v2668, %v2885
      %v2979 = vadd.f32 %v2669, %v2888
      %v2980 = vadd.f32 %v2670, %v2891
      %v2981 = vadd.f32 %v2671, %v2894
      %v2982 = vadd.f32 %v2672, %v2897
      %v2983 = vadd.f32 %v2673, %v2900
      %v2984 = vadd.f32 %v2674, %v2903
      %v2985 = vadd.f32 %v2675, %v2906
      %v2986 = vadd.f32 %v2676, %v2909
      %v2987 = vadd.f32 %v2677, %v2912
      %v2988 = vadd.f32 %v2678, %v2915
      %v2989 = vadd.f32 %v2679, %v2918
      %v2990 = vadd.f32 %v2680, %v2921
      %v2991 = vadd.f32 %v2681, %v2924
      %v2992 = vadd.f32 %v2682, %v2927
      %v2993 = vadd.f32 %v2683, %v2930
      %v2994 = vadd.f32 %v2684, %v2933
      %v2995 = vadd.f32 %v2685, %v2936
      %v2996 = vadd.f32 %v2686, %v2939
      %v2997 = vadd.f32 %v2687, %v2942
      %v2998 = vadd.f32 %v2688, %v2945
      %v2999 = vadd.f32 %v2689, %v2948
      %v3000 = vadd.f32 %v2690, %v2951
      %v3001 = vadd.f32 %v2691, %v2954
      %v3002 = vadd.f32 %v2692, %v2957
      %v3003 = vadd.f32 %v2693, %v2960
      %v3004 = vadd.f32 %v2694, %v2963
      %v3005 = vadd.f32 %v2695, %v2966
      %v3006 = vadd.f32 %v2696, %v2969
      %v3007 = vld [vmem:[%s3] sm:$0x1]
      %v3009 = vperm.slane %v3007, 0
      %v3011 = vadd.f32 %v2971, %v3009
      %v3012 = vadd.f32 %v2972, %v3009
      %v3013 = vadd.f32 %v2973, %v3009
      %v3014 = vadd.f32 %v2974, %v3009
      %v3015 = vadd.f32 %v2975, %v3009
      %v3016 = vadd.f32 %v2976, %v3009
      %v3017 = vadd.f32 %v2977, %v3009
      %v3018 = vadd.f32 %v2978, %v3009
      %v3019 = vadd.f32 %v2979, %v3009
      %v3020 = vadd.f32 %v2980, %v3009
      %v3021 = vadd.f32 %v2981, %v3009
      %v3022 = vadd.f32 %v2982, %v3009
      %v3023 = vadd.f32 %v2983, %v3009
      %v3024 = vadd.f32 %v2984, %v3009
      %v3025 = vadd.f32 %v2985, %v3009
      %v3026 = vadd.f32 %v2986, %v3009
      %v3027 = vadd.f32 %v2987, %v3009
      %v3028 = vadd.f32 %v2988, %v3009
      %v3029 = vadd.f32 %v2989, %v3009
      %v3030 = vadd.f32 %v2990, %v3009
      %v3031 = vadd.f32 %v2991, %v3009
      %v3032 = vadd.f32 %v2992, %v3009
      %v3033 = vadd.f32 %v2993, %v3009
      %v3034 = vadd.f32 %v2994, %v3009
      %v3035 = vadd.f32 %v2995, %v3009
      %v3036 = vadd.f32 %v2996, %v3009
      %v3037 = vadd.f32 %v2997, %v3009
      %v3038 = vadd.f32 %v2998, %v3009
      %v3039 = vadd.f32 %v2999, %v3009
      %v3040 = vadd.f32 %v3000, %v3009
      %v3041 = vadd.f32 %v3001, %v3009
      %v3042 = vadd.f32 %v3002, %v3009
      %v3043 = vadd.f32 %v3003, %v3009
      %v3044 = vadd.f32 %v3004, %v3009
      %v3045 = vadd.f32 %v3005, %v3009
      %v3046 = vadd.f32 %v3006, %v3009
      %v3047 = vmax.f32 %v3011, 0.0
      %v3048 = vmax.f32 %v3012, 0.0
      %v3049 = vmax.f32 %v3013, 0.0
      %v3050 = vmax.f32 %v3014, 0.0
      %v3051 = vmax.f32 %v3015, 0.0
      %v3052 = vmax.f32 %v3016, 0.0
      %v3053 = vmax.f32 %v3017, 0.0
      %v3054 = vmax.f32 %v3018, 0.0
      %v3055 = vmax.f32 %v3019, 0.0
      %v3056 = vmax.f32 %v3020, 0.0
      %v3057 = vmax.f32 %v3021, 0.0
      %v3058 = vmax.f32 %v3022, 0.0
      %v3059 = vmax.f32 %v3023, 0.0
      %v3060 = vmax.f32 %v3024, 0.0
      %v3061 = vmax.f32 %v3025, 0.0
      %v3062 = vmax.f32 %v3026, 0.0
      %v3063 = vmax.f32 %v3027, 0.0
      %v3064 = vmax.f32 %v3028, 0.0
      %v3065 = vmax.f32 %v3029, 0.0
      %v3066 = vmax.f32 %v3030, 0.0
      %v3067 = vmax.f32 %v3031, 0.0
      %v3068 = vmax.f32 %v3032, 0.0
      %v3069 = vmax.f32 %v3033, 0.0
      %v3070 = vmax.f32 %v3034, 0.0
      %v3071 = vmax.f32 %v3035, 0.0
      %v3072 = vmax.f32 %v3036, 0.0
      %v3073 = vmax.f32 %v3037, 0.0
      %v3074 = vmax.f32 %v3038, 0.0
      %v3075 = vmax.f32 %v3039, 0.0
      %v3076 = vmax.f32 %v3040, 0.0
      %v3077 = vmax.f32 %v3041, 0.0
      %v3078 = vmax.f32 %v3042, 0.0
      %v3079 = vmax.f32 %v3043, 0.0
      %v3080 = vmax.f32 %v3044, 0.0
      %v3081 = vmax.f32 %v3045, 0.0
      %v3082 = vmax.f32 %v3046, 0.0
      %3084 = vset.pattern.permute.xlu0 0
      %3085 = vperm.xlu0 %3084, %v252
      %v3086 = vpop.permute.xlu0 %3085
      %3089 = vset.pattern.permute.xlu0 0
      %3090 = vperm.xlu0 %3089, %v253
      %v3091 = vpop.permute.xlu0 %3090
      %3094 = vset.pattern.permute.xlu0 0
      %3095 = vperm.xlu0 %3094, %v254
      %v3096 = vpop.permute.xlu0 %3095
      %3099 = vset.pattern.permute.xlu0 0
      %3100 = vperm.xlu0 %3099, %v255
      %v3101 = vpop.permute.xlu0 %3100
      %3104 = vset.pattern.permute.xlu0 0
      %3105 = vperm.xlu0 %3104, %v256
      %v3106 = vpop.permute.xlu0 %3105
      %3109 = vset.pattern.permute.xlu0 0
      %3110 = vperm.xlu0 %3109, %v257
      %v3111 = vpop.permute.xlu0 %3110
      %3114 = vset.pattern.permute.xlu0 0
      %3115 = vperm.xlu0 %3114, %v258
      %v3116 = vpop.permute.xlu0 %3115
      %3119 = vset.pattern.permute.xlu0 0
      %3120 = vperm.xlu0 %3119, %v259
      %v3121 = vpop.permute.xlu0 %3120
      %3124 = vset.pattern.permute.xlu0 0
      %3125 = vperm.xlu0 %3124, %v260
      %v3126 = vpop.permute.xlu0 %3125
      %3129 = vset.pattern.permute.xlu0 0
      %3130 = vperm.xlu0 %3129, %v261
      %v3131 = vpop.permute.xlu0 %3130
      %3134 = vset.pattern.permute.xlu0 0
      %3135 = vperm.xlu0 %3134, %v262
      %v3136 = vpop.permute.xlu0 %3135
      %3139 = vset.pattern.permute.xlu0 0
      %3140 = vperm.xlu0 %3139, %v263
      %v3141 = vpop.permute.xlu0 %3140
      %3144 = vset.pattern.permute.xlu0 0
      %3145 = vperm.xlu0 %3144, %v264
      %v3146 = vpop.permute.xlu0 %3145
      %3149 = vset.pattern.permute.xlu0 0
      %3150 = vperm.xlu0 %3149, %v265
      %v3151 = vpop.permute.xlu0 %3150
      %3154 = vset.pattern.permute.xlu0 0
      %3155 = vperm.xlu0 %3154, %v266
      %v3156 = vpop.permute.xlu0 %3155
      %3159 = vset.pattern.permute.xlu0 0
      %3160 = vperm.xlu0 %3159, %v267
      %v3161 = vpop.permute.xlu0 %3160
      %3164 = vset.pattern.permute.xlu0 0
      %3165 = vperm.xlu0 %3164, %v268
      %v3166 = vpop.permute.xlu0 %3165
      %3169 = vset.pattern.permute.xlu0 0
      %3170 = vperm.xlu0 %3169, %v269
      %v3171 = vpop.permute.xlu0 %3170
      %3174 = vset.pattern.permute.xlu0 0
      %3175 = vperm.xlu0 %3174, %v270
      %v3176 = vpop.permute.xlu0 %3175
      %3179 = vset.pattern.permute.xlu0 0
      %3180 = vperm.xlu0 %3179, %v271
      %v3181 = vpop.permute.xlu0 %3180
      %3184 = vset.pattern.permute.xlu0 0
      %3185 = vperm.xlu0 %3184, %v272
      %v3186 = vpop.permute.xlu0 %3185
      %3189 = vset.pattern.permute.xlu0 0
      %3190 = vperm.xlu0 %3189, %v273
      %v3191 = vpop.permute.xlu0 %3190
      %3194 = vset.pattern.permute.xlu0 0
      %3195 = vperm.xlu0 %3194, %v274
      %v3196 = vpop.permute.xlu0 %3195
      %3199 = vset.pattern.permute.xlu0 0
      %3200 = vperm.xlu0 %3199, %v275
      %v3201 = vpop.permute.xlu0 %3200
      %3204 = vset.pattern.permute.xlu0 0
      %3205 = vperm.xlu0 %3204, %v276
      %v3206 = vpop.permute.xlu0 %3205
      %3209 = vset.pattern.permute.xlu0 0
      %3210 = vperm.xlu0 %3209, %v277
      %v3211 = vpop.permute.xlu0 %3210
      %3214 = vset.pattern.permute.xlu0 0
      %3215 = vperm.xlu0 %3214, %v278
      %v3216 = vpop.permute.xlu0 %3215
      %3219 = vset.pattern.permute.xlu0 0
      %3220 = vperm.xlu0 %3219, %v279
      %v3221 = vpop.permute.xlu0 %3220
      %3224 = vset.pattern.permute.xlu0 0
      %3225 = vperm.xlu0 %3224, %v280
      %v3226 = vpop.permute.xlu0 %3225
      %3229 = vset.pattern.permute.xlu0 0
      %3230 = vperm.xlu0 %3229, %v281
      %v3231 = vpop.permute.xlu0 %3230
      %3234 = vset.pattern.permute.xlu0 0
      %3235 = vperm.xlu0 %3234, %v282
      %v3236 = vpop.permute.xlu0 %3235
      %3239 = vset.pattern.permute.xlu0 0
      %3240 = vperm.xlu0 %3239, %v283
      %v3241 = vpop.permute.xlu0 %3240
      %3244 = vset.pattern.permute.xlu0 0
      %3245 = vperm.xlu0 %3244, %v284
      %v3246 = vpop.permute.xlu0 %3245
      %3249 = vset.pattern.permute.xlu0 0
      %3250 = vperm.xlu0 %3249, %v285
      %v3251 = vpop.permute.xlu0 %3250
      %3254 = vset.pattern.permute.xlu0 0
      %3255 = vperm.xlu0 %3254, %v286
      %v3256 = vpop.permute.xlu0 %3255
      %3259 = vset.pattern.permute.xlu0 0
      %3260 = vperm.xlu0 %3259, %v287
      %v3261 = vpop.permute.xlu0 %3260
      %v3263 = vmul.f32 %v3047, %v3086
      %v3264 = vmul.f32 %v3048, %v3091
      %v3265 = vmul.f32 %v3049, %v3096
      %v3266 = vmul.f32 %v3050, %v3101
      %v3267 = vmul.f32 %v3051, %v3106
      %v3268 = vmul.f32 %v3052, %v3111
      %v3269 = vmul.f32 %v3053, %v3116
      %v3270 = vmul.f32 %v3054, %v3121
      %v3271 = vmul.f32 %v3055, %v3126
      %v3272 = vmul.f32 %v3056, %v3131
      %v3273 = vmul.f32 %v3057, %v3136
      %v3274 = vmul.f32 %v3058, %v3141
      %v3275 = vmul.f32 %v3059, %v3146
      %v3276 = vmul.f32 %v3060, %v3151
      %v3277 = vmul.f32 %v3061, %v3156
      %v3278 = vmul.f32 %v3062, %v3161
      %v3279 = vmul.f32 %v3063, %v3166
      %v3280 = vmul.f32 %v3064, %v3171
      %v3281 = vmul.f32 %v3065, %v3176
      %v3282 = vmul.f32 %v3066, %v3181
      %v3283 = vmul.f32 %v3067, %v3186
      %v3284 = vmul.f32 %v3068, %v3191
      %v3285 = vmul.f32 %v3069, %v3196
      %v3286 = vmul.f32 %v3070, %v3201
      %v3287 = vmul.f32 %v3071, %v3206
      %v3288 = vmul.f32 %v3072, %v3211
      %v3289 = vmul.f32 %v3073, %v3216
      %v3290 = vmul.f32 %v3074, %v3221
      %v3291 = vmul.f32 %v3075, %v3226
      %v3292 = vmul.f32 %v3076, %v3231
      %v3293 = vmul.f32 %v3077, %v3236
      %v3294 = vmul.f32 %v3078, %v3241
      %v3295 = vmul.f32 %v3079, %v3246
      %v3296 = vmul.f32 %v3080, %v3251
      %v3297 = vmul.f32 %v3081, %v3256
      %v3298 = vmul.f32 %v3082, %v3261
      %vm3299 = vcmask 64512
      %3300 = vst.msk [vmem:[#allocation2] sm:$0xff] %vm3299, 0.0
      %3301 = vst.msk [vmem:[#allocation2 + $0x8] sm:$0xff] %vm3299, 0.0
      %3302 = vst.msk [vmem:[#allocation2 + $0x10] sm:$0xff] %vm3299, 0.0
      %3303 = vst.msk [vmem:[#allocation2 + $0x18] sm:$0xff] %vm3299, 0.0
      %3304 = vst.msk [vmem:[#allocation2 + $0x20] sm:$0xff] %vm3299, 0.0
      %3305 = vst.msk [vmem:[#allocation2 + $0x28] sm:$0xff] %vm3299, 0.0
      %3306 = vst.msk [vmem:[#allocation2 + $0x30] sm:$0xff] %vm3299, 0.0
      %3307 = vst.msk [vmem:[#allocation2 + $0x38] sm:$0xff] %vm3299, 0.0
      %3308 = vst.msk [vmem:[#allocation2 + $0x40] sm:$0xff] %vm3299, 0.0
      %3309 = vst.msk [vmem:[#allocation2 + $0x48] sm:$0xff] %vm3299, 0.0
      %3310 = vst.msk [vmem:[#allocation2 + $0x50] sm:$0xff] %vm3299, 0.0
      %3311 = vst.msk [vmem:[#allocation2 + $0x58] sm:$0xff] %vm3299, 0.0
      %3312 = vst.msk [vmem:[#allocation2 + $0x60] sm:$0xff] %vm3299, 0.0
      %3313 = vst.msk [vmem:[#allocation2 + $0x68] sm:$0xff] %vm3299, 0.0
      %3314 = vst.msk [vmem:[#allocation2 + $0x70] sm:$0xff] %vm3299, 0.0
      %3315 = vst.msk [vmem:[#allocation2 + $0x78] sm:$0xff] %vm3299, 0.0
      %3316 = vst.msk [vmem:[#allocation2 + $0x80] sm:$0xff] %vm3299, 0.0
      %3317 = vst.msk [vmem:[#allocation2 + $0x88] sm:$0xff] %vm3299, 0.0
      %3318 = vst.msk [vmem:[#allocation2 + $0x90] sm:$0xff] %vm3299, 0.0
      %3319 = vst.msk [vmem:[#allocation2 + $0x98] sm:$0xff] %vm3299, 0.0
      %3320 = vst.msk [vmem:[#allocation2 + $0xa0] sm:$0xff] %vm3299, 0.0
      %3321 = vst.msk [vmem:[#allocation2 + $0xa8] sm:$0xff] %vm3299, 0.0
      %3322 = vst.msk [vmem:[#allocation2 + $0xb0] sm:$0xff] %vm3299, 0.0
      %3323 = vst.msk [vmem:[#allocation2 + $0xb8] sm:$0xff] %vm3299, 0.0
      %3324 = vst.msk [vmem:[#allocation2 + $0xc0] sm:$0xff] %vm3299, 0.0
      %3325 = vst.msk [vmem:[#allocation2 + $0xc8] sm:$0xff] %vm3299, 0.0
      %3326 = vst.msk [vmem:[#allocation2 + $0xd0] sm:$0xff] %vm3299, 0.0
      %3327 = vst.msk [vmem:[#allocation2 + $0xd8] sm:$0xff] %vm3299, 0.0
      %3328 = vst.msk [vmem:[#allocation2 + $0xe0] sm:$0xff] %vm3299, 0.0
      %3329 = vst.msk [vmem:[#allocation2 + $0xe8] sm:$0xff] %vm3299, 0.0
      %3330 = vst.msk [vmem:[#allocation2 + $0xf0] sm:$0xff] %vm3299, 0.0
      %3331 = vst.msk [vmem:[#allocation2 + $0xf8] sm:$0xff] %vm3299, 0.0
      %3332 = vst.msk [vmem:[#allocation2 + $0x100] sm:$0xff] %vm3299, 0.0
      %3333 = vst.msk [vmem:[#allocation2 + $0x108] sm:$0xff] %vm3299, 0.0
      %3334 = vst.msk [vmem:[#allocation2 + $0x110] sm:$0xff] %vm3299, 0.0
      %3335 = vst.msk [vmem:[#allocation2 + $0x118] sm:$0xff] %vm3299, 0.0
      %3336 = vst.msk [vmem:[#allocation2 + $0x120] sm:$0xff] %vm3299, 0.0
      %3337 = vst.msk [vmem:[#allocation2 + $0x128] sm:$0xff] %vm3299, 0.0
      %3338 = vst.msk [vmem:[#allocation2 + $0x130] sm:$0xff] %vm3299, 0.0
      %3339 = vst.msk [vmem:[#allocation2 + $0x138] sm:$0xff] %vm3299, 0.0
      %3340 = vst.msk [vmem:[#allocation2 + $0x140] sm:$0xff] %vm3299, 0.0
      %3341 = vst.msk [vmem:[#allocation2 + $0x148] sm:$0xff] %vm3299, 0.0
      %3342 = vst.msk [vmem:[#allocation2 + $0x150] sm:$0xff] %vm3299, 0.0
      %3343 = vst.msk [vmem:[#allocation2 + $0x158] sm:$0xff] %vm3299, 0.0
      %3344 = vst.msk [vmem:[#allocation2 + $0x160] sm:$0xff] %vm3299, 0.0
      %3345 = vst.msk [vmem:[#allocation2 + $0x25] sm:$0xff] %vm3299, %v3263
      %3346 = vst.msk [vmem:[#allocation2 + $0x2d] sm:$0xff] %vm3299, %v3264
      %3347 = vst.msk [vmem:[#allocation2 + $0x35] sm:$0xff] %vm3299, %v3265
      %3348 = vst.msk [vmem:[#allocation2 + $0x3d] sm:$0xff] %vm3299, %v3266
      %3349 = vst.msk [vmem:[#allocation2 + $0x45] sm:$0xff] %vm3299, %v3267
      %3350 = vst.msk [vmem:[#allocation2 + $0x4d] sm:$0xff] %vm3299, %v3268
      %3351 = vst.msk [vmem:[#allocation2 + $0x55] sm:$0xff] %vm3299, %v3269
      %3352 = vst.msk [vmem:[#allocation2 + $0x5d] sm:$0xff] %vm3299, %v3270
      %3353 = vst.msk [vmem:[#allocation2 + $0x65] sm:$0xff] %vm3299, %v3271
      %3354 = vst.msk [vmem:[#allocation2 + $0x6d] sm:$0xff] %vm3299, %v3272
      %3355 = vst.msk [vmem:[#allocation2 + $0x75] sm:$0xff] %vm3299, %v3273
      %3356 = vst.msk [vmem:[#allocation2 + $0x7d] sm:$0xff] %vm3299, %v3274
      %3357 = vst.msk [vmem:[#allocation2 + $0x85] sm:$0xff] %vm3299, %v3275
      %3358 = vst.msk [vmem:[#allocation2 + $0x8d] sm:$0xff] %vm3299, %v3276
      %3359 = vst.msk [vmem:[#allocation2 + $0x95] sm:$0xff] %vm3299, %v3277
      %3360 = vst.msk [vmem:[#allocation2 + $0x9d] sm:$0xff] %vm3299, %v3278
      %3361 = vst.msk [vmem:[#allocation2 + $0xa5] sm:$0xff] %vm3299, %v3279
      %3362 = vst.msk [vmem:[#allocation2 + $0xad] sm:$0xff] %vm3299, %v3280
      %3363 = vst.msk [vmem:[#allocation2 + $0xb5] sm:$0xff] %vm3299, %v3281
      %3364 = vst.msk [vmem:[#allocation2 + $0xbd] sm:$0xff] %vm3299, %v3282
      %3365 = vst.msk [vmem:[#allocation2 + $0xc5] sm:$0xff] %vm3299, %v3283
      %3366 = vst.msk [vmem:[#allocation2 + $0xcd] sm:$0xff] %vm3299, %v3284
      %3367 = vst.msk [vmem:[#allocation2 + $0xd5] sm:$0xff] %vm3299, %v3285
      %3368 = vst.msk [vmem:[#allocation2 + $0xdd] sm:$0xff] %vm3299, %v3286
      %3369 = vst.msk [vmem:[#allocation2 + $0xe5] sm:$0xff] %vm3299, %v3287
      %3370 = vst.msk [vmem:[#allocation2 + $0xed] sm:$0xff] %vm3299, %v3288
      %3371 = vst.msk [vmem:[#allocation2 + $0xf5] sm:$0xff] %vm3299, %v3289
      %3372 = vst.msk [vmem:[#allocation2 + $0xfd] sm:$0xff] %vm3299, %v3290
      %3373 = vst.msk [vmem:[#allocation2 + $0x105] sm:$0xff] %vm3299, %v3291
      %3374 = vst.msk [vmem:[#allocation2 + $0x10d] sm:$0xff] %vm3299, %v3292
      %3375 = vst.msk [vmem:[#allocation2 + $0x115] sm:$0xff] %vm3299, %v3293
      %3376 = vst.msk [vmem:[#allocation2 + $0x11d] sm:$0xff] %vm3299, %v3294
      %3377 = vst.msk [vmem:[#allocation2 + $0x125] sm:$0xff] %vm3299, %v3295
      %3378 = vst.msk [vmem:[#allocation2 + $0x12d] sm:$0xff] %vm3299, %v3296
      %3379 = vst.msk [vmem:[#allocation2 + $0x135] sm:$0xff] %vm3299, %v3297
      %3380 = vst.msk [vmem:[#allocation2 + $0x13d] sm:$0xff] %vm3299, %v3298
      %v3381 = vld [vmem:[#allocation2 + $0x12] sm:$0xff]
      %v3382 = vld [vmem:[#allocation2 + $0x1a] sm:$0xff]
      %v3383 = vld [vmem:[#allocation2 + $0x22] sm:$0xff]
      %v3384 = vld [vmem:[#allocation2 + $0x2a] sm:$0xff]
      %v3385 = vld [vmem:[#allocation2 + $0x32] sm:$0xff]
      %v3386 = vld [vmem:[#allocation2 + $0x3a] sm:$0xff]
      %v3387 = vld [vmem:[#allocation2 + $0x42] sm:$0xff]
      %v3388 = vld [vmem:[#allocation2 + $0x4a] sm:$0xff]
      %v3389 = vld [vmem:[#allocation2 + $0x52] sm:$0xff]
      %v3390 = vld [vmem:[#allocation2 + $0x5a] sm:$0xff]
      %v3391 = vld [vmem:[#allocation2 + $0x62] sm:$0xff]
      %v3392 = vld [vmem:[#allocation2 + $0x6a] sm:$0xff]
      %v3393 = vld [vmem:[#allocation2 + $0x72] sm:$0xff]
      %v3394 = vld [vmem:[#allocation2 + $0x7a] sm:$0xff]
      %v3395 = vld [vmem:[#allocation2 + $0x82] sm:$0xff]
      %v3396 = vld [vmem:[#allocation2 + $0x8a] sm:$0xff]
      %v3397 = vld [vmem:[#allocation2 + $0x92] sm:$0xff]
      %v3398 = vld [vmem:[#allocation2 + $0x9a] sm:$0xff]
      %v3399 = vld [vmem:[#allocation2 + $0xa2] sm:$0xff]
      %v3400 = vld [vmem:[#allocation2 + $0xaa] sm:$0xff]
      %v3401 = vld [vmem:[#allocation2 + $0xb2] sm:$0xff]
      %v3402 = vld [vmem:[#allocation2 + $0xba] sm:$0xff]
      %v3403 = vld [vmem:[#allocation2 + $0xc2] sm:$0xff]
      %v3404 = vld [vmem:[#allocation2 + $0xca] sm:$0xff]
      %v3405 = vld [vmem:[#allocation2 + $0xd2] sm:$0xff]
      %v3406 = vld [vmem:[#allocation2 + $0xda] sm:$0xff]
      %v3407 = vld [vmem:[#allocation2 + $0xe2] sm:$0xff]
      %v3408 = vld [vmem:[#allocation2 + $0xea] sm:$0xff]
      %v3409 = vld [vmem:[#allocation2 + $0xf2] sm:$0xff]
      %v3410 = vld [vmem:[#allocation2 + $0xfa] sm:$0xff]
      %v3411 = vld [vmem:[#allocation2 + $0x102] sm:$0xff]
      %v3412 = vld [vmem:[#allocation2 + $0x10a] sm:$0xff]
      %v3413 = vld [vmem:[#allocation2 + $0x112] sm:$0xff]
      %v3414 = vld [vmem:[#allocation2 + $0x11a] sm:$0xff]
      %v3415 = vld [vmem:[#allocation2 + $0x122] sm:$0xff]
      %v3416 = vld [vmem:[#allocation2 + $0x12a] sm:$0xff]
      %v3417 = vld [vmem:[%s4] sm:$0xff]
      %v3418 = vld [vmem:[#allocation2 + $0x13] sm:$0xff]
      %v3419 = vld [vmem:[#allocation2 + $0x1b] sm:$0xff]
      %v3420 = vld [vmem:[#allocation2 + $0x23] sm:$0xff]
      %v3421 = vld [vmem:[#allocation2 + $0x2b] sm:$0xff]
      %v3422 = vld [vmem:[#allocation2 + $0x33] sm:$0xff]
      %v3423 = vld [vmem:[#allocation2 + $0x3b] sm:$0xff]
      %v3424 = vld [vmem:[#allocation2 + $0x43] sm:$0xff]
      %v3425 = vld [vmem:[#allocation2 + $0x4b] sm:$0xff]
      %v3426 = vld [vmem:[#allocation2 + $0x53] sm:$0xff]
      %v3427 = vld [vmem:[#allocation2 + $0x5b] sm:$0xff]
      %v3428 = vld [vmem:[#allocation2 + $0x63] sm:$0xff]
      %v3429 = vld [vmem:[#allocation2 + $0x6b] sm:$0xff]
      %v3430 = vld [vmem:[#allocation2 + $0x73] sm:$0xff]
      %v3431 = vld [vmem:[#allocation2 + $0x7b] sm:$0xff]
      %v3432 = vld [vmem:[#allocation2 + $0x83] sm:$0xff]
      %v3433 = vld [vmem:[#allocation2 + $0x8b] sm:$0xff]
      %v3434 = vld [vmem:[#allocation2 + $0x93] sm:$0xff]
      %v3435 = vld [vmem:[#allocation2 + $0x9b] sm:$0xff]
      %v3436 = vld [vmem:[#allocation2 + $0xa3] sm:$0xff]
      %v3437 = vld [vmem:[#allocation2 + $0xab] sm:$0xff]
      %v3438 = vld [vmem:[#allocation2 + $0xb3] sm:$0xff]
      %v3439 = vld [vmem:[#allocation2 + $0xbb] sm:$0xff]
      %v3440 = vld [vmem:[#allocation2 + $0xc3] sm:$0xff]
      %v3441 = vld [vmem:[#allocation2 + $0xcb] sm:$0xff]
      %v3442 = vld [vmem:[#allocation2 + $0xd3] sm:$0xff]
      %v3443 = vld [vmem:[#allocation2 + $0xdb] sm:$0xff]
      %v3444 = vld [vmem:[#allocation2 + $0xe3] sm:$0xff]
      %v3445 = vld [vmem:[#allocation2 + $0xeb] sm:$0xff]
      %v3446 = vld [vmem:[#allocation2 + $0xf3] sm:$0xff]
      %v3447 = vld [vmem:[#allocation2 + $0xfb] sm:$0xff]
      %v3448 = vld [vmem:[#allocation2 + $0x103] sm:$0xff]
      %v3449 = vld [vmem:[#allocation2 + $0x10b] sm:$0xff]
      %v3450 = vld [vmem:[#allocation2 + $0x113] sm:$0xff]
      %v3451 = vld [vmem:[#allocation2 + $0x11b] sm:$0xff]
      %v3452 = vld [vmem:[#allocation2 + $0x123] sm:$0xff]
      %v3453 = vld [vmem:[#allocation2 + $0x12b] sm:$0xff]
      %s3454 = scalar_lea.vmem %s4, 8
      %v3455 = vld [vmem:[%s3454] sm:$0xff]
      %v3457 = vsel %vm3299, %v3418, 0
      %v3460 = vsel %vm3299, %v3419, 0
      %v3463 = vsel %vm3299, %v3420, 0
      %v3466 = vsel %vm3299, %v3421, 0
      %v3469 = vsel %vm3299, %v3422, 0
      %v3472 = vsel %vm3299, %v3423, 0
      %v3475 = vsel %vm3299, %v3424, 0
      %v3478 = vsel %vm3299, %v3425, 0
      %v3481 = vsel %vm3299, %v3426, 0
      %v3484 = vsel %vm3299, %v3427, 0
      %v3487 = vsel %vm3299, %v3428, 0
      %v3490 = vsel %vm3299, %v3429, 0
      %v3493 = vsel %vm3299, %v3430, 0
      %v3496 = vsel %vm3299, %v3431, 0
      %v3499 = vsel %vm3299, %v3432, 0
      %v3502 = vsel %vm3299, %v3433, 0
      %v3505 = vsel %vm3299, %v3434, 0
      %v3508 = vsel %vm3299, %v3435, 0
      %v3511 = vsel %vm3299, %v3436, 0
      %v3514 = vsel %vm3299, %v3437, 0
      %v3517 = vsel %vm3299, %v3438, 0
      %v3520 = vsel %vm3299, %v3439, 0
      %v3523 = vsel %vm3299, %v3440, 0
      %v3526 = vsel %vm3299, %v3441, 0
      %v3529 = vsel %vm3299, %v3442, 0
      %v3532 = vsel %vm3299, %v3443, 0
      %v3535 = vsel %vm3299, %v3444, 0
      %v3538 = vsel %vm3299, %v3445, 0
      %v3541 = vsel %vm3299, %v3446, 0
      %v3544 = vsel %vm3299, %v3447, 0
      %v3547 = vsel %vm3299, %v3448, 0
      %v3550 = vsel %vm3299, %v3449, 0
      %v3553 = vsel %vm3299, %v3450, 0
      %v3556 = vsel %vm3299, %v3451, 0
      %v3559 = vsel %vm3299, %v3452, 0
      %v3562 = vsel %vm3299, %v3453, 0
      %3564 = vmatpush.msra.mxu0 0.0
      %3565 = vmatpush.msra.mxu0 0.0
      %3566 = vmatpush.msra.mxu0 0.0
      %3567 = vmatpush.msra.mxu0 0.0
      %3568 = vmatpush.msra.mxu0 0.0
      %3569 = vmatpush.msra.mxu0 0.0
      %3570 = vmatpush.msra.mxu0 0.0
      %3571 = vmatpush.msra.mxu0 0.0
      %3572 = vmatpush.msra.mxu0 0.0
      %3573 = vmatpush.msra.mxu0 0.0
      %3574 = vmatpush.msra.mxu0 0.0
      %3575 = vmatpush.msra.mxu0 0.0
      %3576 = vmatpush.msra.mxu0 0.0
      %3577 = vmatpush.msra.mxu0 0.0
      %3578 = vmatpush.msra.mxu0 0.0
      %3579 = vmatpush.msra.mxu0 %v3455
      %3580 = vmatmul.f32.gmra.mxu0 %v3457
      %v3581 = vpop.f32.mrf.mxu0
      %v3582 = vadd.f32 0.0, %v3581
      %3583 = vmatmul.f32.gmra.mxu0 %v3460
      %v3584 = vpop.f32.mrf.mxu0
      %v3585 = vadd.f32 0.0, %v3584
      %3586 = vmatmul.f32.gmra.mxu0 %v3463
      %v3587 = vpop.f32.mrf.mxu0
      %v3588 = vadd.f32 0.0, %v3587
      %3589 = vmatmul.f32.gmra.mxu0 %v3466
      %v3590 = vpop.f32.mrf.mxu0
      %v3591 = vadd.f32 0.0, %v3590
      %3592 = vmatmul.f32.gmra.mxu0 %v3469
      %v3593 = vpop.f32.mrf.mxu0
      %v3594 = vadd.f32 0.0, %v3593
      %3595 = vmatmul.f32.gmra.mxu0 %v3472
      %v3596 = vpop.f32.mrf.mxu0
      %v3597 = vadd.f32 0.0, %v3596
      %3598 = vmatmul.f32.gmra.mxu0 %v3475
      %v3599 = vpop.f32.mrf.mxu0
      %v3600 = vadd.f32 0.0, %v3599
      %3601 = vmatmul.f32.gmra.mxu0 %v3478
      %v3602 = vpop.f32.mrf.mxu0
      %v3603 = vadd.f32 0.0, %v3602
      %3604 = vmatmul.f32.gmra.mxu0 %v3481
      %v3605 = vpop.f32.mrf.mxu0
      %v3606 = vadd.f32 0.0, %v3605
      %3607 = vmatmul.f32.gmra.mxu0 %v3484
      %v3608 = vpop.f32.mrf.mxu0
      %v3609 = vadd.f32 0.0, %v3608
      %3610 = vmatmul.f32.gmra.mxu0 %v3487
      %v3611 = vpop.f32.mrf.mxu0
      %v3612 = vadd.f32 0.0, %v3611
      %3613 = vmatmul.f32.gmra.mxu0 %v3490
      %v3614 = vpop.f32.mrf.mxu0
      %v3615 = vadd.f32 0.0, %v3614
      %3616 = vmatmul.f32.gmra.mxu0 %v3493
      %v3617 = vpop.f32.mrf.mxu0
      %v3618 = vadd.f32 0.0, %v3617
      %3619 = vmatmul.f32.gmra.mxu0 %v3496
      %v3620 = vpop.f32.mrf.mxu0
      %v3621 = vadd.f32 0.0, %v3620
      %3622 = vmatmul.f32.gmra.mxu0 %v3499
      %v3623 = vpop.f32.mrf.mxu0
      %v3624 = vadd.f32 0.0, %v3623
      %3625 = vmatmul.f32.gmra.mxu0 %v3502
      %v3626 = vpop.f32.mrf.mxu0
      %v3627 = vadd.f32 0.0, %v3626
      %3628 = vmatmul.f32.gmra.mxu0 %v3505
      %v3629 = vpop.f32.mrf.mxu0
      %v3630 = vadd.f32 0.0, %v3629
      %3631 = vmatmul.f32.gmra.mxu0 %v3508
      %v3632 = vpop.f32.mrf.mxu0
      %v3633 = vadd.f32 0.0, %v3632
      %3634 = vmatmul.f32.gmra.mxu0 %v3511
      %v3635 = vpop.f32.mrf.mxu0
      %v3636 = vadd.f32 0.0, %v3635
      %3637 = vmatmul.f32.gmra.mxu0 %v3514
      %v3638 = vpop.f32.mrf.mxu0
      %v3639 = vadd.f32 0.0, %v3638
      %3640 = vmatmul.f32.gmra.mxu0 %v3517
      %v3641 = vpop.f32.mrf.mxu0
      %v3642 = vadd.f32 0.0, %v3641
      %3643 = vmatmul.f32.gmra.mxu0 %v3520
      %v3644 = vpop.f32.mrf.mxu0
      %v3645 = vadd.f32 0.0, %v3644
      %3646 = vmatmul.f32.gmra.mxu0 %v3523
      %v3647 = vpop.f32.mrf.mxu0
      %v3648 = vadd.f32 0.0, %v3647
      %3649 = vmatmul.f32.gmra.mxu0 %v3526
      %v3650 = vpop.f32.mrf.mxu0
      %v3651 = vadd.f32 0.0, %v3650
      %3652 = vmatmul.f32.gmra.mxu0 %v3529
      %v3653 = vpop.f32.mrf.mxu0
      %v3654 = vadd.f32 0.0, %v3653
      %3655 = vmatmul.f32.gmra.mxu0 %v3532
      %v3656 = vpop.f32.mrf.mxu0
      %v3657 = vadd.f32 0.0, %v3656
      %3658 = vmatmul.f32.gmra.mxu0 %v3535
      %v3659 = vpop.f32.mrf.mxu0
      %v3660 = vadd.f32 0.0, %v3659
      %3661 = vmatmul.f32.gmra.mxu0 %v3538
      %v3662 = vpop.f32.mrf.mxu0
      %v3663 = vadd.f32 0.0, %v3662
      %3664 = vmatmul.f32.gmra.mxu0 %v3541
      %v3665 = vpop.f32.mrf.mxu0
      %v3666 = vadd.f32 0.0, %v3665
      %3667 = vmatmul.f32.gmra.mxu0 %v3544
      %v3668 = vpop.f32.mrf.mxu0
      %v3669 = vadd.f32 0.0, %v3668
      %3670 = vmatmul.f32.gmra.mxu0 %v3547
      %v3671 = vpop.f32.mrf.mxu0
      %v3672 = vadd.f32 0.0, %v3671
      %3673 = vmatmul.f32.gmra.mxu0 %v3550
      %v3674 = vpop.f32.mrf.mxu0
      %v3675 = vadd.f32 0.0, %v3674
      %3676 = vmatmul.f32.gmra.mxu0 %v3553
      %v3677 = vpop.f32.mrf.mxu0
      %v3678 = vadd.f32 0.0, %v3677
      %3679 = vmatmul.f32.gmra.mxu0 %v3556
      %v3680 = vpop.f32.mrf.mxu0
      %v3681 = vadd.f32 0.0, %v3680
      %3682 = vmatmul.f32.gmra.mxu0 %v3559
      %v3683 = vpop.f32.mrf.mxu0
      %v3684 = vadd.f32 0.0, %v3683
      %3685 = vmatmul.f32.gmra.mxu0 %v3562
      %v3686 = vpop.f32.mrf.mxu0
      %v3687 = vadd.f32 0.0, %v3686
      %3688 = vdwg.mxu0
      %v3690 = vsel %vm3299, %v3381, 0
      %v3693 = vsel %vm3299, %v3382, 0
      %v3696 = vsel %vm3299, %v3383, 0
      %v3699 = vsel %vm3299, %v3384, 0
      %v3702 = vsel %vm3299, %v3385, 0
      %v3705 = vsel %vm3299, %v3386, 0
      %v3708 = vsel %vm3299, %v3387, 0
      %v3711 = vsel %vm3299, %v3388, 0
      %v3714 = vsel %vm3299, %v3389, 0
      %v3717 = vsel %vm3299, %v3390, 0
      %v3720 = vsel %vm3299, %v3391, 0
      %v3723 = vsel %vm3299, %v3392, 0
      %v3726 = vsel %vm3299, %v3393, 0
      %v3729 = vsel %vm3299, %v3394, 0
      %v3732 = vsel %vm3299, %v3395, 0
      %v3735 = vsel %vm3299, %v3396, 0
      %v3738 = vsel %vm3299, %v3397, 0
      %v3741 = vsel %vm3299, %v3398, 0
      %v3744 = vsel %vm3299, %v3399, 0
      %v3747 = vsel %vm3299, %v3400, 0
      %v3750 = vsel %vm3299, %v3401, 0
      %v3753 = vsel %vm3299, %v3402, 0
      %v3756 = vsel %vm3299, %v3403, 0
      %v3759 = vsel %vm3299, %v3404, 0
      %v3762 = vsel %vm3299, %v3405, 0
      %v3765 = vsel %vm3299, %v3406, 0
      %v3768 = vsel %vm3299, %v3407, 0
      %v3771 = vsel %vm3299, %v3408, 0
      %v3774 = vsel %vm3299, %v3409, 0
      %v3777 = vsel %vm3299, %v3410, 0
      %v3780 = vsel %vm3299, %v3411, 0
      %v3783 = vsel %vm3299, %v3412, 0
      %v3786 = vsel %vm3299, %v3413, 0
      %v3789 = vsel %vm3299, %v3414, 0
      %v3792 = vsel %vm3299, %v3415, 0
      %v3795 = vsel %vm3299, %v3416, 0
      %3797 = vmatpush.msra.mxu0 0.0
      %3798 = vmatpush.msra.mxu0 0.0
      %3799 = vmatpush.msra.mxu0 0.0
      %3800 = vmatpush.msra.mxu0 0.0
      %3801 = vmatpush.msra.mxu0 0.0
      %3802 = vmatpush.msra.mxu0 0.0
      %3803 = vmatpush.msra.mxu0 0.0
      %3804 = vmatpush.msra.mxu0 0.0
      %3805 = vmatpush.msra.mxu0 0.0
      %3806 = vmatpush.msra.mxu0 0.0
      %3807 = vmatpush.msra.mxu0 0.0
      %3808 = vmatpush.msra.mxu0 0.0
      %3809 = vmatpush.msra.mxu0 0.0
      %3810 = vmatpush.msra.mxu0 0.0
      %3811 = vmatpush.msra.mxu0 0.0
      %3812 = vmatpush.msra.mxu0 %v3417
      %3813 = vmatmul.f32.gmra.mxu0 %v3690
      %v3814 = vpop.f32.mrf.mxu0
      %v3815 = vadd.f32 %v3582, %v3814
      %3816 = vmatmul.f32.gmra.mxu0 %v3693
      %v3817 = vpop.f32.mrf.mxu0
      %v3818 = vadd.f32 %v3585, %v3817
      %3819 = vmatmul.f32.gmra.mxu0 %v3696
      %v3820 = vpop.f32.mrf.mxu0
      %v3821 = vadd.f32 %v3588, %v3820
      %3822 = vmatmul.f32.gmra.mxu0 %v3699
      %v3823 = vpop.f32.mrf.mxu0
      %v3824 = vadd.f32 %v3591, %v3823
      %3825 = vmatmul.f32.gmra.mxu0 %v3702
      %v3826 = vpop.f32.mrf.mxu0
      %v3827 = vadd.f32 %v3594, %v3826
      %3828 = vmatmul.f32.gmra.mxu0 %v3705
      %v3829 = vpop.f32.mrf.mxu0
      %v3830 = vadd.f32 %v3597, %v3829
      %3831 = vmatmul.f32.gmra.mxu0 %v3708
      %v3832 = vpop.f32.mrf.mxu0
      %v3833 = vadd.f32 %v3600, %v3832
      %3834 = vmatmul.f32.gmra.mxu0 %v3711
      %v3835 = vpop.f32.mrf.mxu0
      %v3836 = vadd.f32 %v3603, %v3835
      %3837 = vmatmul.f32.gmra.mxu0 %v3714
      %v3838 = vpop.f32.mrf.mxu0
      %v3839 = vadd.f32 %v3606, %v3838
      %3840 = vmatmul.f32.gmra.mxu0 %v3717
      %v3841 = vpop.f32.mrf.mxu0
      %v3842 = vadd.f32 %v3609, %v3841
      %3843 = vmatmul.f32.gmra.mxu0 %v3720
      %v3844 = vpop.f32.mrf.mxu0
      %v3845 = vadd.f32 %v3612, %v3844
      %3846 = vmatmul.f32.gmra.mxu0 %v3723
      %v3847 = vpop.f32.mrf.mxu0
      %v3848 = vadd.f32 %v3615, %v3847
      %3849 = vmatmul.f32.gmra.mxu0 %v3726
      %v3850 = vpop.f32.mrf.mxu0
      %v3851 = vadd.f32 %v3618, %v3850
      %3852 = vmatmul.f32.gmra.mxu0 %v3729
      %v3853 = vpop.f32.mrf.mxu0
      %v3854 = vadd.f32 %v3621, %v3853
      %3855 = vmatmul.f32.gmra.mxu0 %v3732
      %v3856 = vpop.f32.mrf.mxu0
      %v3857 = vadd.f32 %v3624, %v3856
      %3858 = vmatmul.f32.gmra.mxu0 %v3735
      %v3859 = vpop.f32.mrf.mxu0
      %v3860 = vadd.f32 %v3627, %v3859
      %3861 = vmatmul.f32.gmra.mxu0 %v3738
      %v3862 = vpop.f32.mrf.mxu0
      %v3863 = vadd.f32 %v3630, %v3862
      %3864 = vmatmul.f32.gmra.mxu0 %v3741
      %v3865 = vpop.f32.mrf.mxu0
      %v3866 = vadd.f32 %v3633, %v3865
      %3867 = vmatmul.f32.gmra.mxu0 %v3744
      %v3868 = vpop.f32.mrf.mxu0
      %v3869 = vadd.f32 %v3636, %v3868
      %3870 = vmatmul.f32.gmra.mxu0 %v3747
      %v3871 = vpop.f32.mrf.mxu0
      %v3872 = vadd.f32 %v3639, %v3871
      %3873 = vmatmul.f32.gmra.mxu0 %v3750
      %v3874 = vpop.f32.mrf.mxu0
      %v3875 = vadd.f32 %v3642, %v3874
      %3876 = vmatmul.f32.gmra.mxu0 %v3753
      %v3877 = vpop.f32.mrf.mxu0
      %v3878 = vadd.f32 %v3645, %v3877
      %3879 = vmatmul.f32.gmra.mxu0 %v3756
      %v3880 = vpop.f32.mrf.mxu0
      %v3881 = vadd.f32 %v3648, %v3880
      %3882 = vmatmul.f32.gmra.mxu0 %v3759
      %v3883 = vpop.f32.mrf.mxu0
      %v3884 = vadd.f32 %v3651, %v3883
      %3885 = vmatmul.f32.gmra.mxu0 %v3762
      %v3886 = vpop.f32.mrf.mxu0
      %v3887 = vadd.f32 %v3654, %v3886
      %3888 = vmatmul.f32.gmra.mxu0 %v3765
      %v3889 = vpop.f32.mrf.mxu0
      %v3890 = vadd.f32 %v3657, %v3889
      %3891 = vmatmul.f32.gmra.mxu0 %v3768
      %v3892 = vpop.f32.mrf.mxu0
      %v3893 = vadd.f32 %v3660, %v3892
      %3894 = vmatmul.f32.gmra.mxu0 %v3771
      %v3895 = vpop.f32.mrf.mxu0
      %v3896 = vadd.f32 %v3663, %v3895
      %3897 = vmatmul.f32.gmra.mxu0 %v3774
      %v3898 = vpop.f32.mrf.mxu0
      %v3899 = vadd.f32 %v3666, %v3898
      %3900 = vmatmul.f32.gmra.mxu0 %v3777
      %v3901 = vpop.f32.mrf.mxu0
      %v3902 = vadd.f32 %v3669, %v3901
      %3903 = vmatmul.f32.gmra.mxu0 %v3780
      %v3904 = vpop.f32.mrf.mxu0
      %v3905 = vadd.f32 %v3672, %v3904
      %3906 = vmatmul.f32.gmra.mxu0 %v3783
      %v3907 = vpop.f32.mrf.mxu0
      %v3908 = vadd.f32 %v3675, %v3907
      %3909 = vmatmul.f32.gmra.mxu0 %v3786
      %v3910 = vpop.f32.mrf.mxu0
      %v3911 = vadd.f32 %v3678, %v3910
      %3912 = vmatmul.f32.gmra.mxu0 %v3789
      %v3913 = vpop.f32.mrf.mxu0
      %v3914 = vadd.f32 %v3681, %v3913
      %3915 = vmatmul.f32.gmra.mxu0 %v3792
      %v3916 = vpop.f32.mrf.mxu0
      %v3917 = vadd.f32 %v3684, %v3916
      %3918 = vmatmul.f32.gmra.mxu0 %v3795
      %v3919 = vpop.f32.mrf.mxu0
      %v3920 = vadd.f32 %v3687, %v3919
      %3921 = vdwg.mxu0
      %v3922 = vld [vmem:[#allocation2 + $0x14] sm:$0xff]
      %v3923 = vld [vmem:[#allocation2 + $0x1c] sm:$0xff]
      %v3924 = vld [vmem:[#allocation2 + $0x24] sm:$0xff]
      %v3925 = vld [vmem:[#allocation2 + $0x2c] sm:$0xff]
      %v3926 = vld [vmem:[#allocation2 + $0x34] sm:$0xff]
      %v3927 = vld [vmem:[#allocation2 + $0x3c] sm:$0xff]
      %v3928 = vld [vmem:[#allocation2 + $0x44] sm:$0xff]
      %v3929 = vld [vmem:[#allocation2 + $0x4c] sm:$0xff]
      %v3930 = vld [vmem:[#allocation2 + $0x54] sm:$0xff]
      %v3931 = vld [vmem:[#allocation2 + $0x5c] sm:$0xff]
      %v3932 = vld [vmem:[#allocation2 + $0x64] sm:$0xff]
      %v3933 = vld [vmem:[#allocation2 + $0x6c] sm:$0xff]
      %v3934 = vld [vmem:[#allocation2 + $0x74] sm:$0xff]
      %v3935 = vld [vmem:[#allocation2 + $0x7c] sm:$0xff]
      %v3936 = vld [vmem:[#allocation2 + $0x84] sm:$0xff]
      %v3937 = vld [vmem:[#allocation2 + $0x8c] sm:$0xff]
      %v3938 = vld [vmem:[#allocation2 + $0x94] sm:$0xff]
      %v3939 = vld [vmem:[#allocation2 + $0x9c] sm:$0xff]
      %v3940 = vld [vmem:[#allocation2 + $0xa4] sm:$0xff]
      %v3941 = vld [vmem:[#allocation2 + $0xac] sm:$0xff]
      %v3942 = vld [vmem:[#allocation2 + $0xb4] sm:$0xff]
      %v3943 = vld [vmem:[#allocation2 + $0xbc] sm:$0xff]
      %v3944 = vld [vmem:[#allocation2 + $0xc4] sm:$0xff]
      %v3945 = vld [vmem:[#allocation2 + $0xcc] sm:$0xff]
      %v3946 = vld [vmem:[#allocation2 + $0xd4] sm:$0xff]
      %v3947 = vld [vmem:[#allocation2 + $0xdc] sm:$0xff]
      %v3948 = vld [vmem:[#allocation2 + $0xe4] sm:$0xff]
      %v3949 = vld [vmem:[#allocation2 + $0xec] sm:$0xff]
      %v3950 = vld [vmem:[#allocation2 + $0xf4] sm:$0xff]
      %v3951 = vld [vmem:[#allocation2 + $0xfc] sm:$0xff]
      %v3952 = vld [vmem:[#allocation2 + $0x104] sm:$0xff]
      %v3953 = vld [vmem:[#allocation2 + $0x10c] sm:$0xff]
      %v3954 = vld [vmem:[#allocation2 + $0x114] sm:$0xff]
      %v3955 = vld [vmem:[#allocation2 + $0x11c] sm:$0xff]
      %v3956 = vld [vmem:[#allocation2 + $0x124] sm:$0xff]
      %v3957 = vld [vmem:[#allocation2 + $0x12c] sm:$0xff]
      %s3958 = scalar_lea.vmem %s4, 16
      %v3959 = vld [vmem:[%s3958] sm:$0xff]
      %v3961 = vsel %vm3299, %v3922, 0
      %v3964 = vsel %vm3299, %v3923, 0
      %v3967 = vsel %vm3299, %v3924, 0
      %v3970 = vsel %vm3299, %v3925, 0
      %v3973 = vsel %vm3299, %v3926, 0
      %v3976 = vsel %vm3299, %v3927, 0
      %v3979 = vsel %vm3299, %v3928, 0
      %v3982 = vsel %vm3299, %v3929, 0
      %v3985 = vsel %vm3299, %v3930, 0
      %v3988 = vsel %vm3299, %v3931, 0
      %v3991 = vsel %vm3299, %v3932, 0
      %v3994 = vsel %vm3299, %v3933, 0
      %v3997 = vsel %vm3299, %v3934, 0
      %v4000 = vsel %vm3299, %v3935, 0
      %v4003 = vsel %vm3299, %v3936, 0
      %v4006 = vsel %vm3299, %v3937, 0
      %v4009 = vsel %vm3299, %v3938, 0
      %v4012 = vsel %vm3299, %v3939, 0
      %v4015 = vsel %vm3299, %v3940, 0
      %v4018 = vsel %vm3299, %v3941, 0
      %v4021 = vsel %vm3299, %v3942, 0
      %v4024 = vsel %vm3299, %v3943, 0
      %v4027 = vsel %vm3299, %v3944, 0
      %v4030 = vsel %vm3299, %v3945, 0
      %v4033 = vsel %vm3299, %v3946, 0
      %v4036 = vsel %vm3299, %v3947, 0
      %v4039 = vsel %vm3299, %v3948, 0
      %v4042 = vsel %vm3299, %v3949, 0
      %v4045 = vsel %vm3299, %v3950, 0
      %v4048 = vsel %vm3299, %v3951, 0
      %v4051 = vsel %vm3299, %v3952, 0
      %v4054 = vsel %vm3299, %v3953, 0
      %v4057 = vsel %vm3299, %v3954, 0
      %v4060 = vsel %vm3299, %v3955, 0
      %v4063 = vsel %vm3299, %v3956, 0
      %v4066 = vsel %vm3299, %v3957, 0
      %4068 = vmatpush.msra.mxu0 0.0
      %4069 = vmatpush.msra.mxu0 0.0
      %4070 = vmatpush.msra.mxu0 0.0
      %4071 = vmatpush.msra.mxu0 0.0
      %4072 = vmatpush.msra.mxu0 0.0
      %4073 = vmatpush.msra.mxu0 0.0
      %4074 = vmatpush.msra.mxu0 0.0
      %4075 = vmatpush.msra.mxu0 0.0
      %4076 = vmatpush.msra.mxu0 0.0
      %4077 = vmatpush.msra.mxu0 0.0
      %4078 = vmatpush.msra.mxu0 0.0
      %4079 = vmatpush.msra.mxu0 0.0
      %4080 = vmatpush.msra.mxu0 0.0
      %4081 = vmatpush.msra.mxu0 0.0
      %4082 = vmatpush.msra.mxu0 0.0
      %4083 = vmatpush.msra.mxu0 %v3959
      %4084 = vmatmul.f32.gmra.mxu0 %v3961
      %v4085 = vpop.f32.mrf.mxu0
      %v4086 = vadd.f32 0.0, %v4085
      %4087 = vmatmul.f32.gmra.mxu0 %v3964
      %v4088 = vpop.f32.mrf.mxu0
      %v4089 = vadd.f32 0.0, %v4088
      %4090 = vmatmul.f32.gmra.mxu0 %v3967
      %v4091 = vpop.f32.mrf.mxu0
      %v4092 = vadd.f32 0.0, %v4091
      %4093 = vmatmul.f32.gmra.mxu0 %v3970
      %v4094 = vpop.f32.mrf.mxu0
      %v4095 = vadd.f32 0.0, %v4094
      %4096 = vmatmul.f32.gmra.mxu0 %v3973
      %v4097 = vpop.f32.mrf.mxu0
      %v4098 = vadd.f32 0.0, %v4097
      %4099 = vmatmul.f32.gmra.mxu0 %v3976
      %v4100 = vpop.f32.mrf.mxu0
      %v4101 = vadd.f32 0.0, %v4100
      %4102 = vmatmul.f32.gmra.mxu0 %v3979
      %v4103 = vpop.f32.mrf.mxu0
      %v4104 = vadd.f32 0.0, %v4103
      %4105 = vmatmul.f32.gmra.mxu0 %v3982
      %v4106 = vpop.f32.mrf.mxu0
      %v4107 = vadd.f32 0.0, %v4106
      %4108 = vmatmul.f32.gmra.mxu0 %v3985
      %v4109 = vpop.f32.mrf.mxu0
      %v4110 = vadd.f32 0.0, %v4109
      %4111 = vmatmul.f32.gmra.mxu0 %v3988
      %v4112 = vpop.f32.mrf.mxu0
      %v4113 = vadd.f32 0.0, %v4112
      %4114 = vmatmul.f32.gmra.mxu0 %v3991
      %v4115 = vpop.f32.mrf.mxu0
      %v4116 = vadd.f32 0.0, %v4115
      %4117 = vmatmul.f32.gmra.mxu0 %v3994
      %v4118 = vpop.f32.mrf.mxu0
      %v4119 = vadd.f32 0.0, %v4118
      %4120 = vmatmul.f32.gmra.mxu0 %v3997
      %v4121 = vpop.f32.mrf.mxu0
      %v4122 = vadd.f32 0.0, %v4121
      %4123 = vmatmul.f32.gmra.mxu0 %v4000
      %v4124 = vpop.f32.mrf.mxu0
      %v4125 = vadd.f32 0.0, %v4124
      %4126 = vmatmul.f32.gmra.mxu0 %v4003
      %v4127 = vpop.f32.mrf.mxu0
      %v4128 = vadd.f32 0.0, %v4127
      %4129 = vmatmul.f32.gmra.mxu0 %v4006
      %v4130 = vpop.f32.mrf.mxu0
      %v4131 = vadd.f32 0.0, %v4130
      %4132 = vmatmul.f32.gmra.mxu0 %v4009
      %v4133 = vpop.f32.mrf.mxu0
      %v4134 = vadd.f32 0.0, %v4133
      %4135 = vmatmul.f32.gmra.mxu0 %v4012
      %v4136 = vpop.f32.mrf.mxu0
      %v4137 = vadd.f32 0.0, %v4136
      %4138 = vmatmul.f32.gmra.mxu0 %v4015
      %v4139 = vpop.f32.mrf.mxu0
      %v4140 = vadd.f32 0.0, %v4139
      %4141 = vmatmul.f32.gmra.mxu0 %v4018
      %v4142 = vpop.f32.mrf.mxu0
      %v4143 = vadd.f32 0.0, %v4142
      %4144 = vmatmul.f32.gmra.mxu0 %v4021
      %v4145 = vpop.f32.mrf.mxu0
      %v4146 = vadd.f32 0.0, %v4145
      %4147 = vmatmul.f32.gmra.mxu0 %v4024
      %v4148 = vpop.f32.mrf.mxu0
      %v4149 = vadd.f32 0.0, %v4148
      %4150 = vmatmul.f32.gmra.mxu0 %v4027
      %v4151 = vpop.f32.mrf.mxu0
      %v4152 = vadd.f32 0.0, %v4151
      %4153 = vmatmul.f32.gmra.mxu0 %v4030
      %v4154 = vpop.f32.mrf.mxu0
      %v4155 = vadd.f32 0.0, %v4154
      %4156 = vmatmul.f32.gmra.mxu0 %v4033
      %v4157 = vpop.f32.mrf.mxu0
      %v4158 = vadd.f32 0.0, %v4157
      %4159 = vmatmul.f32.gmra.mxu0 %v4036
      %v4160 = vpop.f32.mrf.mxu0
      %v4161 = vadd.f32 0.0, %v4160
      %4162 = vmatmul.f32.gmra.mxu0 %v4039
      %v4163 = vpop.f32.mrf.mxu0
      %v4164 = vadd.f32 0.0, %v4163
      %4165 = vmatmul.f32.gmra.mxu0 %v4042
      %v4166 = vpop.f32.mrf.mxu0
      %v4167 = vadd.f32 0.0, %v4166
      %4168 = vmatmul.f32.gmra.mxu0 %v4045
      %v4169 = vpop.f32.mrf.mxu0
      %v4170 = vadd.f32 0.0, %v4169
      %4171 = vmatmul.f32.gmra.mxu0 %v4048
      %v4172 = vpop.f32.mrf.mxu0
      %v4173 = vadd.f32 0.0, %v4172
      %4174 = vmatmul.f32.gmra.mxu0 %v4051
      %v4175 = vpop.f32.mrf.mxu0
      %v4176 = vadd.f32 0.0, %v4175
      %4177 = vmatmul.f32.gmra.mxu0 %v4054
      %v4178 = vpop.f32.mrf.mxu0
      %v4179 = vadd.f32 0.0, %v4178
      %4180 = vmatmul.f32.gmra.mxu0 %v4057
      %v4181 = vpop.f32.mrf.mxu0
      %v4182 = vadd.f32 0.0, %v4181
      %4183 = vmatmul.f32.gmra.mxu0 %v4060
      %v4184 = vpop.f32.mrf.mxu0
      %v4185 = vadd.f32 0.0, %v4184
      %4186 = vmatmul.f32.gmra.mxu0 %v4063
      %v4187 = vpop.f32.mrf.mxu0
      %v4188 = vadd.f32 0.0, %v4187
      %4189 = vmatmul.f32.gmra.mxu0 %v4066
      %v4190 = vpop.f32.mrf.mxu0
      %v4191 = vadd.f32 0.0, %v4190
      %4192 = vdwg.mxu0
      %v4193 = vadd.f32 %v3815, %v4086
      %v4194 = vadd.f32 %v3818, %v4089
      %v4195 = vadd.f32 %v3821, %v4092
      %v4196 = vadd.f32 %v3824, %v4095
      %v4197 = vadd.f32 %v3827, %v4098
      %v4198 = vadd.f32 %v3830, %v4101
      %v4199 = vadd.f32 %v3833, %v4104
      %v4200 = vadd.f32 %v3836, %v4107
      %v4201 = vadd.f32 %v3839, %v4110
      %v4202 = vadd.f32 %v3842, %v4113
      %v4203 = vadd.f32 %v3845, %v4116
      %v4204 = vadd.f32 %v3848, %v4119
      %v4205 = vadd.f32 %v3851, %v4122
      %v4206 = vadd.f32 %v3854, %v4125
      %v4207 = vadd.f32 %v3857, %v4128
      %v4208 = vadd.f32 %v3860, %v4131
      %v4209 = vadd.f32 %v3863, %v4134
      %v4210 = vadd.f32 %v3866, %v4137
      %v4211 = vadd.f32 %v3869, %v4140
      %v4212 = vadd.f32 %v3872, %v4143
      %v4213 = vadd.f32 %v3875, %v4146
      %v4214 = vadd.f32 %v3878, %v4149
      %v4215 = vadd.f32 %v3881, %v4152
      %v4216 = vadd.f32 %v3884, %v4155
      %v4217 = vadd.f32 %v3887, %v4158
      %v4218 = vadd.f32 %v3890, %v4161
      %v4219 = vadd.f32 %v3893, %v4164
      %v4220 = vadd.f32 %v3896, %v4167
      %v4221 = vadd.f32 %v3899, %v4170
      %v4222 = vadd.f32 %v3902, %v4173
      %v4223 = vadd.f32 %v3905, %v4176
      %v4224 = vadd.f32 %v3908, %v4179
      %v4225 = vadd.f32 %v3911, %v4182
      %v4226 = vadd.f32 %v3914, %v4185
      %v4227 = vadd.f32 %v3917, %v4188
      %v4228 = vadd.f32 %v3920, %v4191
      %v4229 = vld [vmem:[#allocation2 + $0x24] sm:$0xff]
      %v4230 = vld [vmem:[#allocation2 + $0x2c] sm:$0xff]
      %v4231 = vld [vmem:[#allocation2 + $0x34] sm:$0xff]
      %v4232 = vld [vmem:[#allocation2 + $0x3c] sm:$0xff]
      %v4233 = vld [vmem:[#allocation2 + $0x44] sm:$0xff]
      %v4234 = vld [vmem:[#allocation2 + $0x4c] sm:$0xff]
      %v4235 = vld [vmem:[#allocation2 + $0x54] sm:$0xff]
      %v4236 = vld [vmem:[#allocation2 + $0x5c] sm:$0xff]
      %v4237 = vld [vmem:[#allocation2 + $0x64] sm:$0xff]
      %v4238 = vld [vmem:[#allocation2 + $0x6c] sm:$0xff]
      %v4239 = vld [vmem:[#allocation2 + $0x74] sm:$0xff]
      %v4240 = vld [vmem:[#allocation2 + $0x7c] sm:$0xff]
      %v4241 = vld [vmem:[#allocation2 + $0x84] sm:$0xff]
      %v4242 = vld [vmem:[#allocation2 + $0x8c] sm:$0xff]
      %v4243 = vld [vmem:[#allocation2 + $0x94] sm:$0xff]
      %v4244 = vld [vmem:[#allocation2 + $0x9c] sm:$0xff]
      %v4245 = vld [vmem:[#allocation2 + $0xa4] sm:$0xff]
      %v4246 = vld [vmem:[#allocation2 + $0xac] sm:$0xff]
      %v4247 = vld [vmem:[#allocation2 + $0xb4] sm:$0xff]
      %v4248 = vld [vmem:[#allocation2 + $0xbc] sm:$0xff]
      %v4249 = vld [vmem:[#allocation2 + $0xc4] sm:$0xff]
      %v4250 = vld [vmem:[#allocation2 + $0xcc] sm:$0xff]
      %v4251 = vld [vmem:[#allocation2 + $0xd4] sm:$0xff]
      %v4252 = vld [vmem:[#allocation2 + $0xdc] sm:$0xff]
      %v4253 = vld [vmem:[#allocation2 + $0xe4] sm:$0xff]
      %v4254 = vld [vmem:[#allocation2 + $0xec] sm:$0xff]
      %v4255 = vld [vmem:[#allocation2 + $0xf4] sm:$0xff]
      %v4256 = vld [vmem:[#allocation2 + $0xfc] sm:$0xff]
      %v4257 = vld [vmem:[#allocation2 + $0x104] sm:$0xff]
      %v4258 = vld [vmem:[#allocation2 + $0x10c] sm:$0xff]
      %v4259 = vld [vmem:[#allocation2 + $0x114] sm:$0xff]
      %v4260 = vld [vmem:[#allocation2 + $0x11c] sm:$0xff]
      %v4261 = vld [vmem:[#allocation2 + $0x124] sm:$0xff]
      %v4262 = vld [vmem:[#allocation2 + $0x12c] sm:$0xff]
      %v4263 = vld [vmem:[#allocation2 + $0x134] sm:$0xff]
      %v4264 = vld [vmem:[#allocation2 + $0x13c] sm:$0xff]
      %s4265 = scalar_lea.vmem %s4, 24
      %v4266 = vld [vmem:[%s4265] sm:$0xff]
      %v4268 = vsel %vm3299, %v4229, 0
      %v4271 = vsel %vm3299, %v4230, 0
      %v4274 = vsel %vm3299, %v4231, 0
      %v4277 = vsel %vm3299, %v4232, 0
      %v4280 = vsel %vm3299, %v4233, 0
      %v4283 = vsel %vm3299, %v4234, 0
      %v4286 = vsel %vm3299, %v4235, 0
      %v4289 = vsel %vm3299, %v4236, 0
      %v4292 = vsel %vm3299, %v4237, 0
      %v4295 = vsel %vm3299, %v4238, 0
      %v4298 = vsel %vm3299, %v4239, 0
      %v4301 = vsel %vm3299, %v4240, 0
      %v4304 = vsel %vm3299, %v4241, 0
      %v4307 = vsel %vm3299, %v4242, 0
      %v4310 = vsel %vm3299, %v4243, 0
      %v4313 = vsel %vm3299, %v4244, 0
      %v4316 = vsel %vm3299, %v4245, 0
      %v4319 = vsel %vm3299, %v4246, 0
      %v4322 = vsel %vm3299, %v4247, 0
      %v4325 = vsel %vm3299, %v4248, 0
      %v4328 = vsel %vm3299, %v4249, 0
      %v4331 = vsel %vm3299, %v4250, 0
      %v4334 = vsel %vm3299, %v4251, 0
      %v4337 = vsel %vm3299, %v4252, 0
      %v4340 = vsel %vm3299, %v4253, 0
      %v4343 = vsel %vm3299, %v4254, 0
      %v4346 = vsel %vm3299, %v4255, 0
      %v4349 = vsel %vm3299, %v4256, 0
      %v4352 = vsel %vm3299, %v4257, 0
      %v4355 = vsel %vm3299, %v4258, 0
      %v4358 = vsel %vm3299, %v4259, 0
      %v4361 = vsel %vm3299, %v4260, 0
      %v4364 = vsel %vm3299, %v4261, 0
      %v4367 = vsel %vm3299, %v4262, 0
      %v4370 = vsel %vm3299, %v4263, 0
      %v4373 = vsel %vm3299, %v4264, 0
      %4375 = vmatpush.msra.mxu0 0.0
      %4376 = vmatpush.msra.mxu0 0.0
      %4377 = vmatpush.msra.mxu0 0.0
      %4378 = vmatpush.msra.mxu0 0.0
      %4379 = vmatpush.msra.mxu0 0.0
      %4380 = vmatpush.msra.mxu0 0.0
      %4381 = vmatpush.msra.mxu0 0.0
      %4382 = vmatpush.msra.mxu0 0.0
      %4383 = vmatpush.msra.mxu0 0.0
      %4384 = vmatpush.msra.mxu0 0.0
      %4385 = vmatpush.msra.mxu0 0.0
      %4386 = vmatpush.msra.mxu0 0.0
      %4387 = vmatpush.msra.mxu0 0.0
      %4388 = vmatpush.msra.mxu0 0.0
      %4389 = vmatpush.msra.mxu0 0.0
      %4390 = vmatpush.msra.mxu0 %v4266
      %4391 = vmatmul.f32.gmra.mxu0 %v4268
      %v4392 = vpop.f32.mrf.mxu0
      %v4393 = vadd.f32 0.0, %v4392
      %4394 = vmatmul.f32.gmra.mxu0 %v4271
      %v4395 = vpop.f32.mrf.mxu0
      %v4396 = vadd.f32 0.0, %v4395
      %4397 = vmatmul.f32.gmra.mxu0 %v4274
      %v4398 = vpop.f32.mrf.mxu0
      %v4399 = vadd.f32 0.0, %v4398
      %4400 = vmatmul.f32.gmra.mxu0 %v4277
      %v4401 = vpop.f32.mrf.mxu0
      %v4402 = vadd.f32 0.0, %v4401
      %4403 = vmatmul.f32.gmra.mxu0 %v4280
      %v4404 = vpop.f32.mrf.mxu0
      %v4405 = vadd.f32 0.0, %v4404
      %4406 = vmatmul.f32.gmra.mxu0 %v4283
      %v4407 = vpop.f32.mrf.mxu0
      %v4408 = vadd.f32 0.0, %v4407
      %4409 = vmatmul.f32.gmra.mxu0 %v4286
      %v4410 = vpop.f32.mrf.mxu0
      %v4411 = vadd.f32 0.0, %v4410
      %4412 = vmatmul.f32.gmra.mxu0 %v4289
      %v4413 = vpop.f32.mrf.mxu0
      %v4414 = vadd.f32 0.0, %v4413
      %4415 = vmatmul.f32.gmra.mxu0 %v4292
      %v4416 = vpop.f32.mrf.mxu0
      %v4417 = vadd.f32 0.0, %v4416
      %4418 = vmatmul.f32.gmra.mxu0 %v4295
      %v4419 = vpop.f32.mrf.mxu0
      %v4420 = vadd.f32 0.0, %v4419
      %4421 = vmatmul.f32.gmra.mxu0 %v4298
      %v4422 = vpop.f32.mrf.mxu0
      %v4423 = vadd.f32 0.0, %v4422
      %4424 = vmatmul.f32.gmra.mxu0 %v4301
      %v4425 = vpop.f32.mrf.mxu0
      %v4426 = vadd.f32 0.0, %v4425
      %4427 = vmatmul.f32.gmra.mxu0 %v4304
      %v4428 = vpop.f32.mrf.mxu0
      %v4429 = vadd.f32 0.0, %v4428
      %4430 = vmatmul.f32.gmra.mxu0 %v4307
      %v4431 = vpop.f32.mrf.mxu0
      %v4432 = vadd.f32 0.0, %v4431
      %4433 = vmatmul.f32.gmra.mxu0 %v4310
      %v4434 = vpop.f32.mrf.mxu0
      %v4435 = vadd.f32 0.0, %v4434
      %4436 = vmatmul.f32.gmra.mxu0 %v4313
      %v4437 = vpop.f32.mrf.mxu0
      %v4438 = vadd.f32 0.0, %v4437
      %4439 = vmatmul.f32.gmra.mxu0 %v4316
      %v4440 = vpop.f32.mrf.mxu0
      %v4441 = vadd.f32 0.0, %v4440
      %4442 = vmatmul.f32.gmra.mxu0 %v4319
      %v4443 = vpop.f32.mrf.mxu0
      %v4444 = vadd.f32 0.0, %v4443
      %4445 = vmatmul.f32.gmra.mxu0 %v4322
      %v4446 = vpop.f32.mrf.mxu0
      %v4447 = vadd.f32 0.0, %v4446
      %4448 = vmatmul.f32.gmra.mxu0 %v4325
      %v4449 = vpop.f32.mrf.mxu0
      %v4450 = vadd.f32 0.0, %v4449
      %4451 = vmatmul.f32.gmra.mxu0 %v4328
      %v4452 = vpop.f32.mrf.mxu0
      %v4453 = vadd.f32 0.0, %v4452
      %4454 = vmatmul.f32.gmra.mxu0 %v4331
      %v4455 = vpop.f32.mrf.mxu0
      %v4456 = vadd.f32 0.0, %v4455
      %4457 = vmatmul.f32.gmra.mxu0 %v4334
      %v4458 = vpop.f32.mrf.mxu0
      %v4459 = vadd.f32 0.0, %v4458
      %4460 = vmatmul.f32.gmra.mxu0 %v4337
      %v4461 = vpop.f32.mrf.mxu0
      %v4462 = vadd.f32 0.0, %v4461
      %4463 = vmatmul.f32.gmra.mxu0 %v4340
      %v4464 = vpop.f32.mrf.mxu0
      %v4465 = vadd.f32 0.0, %v4464
      %4466 = vmatmul.f32.gmra.mxu0 %v4343
      %v4467 = vpop.f32.mrf.mxu0
      %v4468 = vadd.f32 0.0, %v4467
      %4469 = vmatmul.f32.gmra.mxu0 %v4346
      %v4470 = vpop.f32.mrf.mxu0
      %v4471 = vadd.f32 0.0, %v4470
      %4472 = vmatmul.f32.gmra.mxu0 %v4349
      %v4473 = vpop.f32.mrf.mxu0
      %v4474 = vadd.f32 0.0, %v4473
      %4475 = vmatmul.f32.gmra.mxu0 %v4352
      %v4476 = vpop.f32.mrf.mxu0
      %v4477 = vadd.f32 0.0, %v4476
      %4478 = vmatmul.f32.gmra.mxu0 %v4355
      %v4479 = vpop.f32.mrf.mxu0
      %v4480 = vadd.f32 0.0, %v4479
      %4481 = vmatmul.f32.gmra.mxu0 %v4358
      %v4482 = vpop.f32.mrf.mxu0
      %v4483 = vadd.f32 0.0, %v4482
      %4484 = vmatmul.f32.gmra.mxu0 %v4361
      %v4485 = vpop.f32.mrf.mxu0
      %v4486 = vadd.f32 0.0, %v4485
      %4487 = vmatmul.f32.gmra.mxu0 %v4364
      %v4488 = vpop.f32.mrf.mxu0
      %v4489 = vadd.f32 0.0, %v4488
      %4490 = vmatmul.f32.gmra.mxu0 %v4367
      %v4491 = vpop.f32.mrf.mxu0
      %v4492 = vadd.f32 0.0, %v4491
      %4493 = vmatmul.f32.gmra.mxu0 %v4370
      %v4494 = vpop.f32.mrf.mxu0
      %v4495 = vadd.f32 0.0, %v4494
      %4496 = vmatmul.f32.gmra.mxu0 %v4373
      %v4497 = vpop.f32.mrf.mxu0
      %v4498 = vadd.f32 0.0, %v4497
      %4499 = vdwg.mxu0
      %v4500 = vadd.f32 %v4193, %v4393
      %v4501 = vadd.f32 %v4194, %v4396
      %v4502 = vadd.f32 %v4195, %v4399
      %v4503 = vadd.f32 %v4196, %v4402
      %v4504 = vadd.f32 %v4197, %v4405
      %v4505 = vadd.f32 %v4198, %v4408
      %v4506 = vadd.f32 %v4199, %v4411
      %v4507 = vadd.f32 %v4200, %v4414
      %v4508 = vadd.f32 %v4201, %v4417
      %v4509 = vadd.f32 %v4202, %v4420
      %v4510 = vadd.f32 %v4203, %v4423
      %v4511 = vadd.f32 %v4204, %v4426
      %v4512 = vadd.f32 %v4205, %v4429
      %v4513 = vadd.f32 %v4206, %v4432
      %v4514 = vadd.f32 %v4207, %v4435
      %v4515 = vadd.f32 %v4208, %v4438
      %v4516 = vadd.f32 %v4209, %v4441
      %v4517 = vadd.f32 %v4210, %v4444
      %v4518 = vadd.f32 %v4211, %v4447
      %v4519 = vadd.f32 %v4212, %v4450
      %v4520 = vadd.f32 %v4213, %v4453
      %v4521 = vadd.f32 %v4214, %v4456
      %v4522 = vadd.f32 %v4215, %v4459
      %v4523 = vadd.f32 %v4216, %v4462
      %v4524 = vadd.f32 %v4217, %v4465
      %v4525 = vadd.f32 %v4218, %v4468
      %v4526 = vadd.f32 %v4219, %v4471
      %v4527 = vadd.f32 %v4220, %v4474
      %v4528 = vadd.f32 %v4221, %v4477
      %v4529 = vadd.f32 %v4222, %v4480
      %v4530 = vadd.f32 %v4223, %v4483
      %v4531 = vadd.f32 %v4224, %v4486
      %v4532 = vadd.f32 %v4225, %v4489
      %v4533 = vadd.f32 %v4226, %v4492
      %v4534 = vadd.f32 %v4227, %v4495
      %v4535 = vadd.f32 %v4228, %v4498
      %v4536 = vld [vmem:[#allocation2 + $0x25] sm:$0xff]
      %v4537 = vld [vmem:[#allocation2 + $0x2d] sm:$0xff]
      %v4538 = vld [vmem:[#allocation2 + $0x35] sm:$0xff]
      %v4539 = vld [vmem:[#allocation2 + $0x3d] sm:$0xff]
      %v4540 = vld [vmem:[#allocation2 + $0x45] sm:$0xff]
      %v4541 = vld [vmem:[#allocation2 + $0x4d] sm:$0xff]
      %v4542 = vld [vmem:[#allocation2 + $0x55] sm:$0xff]
      %v4543 = vld [vmem:[#allocation2 + $0x5d] sm:$0xff]
      %v4544 = vld [vmem:[#allocation2 + $0x65] sm:$0xff]
      %v4545 = vld [vmem:[#allocation2 + $0x6d] sm:$0xff]
      %v4546 = vld [vmem:[#allocation2 + $0x75] sm:$0xff]
      %v4547 = vld [vmem:[#allocation2 + $0x7d] sm:$0xff]
      %v4548 = vld [vmem:[#allocation2 + $0x85] sm:$0xff]
      %v4549 = vld [vmem:[#allocation2 + $0x8d] sm:$0xff]
      %v4550 = vld [vmem:[#allocation2 + $0x95] sm:$0xff]
      %v4551 = vld [vmem:[#allocation2 + $0x9d] sm:$0xff]
      %v4552 = vld [vmem:[#allocation2 + $0xa5] sm:$0xff]
      %v4553 = vld [vmem:[#allocation2 + $0xad] sm:$0xff]
      %v4554 = vld [vmem:[#allocation2 + $0xb5] sm:$0xff]
      %v4555 = vld [vmem:[#allocation2 + $0xbd] sm:$0xff]
      %v4556 = vld [vmem:[#allocation2 + $0xc5] sm:$0xff]
      %v4557 = vld [vmem:[#allocation2 + $0xcd] sm:$0xff]
      %v4558 = vld [vmem:[#allocation2 + $0xd5] sm:$0xff]
      %v4559 = vld [vmem:[#allocation2 + $0xdd] sm:$0xff]
      %v4560 = vld [vmem:[#allocation2 + $0xe5] sm:$0xff]
      %v4561 = vld [vmem:[#allocation2 + $0xed] sm:$0xff]
      %v4562 = vld [vmem:[#allocation2 + $0xf5] sm:$0xff]
      %v4563 = vld [vmem:[#allocation2 + $0xfd] sm:$0xff]
      %v4564 = vld [vmem:[#allocation2 + $0x105] sm:$0xff]
      %v4565 = vld [vmem:[#allocation2 + $0x10d] sm:$0xff]
      %v4566 = vld [vmem:[#allocation2 + $0x115] sm:$0xff]
      %v4567 = vld [vmem:[#allocation2 + $0x11d] sm:$0xff]
      %v4568 = vld [vmem:[#allocation2 + $0x125] sm:$0xff]
      %v4569 = vld [vmem:[#allocation2 + $0x12d] sm:$0xff]
      %v4570 = vld [vmem:[#allocation2 + $0x135] sm:$0xff]
      %v4571 = vld [vmem:[#allocation2 + $0x13d] sm:$0xff]
      %s4572 = scalar_lea.vmem %s4, 32
      %v4573 = vld [vmem:[%s4572] sm:$0xff]
      %v4575 = vsel %vm3299, %v4536, 0
      %v4578 = vsel %vm3299, %v4537, 0
      %v4581 = vsel %vm3299, %v4538, 0
      %v4584 = vsel %vm3299, %v4539, 0
      %v4587 = vsel %vm3299, %v4540, 0
      %v4590 = vsel %vm3299, %v4541, 0
      %v4593 = vsel %vm3299, %v4542, 0
      %v4596 = vsel %vm3299, %v4543, 0
      %v4599 = vsel %vm3299, %v4544, 0
      %v4602 = vsel %vm3299, %v4545, 0
      %v4605 = vsel %vm3299, %v4546, 0
      %v4608 = vsel %vm3299, %v4547, 0
      %v4611 = vsel %vm3299, %v4548, 0
      %v4614 = vsel %vm3299, %v4549, 0
      %v4617 = vsel %vm3299, %v4550, 0
      %v4620 = vsel %vm3299, %v4551, 0
      %v4623 = vsel %vm3299, %v4552, 0
      %v4626 = vsel %vm3299, %v4553, 0
      %v4629 = vsel %vm3299, %v4554, 0
      %v4632 = vsel %vm3299, %v4555, 0
      %v4635 = vsel %vm3299, %v4556, 0
      %v4638 = vsel %vm3299, %v4557, 0
      %v4641 = vsel %vm3299, %v4558, 0
      %v4644 = vsel %vm3299, %v4559, 0
      %v4647 = vsel %vm3299, %v4560, 0
      %v4650 = vsel %vm3299, %v4561, 0
      %v4653 = vsel %vm3299, %v4562, 0
      %v4656 = vsel %vm3299, %v4563, 0
      %v4659 = vsel %vm3299, %v4564, 0
      %v4662 = vsel %vm3299, %v4565, 0
      %v4665 = vsel %vm3299, %v4566, 0
      %v4668 = vsel %vm3299, %v4567, 0
      %v4671 = vsel %vm3299, %v4568, 0
      %v4674 = vsel %vm3299, %v4569, 0
      %v4677 = vsel %vm3299, %v4570, 0
      %v4680 = vsel %vm3299, %v4571, 0
      %4682 = vmatpush.msra.mxu0 0.0
      %4683 = vmatpush.msra.mxu0 0.0
      %4684 = vmatpush.msra.mxu0 0.0
      %4685 = vmatpush.msra.mxu0 0.0
      %4686 = vmatpush.msra.mxu0 0.0
      %4687 = vmatpush.msra.mxu0 0.0
      %4688 = vmatpush.msra.mxu0 0.0
      %4689 = vmatpush.msra.mxu0 0.0
      %4690 = vmatpush.msra.mxu0 0.0
      %4691 = vmatpush.msra.mxu0 0.0
      %4692 = vmatpush.msra.mxu0 0.0
      %4693 = vmatpush.msra.mxu0 0.0
      %4694 = vmatpush.msra.mxu0 0.0
      %4695 = vmatpush.msra.mxu0 0.0
      %4696 = vmatpush.msra.mxu0 0.0
      %4697 = vmatpush.msra.mxu0 %v4573
      %4698 = vmatmul.f32.gmra.mxu0 %v4575
      %v4699 = vpop.f32.mrf.mxu0
      %v4700 = vadd.f32 0.0, %v4699
      %4701 = vmatmul.f32.gmra.mxu0 %v4578
      %v4702 = vpop.f32.mrf.mxu0
      %v4703 = vadd.f32 0.0, %v4702
      %4704 = vmatmul.f32.gmra.mxu0 %v4581
      %v4705 = vpop.f32.mrf.mxu0
      %v4706 = vadd.f32 0.0, %v4705
      %4707 = vmatmul.f32.gmra.mxu0 %v4584
      %v4708 = vpop.f32.mrf.mxu0
      %v4709 = vadd.f32 0.0, %v4708
      %4710 = vmatmul.f32.gmra.mxu0 %v4587
      %v4711 = vpop.f32.mrf.mxu0
      %v4712 = vadd.f32 0.0, %v4711
      %4713 = vmatmul.f32.gmra.mxu0 %v4590
      %v4714 = vpop.f32.mrf.mxu0
      %v4715 = vadd.f32 0.0, %v4714
      %4716 = vmatmul.f32.gmra.mxu0 %v4593
      %v4717 = vpop.f32.mrf.mxu0
      %v4718 = vadd.f32 0.0, %v4717
      %4719 = vmatmul.f32.gmra.mxu0 %v4596
      %v4720 = vpop.f32.mrf.mxu0
      %v4721 = vadd.f32 0.0, %v4720
      %4722 = vmatmul.f32.gmra.mxu0 %v4599
      %v4723 = vpop.f32.mrf.mxu0
      %v4724 = vadd.f32 0.0, %v4723
      %4725 = vmatmul.f32.gmra.mxu0 %v4602
      %v4726 = vpop.f32.mrf.mxu0
      %v4727 = vadd.f32 0.0, %v4726
      %4728 = vmatmul.f32.gmra.mxu0 %v4605
      %v4729 = vpop.f32.mrf.mxu0
      %v4730 = vadd.f32 0.0, %v4729
      %4731 = vmatmul.f32.gmra.mxu0 %v4608
      %v4732 = vpop.f32.mrf.mxu0
      %v4733 = vadd.f32 0.0, %v4732
      %4734 = vmatmul.f32.gmra.mxu0 %v4611
      %v4735 = vpop.f32.mrf.mxu0
      %v4736 = vadd.f32 0.0, %v4735
      %4737 = vmatmul.f32.gmra.mxu0 %v4614
      %v4738 = vpop.f32.mrf.mxu0
      %v4739 = vadd.f32 0.0, %v4738
      %4740 = vmatmul.f32.gmra.mxu0 %v4617
      %v4741 = vpop.f32.mrf.mxu0
      %v4742 = vadd.f32 0.0, %v4741
      %4743 = vmatmul.f32.gmra.mxu0 %v4620
      %v4744 = vpop.f32.mrf.mxu0
      %v4745 = vadd.f32 0.0, %v4744
      %4746 = vmatmul.f32.gmra.mxu0 %v4623
      %v4747 = vpop.f32.mrf.mxu0
      %v4748 = vadd.f32 0.0, %v4747
      %4749 = vmatmul.f32.gmra.mxu0 %v4626
      %v4750 = vpop.f32.mrf.mxu0
      %v4751 = vadd.f32 0.0, %v4750
      %4752 = vmatmul.f32.gmra.mxu0 %v4629
      %v4753 = vpop.f32.mrf.mxu0
      %v4754 = vadd.f32 0.0, %v4753
      %4755 = vmatmul.f32.gmra.mxu0 %v4632
      %v4756 = vpop.f32.mrf.mxu0
      %v4757 = vadd.f32 0.0, %v4756
      %4758 = vmatmul.f32.gmra.mxu0 %v4635
      %v4759 = vpop.f32.mrf.mxu0
      %v4760 = vadd.f32 0.0, %v4759
      %4761 = vmatmul.f32.gmra.mxu0 %v4638
      %v4762 = vpop.f32.mrf.mxu0
      %v4763 = vadd.f32 0.0, %v4762
      %4764 = vmatmul.f32.gmra.mxu0 %v4641
      %v4765 = vpop.f32.mrf.mxu0
      %v4766 = vadd.f32 0.0, %v4765
      %4767 = vmatmul.f32.gmra.mxu0 %v4644
      %v4768 = vpop.f32.mrf.mxu0
      %v4769 = vadd.f32 0.0, %v4768
      %4770 = vmatmul.f32.gmra.mxu0 %v4647
      %v4771 = vpop.f32.mrf.mxu0
      %v4772 = vadd.f32 0.0, %v4771
      %4773 = vmatmul.f32.gmra.mxu0 %v4650
      %v4774 = vpop.f32.mrf.mxu0
      %v4775 = vadd.f32 0.0, %v4774
      %4776 = vmatmul.f32.gmra.mxu0 %v4653
      %v4777 = vpop.f32.mrf.mxu0
      %v4778 = vadd.f32 0.0, %v4777
      %4779 = vmatmul.f32.gmra.mxu0 %v4656
      %v4780 = vpop.f32.mrf.mxu0
      %v4781 = vadd.f32 0.0, %v4780
      %4782 = vmatmul.f32.gmra.mxu0 %v4659
      %v4783 = vpop.f32.mrf.mxu0
      %v4784 = vadd.f32 0.0, %v4783
      %4785 = vmatmul.f32.gmra.mxu0 %v4662
      %v4786 = vpop.f32.mrf.mxu0
      %v4787 = vadd.f32 0.0, %v4786
      %4788 = vmatmul.f32.gmra.mxu0 %v4665
      %v4789 = vpop.f32.mrf.mxu0
      %v4790 = vadd.f32 0.0, %v4789
      %4791 = vmatmul.f32.gmra.mxu0 %v4668
      %v4792 = vpop.f32.mrf.mxu0
      %v4793 = vadd.f32 0.0, %v4792
      %4794 = vmatmul.f32.gmra.mxu0 %v4671
      %v4795 = vpop.f32.mrf.mxu0
      %v4796 = vadd.f32 0.0, %v4795
      %4797 = vmatmul.f32.gmra.mxu0 %v4674
      %v4798 = vpop.f32.mrf.mxu0
      %v4799 = vadd.f32 0.0, %v4798
      %4800 = vmatmul.f32.gmra.mxu0 %v4677
      %v4801 = vpop.f32.mrf.mxu0
      %v4802 = vadd.f32 0.0, %v4801
      %4803 = vmatmul.f32.gmra.mxu0 %v4680
      %v4804 = vpop.f32.mrf.mxu0
      %v4805 = vadd.f32 0.0, %v4804
      %4806 = vdwg.mxu0
      %v4807 = vadd.f32 %v4500, %v4700
      %v4808 = vadd.f32 %v4501, %v4703
      %v4809 = vadd.f32 %v4502, %v4706
      %v4810 = vadd.f32 %v4503, %v4709
      %v4811 = vadd.f32 %v4504, %v4712
      %v4812 = vadd.f32 %v4505, %v4715
      %v4813 = vadd.f32 %v4506, %v4718
      %v4814 = vadd.f32 %v4507, %v4721
      %v4815 = vadd.f32 %v4508, %v4724
      %v4816 = vadd.f32 %v4509, %v4727
      %v4817 = vadd.f32 %v4510, %v4730
      %v4818 = vadd.f32 %v4511, %v4733
      %v4819 = vadd.f32 %v4512, %v4736
      %v4820 = vadd.f32 %v4513, %v4739
      %v4821 = vadd.f32 %v4514, %v4742
      %v4822 = vadd.f32 %v4515, %v4745
      %v4823 = vadd.f32 %v4516, %v4748
      %v4824 = vadd.f32 %v4517, %v4751
      %v4825 = vadd.f32 %v4518, %v4754
      %v4826 = vadd.f32 %v4519, %v4757
      %v4827 = vadd.f32 %v4520, %v4760
      %v4828 = vadd.f32 %v4521, %v4763
      %v4829 = vadd.f32 %v4522, %v4766
      %v4830 = vadd.f32 %v4523, %v4769
      %v4831 = vadd.f32 %v4524, %v4772
      %v4832 = vadd.f32 %v4525, %v4775
      %v4833 = vadd.f32 %v4526, %v4778
      %v4834 = vadd.f32 %v4527, %v4781
      %v4835 = vadd.f32 %v4528, %v4784
      %v4836 = vadd.f32 %v4529, %v4787
      %v4837 = vadd.f32 %v4530, %v4790
      %v4838 = vadd.f32 %v4531, %v4793
      %v4839 = vadd.f32 %v4532, %v4796
      %v4840 = vadd.f32 %v4533, %v4799
      %v4841 = vadd.f32 %v4534, %v4802
      %v4842 = vadd.f32 %v4535, %v4805
      %v4843 = vld [vmem:[#allocation2 + $0x26] sm:$0xff]
      %v4844 = vld [vmem:[#allocation2 + $0x2e] sm:$0xff]
      %v4845 = vld [vmem:[#allocation2 + $0x36] sm:$0xff]
      %v4846 = vld [vmem:[#allocation2 + $0x3e] sm:$0xff]
      %v4847 = vld [vmem:[#allocation2 + $0x46] sm:$0xff]
      %v4848 = vld [vmem:[#allocation2 + $0x4e] sm:$0xff]
      %v4849 = vld [vmem:[#allocation2 + $0x56] sm:$0xff]
      %v4850 = vld [vmem:[#allocation2 + $0x5e] sm:$0xff]
      %v4851 = vld [vmem:[#allocation2 + $0x66] sm:$0xff]
      %v4852 = vld [vmem:[#allocation2 + $0x6e] sm:$0xff]
      %v4853 = vld [vmem:[#allocation2 + $0x76] sm:$0xff]
      %v4854 = vld [vmem:[#allocation2 + $0x7e] sm:$0xff]
      %v4855 = vld [vmem:[#allocation2 + $0x86] sm:$0xff]
      %v4856 = vld [vmem:[#allocation2 + $0x8e] sm:$0xff]
      %v4857 = vld [vmem:[#allocation2 + $0x96] sm:$0xff]
      %v4858 = vld [vmem:[#allocation2 + $0x9e] sm:$0xff]
      %v4859 = vld [vmem:[#allocation2 + $0xa6] sm:$0xff]
      %v4860 = vld [vmem:[#allocation2 + $0xae] sm:$0xff]
      %v4861 = vld [vmem:[#allocation2 + $0xb6] sm:$0xff]
      %v4862 = vld [vmem:[#allocation2 + $0xbe] sm:$0xff]
      %v4863 = vld [vmem:[#allocation2 + $0xc6] sm:$0xff]
      %v4864 = vld [vmem:[#allocation2 + $0xce] sm:$0xff]
      %v4865 = vld [vmem:[#allocation2 + $0xd6] sm:$0xff]
      %v4866 = vld [vmem:[#allocation2 + $0xde] sm:$0xff]
      %v4867 = vld [vmem:[#allocation2 + $0xe6] sm:$0xff]
      %v4868 = vld [vmem:[#allocation2 + $0xee] sm:$0xff]
      %v4869 = vld [vmem:[#allocation2 + $0xf6] sm:$0xff]
      %v4870 = vld [vmem:[#allocation2 + $0xfe] sm:$0xff]
      %v4871 = vld [vmem:[#allocation2 + $0x106] sm:$0xff]
      %v4872 = vld [vmem:[#allocation2 + $0x10e] sm:$0xff]
      %v4873 = vld [vmem:[#allocation2 + $0x116] sm:$0xff]
      %v4874 = vld [vmem:[#allocation2 + $0x11e] sm:$0xff]
      %v4875 = vld [vmem:[#allocation2 + $0x126] sm:$0xff]
      %v4876 = vld [vmem:[#allocation2 + $0x12e] sm:$0xff]
      %v4877 = vld [vmem:[#allocation2 + $0x136] sm:$0xff]
      %v4878 = vld [vmem:[#allocation2 + $0x13e] sm:$0xff]
      %s4879 = scalar_lea.vmem %s4, 40
      %v4880 = vld [vmem:[%s4879] sm:$0xff]
      %v4882 = vsel %vm3299, %v4843, 0
      %v4885 = vsel %vm3299, %v4844, 0
      %v4888 = vsel %vm3299, %v4845, 0
      %v4891 = vsel %vm3299, %v4846, 0
      %v4894 = vsel %vm3299, %v4847, 0
      %v4897 = vsel %vm3299, %v4848, 0
      %v4900 = vsel %vm3299, %v4849, 0
      %v4903 = vsel %vm3299, %v4850, 0
      %v4906 = vsel %vm3299, %v4851, 0
      %v4909 = vsel %vm3299, %v4852, 0
      %v4912 = vsel %vm3299, %v4853, 0
      %v4915 = vsel %vm3299, %v4854, 0
      %v4918 = vsel %vm3299, %v4855, 0
      %v4921 = vsel %vm3299, %v4856, 0
      %v4924 = vsel %vm3299, %v4857, 0
      %v4927 = vsel %vm3299, %v4858, 0
      %v4930 = vsel %vm3299, %v4859, 0
      %v4933 = vsel %vm3299, %v4860, 0
      %v4936 = vsel %vm3299, %v4861, 0
      %v4939 = vsel %vm3299, %v4862, 0
      %v4942 = vsel %vm3299, %v4863, 0
      %v4945 = vsel %vm3299, %v4864, 0
      %v4948 = vsel %vm3299, %v4865, 0
      %v4951 = vsel %vm3299, %v4866, 0
      %v4954 = vsel %vm3299, %v4867, 0
      %v4957 = vsel %vm3299, %v4868, 0
      %v4960 = vsel %vm3299, %v4869, 0
      %v4963 = vsel %vm3299, %v4870, 0
      %v4966 = vsel %vm3299, %v4871, 0
      %v4969 = vsel %vm3299, %v4872, 0
      %v4972 = vsel %vm3299, %v4873, 0
      %v4975 = vsel %vm3299, %v4874, 0
      %v4978 = vsel %vm3299, %v4875, 0
      %v4981 = vsel %vm3299, %v4876, 0
      %v4984 = vsel %vm3299, %v4877, 0
      %v4987 = vsel %vm3299, %v4878, 0
      %4989 = vmatpush.msra.mxu0 0.0
      %4990 = vmatpush.msra.mxu0 0.0
      %4991 = vmatpush.msra.mxu0 0.0
      %4992 = vmatpush.msra.mxu0 0.0
      %4993 = vmatpush.msra.mxu0 0.0
      %4994 = vmatpush.msra.mxu0 0.0
      %4995 = vmatpush.msra.mxu0 0.0
      %4996 = vmatpush.msra.mxu0 0.0
      %4997 = vmatpush.msra.mxu0 0.0
      %4998 = vmatpush.msra.mxu0 0.0
      %4999 = vmatpush.msra.mxu0 0.0
      %5000 = vmatpush.msra.mxu0 0.0
      %5001 = vmatpush.msra.mxu0 0.0
      %5002 = vmatpush.msra.mxu0 0.0
      %5003 = vmatpush.msra.mxu0 0.0
      %5004 = vmatpush.msra.mxu0 %v4880
      %5005 = vmatmul.f32.gmra.mxu0 %v4882
      %v5006 = vpop.f32.mrf.mxu0
      %v5007 = vadd.f32 0.0, %v5006
      %5008 = vmatmul.f32.gmra.mxu0 %v4885
      %v5009 = vpop.f32.mrf.mxu0
      %v5010 = vadd.f32 0.0, %v5009
      %5011 = vmatmul.f32.gmra.mxu0 %v4888
      %v5012 = vpop.f32.mrf.mxu0
      %v5013 = vadd.f32 0.0, %v5012
      %5014 = vmatmul.f32.gmra.mxu0 %v4891
      %v5015 = vpop.f32.mrf.mxu0
      %v5016 = vadd.f32 0.0, %v5015
      %5017 = vmatmul.f32.gmra.mxu0 %v4894
      %v5018 = vpop.f32.mrf.mxu0
      %v5019 = vadd.f32 0.0, %v5018
      %5020 = vmatmul.f32.gmra.mxu0 %v4897
      %v5021 = vpop.f32.mrf.mxu0
      %v5022 = vadd.f32 0.0, %v5021
      %5023 = vmatmul.f32.gmra.mxu0 %v4900
      %v5024 = vpop.f32.mrf.mxu0
      %v5025 = vadd.f32 0.0, %v5024
      %5026 = vmatmul.f32.gmra.mxu0 %v4903
      %v5027 = vpop.f32.mrf.mxu0
      %v5028 = vadd.f32 0.0, %v5027
      %5029 = vmatmul.f32.gmra.mxu0 %v4906
      %v5030 = vpop.f32.mrf.mxu0
      %v5031 = vadd.f32 0.0, %v5030
      %5032 = vmatmul.f32.gmra.mxu0 %v4909
      %v5033 = vpop.f32.mrf.mxu0
      %v5034 = vadd.f32 0.0, %v5033
      %5035 = vmatmul.f32.gmra.mxu0 %v4912
      %v5036 = vpop.f32.mrf.mxu0
      %v5037 = vadd.f32 0.0, %v5036
      %5038 = vmatmul.f32.gmra.mxu0 %v4915
      %v5039 = vpop.f32.mrf.mxu0
      %v5040 = vadd.f32 0.0, %v5039
      %5041 = vmatmul.f32.gmra.mxu0 %v4918
      %v5042 = vpop.f32.mrf.mxu0
      %v5043 = vadd.f32 0.0, %v5042
      %5044 = vmatmul.f32.gmra.mxu0 %v4921
      %v5045 = vpop.f32.mrf.mxu0
      %v5046 = vadd.f32 0.0, %v5045
      %5047 = vmatmul.f32.gmra.mxu0 %v4924
      %v5048 = vpop.f32.mrf.mxu0
      %v5049 = vadd.f32 0.0, %v5048
      %5050 = vmatmul.f32.gmra.mxu0 %v4927
      %v5051 = vpop.f32.mrf.mxu0
      %v5052 = vadd.f32 0.0, %v5051
      %5053 = vmatmul.f32.gmra.mxu0 %v4930
      %v5054 = vpop.f32.mrf.mxu0
      %v5055 = vadd.f32 0.0, %v5054
      %5056 = vmatmul.f32.gmra.mxu0 %v4933
      %v5057 = vpop.f32.mrf.mxu0
      %v5058 = vadd.f32 0.0, %v5057
      %5059 = vmatmul.f32.gmra.mxu0 %v4936
      %v5060 = vpop.f32.mrf.mxu0
      %v5061 = vadd.f32 0.0, %v5060
      %5062 = vmatmul.f32.gmra.mxu0 %v4939
      %v5063 = vpop.f32.mrf.mxu0
      %v5064 = vadd.f32 0.0, %v5063
      %5065 = vmatmul.f32.gmra.mxu0 %v4942
      %v5066 = vpop.f32.mrf.mxu0
      %v5067 = vadd.f32 0.0, %v5066
      %5068 = vmatmul.f32.gmra.mxu0 %v4945
      %v5069 = vpop.f32.mrf.mxu0
      %v5070 = vadd.f32 0.0, %v5069
      %5071 = vmatmul.f32.gmra.mxu0 %v4948
      %v5072 = vpop.f32.mrf.mxu0
      %v5073 = vadd.f32 0.0, %v5072
      %5074 = vmatmul.f32.gmra.mxu0 %v4951
      %v5075 = vpop.f32.mrf.mxu0
      %v5076 = vadd.f32 0.0, %v5075
      %5077 = vmatmul.f32.gmra.mxu0 %v4954
      %v5078 = vpop.f32.mrf.mxu0
      %v5079 = vadd.f32 0.0, %v5078
      %5080 = vmatmul.f32.gmra.mxu0 %v4957
      %v5081 = vpop.f32.mrf.mxu0
      %v5082 = vadd.f32 0.0, %v5081
      %5083 = vmatmul.f32.gmra.mxu0 %v4960
      %v5084 = vpop.f32.mrf.mxu0
      %v5085 = vadd.f32 0.0, %v5084
      %5086 = vmatmul.f32.gmra.mxu0 %v4963
      %v5087 = vpop.f32.mrf.mxu0
      %v5088 = vadd.f32 0.0, %v5087
      %5089 = vmatmul.f32.gmra.mxu0 %v4966
      %v5090 = vpop.f32.mrf.mxu0
      %v5091 = vadd.f32 0.0, %v5090
      %5092 = vmatmul.f32.gmra.mxu0 %v4969
      %v5093 = vpop.f32.mrf.mxu0
      %v5094 = vadd.f32 0.0, %v5093
      %5095 = vmatmul.f32.gmra.mxu0 %v4972
      %v5096 = vpop.f32.mrf.mxu0
      %v5097 = vadd.f32 0.0, %v5096
      %5098 = vmatmul.f32.gmra.mxu0 %v4975
      %v5099 = vpop.f32.mrf.mxu0
      %v5100 = vadd.f32 0.0, %v5099
      %5101 = vmatmul.f32.gmra.mxu0 %v4978
      %v5102 = vpop.f32.mrf.mxu0
      %v5103 = vadd.f32 0.0, %v5102
      %5104 = vmatmul.f32.gmra.mxu0 %v4981
      %v5105 = vpop.f32.mrf.mxu0
      %v5106 = vadd.f32 0.0, %v5105
      %5107 = vmatmul.f32.gmra.mxu0 %v4984
      %v5108 = vpop.f32.mrf.mxu0
      %v5109 = vadd.f32 0.0, %v5108
      %5110 = vmatmul.f32.gmra.mxu0 %v4987
      %v5111 = vpop.f32.mrf.mxu0
      %v5112 = vadd.f32 0.0, %v5111
      %5113 = vdwg.mxu0
      %v5114 = vadd.f32 %v4807, %v5007
      %v5115 = vadd.f32 %v4808, %v5010
      %v5116 = vadd.f32 %v4809, %v5013
      %v5117 = vadd.f32 %v4810, %v5016
      %v5118 = vadd.f32 %v4811, %v5019
      %v5119 = vadd.f32 %v4812, %v5022
      %v5120 = vadd.f32 %v4813, %v5025
      %v5121 = vadd.f32 %v4814, %v5028
      %v5122 = vadd.f32 %v4815, %v5031
      %v5123 = vadd.f32 %v4816, %v5034
      %v5124 = vadd.f32 %v4817, %v5037
      %v5125 = vadd.f32 %v4818, %v5040
      %v5126 = vadd.f32 %v4819, %v5043
      %v5127 = vadd.f32 %v4820, %v5046
      %v5128 = vadd.f32 %v4821, %v5049
      %v5129 = vadd.f32 %v4822, %v5052
      %v5130 = vadd.f32 %v4823, %v5055
      %v5131 = vadd.f32 %v4824, %v5058
      %v5132 = vadd.f32 %v4825, %v5061
      %v5133 = vadd.f32 %v4826, %v5064
      %v5134 = vadd.f32 %v4827, %v5067
      %v5135 = vadd.f32 %v4828, %v5070
      %v5136 = vadd.f32 %v4829, %v5073
      %v5137 = vadd.f32 %v4830, %v5076
      %v5138 = vadd.f32 %v4831, %v5079
      %v5139 = vadd.f32 %v4832, %v5082
      %v5140 = vadd.f32 %v4833, %v5085
      %v5141 = vadd.f32 %v4834, %v5088
      %v5142 = vadd.f32 %v4835, %v5091
      %v5143 = vadd.f32 %v4836, %v5094
      %v5144 = vadd.f32 %v4837, %v5097
      %v5145 = vadd.f32 %v4838, %v5100
      %v5146 = vadd.f32 %v4839, %v5103
      %v5147 = vadd.f32 %v4840, %v5106
      %v5148 = vadd.f32 %v4841, %v5109
      %v5149 = vadd.f32 %v4842, %v5112
      %v5150 = vld [vmem:[#allocation2 + $0x36] sm:$0xff]
      %v5151 = vld [vmem:[#allocation2 + $0x3e] sm:$0xff]
      %v5152 = vld [vmem:[#allocation2 + $0x46] sm:$0xff]
      %v5153 = vld [vmem:[#allocation2 + $0x4e] sm:$0xff]
      %v5154 = vld [vmem:[#allocation2 + $0x56] sm:$0xff]
      %v5155 = vld [vmem:[#allocation2 + $0x5e] sm:$0xff]
      %v5156 = vld [vmem:[#allocation2 + $0x66] sm:$0xff]
      %v5157 = vld [vmem:[#allocation2 + $0x6e] sm:$0xff]
      %v5158 = vld [vmem:[#allocation2 + $0x76] sm:$0xff]
      %v5159 = vld [vmem:[#allocation2 + $0x7e] sm:$0xff]
      %v5160 = vld [vmem:[#allocation2 + $0x86] sm:$0xff]
      %v5161 = vld [vmem:[#allocation2 + $0x8e] sm:$0xff]
      %v5162 = vld [vmem:[#allocation2 + $0x96] sm:$0xff]
      %v5163 = vld [vmem:[#allocation2 + $0x9e] sm:$0xff]
      %v5164 = vld [vmem:[#allocation2 + $0xa6] sm:$0xff]
      %v5165 = vld [vmem:[#allocation2 + $0xae] sm:$0xff]
      %v5166 = vld [vmem:[#allocation2 + $0xb6] sm:$0xff]
      %v5167 = vld [vmem:[#allocation2 + $0xbe] sm:$0xff]
      %v5168 = vld [vmem:[#allocation2 + $0xc6] sm:$0xff]
      %v5169 = vld [vmem:[#allocation2 + $0xce] sm:$0xff]
      %v5170 = vld [vmem:[#allocation2 + $0xd6] sm:$0xff]
      %v5171 = vld [vmem:[#allocation2 + $0xde] sm:$0xff]
      %v5172 = vld [vmem:[#allocation2 + $0xe6] sm:$0xff]
      %v5173 = vld [vmem:[#allocation2 + $0xee] sm:$0xff]
      %v5174 = vld [vmem:[#allocation2 + $0xf6] sm:$0xff]
      %v5175 = vld [vmem:[#allocation2 + $0xfe] sm:$0xff]
      %v5176 = vld [vmem:[#allocation2 + $0x106] sm:$0xff]
      %v5177 = vld [vmem:[#allocation2 + $0x10e] sm:$0xff]
      %v5178 = vld [vmem:[#allocation2 + $0x116] sm:$0xff]
      %v5179 = vld [vmem:[#allocation2 + $0x11e] sm:$0xff]
      %v5180 = vld [vmem:[#allocation2 + $0x126] sm:$0xff]
      %v5181 = vld [vmem:[#allocation2 + $0x12e] sm:$0xff]
      %v5182 = vld [vmem:[#allocation2 + $0x136] sm:$0xff]
      %v5183 = vld [vmem:[#allocation2 + $0x13e] sm:$0xff]
      %v5184 = vld [vmem:[#allocation2 + $0x146] sm:$0xff]
      %v5185 = vld [vmem:[#allocation2 + $0x14e] sm:$0xff]
      %s5186 = scalar_lea.vmem %s4, 48
      %v5187 = vld [vmem:[%s5186] sm:$0xff]
      %v5189 = vsel %vm3299, %v5150, 0
      %v5192 = vsel %vm3299, %v5151, 0
      %v5195 = vsel %vm3299, %v5152, 0
      %v5198 = vsel %vm3299, %v5153, 0
      %v5201 = vsel %vm3299, %v5154, 0
      %v5204 = vsel %vm3299, %v5155, 0
      %v5207 = vsel %vm3299, %v5156, 0
      %v5210 = vsel %vm3299, %v5157, 0
      %v5213 = vsel %vm3299, %v5158, 0
      %v5216 = vsel %vm3299, %v5159, 0
      %v5219 = vsel %vm3299, %v5160, 0
      %v5222 = vsel %vm3299, %v5161, 0
      %v5225 = vsel %vm3299, %v5162, 0
      %v5228 = vsel %vm3299, %v5163, 0
      %v5231 = vsel %vm3299, %v5164, 0
      %v5234 = vsel %vm3299, %v5165, 0
      %v5237 = vsel %vm3299, %v5166, 0
      %v5240 = vsel %vm3299, %v5167, 0
      %v5243 = vsel %vm3299, %v5168, 0
      %v5246 = vsel %vm3299, %v5169, 0
      %v5249 = vsel %vm3299, %v5170, 0
      %v5252 = vsel %vm3299, %v5171, 0
      %v5255 = vsel %vm3299, %v5172, 0
      %v5258 = vsel %vm3299, %v5173, 0
      %v5261 = vsel %vm3299, %v5174, 0
      %v5264 = vsel %vm3299, %v5175, 0
      %v5267 = vsel %vm3299, %v5176, 0
      %v5270 = vsel %vm3299, %v5177, 0
      %v5273 = vsel %vm3299, %v5178, 0
      %v5276 = vsel %vm3299, %v5179, 0
      %v5279 = vsel %vm3299, %v5180, 0
      %v5282 = vsel %vm3299, %v5181, 0
      %v5285 = vsel %vm3299, %v5182, 0
      %v5288 = vsel %vm3299, %v5183, 0
      %v5291 = vsel %vm3299, %v5184, 0
      %v5294 = vsel %vm3299, %v5185, 0
      %5296 = vmatpush.msra.mxu0 0.0
      %5297 = vmatpush.msra.mxu0 0.0
      %5298 = vmatpush.msra.mxu0 0.0
      %5299 = vmatpush.msra.mxu0 0.0
      %5300 = vmatpush.msra.mxu0 0.0
      %5301 = vmatpush.msra.mxu0 0.0
      %5302 = vmatpush.msra.mxu0 0.0
      %5303 = vmatpush.msra.mxu0 0.0
      %5304 = vmatpush.msra.mxu0 0.0
      %5305 = vmatpush.msra.mxu0 0.0
      %5306 = vmatpush.msra.mxu0 0.0
      %5307 = vmatpush.msra.mxu0 0.0
      %5308 = vmatpush.msra.mxu0 0.0
      %5309 = vmatpush.msra.mxu0 0.0
      %5310 = vmatpush.msra.mxu0 0.0
      %5311 = vmatpush.msra.mxu0 %v5187
      %5312 = vmatmul.f32.gmra.mxu0 %v5189
      %v5313 = vpop.f32.mrf.mxu0
      %v5314 = vadd.f32 0.0, %v5313
      %5315 = vmatmul.f32.gmra.mxu0 %v5192
      %v5316 = vpop.f32.mrf.mxu0
      %v5317 = vadd.f32 0.0, %v5316
      %5318 = vmatmul.f32.gmra.mxu0 %v5195
      %v5319 = vpop.f32.mrf.mxu0
      %v5320 = vadd.f32 0.0, %v5319
      %5321 = vmatmul.f32.gmra.mxu0 %v5198
      %v5322 = vpop.f32.mrf.mxu0
      %v5323 = vadd.f32 0.0, %v5322
      %5324 = vmatmul.f32.gmra.mxu0 %v5201
      %v5325 = vpop.f32.mrf.mxu0
      %v5326 = vadd.f32 0.0, %v5325
      %5327 = vmatmul.f32.gmra.mxu0 %v5204
      %v5328 = vpop.f32.mrf.mxu0
      %v5329 = vadd.f32 0.0, %v5328
      %5330 = vmatmul.f32.gmra.mxu0 %v5207
      %v5331 = vpop.f32.mrf.mxu0
      %v5332 = vadd.f32 0.0, %v5331
      %5333 = vmatmul.f32.gmra.mxu0 %v5210
      %v5334 = vpop.f32.mrf.mxu0
      %v5335 = vadd.f32 0.0, %v5334
      %5336 = vmatmul.f32.gmra.mxu0 %v5213
      %v5337 = vpop.f32.mrf.mxu0
      %v5338 = vadd.f32 0.0, %v5337
      %5339 = vmatmul.f32.gmra.mxu0 %v5216
      %v5340 = vpop.f32.mrf.mxu0
      %v5341 = vadd.f32 0.0, %v5340
      %5342 = vmatmul.f32.gmra.mxu0 %v5219
      %v5343 = vpop.f32.mrf.mxu0
      %v5344 = vadd.f32 0.0, %v5343
      %5345 = vmatmul.f32.gmra.mxu0 %v5222
      %v5346 = vpop.f32.mrf.mxu0
      %v5347 = vadd.f32 0.0, %v5346
      %5348 = vmatmul.f32.gmra.mxu0 %v5225
      %v5349 = vpop.f32.mrf.mxu0
      %v5350 = vadd.f32 0.0, %v5349
      %5351 = vmatmul.f32.gmra.mxu0 %v5228
      %v5352 = vpop.f32.mrf.mxu0
      %v5353 = vadd.f32 0.0, %v5352
      %5354 = vmatmul.f32.gmra.mxu0 %v5231
      %v5355 = vpop.f32.mrf.mxu0
      %v5356 = vadd.f32 0.0, %v5355
      %5357 = vmatmul.f32.gmra.mxu0 %v5234
      %v5358 = vpop.f32.mrf.mxu0
      %v5359 = vadd.f32 0.0, %v5358
      %5360 = vmatmul.f32.gmra.mxu0 %v5237
      %v5361 = vpop.f32.mrf.mxu0
      %v5362 = vadd.f32 0.0, %v5361
      %5363 = vmatmul.f32.gmra.mxu0 %v5240
      %v5364 = vpop.f32.mrf.mxu0
      %v5365 = vadd.f32 0.0, %v5364
      %5366 = vmatmul.f32.gmra.mxu0 %v5243
      %v5367 = vpop.f32.mrf.mxu0
      %v5368 = vadd.f32 0.0, %v5367
      %5369 = vmatmul.f32.gmra.mxu0 %v5246
      %v5370 = vpop.f32.mrf.mxu0
      %v5371 = vadd.f32 0.0, %v5370
      %5372 = vmatmul.f32.gmra.mxu0 %v5249
      %v5373 = vpop.f32.mrf.mxu0
      %v5374 = vadd.f32 0.0, %v5373
      %5375 = vmatmul.f32.gmra.mxu0 %v5252
      %v5376 = vpop.f32.mrf.mxu0
      %v5377 = vadd.f32 0.0, %v5376
      %5378 = vmatmul.f32.gmra.mxu0 %v5255
      %v5379 = vpop.f32.mrf.mxu0
      %v5380 = vadd.f32 0.0, %v5379
      %5381 = vmatmul.f32.gmra.mxu0 %v5258
      %v5382 = vpop.f32.mrf.mxu0
      %v5383 = vadd.f32 0.0, %v5382
      %5384 = vmatmul.f32.gmra.mxu0 %v5261
      %v5385 = vpop.f32.mrf.mxu0
      %v5386 = vadd.f32 0.0, %v5385
      %5387 = vmatmul.f32.gmra.mxu0 %v5264
      %v5388 = vpop.f32.mrf.mxu0
      %v5389 = vadd.f32 0.0, %v5388
      %5390 = vmatmul.f32.gmra.mxu0 %v5267
      %v5391 = vpop.f32.mrf.mxu0
      %v5392 = vadd.f32 0.0, %v5391
      %5393 = vmatmul.f32.gmra.mxu0 %v5270
      %v5394 = vpop.f32.mrf.mxu0
      %v5395 = vadd.f32 0.0, %v5394
      %5396 = vmatmul.f32.gmra.mxu0 %v5273
      %v5397 = vpop.f32.mrf.mxu0
      %v5398 = vadd.f32 0.0, %v5397
      %5399 = vmatmul.f32.gmra.mxu0 %v5276
      %v5400 = vpop.f32.mrf.mxu0
      %v5401 = vadd.f32 0.0, %v5400
      %5402 = vmatmul.f32.gmra.mxu0 %v5279
      %v5403 = vpop.f32.mrf.mxu0
      %v5404 = vadd.f32 0.0, %v5403
      %5405 = vmatmul.f32.gmra.mxu0 %v5282
      %v5406 = vpop.f32.mrf.mxu0
      %v5407 = vadd.f32 0.0, %v5406
      %5408 = vmatmul.f32.gmra.mxu0 %v5285
      %v5409 = vpop.f32.mrf.mxu0
      %v5410 = vadd.f32 0.0, %v5409
      %5411 = vmatmul.f32.gmra.mxu0 %v5288
      %v5412 = vpop.f32.mrf.mxu0
      %v5413 = vadd.f32 0.0, %v5412
      %5414 = vmatmul.f32.gmra.mxu0 %v5291
      %v5415 = vpop.f32.mrf.mxu0
      %v5416 = vadd.f32 0.0, %v5415
      %5417 = vmatmul.f32.gmra.mxu0 %v5294
      %v5418 = vpop.f32.mrf.mxu0
      %v5419 = vadd.f32 0.0, %v5418
      %5420 = vdwg.mxu0
      %v5421 = vadd.f32 %v5114, %v5314
      %v5422 = vadd.f32 %v5115, %v5317
      %v5423 = vadd.f32 %v5116, %v5320
      %v5424 = vadd.f32 %v5117, %v5323
      %v5425 = vadd.f32 %v5118, %v5326
      %v5426 = vadd.f32 %v5119, %v5329
      %v5427 = vadd.f32 %v5120, %v5332
      %v5428 = vadd.f32 %v5121, %v5335
      %v5429 = vadd.f32 %v5122, %v5338
      %v5430 = vadd.f32 %v5123, %v5341
      %v5431 = vadd.f32 %v5124, %v5344
      %v5432 = vadd.f32 %v5125, %v5347
      %v5433 = vadd.f32 %v5126, %v5350
      %v5434 = vadd.f32 %v5127, %v5353
      %v5435 = vadd.f32 %v5128, %v5356
      %v5436 = vadd.f32 %v5129, %v5359
      %v5437 = vadd.f32 %v5130, %v5362
      %v5438 = vadd.f32 %v5131, %v5365
      %v5439 = vadd.f32 %v5132, %v5368
      %v5440 = vadd.f32 %v5133, %v5371
      %v5441 = vadd.f32 %v5134, %v5374
      %v5442 = vadd.f32 %v5135, %v5377
      %v5443 = vadd.f32 %v5136, %v5380
      %v5444 = vadd.f32 %v5137, %v5383
      %v5445 = vadd.f32 %v5138, %v5386
      %v5446 = vadd.f32 %v5139, %v5389
      %v5447 = vadd.f32 %v5140, %v5392
      %v5448 = vadd.f32 %v5141, %v5395
      %v5449 = vadd.f32 %v5142, %v5398
      %v5450 = vadd.f32 %v5143, %v5401
      %v5451 = vadd.f32 %v5144, %v5404
      %v5452 = vadd.f32 %v5145, %v5407
      %v5453 = vadd.f32 %v5146, %v5410
      %v5454 = vadd.f32 %v5147, %v5413
      %v5455 = vadd.f32 %v5148, %v5416
      %v5456 = vadd.f32 %v5149, %v5419
      %v5457 = vld [vmem:[#allocation2 + $0x37] sm:$0xff]
      %v5458 = vld [vmem:[#allocation2 + $0x3f] sm:$0xff]
      %v5459 = vld [vmem:[#allocation2 + $0x47] sm:$0xff]
      %v5460 = vld [vmem:[#allocation2 + $0x4f] sm:$0xff]
      %v5461 = vld [vmem:[#allocation2 + $0x57] sm:$0xff]
      %v5462 = vld [vmem:[#allocation2 + $0x5f] sm:$0xff]
      %v5463 = vld [vmem:[#allocation2 + $0x67] sm:$0xff]
      %v5464 = vld [vmem:[#allocation2 + $0x6f] sm:$0xff]
      %v5465 = vld [vmem:[#allocation2 + $0x77] sm:$0xff]
      %v5466 = vld [vmem:[#allocation2 + $0x7f] sm:$0xff]
      %v5467 = vld [vmem:[#allocation2 + $0x87] sm:$0xff]
      %v5468 = vld [vmem:[#allocation2 + $0x8f] sm:$0xff]
      %v5469 = vld [vmem:[#allocation2 + $0x97] sm:$0xff]
      %v5470 = vld [vmem:[#allocation2 + $0x9f] sm:$0xff]
      %v5471 = vld [vmem:[#allocation2 + $0xa7] sm:$0xff]
      %v5472 = vld [vmem:[#allocation2 + $0xaf] sm:$0xff]
      %v5473 = vld [vmem:[#allocation2 + $0xb7] sm:$0xff]
      %v5474 = vld [vmem:[#allocation2 + $0xbf] sm:$0xff]
      %v5475 = vld [vmem:[#allocation2 + $0xc7] sm:$0xff]
      %v5476 = vld [vmem:[#allocation2 + $0xcf] sm:$0xff]
      %v5477 = vld [vmem:[#allocation2 + $0xd7] sm:$0xff]
      %v5478 = vld [vmem:[#allocation2 + $0xdf] sm:$0xff]
      %v5479 = vld [vmem:[#allocation2 + $0xe7] sm:$0xff]
      %v5480 = vld [vmem:[#allocation2 + $0xef] sm:$0xff]
      %v5481 = vld [vmem:[#allocation2 + $0xf7] sm:$0xff]
      %v5482 = vld [vmem:[#allocation2 + $0xff] sm:$0xff]
      %v5483 = vld [vmem:[#allocation2 + $0x107] sm:$0xff]
      %v5484 = vld [vmem:[#allocation2 + $0x10f] sm:$0xff]
      %v5485 = vld [vmem:[#allocation2 + $0x117] sm:$0xff]
      %v5486 = vld [vmem:[#allocation2 + $0x11f] sm:$0xff]
      %v5487 = vld [vmem:[#allocation2 + $0x127] sm:$0xff]
      %v5488 = vld [vmem:[#allocation2 + $0x12f] sm:$0xff]
      %v5489 = vld [vmem:[#allocation2 + $0x137] sm:$0xff]
      %v5490 = vld [vmem:[#allocation2 + $0x13f] sm:$0xff]
      %v5491 = vld [vmem:[#allocation2 + $0x147] sm:$0xff]
      %v5492 = vld [vmem:[#allocation2 + $0x14f] sm:$0xff]
      %s5493 = scalar_lea.vmem %s4, 56
      %v5494 = vld [vmem:[%s5493] sm:$0xff]
      %v5496 = vsel %vm3299, %v5457, 0
      %v5499 = vsel %vm3299, %v5458, 0
      %v5502 = vsel %vm3299, %v5459, 0
      %v5505 = vsel %vm3299, %v5460, 0
      %v5508 = vsel %vm3299, %v5461, 0
      %v5511 = vsel %vm3299, %v5462, 0
      %v5514 = vsel %vm3299, %v5463, 0
      %v5517 = vsel %vm3299, %v5464, 0
      %v5520 = vsel %vm3299, %v5465, 0
      %v5523 = vsel %vm3299, %v5466, 0
      %v5526 = vsel %vm3299, %v5467, 0
      %v5529 = vsel %vm3299, %v5468, 0
      %v5532 = vsel %vm3299, %v5469, 0
      %v5535 = vsel %vm3299, %v5470, 0
      %v5538 = vsel %vm3299, %v5471, 0
      %v5541 = vsel %vm3299, %v5472, 0
      %v5544 = vsel %vm3299, %v5473, 0
      %v5547 = vsel %vm3299, %v5474, 0
      %v5550 = vsel %vm3299, %v5475, 0
      %v5553 = vsel %vm3299, %v5476, 0
      %v5556 = vsel %vm3299, %v5477, 0
      %v5559 = vsel %vm3299, %v5478, 0
      %v5562 = vsel %vm3299, %v5479, 0
      %v5565 = vsel %vm3299, %v5480, 0
      %v5568 = vsel %vm3299, %v5481, 0
      %v5571 = vsel %vm3299, %v5482, 0
      %v5574 = vsel %vm3299, %v5483, 0
      %v5577 = vsel %vm3299, %v5484, 0
      %v5580 = vsel %vm3299, %v5485, 0
      %v5583 = vsel %vm3299, %v5486, 0
      %v5586 = vsel %vm3299, %v5487, 0
      %v5589 = vsel %vm3299, %v5488, 0
      %v5592 = vsel %vm3299, %v5489, 0
      %v5595 = vsel %vm3299, %v5490, 0
      %v5598 = vsel %vm3299, %v5491, 0
      %v5601 = vsel %vm3299, %v5492, 0
      %5603 = vmatpush.msra.mxu0 0.0
      %5604 = vmatpush.msra.mxu0 0.0
      %5605 = vmatpush.msra.mxu0 0.0
      %5606 = vmatpush.msra.mxu0 0.0
      %5607 = vmatpush.msra.mxu0 0.0
      %5608 = vmatpush.msra.mxu0 0.0
      %5609 = vmatpush.msra.mxu0 0.0
      %5610 = vmatpush.msra.mxu0 0.0
      %5611 = vmatpush.msra.mxu0 0.0
      %5612 = vmatpush.msra.mxu0 0.0
      %5613 = vmatpush.msra.mxu0 0.0
      %5614 = vmatpush.msra.mxu0 0.0
      %5615 = vmatpush.msra.mxu0 0.0
      %5616 = vmatpush.msra.mxu0 0.0
      %5617 = vmatpush.msra.mxu0 0.0
      %5618 = vmatpush.msra.mxu0 %v5494
      %5619 = vmatmul.f32.gmra.mxu0 %v5496
      %v5620 = vpop.f32.mrf.mxu0
      %v5621 = vadd.f32 0.0, %v5620
      %5622 = vmatmul.f32.gmra.mxu0 %v5499
      %v5623 = vpop.f32.mrf.mxu0
      %v5624 = vadd.f32 0.0, %v5623
      %5625 = vmatmul.f32.gmra.mxu0 %v5502
      %v5626 = vpop.f32.mrf.mxu0
      %v5627 = vadd.f32 0.0, %v5626
      %5628 = vmatmul.f32.gmra.mxu0 %v5505
      %v5629 = vpop.f32.mrf.mxu0
      %v5630 = vadd.f32 0.0, %v5629
      %5631 = vmatmul.f32.gmra.mxu0 %v5508
      %v5632 = vpop.f32.mrf.mxu0
      %v5633 = vadd.f32 0.0, %v5632
      %5634 = vmatmul.f32.gmra.mxu0 %v5511
      %v5635 = vpop.f32.mrf.mxu0
      %v5636 = vadd.f32 0.0, %v5635
      %5637 = vmatmul.f32.gmra.mxu0 %v5514
      %v5638 = vpop.f32.mrf.mxu0
      %v5639 = vadd.f32 0.0, %v5638
      %5640 = vmatmul.f32.gmra.mxu0 %v5517
      %v5641 = vpop.f32.mrf.mxu0
      %v5642 = vadd.f32 0.0, %v5641
      %5643 = vmatmul.f32.gmra.mxu0 %v5520
      %v5644 = vpop.f32.mrf.mxu0
      %v5645 = vadd.f32 0.0, %v5644
      %5646 = vmatmul.f32.gmra.mxu0 %v5523
      %v5647 = vpop.f32.mrf.mxu0
      %v5648 = vadd.f32 0.0, %v5647
      %5649 = vmatmul.f32.gmra.mxu0 %v5526
      %v5650 = vpop.f32.mrf.mxu0
      %v5651 = vadd.f32 0.0, %v5650
      %5652 = vmatmul.f32.gmra.mxu0 %v5529
      %v5653 = vpop.f32.mrf.mxu0
      %v5654 = vadd.f32 0.0, %v5653
      %5655 = vmatmul.f32.gmra.mxu0 %v5532
      %v5656 = vpop.f32.mrf.mxu0
      %v5657 = vadd.f32 0.0, %v5656
      %5658 = vmatmul.f32.gmra.mxu0 %v5535
      %v5659 = vpop.f32.mrf.mxu0
      %v5660 = vadd.f32 0.0, %v5659
      %5661 = vmatmul.f32.gmra.mxu0 %v5538
      %v5662 = vpop.f32.mrf.mxu0
      %v5663 = vadd.f32 0.0, %v5662
      %5664 = vmatmul.f32.gmra.mxu0 %v5541
      %v5665 = vpop.f32.mrf.mxu0
      %v5666 = vadd.f32 0.0, %v5665
      %5667 = vmatmul.f32.gmra.mxu0 %v5544
      %v5668 = vpop.f32.mrf.mxu0
      %v5669 = vadd.f32 0.0, %v5668
      %5670 = vmatmul.f32.gmra.mxu0 %v5547
      %v5671 = vpop.f32.mrf.mxu0
      %v5672 = vadd.f32 0.0, %v5671
      %5673 = vmatmul.f32.gmra.mxu0 %v5550
      %v5674 = vpop.f32.mrf.mxu0
      %v5675 = vadd.f32 0.0, %v5674
      %5676 = vmatmul.f32.gmra.mxu0 %v5553
      %v5677 = vpop.f32.mrf.mxu0
      %v5678 = vadd.f32 0.0, %v5677
      %5679 = vmatmul.f32.gmra.mxu0 %v5556
      %v5680 = vpop.f32.mrf.mxu0
      %v5681 = vadd.f32 0.0, %v5680
      %5682 = vmatmul.f32.gmra.mxu0 %v5559
      %v5683 = vpop.f32.mrf.mxu0
      %v5684 = vadd.f32 0.0, %v5683
      %5685 = vmatmul.f32.gmra.mxu0 %v5562
      %v5686 = vpop.f32.mrf.mxu0
      %v5687 = vadd.f32 0.0, %v5686
      %5688 = vmatmul.f32.gmra.mxu0 %v5565
      %v5689 = vpop.f32.mrf.mxu0
      %v5690 = vadd.f32 0.0, %v5689
      %5691 = vmatmul.f32.gmra.mxu0 %v5568
      %v5692 = vpop.f32.mrf.mxu0
      %v5693 = vadd.f32 0.0, %v5692
      %5694 = vmatmul.f32.gmra.mxu0 %v5571
      %v5695 = vpop.f32.mrf.mxu0
      %v5696 = vadd.f32 0.0, %v5695
      %5697 = vmatmul.f32.gmra.mxu0 %v5574
      %v5698 = vpop.f32.mrf.mxu0
      %v5699 = vadd.f32 0.0, %v5698
      %5700 = vmatmul.f32.gmra.mxu0 %v5577
      %v5701 = vpop.f32.mrf.mxu0
      %v5702 = vadd.f32 0.0, %v5701
      %5703 = vmatmul.f32.gmra.mxu0 %v5580
      %v5704 = vpop.f32.mrf.mxu0
      %v5705 = vadd.f32 0.0, %v5704
      %5706 = vmatmul.f32.gmra.mxu0 %v5583
      %v5707 = vpop.f32.mrf.mxu0
      %v5708 = vadd.f32 0.0, %v5707
      %5709 = vmatmul.f32.gmra.mxu0 %v5586
      %v5710 = vpop.f32.mrf.mxu0
      %v5711 = vadd.f32 0.0, %v5710
      %5712 = vmatmul.f32.gmra.mxu0 %v5589
      %v5713 = vpop.f32.mrf.mxu0
      %v5714 = vadd.f32 0.0, %v5713
      %5715 = vmatmul.f32.gmra.mxu0 %v5592
      %v5716 = vpop.f32.mrf.mxu0
      %v5717 = vadd.f32 0.0, %v5716
      %5718 = vmatmul.f32.gmra.mxu0 %v5595
      %v5719 = vpop.f32.mrf.mxu0
      %v5720 = vadd.f32 0.0, %v5719
      %5721 = vmatmul.f32.gmra.mxu0 %v5598
      %v5722 = vpop.f32.mrf.mxu0
      %v5723 = vadd.f32 0.0, %v5722
      %5724 = vmatmul.f32.gmra.mxu0 %v5601
      %v5725 = vpop.f32.mrf.mxu0
      %v5726 = vadd.f32 0.0, %v5725
      %5727 = vdwg.mxu0
      %v5728 = vadd.f32 %v5421, %v5621
      %v5729 = vadd.f32 %v5422, %v5624
      %v5730 = vadd.f32 %v5423, %v5627
      %v5731 = vadd.f32 %v5424, %v5630
      %v5732 = vadd.f32 %v5425, %v5633
      %v5733 = vadd.f32 %v5426, %v5636
      %v5734 = vadd.f32 %v5427, %v5639
      %v5735 = vadd.f32 %v5428, %v5642
      %v5736 = vadd.f32 %v5429, %v5645
      %v5737 = vadd.f32 %v5430, %v5648
      %v5738 = vadd.f32 %v5431, %v5651
      %v5739 = vadd.f32 %v5432, %v5654
      %v5740 = vadd.f32 %v5433, %v5657
      %v5741 = vadd.f32 %v5434, %v5660
      %v5742 = vadd.f32 %v5435, %v5663
      %v5743 = vadd.f32 %v5436, %v5666
      %v5744 = vadd.f32 %v5437, %v5669
      %v5745 = vadd.f32 %v5438, %v5672
      %v5746 = vadd.f32 %v5439, %v5675
      %v5747 = vadd.f32 %v5440, %v5678
      %v5748 = vadd.f32 %v5441, %v5681
      %v5749 = vadd.f32 %v5442, %v5684
      %v5750 = vadd.f32 %v5443, %v5687
      %v5751 = vadd.f32 %v5444, %v5690
      %v5752 = vadd.f32 %v5445, %v5693
      %v5753 = vadd.f32 %v5446, %v5696
      %v5754 = vadd.f32 %v5447, %v5699
      %v5755 = vadd.f32 %v5448, %v5702
      %v5756 = vadd.f32 %v5449, %v5705
      %v5757 = vadd.f32 %v5450, %v5708
      %v5758 = vadd.f32 %v5451, %v5711
      %v5759 = vadd.f32 %v5452, %v5714
      %v5760 = vadd.f32 %v5453, %v5717
      %v5761 = vadd.f32 %v5454, %v5720
      %v5762 = vadd.f32 %v5455, %v5723
      %v5763 = vadd.f32 %v5456, %v5726
      %v5764 = vld [vmem:[#allocation2 + $0x38] sm:$0xff]
      %v5765 = vld [vmem:[#allocation2 + $0x40] sm:$0xff]
      %v5766 = vld [vmem:[#allocation2 + $0x48] sm:$0xff]
      %v5767 = vld [vmem:[#allocation2 + $0x50] sm:$0xff]
      %v5768 = vld [vmem:[#allocation2 + $0x58] sm:$0xff]
      %v5769 = vld [vmem:[#allocation2 + $0x60] sm:$0xff]
      %v5770 = vld [vmem:[#allocation2 + $0x68] sm:$0xff]
      %v5771 = vld [vmem:[#allocation2 + $0x70] sm:$0xff]
      %v5772 = vld [vmem:[#allocation2 + $0x78] sm:$0xff]
      %v5773 = vld [vmem:[#allocation2 + $0x80] sm:$0xff]
      %v5774 = vld [vmem:[#allocation2 + $0x88] sm:$0xff]
      %v5775 = vld [vmem:[#allocation2 + $0x90] sm:$0xff]
      %v5776 = vld [vmem:[#allocation2 + $0x98] sm:$0xff]
      %v5777 = vld [vmem:[#allocation2 + $0xa0] sm:$0xff]
      %v5778 = vld [vmem:[#allocation2 + $0xa8] sm:$0xff]
      %v5779 = vld [vmem:[#allocation2 + $0xb0] sm:$0xff]
      %v5780 = vld [vmem:[#allocation2 + $0xb8] sm:$0xff]
      %v5781 = vld [vmem:[#allocation2 + $0xc0] sm:$0xff]
      %v5782 = vld [vmem:[#allocation2 + $0xc8] sm:$0xff]
      %v5783 = vld [vmem:[#allocation2 + $0xd0] sm:$0xff]
      %v5784 = vld [vmem:[#allocation2 + $0xd8] sm:$0xff]
      %v5785 = vld [vmem:[#allocation2 + $0xe0] sm:$0xff]
      %v5786 = vld [vmem:[#allocation2 + $0xe8] sm:$0xff]
      %v5787 = vld [vmem:[#allocation2 + $0xf0] sm:$0xff]
      %v5788 = vld [vmem:[#allocation2 + $0xf8] sm:$0xff]
      %v5789 = vld [vmem:[#allocation2 + $0x100] sm:$0xff]
      %v5790 = vld [vmem:[#allocation2 + $0x108] sm:$0xff]
      %v5791 = vld [vmem:[#allocation2 + $0x110] sm:$0xff]
      %v5792 = vld [vmem:[#allocation2 + $0x118] sm:$0xff]
      %v5793 = vld [vmem:[#allocation2 + $0x120] sm:$0xff]
      %v5794 = vld [vmem:[#allocation2 + $0x128] sm:$0xff]
      %v5795 = vld [vmem:[#allocation2 + $0x130] sm:$0xff]
      %v5796 = vld [vmem:[#allocation2 + $0x138] sm:$0xff]
      %v5797 = vld [vmem:[#allocation2 + $0x140] sm:$0xff]
      %v5798 = vld [vmem:[#allocation2 + $0x148] sm:$0xff]
      %v5799 = vld [vmem:[#allocation2 + $0x150] sm:$0xff]
      %s5800 = scalar_lea.vmem %s4, 64
      %v5801 = vld [vmem:[%s5800] sm:$0xff]
      %v5803 = vsel %vm3299, %v5764, 0
      %v5806 = vsel %vm3299, %v5765, 0
      %v5809 = vsel %vm3299, %v5766, 0
      %v5812 = vsel %vm3299, %v5767, 0
      %v5815 = vsel %vm3299, %v5768, 0
      %v5818 = vsel %vm3299, %v5769, 0
      %v5821 = vsel %vm3299, %v5770, 0
      %v5824 = vsel %vm3299, %v5771, 0
      %v5827 = vsel %vm3299, %v5772, 0
      %v5830 = vsel %vm3299, %v5773, 0
      %v5833 = vsel %vm3299, %v5774, 0
      %v5836 = vsel %vm3299, %v5775, 0
      %v5839 = vsel %vm3299, %v5776, 0
      %v5842 = vsel %vm3299, %v5777, 0
      %v5845 = vsel %vm3299, %v5778, 0
      %v5848 = vsel %vm3299, %v5779, 0
      %v5851 = vsel %vm3299, %v5780, 0
      %v5854 = vsel %vm3299, %v5781, 0
      %v5857 = vsel %vm3299, %v5782, 0
      %v5860 = vsel %vm3299, %v5783, 0
      %v5863 = vsel %vm3299, %v5784, 0
      %v5866 = vsel %vm3299, %v5785, 0
      %v5869 = vsel %vm3299, %v5786, 0
      %v5872 = vsel %vm3299, %v5787, 0
      %v5875 = vsel %vm3299, %v5788, 0
      %v5878 = vsel %vm3299, %v5789, 0
      %v5881 = vsel %vm3299, %v5790, 0
      %v5884 = vsel %vm3299, %v5791, 0
      %v5887 = vsel %vm3299, %v5792, 0
      %v5890 = vsel %vm3299, %v5793, 0
      %v5893 = vsel %vm3299, %v5794, 0
      %v5896 = vsel %vm3299, %v5795, 0
      %v5899 = vsel %vm3299, %v5796, 0
      %v5902 = vsel %vm3299, %v5797, 0
      %v5905 = vsel %vm3299, %v5798, 0
      %v5908 = vsel %vm3299, %v5799, 0
      %5910 = vmatpush.msra.mxu0 0.0
      %5911 = vmatpush.msra.mxu0 0.0
      %5912 = vmatpush.msra.mxu0 0.0
      %5913 = vmatpush.msra.mxu0 0.0
      %5914 = vmatpush.msra.mxu0 0.0
      %5915 = vmatpush.msra.mxu0 0.0
      %5916 = vmatpush.msra.mxu0 0.0
      %5917 = vmatpush.msra.mxu0 0.0
      %5918 = vmatpush.msra.mxu0 0.0
      %5919 = vmatpush.msra.mxu0 0.0
      %5920 = vmatpush.msra.mxu0 0.0
      %5921 = vmatpush.msra.mxu0 0.0
      %5922 = vmatpush.msra.mxu0 0.0
      %5923 = vmatpush.msra.mxu0 0.0
      %5924 = vmatpush.msra.mxu0 0.0
      %5925 = vmatpush.msra.mxu0 %v5801
      %5926 = vmatmul.f32.gmra.mxu0 %v5803
      %v5927 = vpop.f32.mrf.mxu0
      %v5928 = vadd.f32 0.0, %v5927
      %5929 = vmatmul.f32.gmra.mxu0 %v5806
      %v5930 = vpop.f32.mrf.mxu0
      %v5931 = vadd.f32 0.0, %v5930
      %5932 = vmatmul.f32.gmra.mxu0 %v5809
      %v5933 = vpop.f32.mrf.mxu0
      %v5934 = vadd.f32 0.0, %v5933
      %5935 = vmatmul.f32.gmra.mxu0 %v5812
      %v5936 = vpop.f32.mrf.mxu0
      %v5937 = vadd.f32 0.0, %v5936
      %5938 = vmatmul.f32.gmra.mxu0 %v5815
      %v5939 = vpop.f32.mrf.mxu0
      %v5940 = vadd.f32 0.0, %v5939
      %5941 = vmatmul.f32.gmra.mxu0 %v5818
      %v5942 = vpop.f32.mrf.mxu0
      %v5943 = vadd.f32 0.0, %v5942
      %5944 = vmatmul.f32.gmra.mxu0 %v5821
      %v5945 = vpop.f32.mrf.mxu0
      %v5946 = vadd.f32 0.0, %v5945
      %5947 = vmatmul.f32.gmra.mxu0 %v5824
      %v5948 = vpop.f32.mrf.mxu0
      %v5949 = vadd.f32 0.0, %v5948
      %5950 = vmatmul.f32.gmra.mxu0 %v5827
      %v5951 = vpop.f32.mrf.mxu0
      %v5952 = vadd.f32 0.0, %v5951
      %5953 = vmatmul.f32.gmra.mxu0 %v5830
      %v5954 = vpop.f32.mrf.mxu0
      %v5955 = vadd.f32 0.0, %v5954
      %5956 = vmatmul.f32.gmra.mxu0 %v5833
      %v5957 = vpop.f32.mrf.mxu0
      %v5958 = vadd.f32 0.0, %v5957
      %5959 = vmatmul.f32.gmra.mxu0 %v5836
      %v5960 = vpop.f32.mrf.mxu0
      %v5961 = vadd.f32 0.0, %v5960
      %5962 = vmatmul.f32.gmra.mxu0 %v5839
      %v5963 = vpop.f32.mrf.mxu0
      %v5964 = vadd.f32 0.0, %v5963
      %5965 = vmatmul.f32.gmra.mxu0 %v5842
      %v5966 = vpop.f32.mrf.mxu0
      %v5967 = vadd.f32 0.0, %v5966
      %5968 = vmatmul.f32.gmra.mxu0 %v5845
      %v5969 = vpop.f32.mrf.mxu0
      %v5970 = vadd.f32 0.0, %v5969
      %5971 = vmatmul.f32.gmra.mxu0 %v5848
      %v5972 = vpop.f32.mrf.mxu0
      %v5973 = vadd.f32 0.0, %v5972
      %5974 = vmatmul.f32.gmra.mxu0 %v5851
      %v5975 = vpop.f32.mrf.mxu0
      %v5976 = vadd.f32 0.0, %v5975
      %5977 = vmatmul.f32.gmra.mxu0 %v5854
      %v5978 = vpop.f32.mrf.mxu0
      %v5979 = vadd.f32 0.0, %v5978
      %5980 = vmatmul.f32.gmra.mxu0 %v5857
      %v5981 = vpop.f32.mrf.mxu0
      %v5982 = vadd.f32 0.0, %v5981
      %5983 = vmatmul.f32.gmra.mxu0 %v5860
      %v5984 = vpop.f32.mrf.mxu0
      %v5985 = vadd.f32 0.0, %v5984
      %5986 = vmatmul.f32.gmra.mxu0 %v5863
      %v5987 = vpop.f32.mrf.mxu0
      %v5988 = vadd.f32 0.0, %v5987
      %5989 = vmatmul.f32.gmra.mxu0 %v5866
      %v5990 = vpop.f32.mrf.mxu0
      %v5991 = vadd.f32 0.0, %v5990
      %5992 = vmatmul.f32.gmra.mxu0 %v5869
      %v5993 = vpop.f32.mrf.mxu0
      %v5994 = vadd.f32 0.0, %v5993
      %5995 = vmatmul.f32.gmra.mxu0 %v5872
      %v5996 = vpop.f32.mrf.mxu0
      %v5997 = vadd.f32 0.0, %v5996
      %5998 = vmatmul.f32.gmra.mxu0 %v5875
      %v5999 = vpop.f32.mrf.mxu0
      %v6000 = vadd.f32 0.0, %v5999
      %6001 = vmatmul.f32.gmra.mxu0 %v5878
      %v6002 = vpop.f32.mrf.mxu0
      %v6003 = vadd.f32 0.0, %v6002
      %6004 = vmatmul.f32.gmra.mxu0 %v5881
      %v6005 = vpop.f32.mrf.mxu0
      %v6006 = vadd.f32 0.0, %v6005
      %6007 = vmatmul.f32.gmra.mxu0 %v5884
      %v6008 = vpop.f32.mrf.mxu0
      %v6009 = vadd.f32 0.0, %v6008
      %6010 = vmatmul.f32.gmra.mxu0 %v5887
      %v6011 = vpop.f32.mrf.mxu0
      %v6012 = vadd.f32 0.0, %v6011
      %6013 = vmatmul.f32.gmra.mxu0 %v5890
      %v6014 = vpop.f32.mrf.mxu0
      %v6015 = vadd.f32 0.0, %v6014
      %6016 = vmatmul.f32.gmra.mxu0 %v5893
      %v6017 = vpop.f32.mrf.mxu0
      %v6018 = vadd.f32 0.0, %v6017
      %6019 = vmatmul.f32.gmra.mxu0 %v5896
      %v6020 = vpop.f32.mrf.mxu0
      %v6021 = vadd.f32 0.0, %v6020
      %6022 = vmatmul.f32.gmra.mxu0 %v5899
      %v6023 = vpop.f32.mrf.mxu0
      %v6024 = vadd.f32 0.0, %v6023
      %6025 = vmatmul.f32.gmra.mxu0 %v5902
      %v6026 = vpop.f32.mrf.mxu0
      %v6027 = vadd.f32 0.0, %v6026
      %6028 = vmatmul.f32.gmra.mxu0 %v5905
      %v6029 = vpop.f32.mrf.mxu0
      %v6030 = vadd.f32 0.0, %v6029
      %6031 = vmatmul.f32.gmra.mxu0 %v5908
      %v6032 = vpop.f32.mrf.mxu0
      %v6033 = vadd.f32 0.0, %v6032
      %6034 = vdwg.mxu0
      %v6035 = vadd.f32 %v5728, %v5928
      %v6036 = vadd.f32 %v5729, %v5931
      %v6037 = vadd.f32 %v5730, %v5934
      %v6038 = vadd.f32 %v5731, %v5937
      %v6039 = vadd.f32 %v5732, %v5940
      %v6040 = vadd.f32 %v5733, %v5943
      %v6041 = vadd.f32 %v5734, %v5946
      %v6042 = vadd.f32 %v5735, %v5949
      %v6043 = vadd.f32 %v5736, %v5952
      %v6044 = vadd.f32 %v5737, %v5955
      %v6045 = vadd.f32 %v5738, %v5958
      %v6046 = vadd.f32 %v5739, %v5961
      %v6047 = vadd.f32 %v5740, %v5964
      %v6048 = vadd.f32 %v5741, %v5967
      %v6049 = vadd.f32 %v5742, %v5970
      %v6050 = vadd.f32 %v5743, %v5973
      %v6051 = vadd.f32 %v5744, %v5976
      %v6052 = vadd.f32 %v5745, %v5979
      %v6053 = vadd.f32 %v5746, %v5982
      %v6054 = vadd.f32 %v5747, %v5985
      %v6055 = vadd.f32 %v5748, %v5988
      %v6056 = vadd.f32 %v5749, %v5991
      %v6057 = vadd.f32 %v5750, %v5994
      %v6058 = vadd.f32 %v5751, %v5997
      %v6059 = vadd.f32 %v5752, %v6000
      %v6060 = vadd.f32 %v5753, %v6003
      %v6061 = vadd.f32 %v5754, %v6006
      %v6062 = vadd.f32 %v5755, %v6009
      %v6063 = vadd.f32 %v5756, %v6012
      %v6064 = vadd.f32 %v5757, %v6015
      %v6065 = vadd.f32 %v5758, %v6018
      %v6066 = vadd.f32 %v5759, %v6021
      %v6067 = vadd.f32 %v5760, %v6024
      %v6068 = vadd.f32 %v5761, %v6027
      %v6069 = vadd.f32 %v5762, %v6030
      %v6070 = vadd.f32 %v5763, %v6033
      %v6071 = vld [vmem:[%s5] sm:$0x1]
      %v6073 = vperm.slane %v6071, 0
      %v6075 = vadd.f32 %v6035, %v6073
      %v6076 = vadd.f32 %v6036, %v6073
      %v6077 = vadd.f32 %v6037, %v6073
      %v6078 = vadd.f32 %v6038, %v6073
      %v6079 = vadd.f32 %v6039, %v6073
      %v6080 = vadd.f32 %v6040, %v6073
      %v6081 = vadd.f32 %v6041, %v6073
      %v6082 = vadd.f32 %v6042, %v6073
      %v6083 = vadd.f32 %v6043, %v6073
      %v6084 = vadd.f32 %v6044, %v6073
      %v6085 = vadd.f32 %v6045, %v6073
      %v6086 = vadd.f32 %v6046, %v6073
      %v6087 = vadd.f32 %v6047, %v6073
      %v6088 = vadd.f32 %v6048, %v6073
      %v6089 = vadd.f32 %v6049, %v6073
      %v6090 = vadd.f32 %v6050, %v6073
      %v6091 = vadd.f32 %v6051, %v6073
      %v6092 = vadd.f32 %v6052, %v6073
      %v6093 = vadd.f32 %v6053, %v6073
      %v6094 = vadd.f32 %v6054, %v6073
      %v6095 = vadd.f32 %v6055, %v6073
      %v6096 = vadd.f32 %v6056, %v6073
      %v6097 = vadd.f32 %v6057, %v6073
      %v6098 = vadd.f32 %v6058, %v6073
      %v6099 = vadd.f32 %v6059, %v6073
      %v6100 = vadd.f32 %v6060, %v6073
      %v6101 = vadd.f32 %v6061, %v6073
      %v6102 = vadd.f32 %v6062, %v6073
      %v6103 = vadd.f32 %v6063, %v6073
      %v6104 = vadd.f32 %v6064, %v6073
      %v6105 = vadd.f32 %v6065, %v6073
      %v6106 = vadd.f32 %v6066, %v6073
      %v6107 = vadd.f32 %v6067, %v6073
      %v6108 = vadd.f32 %v6068, %v6073
      %v6109 = vadd.f32 %v6069, %v6073
      %v6110 = vadd.f32 %v6070, %v6073
      %v6111 = vmax.f32 %v6075, 0.0
      %v6112 = vmax.f32 %v6076, 0.0
      %v6113 = vmax.f32 %v6077, 0.0
      %v6114 = vmax.f32 %v6078, 0.0
      %v6115 = vmax.f32 %v6079, 0.0
      %v6116 = vmax.f32 %v6080, 0.0
      %v6117 = vmax.f32 %v6081, 0.0
      %v6118 = vmax.f32 %v6082, 0.0
      %v6119 = vmax.f32 %v6083, 0.0
      %v6120 = vmax.f32 %v6084, 0.0
      %v6121 = vmax.f32 %v6085, 0.0
      %v6122 = vmax.f32 %v6086, 0.0
      %v6123 = vmax.f32 %v6087, 0.0
      %v6124 = vmax.f32 %v6088, 0.0
      %v6125 = vmax.f32 %v6089, 0.0
      %v6126 = vmax.f32 %v6090, 0.0
      %v6127 = vmax.f32 %v6091, 0.0
      %v6128 = vmax.f32 %v6092, 0.0
      %v6129 = vmax.f32 %v6093, 0.0
      %v6130 = vmax.f32 %v6094, 0.0
      %v6131 = vmax.f32 %v6095, 0.0
      %v6132 = vmax.f32 %v6096, 0.0
      %v6133 = vmax.f32 %v6097, 0.0
      %v6134 = vmax.f32 %v6098, 0.0
      %v6135 = vmax.f32 %v6099, 0.0
      %v6136 = vmax.f32 %v6100, 0.0
      %v6137 = vmax.f32 %v6101, 0.0
      %v6138 = vmax.f32 %v6102, 0.0
      %v6139 = vmax.f32 %v6103, 0.0
      %v6140 = vmax.f32 %v6104, 0.0
      %v6141 = vmax.f32 %v6105, 0.0
      %v6142 = vmax.f32 %v6106, 0.0
      %v6143 = vmax.f32 %v6107, 0.0
      %v6144 = vmax.f32 %v6108, 0.0
      %v6145 = vmax.f32 %v6109, 0.0
      %v6146 = vmax.f32 %v6110, 0.0
      %v6147 = vmul.f32 %v6111, %v3086
      %v6148 = vmul.f32 %v6112, %v3091
      %v6149 = vmul.f32 %v6113, %v3096
      %v6150 = vmul.f32 %v6114, %v3101
      %v6151 = vmul.f32 %v6115, %v3106
      %v6152 = vmul.f32 %v6116, %v3111
      %v6153 = vmul.f32 %v6117, %v3116
      %v6154 = vmul.f32 %v6118, %v3121
      %v6155 = vmul.f32 %v6119, %v3126
      %v6156 = vmul.f32 %v6120, %v3131
      %v6157 = vmul.f32 %v6121, %v3136
      %v6158 = vmul.f32 %v6122, %v3141
      %v6159 = vmul.f32 %v6123, %v3146
      %v6160 = vmul.f32 %v6124, %v3151
      %v6161 = vmul.f32 %v6125, %v3156
      %v6162 = vmul.f32 %v6126, %v3161
      %v6163 = vmul.f32 %v6127, %v3166
      %v6164 = vmul.f32 %v6128, %v3171
      %v6165 = vmul.f32 %v6129, %v3176
      %v6166 = vmul.f32 %v6130, %v3181
      %v6167 = vmul.f32 %v6131, %v3186
      %v6168 = vmul.f32 %v6132, %v3191
      %v6169 = vmul.f32 %v6133, %v3196
      %v6170 = vmul.f32 %v6134, %v3201
      %v6171 = vmul.f32 %v6135, %v3206
      %v6172 = vmul.f32 %v6136, %v3211
      %v6173 = vmul.f32 %v6137, %v3216
      %v6174 = vmul.f32 %v6138, %v3221
      %v6175 = vmul.f32 %v6139, %v3226
      %v6176 = vmul.f32 %v6140, %v3231
      %v6177 = vmul.f32 %v6141, %v3236
      %v6178 = vmul.f32 %v6142, %v3241
      %v6179 = vmul.f32 %v6143, %v3246
      %v6180 = vmul.f32 %v6144, %v3251
      %v6181 = vmul.f32 %v6145, %v3256
      %v6182 = vmul.f32 %v6146, %v3261
      %6183 = vst.msk [vmem:[%s251] sm:$0xff] %vm3299, %v6147
      %6184 = vst.msk [vmem:[%s251 + $0x8] sm:$0xff] %vm3299, %v6148
      %6185 = vst.msk [vmem:[%s251 + $0x10] sm:$0xff] %vm3299, %v6149
      %6186 = vst.msk [vmem:[%s251 + $0x18] sm:$0xff] %vm3299, %v6150
      %6187 = vst.msk [vmem:[%s251 + $0x20] sm:$0xff] %vm3299, %v6151
      %6188 = vst.msk [vmem:[%s251 + $0x28] sm:$0xff] %vm3299, %v6152
      %6189 = vst.msk [vmem:[%s251 + $0x30] sm:$0xff] %vm3299, %v6153
      %6190 = vst.msk [vmem:[%s251 + $0x38] sm:$0xff] %vm3299, %v6154
      %6191 = vst.msk [vmem:[%s251 + $0x40] sm:$0xff] %vm3299, %v6155
      %6192 = vst.msk [vmem:[%s251 + $0x48] sm:$0xff] %vm3299, %v6156
      %6193 = vst.msk [vmem:[%s251 + $0x50] sm:$0xff] %vm3299, %v6157
      %6194 = vst.msk [vmem:[%s251 + $0x58] sm:$0xff] %vm3299, %v6158
      %6195 = vst.msk [vmem:[%s251 + $0x60] sm:$0xff] %vm3299, %v6159
      %6196 = vst.msk [vmem:[%s251 + $0x68] sm:$0xff] %vm3299, %v6160
      %6197 = vst.msk [vmem:[%s251 + $0x70] sm:$0xff] %vm3299, %v6161
      %6198 = vst.msk [vmem:[%s251 + $0x78] sm:$0xff] %vm3299, %v6162
      %6199 = vst.msk [vmem:[%s251 + $0x80] sm:$0xff] %vm3299, %v6163
      %6200 = vst.msk [vmem:[%s251 + $0x88] sm:$0xff] %vm3299, %v6164
      %6201 = vst.msk [vmem:[%s251 + $0x90] sm:$0xff] %vm3299, %v6165
      %6202 = vst.msk [vmem:[%s251 + $0x98] sm:$0xff] %vm3299, %v6166
      %6203 = vst.msk [vmem:[%s251 + $0xa0] sm:$0xff] %vm3299, %v6167
      %6204 = vst.msk [vmem:[%s251 + $0xa8] sm:$0xff] %vm3299, %v6168
      %6205 = vst.msk [vmem:[%s251 + $0xb0] sm:$0xff] %vm3299, %v6169
      %6206 = vst.msk [vmem:[%s251 + $0xb8] sm:$0xff] %vm3299, %v6170
      %6207 = vst.msk [vmem:[%s251 + $0xc0] sm:$0xff] %vm3299, %v6171
      %6208 = vst.msk [vmem:[%s251 + $0xc8] sm:$0xff] %vm3299, %v6172
      %6209 = vst.msk [vmem:[%s251 + $0xd0] sm:$0xff] %vm3299, %v6173
      %6210 = vst.msk [vmem:[%s251 + $0xd8] sm:$0xff] %vm3299, %v6174
      %6211 = vst.msk [vmem:[%s251 + $0xe0] sm:$0xff] %vm3299, %v6175
      %6212 = vst.msk [vmem:[%s251 + $0xe8] sm:$0xff] %vm3299, %v6176
      %6213 = vst.msk [vmem:[%s251 + $0xf0] sm:$0xff] %vm3299, %v6177
      %6214 = vst.msk [vmem:[%s251 + $0xf8] sm:$0xff] %vm3299, %v6178
      %6215 = vst.msk [vmem:[%s251 + $0x100] sm:$0xff] %vm3299, %v6179
      %6216 = vst.msk [vmem:[%s251 + $0x108] sm:$0xff] %vm3299, %v6180
      %6217 = vst.msk [vmem:[%s251 + $0x110] sm:$0xff] %vm3299, %v6181
      %6218 = vst.msk [vmem:[%s251 + $0x118] sm:$0xff] %vm3299, %v6182
      %p6219 = scmp.lt.s32.totalorder %s17, 1
      %s6220 = scalar_select %p6219, %s17, 1
      %s6221 = smul.addr %s6220, 36
      %s6222 = smul.addr %s6221, 8
      %s6223 = scalar_lea.vmem %s6, %s6222
      // Predicated region
      $region45: #{fe_forward.7} parent=43 // pred_check
        %p6224 = pneg %p166
      $region46: #{fe_forward.7} parent=43 // pred_check_branch
        %6226 = sbr.rel (%p6224) target = $region48
      $region47: #{fe_forward.7} parent=43 // pred_region
        _
      $region48: #{fe_forward.7} parent=43 // pred_fallthru
        _
    $region44: #{fe_forward.7} parent=5 // pred_fallthru
      _
    %p6227 = scmp.le.s32.totalorder 2, %s12
    // Predicated region
    $region49: #{fe_forward.7} parent=5 // pred_check
      %p6228 = pneg %p6227
    $region50: #{fe_forward.7} parent=5 // pred_check_branch
      %6230 = sbr.rel (%p6228) target = $region52
    $region51: #{fe_forward.7} parent=5 // pred_region
      %s6231 = ssub.s32 %s12, 2
      // Predicated region
      $region53: #{fe_forward.7} parent=51 // pred_check
        %p6232 = pneg %p172
      $region54: #{fe_forward.7} parent=51 // pred_check_branch
        %6234 = sbr.rel (%p6232) target = $region56
      $region55: #{fe_forward.7} parent=51 // pred_region
        %p6235 = scmp.lt.s32.totalorder %s18, 1
        %s6236 = scalar_select %p6235, %s18, 1
        %s6237 = smul.addr %s6236, 36
        %s6238 = smul.addr %s6237, 8
        %s6239 = scalar_lea.vmem %s6, %s6238
      $region56: #{fe_forward.7} parent=51 // pred_fallthru
        _
    $region52: #{fe_forward.7} parent=5 // pred_fallthru
      _
  $region6: #{fe_forward.7} parent=0 // loop_footer
    %s16 = sadd.s32 1, %s12
  $region7: #{fe_forward.7} parent=0 // loop_footer_branch
    %11 = sbr.rel target = $region3
  $region8: #{fe_forward.7} parent=0 // loop_exit
    _

</llo_original>
